<compile_context>
chip_gen: v7x
topology: tpu7x:2x2x1
jax: 0.10.0
libtpu: 0.0.40
codegen_flags: <defaults>
</compile_context>

<pallas_src>
import functools

import numpy as np
import jax
import jax.numpy as jnp
from jax.experimental import pallas as pl
from jax.experimental.pallas import tpu as pltpu


# ----------------------------------------------------------------------------
# Trace-time constant builders (numpy): spatial selection matrices that turn
# every conv (and the folded 2x2 avg-pool) into plain MXU matmuls on
# channels-last (P, C) activations resident in VMEM.
# ----------------------------------------------------------------------------
def _pool_matrix(h, w):
    """(Ho*Wo, H*W) matrix implementing F.avg_pool2d(., 2) on an (H, W) map."""
    ho, wo = h // 2, w // 2
    a = np.zeros((ho * wo, h * w), np.float32)
    for oh in range(ho):
        for ow in range(wo):
            for dy in range(2):
                for dx in range(2):
                    a[oh * wo + ow, (2 * oh + dy) * w + (2 * ow + dx)] = 0.25
    return a, ho, wo


def _tap_selection_matrix(h, w, k, stride, pad):
    """(K*K*Ho*Wo, H*W) 0/1 matrix, rows stacked tap-major (t = ki*K + kj).

    Row block t selects, for every output position, the input pixel hit by
    kernel tap (ki, kj); entries that would read padding stay zero.
    """
    ho = (h + 2 * pad - k) // stride + 1
    wo = (w + 2 * pad - k) // stride + 1
    s = np.zeros((k * k * ho * wo, h * w), np.float32)
    for ki in range(k):
        for kj in range(k):
            t = ki * k + kj
            for oh in range(ho):
                for ow in range(wo):
                    ih = oh * stride - pad + ki
                    iw = ow * stride - pad + kj
                    if 0 <= ih < h and 0 <= iw < w:
                        s[t * ho * wo + oh * wo + ow, ih * w + iw] = 1.0
    return s, ho, wo


def _taps_weights(w):
    """(Cout, Cin, K, K) -> (K*K, Cin, Cout), tap-major to match selection rows."""
    cout, cin, k, _ = w.shape
    return jnp.transpose(w, (2, 3, 1, 0)).reshape(k * k, cin, cout)


# ----------------------------------------------------------------------------
# In-kernel helpers.
# ----------------------------------------------------------------------------
def _conv_taps(x, s_ref, w_ref):
    """Convolution as  sum_t (S_t @ x) @ W_t  on channels-last x (P_in, Cin).

    One stacked selection matmul (tap-major rows), then K*K small per-tap
    weight matmuls accumulated in f32.  Only static sublane slices are used.
    """
    n_taps = w_ref.shape[0]
    p_out = s_ref.shape[0] // n_taps
    patches = jnp.dot(s_ref[...], x, preferred_element_type=jnp.float32)
    acc = jnp.dot(patches[0:p_out], w_ref[0], preferred_element_type=jnp.float32)
    for t in range(1, n_taps):
        acc = acc + jnp.dot(patches[t * p_out:(t + 1) * p_out], w_ref[t],
                            preferred_element_type=jnp.float32)
    return acc


def _group_norm(y, gamma, beta, num_groups, eps):
    """GroupNorm on channels-last y (P, C); groups are contiguous channels."""
    p, c = y.shape
    cg = c // num_groups
    cnt = float(p * cg)
    col_sum = jnp.sum(y, axis=0, keepdims=True)          # (1, C)
    col_sq = jnp.sum(y * y, axis=0, keepdims=True)       # (1, C)
    gr = jax.lax.broadcasted_iota(jnp.int32, (num_groups, c), 0)
    ch = jax.lax.broadcasted_iota(jnp.int32, (num_groups, c), 1)
    mask = ((ch >= gr * cg) & (ch < (gr + 1) * cg)).astype(jnp.float32)  # (G, C)
    g_mean = jnp.sum(mask * col_sum, axis=1, keepdims=True) / cnt        # (G, 1)
    g_var = jnp.sum(mask * col_sq, axis=1, keepdims=True) / cnt - g_mean * g_mean
    g_inv = jax.lax.rsqrt(jnp.maximum(g_var, 0.0) + eps)
    mean_c = jnp.sum(mask * g_mean, axis=0, keepdims=True)               # (1, C)
    inv_c = jnp.sum(mask * g_inv, axis=0, keepdims=True)                 # (1, C)
    return (y - mean_c) * inv_c * gamma + beta


# ----------------------------------------------------------------------------
# Fused encoder kernel: one grid step == one image, entirely in VMEM.
# ----------------------------------------------------------------------------
def _encoder_kernel(x_ref,
                    s0, w0, g0, b0,      # stem (avg-pool folded in)
                    s1, w1, g1, b1,      # downsample 1x1 / s2
                    s2, w2, g2, b2,      # block conv1 3x3 / s2
                    s3, w3, g3, b3,      # block conv2 3x3 / s1
                    s4, w4, g4, b4,      # compression 3x3 / s1
                    o_ref, *, ngroups, eps):
    x = x_ref[0]                                                    # (H*W, Cin)

    # stem: [avg_pool2d(2) folded into s0] conv3x3/s2 + GN + ReLU
    y = _conv_taps(x, s0, w0)
    y = jnp.maximum(_group_norm(y, g0[...], b0[...], ngroups, eps), 0.0)

    # BasicBlock (stride 2): downsample path 1x1/s2 + GN
    idt = _group_norm(_conv_taps(y, s1, w1), g1[...], b1[...], ngroups, eps)

    # main path: conv1 3x3/s2 + GN + ReLU
    z = _conv_taps(y, s2, w2)
    z = jnp.maximum(_group_norm(z, g2[...], b2[...], ngroups, eps), 0.0)

    # conv2 3x3/s1 + GN, residual add, ReLU
    z = _group_norm(_conv_taps(z, s3, w3), g3[...], b3[...], ngroups, eps)
    z = jnp.maximum(z + idt, 0.0)

    # compression: conv3x3/s1 + GroupNorm(1, C) + ReLU   -> (P_final, 256)
    z = _conv_taps(z, s4, w4)
    z = jnp.maximum(_group_norm(z, g4[...], b4[...], 1, eps), 0.0)

    o_ref[0] = z.astype(o_ref.dtype)                                # lane-dense store


# ----------------------------------------------------------------------------
# ResNetEncoder.forward wrapper.
# ----------------------------------------------------------------------------
def resnet_encoder_forward(x, params, ngroups, eps=1e-5):
    N, cin, H, W = x.shape

    # Fold F.avg_pool2d(input, 2) into the stem's tap-selection matrix.
    pool, hp, wp = _pool_matrix(H, W)
    s_stem, ho1, wo1 = _tap_selection_matrix(hp, wp, 3, 2, 1)
    s_stem = (s_stem @ pool).astype(np.float32)                     # (9*P1, H*W)
    s_ds, ho2, wo2 = _tap_selection_matrix(ho1, wo1, 1, 2, 0)
    s_c1, _, _ = _tap_selection_matrix(ho1, wo1, 3, 2, 1)
    s_c2, _, _ = _tap_selection_matrix(ho2, wo2, 3, 1, 1)
    s_cmp, _, _ = _tap_selection_matrix(ho2, wo2, 3, 1, 1)

    cout = params["comp_w"].shape[0]
    p_fin = ho2 * wo2

    # Single layout conversion at the entry: NCHW -> channels-last (N, H*W, C).
    x_cl = jnp.transpose(x, (0, 2, 3, 1)).reshape(N, H * W, cin)

    operands = [
        x_cl,
        jnp.asarray(s_stem), _taps_weights(params["stem_w"]),
        params["stem_g"].reshape(1, -1), params["stem_b"].reshape(1, -1),
        jnp.asarray(s_ds), _taps_weights(params["ds_w"]),
        params["ds_g"].reshape(1, -1), params["ds_b"].reshape(1, -1),
        jnp.asarray(s_c1), _taps_weights(params["c1_w"]),
        params["c1_g"].reshape(1, -1), params["c1_b"].reshape(1, -1),
        jnp.asarray(s_c2), _taps_weights(params["c2_w"]),
        params["c2_g"].reshape(1, -1), params["c2_b"].reshape(1, -1),
        jnp.asarray(s_cmp), _taps_weights(params["comp_w"]),
        params["comp_g"].reshape(1, -1), params["comp_b"].reshape(1, -1),
    ]

    # Per-image block for the input; all weights/selection matrices are shared
    # full-array VMEM-resident blocks (constant index_map -> fetched once).
    in_specs = [pl.BlockSpec((1, H * W, cin), lambda n: (n, 0, 0))]
    for a in operands[1:]:
        in_specs.append(pl.BlockSpec(a.shape, lambda n, nd=a.ndim: (0,) * nd))

    kernel = functools.partial(_encoder_kernel, ngroups=ngroups, eps=eps)
    out = pl.pallas_call(
        kernel,
        out_shape=jax.ShapeDtypeStruct((N, p_fin, cout), x.dtype),
        grid=(N,),
        in_specs=in_specs,
        out_specs=pl.BlockSpec((1, p_fin, cout), lambda n: (n, 0, 0)),
        compiler_params=pltpu.CompilerParams(dimension_semantics=("parallel",)),
    )(*operands)

    # Single layout conversion at the exit: (N, P, C) -> NCHW.
    return jnp.transpose(out, (0, 2, 1)).reshape(N, cout, ho2, wo2)


# ----------------------------------------------------------------------------
# Parameter init (deterministic, kaiming-normal-like, gamma=1, beta=0).
# ----------------------------------------------------------------------------
def _kaiming(key, cout, cin, k):
    fan_in = cin * k * k
    std = (2.0 / fan_in) ** 0.5
    return std * jax.random.normal(key, (cout, cin, k, k), jnp.float32)


def init_params(key, in_channels, baseplanes, num_compression_channels):
    ks = jax.random.split(key, 5)
    c2 = baseplanes * 2
    return {
        "stem_w": _kaiming(ks[0], baseplanes, in_channels, 3),
        "stem_g": jnp.ones((baseplanes,), jnp.float32),
        "stem_b": jnp.zeros((baseplanes,), jnp.float32),
        "c1_w": _kaiming(ks[1], c2, baseplanes, 3),
        "c1_g": jnp.ones((c2,), jnp.float32), "c1_b": jnp.zeros((c2,), jnp.float32),
        "c2_w": _kaiming(ks[2], c2, c2, 3),
        "c2_g": jnp.ones((c2,), jnp.float32), "c2_b": jnp.zeros((c2,), jnp.float32),
        "ds_w": _kaiming(ks[3], c2, baseplanes, 1),
        "ds_g": jnp.ones((c2,), jnp.float32), "ds_b": jnp.zeros((c2,), jnp.float32),
        "comp_w": _kaiming(ks[4], num_compression_channels, c2, 3),
        "comp_g": jnp.ones((num_compression_channels,), jnp.float32),
        "comp_b": jnp.zeros((num_compression_channels,), jnp.float32),
    }


# ----------------------------------------------------------------------------
# Pure-JAX reference (for correctness check only).
# ----------------------------------------------------------------------------
def _ref_conv(x, w, stride, pad):
    return jax.lax.conv_general_dilated(
        x, w, (stride, stride), [(pad, pad), (pad, pad)],
        dimension_numbers=("NCHW", "OIHW", "NCHW"))


def _ref_gn(x, gamma, beta, num_groups, eps=1e-5):
    N, C, H, W = x.shape
    xg = x.reshape(N, num_groups, C // num_groups, H, W)
    mean = xg.mean(axis=(2, 3, 4), keepdims=True)
    var = ((xg - mean) ** 2).mean(axis=(2, 3, 4), keepdims=True)
    xn = ((xg - mean) / jnp.sqrt(var + eps)).reshape(N, C, H, W)
    return xn * gamma.reshape(1, C, 1, 1) + beta.reshape(1, C, 1, 1)


def ref_forward(x, p, ngroups):
    N, C, H, W = x.shape
    x = x.reshape(N, C, H // 2, 2, W // 2, 2).mean(axis=(3, 5))
    x = jax.nn.relu(_ref_gn(_ref_conv(x, p["stem_w"], 2, 1), p["stem_g"], p["stem_b"], ngroups))
    idt = _ref_gn(_ref_conv(x, p["ds_w"], 2, 0), p["ds_g"], p["ds_b"], ngroups)
    out = jax.nn.relu(_ref_gn(_ref_conv(x, p["c1_w"], 2, 1), p["c1_g"], p["c1_b"], ngroups))
    out = _ref_gn(_ref_conv(out, p["c2_w"], 1, 1), p["c2_g"], p["c2_b"], ngroups)
    out = jax.nn.relu(out + idt)
    out = jax.nn.relu(_ref_gn(_ref_conv(out, p["comp_w"], 1, 1), p["comp_g"], p["comp_b"], 1))
    return out


if __name__ == "__main__":
    key = jax.random.PRNGKey(0)
    # observation_space: panoramic_rgb (16, 32, 3) + panoramic_depth (16, 32, 1)
    N = 2
    H, W = 16, 32
    IN_C = 3 + 1                                   # rgb + depth channels
    spatial_size = H // 2                          # 8
    BASEPLANES, NGROUPS = 16, 4
    final_spatial_compress = 1.0 / 4.0             # tiny backbone: stem s2 + block s2
    final_spatial = int(spatial_size * final_spatial_compress)        # 2
    num_compression_channels = int(round(1024 / final_spatial ** 2))  # 256
    output_shape = (num_compression_channels, final_spatial, final_spatial * 2)

    k_in, k_par = jax.random.split(key)
    x = jax.random.normal(k_in, (N, IN_C, H, W), jnp.float32)
    params = init_params(k_par, IN_C, BASEPLANES, num_compression_channels)

    out = resnet_encoder_forward(x, params, NGROUPS)
    out = jax.block_until_ready(out)
    assert out.shape == (N,) + output_shape, out.shape

    ref = ref_forward(x, params, NGROUPS)
    err = float(jnp.max(jnp.abs(out - ref)))
    assert jnp.allclose(out, ref, rtol=1e-4, atol=1e-4), err

    print("KERNEL_OK")
</pallas_src>

<mosaic_0001>
module attributes {stable_mosaic.version = 11 : i64} {
  func.func @_encoder_kernel(%arg0: i32, %arg1: memref<1x512x4xf32, #tpu.memory_space<vmem>>, %arg2: memref<288x512xf32, #tpu.memory_space<vmem>>, %arg3: memref<9x4x16xf32, #tpu.memory_space<vmem>>, %arg4: memref<1x16xf32, #tpu.memory_space<vmem>>, %arg5: memref<1x16xf32, #tpu.memory_space<vmem>>, %arg6: memref<8x32xf32, #tpu.memory_space<vmem>>, %arg7: memref<1x16x32xf32, #tpu.memory_space<vmem>>, %arg8: memref<1x32xf32, #tpu.memory_space<vmem>>, %arg9: memref<1x32xf32, #tpu.memory_space<vmem>>, %arg10: memref<72x32xf32, #tpu.memory_space<vmem>>, %arg11: memref<9x16x32xf32, #tpu.memory_space<vmem>>, %arg12: memref<1x32xf32, #tpu.memory_space<vmem>>, %arg13: memref<1x32xf32, #tpu.memory_space<vmem>>, %arg14: memref<72x8xf32, #tpu.memory_space<vmem>>, %arg15: memref<9x32x32xf32, #tpu.memory_space<vmem>>, %arg16: memref<1x32xf32, #tpu.memory_space<vmem>>, %arg17: memref<1x32xf32, #tpu.memory_space<vmem>>, %arg18: memref<72x8xf32, #tpu.memory_space<vmem>>, %arg19: memref<9x32x256xf32, #tpu.memory_space<vmem>>, %arg20: memref<1x256xf32, #tpu.memory_space<vmem>>, %arg21: memref<1x256xf32, #tpu.memory_space<vmem>>, %arg22: memref<1x8x256xf32, #tpu.memory_space<vmem>>) attributes {dimension_semantics = [#tpu.dimension_semantics<parallel>], iteration_bounds = array<i64: 2>, scalar_prefetch = 0 : i64, scratch_operands = 0 : i64, tpu.core_type = #tpu.core_type<tc>, window_params = [{transform_indices = @transform_0, window_bounds = array<i64: 1, 512, 4>}, {pipeline_mode = #tpu.pipeline_mode<synchronous>, transform_indices = @transform_1, window_bounds = array<i64: 288, 512>}, {pipeline_mode = #tpu.pipeline_mode<synchronous>, transform_indices = @transform_2, window_bounds = array<i64: 9, 4, 16>}, {pipeline_mode = #tpu.pipeline_mode<synchronous>, transform_indices = @transform_3, window_bounds = array<i64: 1, 16>}, {pipeline_mode = #tpu.pipeline_mode<synchronous>, transform_indices = @transform_4, window_bounds = array<i64: 1, 16>}, {pipeline_mode = #tpu.pipeline_mode<synchronous>, transform_indices = @transform_5, window_bounds = array<i64: 8, 32>}, {pipeline_mode = #tpu.pipeline_mode<synchronous>, transform_indices = @transform_6, window_bounds = array<i64: 1, 16, 32>}, {pipeline_mode = #tpu.pipeline_mode<synchronous>, transform_indices = @transform_7, window_bounds = array<i64: 1, 32>}, {pipeline_mode = #tpu.pipeline_mode<synchronous>, transform_indices = @transform_8, window_bounds = array<i64: 1, 32>}, {pipeline_mode = #tpu.pipeline_mode<synchronous>, transform_indices = @transform_9, window_bounds = array<i64: 72, 32>}, {pipeline_mode = #tpu.pipeline_mode<synchronous>, transform_indices = @transform_10, window_bounds = array<i64: 9, 16, 32>}, {pipeline_mode = #tpu.pipeline_mode<synchronous>, transform_indices = @transform_11, window_bounds = array<i64: 1, 32>}, {pipeline_mode = #tpu.pipeline_mode<synchronous>, transform_indices = @transform_12, window_bounds = array<i64: 1, 32>}, {pipeline_mode = #tpu.pipeline_mode<synchronous>, transform_indices = @transform_13, window_bounds = array<i64: 72, 8>}, {pipeline_mode = #tpu.pipeline_mode<synchronous>, transform_indices = @transform_14, window_bounds = array<i64: 9, 32, 32>}, {pipeline_mode = #tpu.pipeline_mode<synchronous>, transform_indices = @transform_15, window_bounds = array<i64: 1, 32>}, {pipeline_mode = #tpu.pipeline_mode<synchronous>, transform_indices = @transform_16, window_bounds = array<i64: 1, 32>}, {pipeline_mode = #tpu.pipeline_mode<synchronous>, transform_indices = @transform_17, window_bounds = array<i64: 72, 8>}, {pipeline_mode = #tpu.pipeline_mode<synchronous>, transform_indices = @transform_18, window_bounds = array<i64: 9, 32, 256>}, {pipeline_mode = #tpu.pipeline_mode<synchronous>, transform_indices = @transform_19, window_bounds = array<i64: 1, 256>}, {pipeline_mode = #tpu.pipeline_mode<synchronous>, transform_indices = @transform_20, window_bounds = array<i64: 1, 256>}, {transform_indices = @transform_21, window_bounds = array<i64: 1, 8, 256>}]} {
    %c0 = arith.constant 0 : index
    %c0_0 = arith.constant 0 : index
    %c0_1 = arith.constant 0 : index
    %0 = vector.load %arg1[%c0, %c0_0, %c0_1] : memref<1x512x4xf32, #tpu.memory_space<vmem>>, vector<1x512x4xf32>
    %1 = vector.shape_cast %0 : vector<1x512x4xf32> to vector<512x4xf32>
    %c0_2 = arith.constant 0 : index
    %c0_3 = arith.constant 0 : index
    %2 = vector.load %arg2[%c0_2, %c0_3] : memref<288x512xf32, #tpu.memory_space<vmem>>, vector<288x512xf32>
    %cst = arith.constant dense<0.000000e+00> : vector<288x4xf32>
    %3 = tpu.matmul %2, %1, %cst {dimension_numbers = #tpu.dot_dimension_numbers<[1], [0], [0], [1], [0, 0, 1, 1], [], []>} : vector<288x512xf32>, vector<512x4xf32>, vector<288x4xf32> -> vector<288x4xf32>
    %4 = vector.extract_strided_slice %3 {offsets = [0, 0], sizes = [32, 4], strides = [1, 1]} : vector<288x4xf32> to vector<32x4xf32>
    %c0_4 = arith.constant 0 : index
    %c0_5 = arith.constant 0 : index
    %c0_6 = arith.constant 0 : index
    %5 = vector.load %arg3[%c0_4, %c0_5, %c0_6] : memref<9x4x16xf32, #tpu.memory_space<vmem>>, vector<1x4x16xf32>
    %6 = vector.shape_cast %5 : vector<1x4x16xf32> to vector<4x16xf32>
    %cst_7 = arith.constant dense<0.000000e+00> : vector<32x16xf32>
    %7 = tpu.matmul %4, %6, %cst_7 {dimension_numbers = #tpu.dot_dimension_numbers<[1], [0], [0], [1], [0, 0, 1, 1], [], []>} : vector<32x4xf32>, vector<4x16xf32>, vector<32x16xf32> -> vector<32x16xf32>
    %8 = vector.extract_strided_slice %3 {offsets = [32, 0], sizes = [32, 4], strides = [1, 1]} : vector<288x4xf32> to vector<32x4xf32>
    %c1 = arith.constant 1 : index
    %c0_8 = arith.constant 0 : index
    %c0_9 = arith.constant 0 : index
    %9 = vector.load %arg3[%c1, %c0_8, %c0_9] : memref<9x4x16xf32, #tpu.memory_space<vmem>>, vector<1x4x16xf32>
    %10 = vector.shape_cast %9 : vector<1x4x16xf32> to vector<4x16xf32>
    %cst_10 = arith.constant dense<0.000000e+00> : vector<32x16xf32>
    %11 = tpu.matmul %8, %10, %cst_10 {dimension_numbers = #tpu.dot_dimension_numbers<[1], [0], [0], [1], [0, 0, 1, 1], [], []>} : vector<32x4xf32>, vector<4x16xf32>, vector<32x16xf32> -> vector<32x16xf32>
    %12 = arith.addf %7, %11 : vector<32x16xf32>
    %13 = vector.extract_strided_slice %3 {offsets = [64, 0], sizes = [32, 4], strides = [1, 1]} : vector<288x4xf32> to vector<32x4xf32>
    %c2 = arith.constant 2 : index
    %c0_11 = arith.constant 0 : index
    %c0_12 = arith.constant 0 : index
    %14 = vector.load %arg3[%c2, %c0_11, %c0_12] : memref<9x4x16xf32, #tpu.memory_space<vmem>>, vector<1x4x16xf32>
    %15 = vector.shape_cast %14 : vector<1x4x16xf32> to vector<4x16xf32>
    %cst_13 = arith.constant dense<0.000000e+00> : vector<32x16xf32>
    %16 = tpu.matmul %13, %15, %cst_13 {dimension_numbers = #tpu.dot_dimension_numbers<[1], [0], [0], [1], [0, 0, 1, 1], [], []>} : vector<32x4xf32>, vector<4x16xf32>, vector<32x16xf32> -> vector<32x16xf32>
    %17 = arith.addf %12, %16 : vector<32x16xf32>
    %18 = vector.extract_strided_slice %3 {offsets = [96, 0], sizes = [32, 4], strides = [1, 1]} : vector<288x4xf32> to vector<32x4xf32>
    %c3 = arith.constant 3 : index
    %c0_14 = arith.constant 0 : index
    %c0_15 = arith.constant 0 : index
    %19 = vector.load %arg3[%c3, %c0_14, %c0_15] : memref<9x4x16xf32, #tpu.memory_space<vmem>>, vector<1x4x16xf32>
    %20 = vector.shape_cast %19 : vector<1x4x16xf32> to vector<4x16xf32>
    %cst_16 = arith.constant dense<0.000000e+00> : vector<32x16xf32>
    %21 = tpu.matmul %18, %20, %cst_16 {dimension_numbers = #tpu.dot_dimension_numbers<[1], [0], [0], [1], [0, 0, 1, 1], [], []>} : vector<32x4xf32>, vector<4x16xf32>, vector<32x16xf32> -> vector<32x16xf32>
    %22 = arith.addf %17, %21 : vector<32x16xf32>
    %23 = vector.extract_strided_slice %3 {offsets = [128, 0], sizes = [32, 4], strides = [1, 1]} : vector<288x4xf32> to vector<32x4xf32>
    %c4 = arith.constant 4 : index
    %c0_17 = arith.constant 0 : index
    %c0_18 = arith.constant 0 : index
    %24 = vector.load %arg3[%c4, %c0_17, %c0_18] : memref<9x4x16xf32, #tpu.memory_space<vmem>>, vector<1x4x16xf32>
    %25 = vector.shape_cast %24 : vector<1x4x16xf32> to vector<4x16xf32>
    %cst_19 = arith.constant dense<0.000000e+00> : vector<32x16xf32>
    %26 = tpu.matmul %23, %25, %cst_19 {dimension_numbers = #tpu.dot_dimension_numbers<[1], [0], [0], [1], [0, 0, 1, 1], [], []>} : vector<32x4xf32>, vector<4x16xf32>, vector<32x16xf32> -> vector<32x16xf32>
    %27 = arith.addf %22, %26 : vector<32x16xf32>
    %28 = vector.extract_strided_slice %3 {offsets = [160, 0], sizes = [32, 4], strides = [1, 1]} : vector<288x4xf32> to vector<32x4xf32>
    %c5 = arith.constant 5 : index
    %c0_20 = arith.constant 0 : index
    %c0_21 = arith.constant 0 : index
    %29 = vector.load %arg3[%c5, %c0_20, %c0_21] : memref<9x4x16xf32, #tpu.memory_space<vmem>>, vector<1x4x16xf32>
    %30 = vector.shape_cast %29 : vector<1x4x16xf32> to vector<4x16xf32>
    %cst_22 = arith.constant dense<0.000000e+00> : vector<32x16xf32>
    %31 = tpu.matmul %28, %30, %cst_22 {dimension_numbers = #tpu.dot_dimension_numbers<[1], [0], [0], [1], [0, 0, 1, 1], [], []>} : vector<32x4xf32>, vector<4x16xf32>, vector<32x16xf32> -> vector<32x16xf32>
    %32 = arith.addf %27, %31 : vector<32x16xf32>
    %33 = vector.extract_strided_slice %3 {offsets = [192, 0], sizes = [32, 4], strides = [1, 1]} : vector<288x4xf32> to vector<32x4xf32>
    %c6 = arith.constant 6 : index
    %c0_23 = arith.constant 0 : index
    %c0_24 = arith.constant 0 : index
    %34 = vector.load %arg3[%c6, %c0_23, %c0_24] : memref<9x4x16xf32, #tpu.memory_space<vmem>>, vector<1x4x16xf32>
    %35 = vector.shape_cast %34 : vector<1x4x16xf32> to vector<4x16xf32>
    %cst_25 = arith.constant dense<0.000000e+00> : vector<32x16xf32>
    %36 = tpu.matmul %33, %35, %cst_25 {dimension_numbers = #tpu.dot_dimension_numbers<[1], [0], [0], [1], [0, 0, 1, 1], [], []>} : vector<32x4xf32>, vector<4x16xf32>, vector<32x16xf32> -> vector<32x16xf32>
    %37 = arith.addf %32, %36 : vector<32x16xf32>
    %38 = vector.extract_strided_slice %3 {offsets = [224, 0], sizes = [32, 4], strides = [1, 1]} : vector<288x4xf32> to vector<32x4xf32>
    %c7 = arith.constant 7 : index
    %c0_26 = arith.constant 0 : index
    %c0_27 = arith.constant 0 : index
    %39 = vector.load %arg3[%c7, %c0_26, %c0_27] : memref<9x4x16xf32, #tpu.memory_space<vmem>>, vector<1x4x16xf32>
    %40 = vector.shape_cast %39 : vector<1x4x16xf32> to vector<4x16xf32>
    %cst_28 = arith.constant dense<0.000000e+00> : vector<32x16xf32>
    %41 = tpu.matmul %38, %40, %cst_28 {dimension_numbers = #tpu.dot_dimension_numbers<[1], [0], [0], [1], [0, 0, 1, 1], [], []>} : vector<32x4xf32>, vector<4x16xf32>, vector<32x16xf32> -> vector<32x16xf32>
    %42 = arith.addf %37, %41 : vector<32x16xf32>
    %43 = vector.extract_strided_slice %3 {offsets = [256, 0], sizes = [32, 4], strides = [1, 1]} : vector<288x4xf32> to vector<32x4xf32>
    %c8 = arith.constant 8 : index
    %c0_29 = arith.constant 0 : index
    %c0_30 = arith.constant 0 : index
    %44 = vector.load %arg3[%c8, %c0_29, %c0_30] : memref<9x4x16xf32, #tpu.memory_space<vmem>>, vector<1x4x16xf32>
    %45 = vector.shape_cast %44 : vector<1x4x16xf32> to vector<4x16xf32>
    %cst_31 = arith.constant dense<0.000000e+00> : vector<32x16xf32>
    %46 = tpu.matmul %43, %45, %cst_31 {dimension_numbers = #tpu.dot_dimension_numbers<[1], [0], [0], [1], [0, 0, 1, 1], [], []>} : vector<32x4xf32>, vector<4x16xf32>, vector<32x16xf32> -> vector<32x16xf32>
    %47 = arith.addf %42, %46 : vector<32x16xf32>
    %c0_32 = arith.constant 0 : index
    %c0_33 = arith.constant 0 : index
    %48 = vector.load %arg4[%c0_32, %c0_33] : memref<1x16xf32, #tpu.memory_space<vmem>>, vector<1x16xf32>
    %c0_34 = arith.constant 0 : index
    %c0_35 = arith.constant 0 : index
    %49 = vector.load %arg5[%c0_34, %c0_35] : memref<1x16xf32, #tpu.memory_space<vmem>>, vector<1x16xf32>
    %cst_36 = arith.constant dense<0.000000e+00> : vector<16xf32>
    %50 = vector.multi_reduction <add>, %47, %cst_36 [0] : vector<32x16xf32> to vector<16xf32>
    %51 = vector.shape_cast %50 : vector<16xf32> to vector<1x16xf32>
    %52 = arith.mulf %47, %47 : vector<32x16xf32>
    %cst_37 = arith.constant dense<0.000000e+00> : vector<16xf32>
    %53 = vector.multi_reduction <add>, %52, %cst_37 [0] : vector<32x16xf32> to vector<16xf32>
    %54 = vector.shape_cast %53 : vector<16xf32> to vector<1x16xf32>
    %55 = tpu.iota {dimensions = array<i32: 0>} : vector<4x16xi32>
    %56 = tpu.iota {dimensions = array<i32: 1>} : vector<4x16xi32>
    %c4_i32 = arith.constant 4 : i32
    %57 = vector.broadcast %c4_i32 : i32 to vector<4x16xi32>
    %58 = arith.muli %55, %57 : vector<4x16xi32>
    %59 = arith.cmpi sge, %56, %58 : vector<4x16xi32>
    %c1_i32 = arith.constant 1 : i32
    %60 = vector.broadcast %c1_i32 : i32 to vector<4x16xi32>
    %61 = arith.addi %55, %60 : vector<4x16xi32>
    %c4_i32_38 = arith.constant 4 : i32
    %62 = vector.broadcast %c4_i32_38 : i32 to vector<4x16xi32>
    %63 = arith.muli %61, %62 : vector<4x16xi32>
    %64 = arith.cmpi slt, %56, %63 : vector<4x16xi32>
    %65 = arith.andi %59, %64 : vector<4x16xi1>
    %66 = arith.extui %65 : vector<4x16xi1> to vector<4x16xi32>
    %67 = arith.sitofp %66 : vector<4x16xi32> to vector<4x16xf32>
    %68 = vector.broadcast %51 : vector<1x16xf32> to vector<4x16xf32>
    %69 = arith.mulf %67, %68 : vector<4x16xf32>
    %cst_39 = arith.constant dense<0.000000e+00> : vector<4xf32>
    %70 = vector.multi_reduction <add>, %69, %cst_39 [1] : vector<4x16xf32> to vector<4xf32>
    %71 = vector.shape_cast %70 : vector<4xf32> to vector<4x1xf32>
    %cst_40 = arith.constant 1.280000e+02 : f32
    %72 = vector.broadcast %cst_40 : f32 to vector<4x1xf32>
    %73 = arith.divf %71, %72 : vector<4x1xf32>
    %74 = vector.broadcast %54 : vector<1x16xf32> to vector<4x16xf32>
    %75 = arith.mulf %67, %74 : vector<4x16xf32>
    %cst_41 = arith.constant dense<0.000000e+00> : vector<4xf32>
    %76 = vector.multi_reduction <add>, %75, %cst_41 [1] : vector<4x16xf32> to vector<4xf32>
    %77 = vector.shape_cast %76 : vector<4xf32> to vector<4x1xf32>
    %cst_42 = arith.constant 1.280000e+02 : f32
    %78 = vector.broadcast %cst_42 : f32 to vector<4x1xf32>
    %79 = arith.divf %77, %78 : vector<4x1xf32>
    %80 = arith.mulf %73, %73 : vector<4x1xf32>
    %81 = arith.subf %79, %80 : vector<4x1xf32>
    %cst_43 = arith.constant 0.000000e+00 : f32
    %82 = vector.broadcast %cst_43 : f32 to vector<4x1xf32>
    %83 = arith.maximumf %81, %82 : vector<4x1xf32>
    %cst_44 = arith.constant 9.99999974E-6 : f32
    %84 = vector.broadcast %cst_44 : f32 to vector<4x1xf32>
    %85 = arith.addf %83, %84 : vector<4x1xf32>
    %86 = math.rsqrt %85 : vector<4x1xf32>
    %87 = vector.broadcast %73 : vector<4x1xf32> to vector<4x16xf32>
    %88 = arith.mulf %67, %87 : vector<4x16xf32>
    %cst_45 = arith.constant dense<0.000000e+00> : vector<16xf32>
    %89 = vector.multi_reduction <add>, %88, %cst_45 [0] : vector<4x16xf32> to vector<16xf32>
    %90 = vector.shape_cast %89 : vector<16xf32> to vector<1x16xf32>
    %91 = vector.broadcast %86 : vector<4x1xf32> to vector<4x16xf32>
    %92 = arith.mulf %67, %91 : vector<4x16xf32>
    %cst_46 = arith.constant dense<0.000000e+00> : vector<16xf32>
    %93 = vector.multi_reduction <add>, %92, %cst_46 [0] : vector<4x16xf32> to vector<16xf32>
    %94 = vector.shape_cast %93 : vector<16xf32> to vector<1x16xf32>
    %95 = vector.broadcast %90 : vector<1x16xf32> to vector<32x16xf32>
    %96 = arith.subf %47, %95 : vector<32x16xf32>
    %97 = vector.broadcast %94 : vector<1x16xf32> to vector<32x16xf32>
    %98 = arith.mulf %96, %97 : vector<32x16xf32>
    %99 = vector.broadcast %48 : vector<1x16xf32> to vector<32x16xf32>
    %100 = arith.mulf %98, %99 : vector<32x16xf32>
    %101 = vector.broadcast %49 : vector<1x16xf32> to vector<32x16xf32>
    %102 = arith.addf %100, %101 : vector<32x16xf32>
    %cst_47 = arith.constant 0.000000e+00 : f32
    %103 = vector.broadcast %cst_47 : f32 to vector<32x16xf32>
    %104 = arith.maximumf %102, %103 : vector<32x16xf32>
    %c0_48 = arith.constant 0 : index
    %c0_49 = arith.constant 0 : index
    %105 = vector.load %arg6[%c0_48, %c0_49] : memref<8x32xf32, #tpu.memory_space<vmem>>, vector<8x32xf32>
    %cst_50 = arith.constant dense<0.000000e+00> : vector<8x16xf32>
    %106 = tpu.matmul %105, %104, %cst_50 {dimension_numbers = #tpu.dot_dimension_numbers<[1], [0], [0], [1], [0, 0, 1, 1], [], []>} : vector<8x32xf32>, vector<32x16xf32>, vector<8x16xf32> -> vector<8x16xf32>
    %c0_51 = arith.constant 0 : index
    %c0_52 = arith.constant 0 : index
    %c0_53 = arith.constant 0 : index
    %107 = vector.load %arg7[%c0_51, %c0_52, %c0_53] : memref<1x16x32xf32, #tpu.memory_space<vmem>>, vector<1x16x32xf32>
    %108 = vector.shape_cast %107 : vector<1x16x32xf32> to vector<16x32xf32>
    %cst_54 = arith.constant dense<0.000000e+00> : vector<8x32xf32>
    %109 = tpu.matmul %106, %108, %cst_54 {dimension_numbers = #tpu.dot_dimension_numbers<[1], [0], [0], [1], [0, 0, 1, 1], [], []>} : vector<8x16xf32>, vector<16x32xf32>, vector<8x32xf32> -> vector<8x32xf32>
    %c0_55 = arith.constant 0 : index
    %c0_56 = arith.constant 0 : index
    %110 = vector.load %arg8[%c0_55, %c0_56] : memref<1x32xf32, #tpu.memory_space<vmem>>, vector<1x32xf32>
    %c0_57 = arith.constant 0 : index
    %c0_58 = arith.constant 0 : index
    %111 = vector.load %arg9[%c0_57, %c0_58] : memref<1x32xf32, #tpu.memory_space<vmem>>, vector<1x32xf32>
    %cst_59 = arith.constant dense<0.000000e+00> : vector<32xf32>
    %112 = vector.multi_reduction <add>, %109, %cst_59 [0] : vector<8x32xf32> to vector<32xf32>
    %113 = vector.shape_cast %112 : vector<32xf32> to vector<1x32xf32>
    %114 = arith.mulf %109, %109 : vector<8x32xf32>
    %cst_60 = arith.constant dense<0.000000e+00> : vector<32xf32>
    %115 = vector.multi_reduction <add>, %114, %cst_60 [0] : vector<8x32xf32> to vector<32xf32>
    %116 = vector.shape_cast %115 : vector<32xf32> to vector<1x32xf32>
    %117 = tpu.iota {dimensions = array<i32: 0>} : vector<4x32xi32>
    %118 = tpu.iota {dimensions = array<i32: 1>} : vector<4x32xi32>
    %c8_i32 = arith.constant 8 : i32
    %119 = vector.broadcast %c8_i32 : i32 to vector<4x32xi32>
    %120 = arith.muli %117, %119 : vector<4x32xi32>
    %121 = arith.cmpi sge, %118, %120 : vector<4x32xi32>
    %c1_i32_61 = arith.constant 1 : i32
    %122 = vector.broadcast %c1_i32_61 : i32 to vector<4x32xi32>
    %123 = arith.addi %117, %122 : vector<4x32xi32>
    %c8_i32_62 = arith.constant 8 : i32
    %124 = vector.broadcast %c8_i32_62 : i32 to vector<4x32xi32>
    %125 = arith.muli %123, %124 : vector<4x32xi32>
    %126 = arith.cmpi slt, %118, %125 : vector<4x32xi32>
    %127 = arith.andi %121, %126 : vector<4x32xi1>
    %128 = arith.extui %127 : vector<4x32xi1> to vector<4x32xi32>
    %129 = arith.sitofp %128 : vector<4x32xi32> to vector<4x32xf32>
    %130 = vector.broadcast %113 : vector<1x32xf32> to vector<4x32xf32>
    %131 = arith.mulf %129, %130 : vector<4x32xf32>
    %cst_63 = arith.constant dense<0.000000e+00> : vector<4xf32>
    %132 = vector.multi_reduction <add>, %131, %cst_63 [1] : vector<4x32xf32> to vector<4xf32>
    %133 = vector.shape_cast %132 : vector<4xf32> to vector<4x1xf32>
    %cst_64 = arith.constant 6.400000e+01 : f32
    %134 = vector.broadcast %cst_64 : f32 to vector<4x1xf32>
    %135 = arith.divf %133, %134 : vector<4x1xf32>
    %136 = vector.broadcast %116 : vector<1x32xf32> to vector<4x32xf32>
    %137 = arith.mulf %129, %136 : vector<4x32xf32>
    %cst_65 = arith.constant dense<0.000000e+00> : vector<4xf32>
    %138 = vector.multi_reduction <add>, %137, %cst_65 [1] : vector<4x32xf32> to vector<4xf32>
    %139 = vector.shape_cast %138 : vector<4xf32> to vector<4x1xf32>
    %cst_66 = arith.constant 6.400000e+01 : f32
    %140 = vector.broadcast %cst_66 : f32 to vector<4x1xf32>
    %141 = arith.divf %139, %140 : vector<4x1xf32>
    %142 = arith.mulf %135, %135 : vector<4x1xf32>
    %143 = arith.subf %141, %142 : vector<4x1xf32>
    %cst_67 = arith.constant 0.000000e+00 : f32
    %144 = vector.broadcast %cst_67 : f32 to vector<4x1xf32>
    %145 = arith.maximumf %143, %144 : vector<4x1xf32>
    %cst_68 = arith.constant 9.99999974E-6 : f32
    %146 = vector.broadcast %cst_68 : f32 to vector<4x1xf32>
    %147 = arith.addf %145, %146 : vector<4x1xf32>
    %148 = math.rsqrt %147 : vector<4x1xf32>
    %149 = vector.broadcast %135 : vector<4x1xf32> to vector<4x32xf32>
    %150 = arith.mulf %129, %149 : vector<4x32xf32>
    %cst_69 = arith.constant dense<0.000000e+00> : vector<32xf32>
    %151 = vector.multi_reduction <add>, %150, %cst_69 [0] : vector<4x32xf32> to vector<32xf32>
    %152 = vector.shape_cast %151 : vector<32xf32> to vector<1x32xf32>
    %153 = vector.broadcast %148 : vector<4x1xf32> to vector<4x32xf32>
    %154 = arith.mulf %129, %153 : vector<4x32xf32>
    %cst_70 = arith.constant dense<0.000000e+00> : vector<32xf32>
    %155 = vector.multi_reduction <add>, %154, %cst_70 [0] : vector<4x32xf32> to vector<32xf32>
    %156 = vector.shape_cast %155 : vector<32xf32> to vector<1x32xf32>
    %157 = vector.broadcast %152 : vector<1x32xf32> to vector<8x32xf32>
    %158 = arith.subf %109, %157 : vector<8x32xf32>
    %159 = vector.broadcast %156 : vector<1x32xf32> to vector<8x32xf32>
    %160 = arith.mulf %158, %159 : vector<8x32xf32>
    %161 = vector.broadcast %110 : vector<1x32xf32> to vector<8x32xf32>
    %162 = arith.mulf %160, %161 : vector<8x32xf32>
    %163 = vector.broadcast %111 : vector<1x32xf32> to vector<8x32xf32>
    %164 = arith.addf %162, %163 : vector<8x32xf32>
    %c0_71 = arith.constant 0 : index
    %c0_72 = arith.constant 0 : index
    %165 = vector.load %arg10[%c0_71, %c0_72] : memref<72x32xf32, #tpu.memory_space<vmem>>, vector<72x32xf32>
    %cst_73 = arith.constant dense<0.000000e+00> : vector<72x16xf32>
    %166 = tpu.matmul %165, %104, %cst_73 {dimension_numbers = #tpu.dot_dimension_numbers<[1], [0], [0], [1], [0, 0, 1, 1], [], []>} : vector<72x32xf32>, vector<32x16xf32>, vector<72x16xf32> -> vector<72x16xf32>
    %167 = vector.extract_strided_slice %166 {offsets = [0, 0], sizes = [8, 16], strides = [1, 1]} : vector<72x16xf32> to vector<8x16xf32>
    %c0_74 = arith.constant 0 : index
    %c0_75 = arith.constant 0 : index
    %c0_76 = arith.constant 0 : index
    %168 = vector.load %arg11[%c0_74, %c0_75, %c0_76] : memref<9x16x32xf32, #tpu.memory_space<vmem>>, vector<1x16x32xf32>
    %169 = vector.shape_cast %168 : vector<1x16x32xf32> to vector<16x32xf32>
    %cst_77 = arith.constant dense<0.000000e+00> : vector<8x32xf32>
    %170 = tpu.matmul %167, %169, %cst_77 {dimension_numbers = #tpu.dot_dimension_numbers<[1], [0], [0], [1], [0, 0, 1, 1], [], []>} : vector<8x16xf32>, vector<16x32xf32>, vector<8x32xf32> -> vector<8x32xf32>
    %171 = vector.extract_strided_slice %166 {offsets = [8, 0], sizes = [8, 16], strides = [1, 1]} : vector<72x16xf32> to vector<8x16xf32>
    %c1_78 = arith.constant 1 : index
    %c0_79 = arith.constant 0 : index
    %c0_80 = arith.constant 0 : index
    %172 = vector.load %arg11[%c1_78, %c0_79, %c0_80] : memref<9x16x32xf32, #tpu.memory_space<vmem>>, vector<1x16x32xf32>
    %173 = vector.shape_cast %172 : vector<1x16x32xf32> to vector<16x32xf32>
    %cst_81 = arith.constant dense<0.000000e+00> : vector<8x32xf32>
    %174 = tpu.matmul %171, %173, %cst_81 {dimension_numbers = #tpu.dot_dimension_numbers<[1], [0], [0], [1], [0, 0, 1, 1], [], []>} : vector<8x16xf32>, vector<16x32xf32>, vector<8x32xf32> -> vector<8x32xf32>
    %175 = arith.addf %170, %174 : vector<8x32xf32>
    %176 = vector.extract_strided_slice %166 {offsets = [16, 0], sizes = [8, 16], strides = [1, 1]} : vector<72x16xf32> to vector<8x16xf32>
    %c2_82 = arith.constant 2 : index
    %c0_83 = arith.constant 0 : index
    %c0_84 = arith.constant 0 : index
    %177 = vector.load %arg11[%c2_82, %c0_83, %c0_84] : memref<9x16x32xf32, #tpu.memory_space<vmem>>, vector<1x16x32xf32>
    %178 = vector.shape_cast %177 : vector<1x16x32xf32> to vector<16x32xf32>
    %cst_85 = arith.constant dense<0.000000e+00> : vector<8x32xf32>
    %179 = tpu.matmul %176, %178, %cst_85 {dimension_numbers = #tpu.dot_dimension_numbers<[1], [0], [0], [1], [0, 0, 1, 1], [], []>} : vector<8x16xf32>, vector<16x32xf32>, vector<8x32xf32> -> vector<8x32xf32>
    %180 = arith.addf %175, %179 : vector<8x32xf32>
    %181 = vector.extract_strided_slice %166 {offsets = [24, 0], sizes = [8, 16], strides = [1, 1]} : vector<72x16xf32> to vector<8x16xf32>
    %c3_86 = arith.constant 3 : index
    %c0_87 = arith.constant 0 : index
    %c0_88 = arith.constant 0 : index
    %182 = vector.load %arg11[%c3_86, %c0_87, %c0_88] : memref<9x16x32xf32, #tpu.memory_space<vmem>>, vector<1x16x32xf32>
    %183 = vector.shape_cast %182 : vector<1x16x32xf32> to vector<16x32xf32>
    %cst_89 = arith.constant dense<0.000000e+00> : vector<8x32xf32>
    %184 = tpu.matmul %181, %183, %cst_89 {dimension_numbers = #tpu.dot_dimension_numbers<[1], [0], [0], [1], [0, 0, 1, 1], [], []>} : vector<8x16xf32>, vector<16x32xf32>, vector<8x32xf32> -> vector<8x32xf32>
    %185 = arith.addf %180, %184 : vector<8x32xf32>
    %186 = vector.extract_strided_slice %166 {offsets = [32, 0], sizes = [8, 16], strides = [1, 1]} : vector<72x16xf32> to vector<8x16xf32>
    %c4_90 = arith.constant 4 : index
    %c0_91 = arith.constant 0 : index
    %c0_92 = arith.constant 0 : index
    %187 = vector.load %arg11[%c4_90, %c0_91, %c0_92] : memref<9x16x32xf32, #tpu.memory_space<vmem>>, vector<1x16x32xf32>
    %188 = vector.shape_cast %187 : vector<1x16x32xf32> to vector<16x32xf32>
    %cst_93 = arith.constant dense<0.000000e+00> : vector<8x32xf32>
    %189 = tpu.matmul %186, %188, %cst_93 {dimension_numbers = #tpu.dot_dimension_numbers<[1], [0], [0], [1], [0, 0, 1, 1], [], []>} : vector<8x16xf32>, vector<16x32xf32>, vector<8x32xf32> -> vector<8x32xf32>
    %190 = arith.addf %185, %189 : vector<8x32xf32>
    %191 = vector.extract_strided_slice %166 {offsets = [40, 0], sizes = [8, 16], strides = [1, 1]} : vector<72x16xf32> to vector<8x16xf32>
    %c5_94 = arith.constant 5 : index
    %c0_95 = arith.constant 0 : index
    %c0_96 = arith.constant 0 : index
    %192 = vector.load %arg11[%c5_94, %c0_95, %c0_96] : memref<9x16x32xf32, #tpu.memory_space<vmem>>, vector<1x16x32xf32>
    %193 = vector.shape_cast %192 : vector<1x16x32xf32> to vector<16x32xf32>
    %cst_97 = arith.constant dense<0.000000e+00> : vector<8x32xf32>
    %194 = tpu.matmul %191, %193, %cst_97 {dimension_numbers = #tpu.dot_dimension_numbers<[1], [0], [0], [1], [0, 0, 1, 1], [], []>} : vector<8x16xf32>, vector<16x32xf32>, vector<8x32xf32> -> vector<8x32xf32>
    %195 = arith.addf %190, %194 : vector<8x32xf32>
    %196 = vector.extract_strided_slice %166 {offsets = [48, 0], sizes = [8, 16], strides = [1, 1]} : vector<72x16xf32> to vector<8x16xf32>
    %c6_98 = arith.constant 6 : index
    %c0_99 = arith.constant 0 : index
    %c0_100 = arith.constant 0 : index
    %197 = vector.load %arg11[%c6_98, %c0_99, %c0_100] : memref<9x16x32xf32, #tpu.memory_space<vmem>>, vector<1x16x32xf32>
    %198 = vector.shape_cast %197 : vector<1x16x32xf32> to vector<16x32xf32>
    %cst_101 = arith.constant dense<0.000000e+00> : vector<8x32xf32>
    %199 = tpu.matmul %196, %198, %cst_101 {dimension_numbers = #tpu.dot_dimension_numbers<[1], [0], [0], [1], [0, 0, 1, 1], [], []>} : vector<8x16xf32>, vector<16x32xf32>, vector<8x32xf32> -> vector<8x32xf32>
    %200 = arith.addf %195, %199 : vector<8x32xf32>
    %201 = vector.extract_strided_slice %166 {offsets = [56, 0], sizes = [8, 16], strides = [1, 1]} : vector<72x16xf32> to vector<8x16xf32>
    %c7_102 = arith.constant 7 : index
    %c0_103 = arith.constant 0 : index
    %c0_104 = arith.constant 0 : index
    %202 = vector.load %arg11[%c7_102, %c0_103, %c0_104] : memref<9x16x32xf32, #tpu.memory_space<vmem>>, vector<1x16x32xf32>
    %203 = vector.shape_cast %202 : vector<1x16x32xf32> to vector<16x32xf32>
    %cst_105 = arith.constant dense<0.000000e+00> : vector<8x32xf32>
    %204 = tpu.matmul %201, %203, %cst_105 {dimension_numbers = #tpu.dot_dimension_numbers<[1], [0], [0], [1], [0, 0, 1, 1], [], []>} : vector<8x16xf32>, vector<16x32xf32>, vector<8x32xf32> -> vector<8x32xf32>
    %205 = arith.addf %200, %204 : vector<8x32xf32>
    %206 = vector.extract_strided_slice %166 {offsets = [64, 0], sizes = [8, 16], strides = [1, 1]} : vector<72x16xf32> to vector<8x16xf32>
    %c8_106 = arith.constant 8 : index
    %c0_107 = arith.constant 0 : index
    %c0_108 = arith.constant 0 : index
    %207 = vector.load %arg11[%c8_106, %c0_107, %c0_108] : memref<9x16x32xf32, #tpu.memory_space<vmem>>, vector<1x16x32xf32>
    %208 = vector.shape_cast %207 : vector<1x16x32xf32> to vector<16x32xf32>
    %cst_109 = arith.constant dense<0.000000e+00> : vector<8x32xf32>
    %209 = tpu.matmul %206, %208, %cst_109 {dimension_numbers = #tpu.dot_dimension_numbers<[1], [0], [0], [1], [0, 0, 1, 1], [], []>} : vector<8x16xf32>, vector<16x32xf32>, vector<8x32xf32> -> vector<8x32xf32>
    %210 = arith.addf %205, %209 : vector<8x32xf32>
    %c0_110 = arith.constant 0 : index
    %c0_111 = arith.constant 0 : index
    %211 = vector.load %arg12[%c0_110, %c0_111] : memref<1x32xf32, #tpu.memory_space<vmem>>, vector<1x32xf32>
    %c0_112 = arith.constant 0 : index
    %c0_113 = arith.constant 0 : index
    %212 = vector.load %arg13[%c0_112, %c0_113] : memref<1x32xf32, #tpu.memory_space<vmem>>, vector<1x32xf32>
    %cst_114 = arith.constant dense<0.000000e+00> : vector<32xf32>
    %213 = vector.multi_reduction <add>, %210, %cst_114 [0] : vector<8x32xf32> to vector<32xf32>
    %214 = vector.shape_cast %213 : vector<32xf32> to vector<1x32xf32>
    %215 = arith.mulf %210, %210 : vector<8x32xf32>
    %cst_115 = arith.constant dense<0.000000e+00> : vector<32xf32>
    %216 = vector.multi_reduction <add>, %215, %cst_115 [0] : vector<8x32xf32> to vector<32xf32>
    %217 = vector.shape_cast %216 : vector<32xf32> to vector<1x32xf32>
    %218 = tpu.iota {dimensions = array<i32: 0>} : vector<4x32xi32>
    %219 = tpu.iota {dimensions = array<i32: 1>} : vector<4x32xi32>
    %c8_i32_116 = arith.constant 8 : i32
    %220 = vector.broadcast %c8_i32_116 : i32 to vector<4x32xi32>
    %221 = arith.muli %218, %220 : vector<4x32xi32>
    %222 = arith.cmpi sge, %219, %221 : vector<4x32xi32>
    %c1_i32_117 = arith.constant 1 : i32
    %223 = vector.broadcast %c1_i32_117 : i32 to vector<4x32xi32>
    %224 = arith.addi %218, %223 : vector<4x32xi32>
    %c8_i32_118 = arith.constant 8 : i32
    %225 = vector.broadcast %c8_i32_118 : i32 to vector<4x32xi32>
    %226 = arith.muli %224, %225 : vector<4x32xi32>
    %227 = arith.cmpi slt, %219, %226 : vector<4x32xi32>
    %228 = arith.andi %222, %227 : vector<4x32xi1>
    %229 = arith.extui %228 : vector<4x32xi1> to vector<4x32xi32>
    %230 = arith.sitofp %229 : vector<4x32xi32> to vector<4x32xf32>
    %231 = vector.broadcast %214 : vector<1x32xf32> to vector<4x32xf32>
    %232 = arith.mulf %230, %231 : vector<4x32xf32>
    %cst_119 = arith.constant dense<0.000000e+00> : vector<4xf32>
    %233 = vector.multi_reduction <add>, %232, %cst_119 [1] : vector<4x32xf32> to vector<4xf32>
    %234 = vector.shape_cast %233 : vector<4xf32> to vector<4x1xf32>
    %cst_120 = arith.constant 6.400000e+01 : f32
    %235 = vector.broadcast %cst_120 : f32 to vector<4x1xf32>
    %236 = arith.divf %234, %235 : vector<4x1xf32>
    %237 = vector.broadcast %217 : vector<1x32xf32> to vector<4x32xf32>
    %238 = arith.mulf %230, %237 : vector<4x32xf32>
    %cst_121 = arith.constant dense<0.000000e+00> : vector<4xf32>
    %239 = vector.multi_reduction <add>, %238, %cst_121 [1] : vector<4x32xf32> to vector<4xf32>
    %240 = vector.shape_cast %239 : vector<4xf32> to vector<4x1xf32>
    %cst_122 = arith.constant 6.400000e+01 : f32
    %241 = vector.broadcast %cst_122 : f32 to vector<4x1xf32>
    %242 = arith.divf %240, %241 : vector<4x1xf32>
    %243 = arith.mulf %236, %236 : vector<4x1xf32>
    %244 = arith.subf %242, %243 : vector<4x1xf32>
    %cst_123 = arith.constant 0.000000e+00 : f32
    %245 = vector.broadcast %cst_123 : f32 to vector<4x1xf32>
    %246 = arith.maximumf %244, %245 : vector<4x1xf32>
    %cst_124 = arith.constant 9.99999974E-6 : f32
    %247 = vector.broadcast %cst_124 : f32 to vector<4x1xf32>
    %248 = arith.addf %246, %247 : vector<4x1xf32>
    %249 = math.rsqrt %248 : vector<4x1xf32>
    %250 = vector.broadcast %236 : vector<4x1xf32> to vector<4x32xf32>
    %251 = arith.mulf %230, %250 : vector<4x32xf32>
    %cst_125 = arith.constant dense<0.000000e+00> : vector<32xf32>
    %252 = vector.multi_reduction <add>, %251, %cst_125 [0] : vector<4x32xf32> to vector<32xf32>
    %253 = vector.shape_cast %252 : vector<32xf32> to vector<1x32xf32>
    %254 = vector.broadcast %249 : vector<4x1xf32> to vector<4x32xf32>
    %255 = arith.mulf %230, %254 : vector<4x32xf32>
    %cst_126 = arith.constant dense<0.000000e+00> : vector<32xf32>
    %256 = vector.multi_reduction <add>, %255, %cst_126 [0] : vector<4x32xf32> to vector<32xf32>
    %257 = vector.shape_cast %256 : vector<32xf32> to vector<1x32xf32>
    %258 = vector.broadcast %253 : vector<1x32xf32> to vector<8x32xf32>
    %259 = arith.subf %210, %258 : vector<8x32xf32>
    %260 = vector.broadcast %257 : vector<1x32xf32> to vector<8x32xf32>
    %261 = arith.mulf %259, %260 : vector<8x32xf32>
    %262 = vector.broadcast %211 : vector<1x32xf32> to vector<8x32xf32>
    %263 = arith.mulf %261, %262 : vector<8x32xf32>
    %264 = vector.broadcast %212 : vector<1x32xf32> to vector<8x32xf32>
    %265 = arith.addf %263, %264 : vector<8x32xf32>
    %cst_127 = arith.constant 0.000000e+00 : f32
    %266 = vector.broadcast %cst_127 : f32 to vector<8x32xf32>
    %267 = arith.maximumf %265, %266 : vector<8x32xf32>
    %c0_128 = arith.constant 0 : index
    %c0_129 = arith.constant 0 : index
    %268 = vector.load %arg14[%c0_128, %c0_129] : memref<72x8xf32, #tpu.memory_space<vmem>>, vector<72x8xf32>
    %cst_130 = arith.constant dense<0.000000e+00> : vector<72x32xf32>
    %269 = tpu.matmul %268, %267, %cst_130 {dimension_numbers = #tpu.dot_dimension_numbers<[1], [0], [0], [1], [0, 0, 1, 1], [], []>} : vector<72x8xf32>, vector<8x32xf32>, vector<72x32xf32> -> vector<72x32xf32>
    %270 = vector.extract_strided_slice %269 {offsets = [0, 0], sizes = [8, 32], strides = [1, 1]} : vector<72x32xf32> to vector<8x32xf32>
    %c0_131 = arith.constant 0 : index
    %c0_132 = arith.constant 0 : index
    %c0_133 = arith.constant 0 : index
    %271 = vector.load %arg15[%c0_131, %c0_132, %c0_133] : memref<9x32x32xf32, #tpu.memory_space<vmem>>, vector<1x32x32xf32>
    %272 = vector.shape_cast %271 : vector<1x32x32xf32> to vector<32x32xf32>
    %cst_134 = arith.constant dense<0.000000e+00> : vector<8x32xf32>
    %273 = tpu.matmul %270, %272, %cst_134 {dimension_numbers = #tpu.dot_dimension_numbers<[1], [0], [0], [1], [0, 0, 1, 1], [], []>} : vector<8x32xf32>, vector<32x32xf32>, vector<8x32xf32> -> vector<8x32xf32>
    %274 = vector.extract_strided_slice %269 {offsets = [8, 0], sizes = [8, 32], strides = [1, 1]} : vector<72x32xf32> to vector<8x32xf32>
    %c1_135 = arith.constant 1 : index
    %c0_136 = arith.constant 0 : index
    %c0_137 = arith.constant 0 : index
    %275 = vector.load %arg15[%c1_135, %c0_136, %c0_137] : memref<9x32x32xf32, #tpu.memory_space<vmem>>, vector<1x32x32xf32>
    %276 = vector.shape_cast %275 : vector<1x32x32xf32> to vector<32x32xf32>
    %cst_138 = arith.constant dense<0.000000e+00> : vector<8x32xf32>
    %277 = tpu.matmul %274, %276, %cst_138 {dimension_numbers = #tpu.dot_dimension_numbers<[1], [0], [0], [1], [0, 0, 1, 1], [], []>} : vector<8x32xf32>, vector<32x32xf32>, vector<8x32xf32> -> vector<8x32xf32>
    %278 = arith.addf %273, %277 : vector<8x32xf32>
    %279 = vector.extract_strided_slice %269 {offsets = [16, 0], sizes = [8, 32], strides = [1, 1]} : vector<72x32xf32> to vector<8x32xf32>
    %c2_139 = arith.constant 2 : index
    %c0_140 = arith.constant 0 : index
    %c0_141 = arith.constant 0 : index
    %280 = vector.load %arg15[%c2_139, %c0_140, %c0_141] : memref<9x32x32xf32, #tpu.memory_space<vmem>>, vector<1x32x32xf32>
    %281 = vector.shape_cast %280 : vector<1x32x32xf32> to vector<32x32xf32>
    %cst_142 = arith.constant dense<0.000000e+00> : vector<8x32xf32>
    %282 = tpu.matmul %279, %281, %cst_142 {dimension_numbers = #tpu.dot_dimension_numbers<[1], [0], [0], [1], [0, 0, 1, 1], [], []>} : vector<8x32xf32>, vector<32x32xf32>, vector<8x32xf32> -> vector<8x32xf32>
    %283 = arith.addf %278, %282 : vector<8x32xf32>
    %284 = vector.extract_strided_slice %269 {offsets = [24, 0], sizes = [8, 32], strides = [1, 1]} : vector<72x32xf32> to vector<8x32xf32>
    %c3_143 = arith.constant 3 : index
    %c0_144 = arith.constant 0 : index
    %c0_145 = arith.constant 0 : index
    %285 = vector.load %arg15[%c3_143, %c0_144, %c0_145] : memref<9x32x32xf32, #tpu.memory_space<vmem>>, vector<1x32x32xf32>
    %286 = vector.shape_cast %285 : vector<1x32x32xf32> to vector<32x32xf32>
    %cst_146 = arith.constant dense<0.000000e+00> : vector<8x32xf32>
    %287 = tpu.matmul %284, %286, %cst_146 {dimension_numbers = #tpu.dot_dimension_numbers<[1], [0], [0], [1], [0, 0, 1, 1], [], []>} : vector<8x32xf32>, vector<32x32xf32>, vector<8x32xf32> -> vector<8x32xf32>
    %288 = arith.addf %283, %287 : vector<8x32xf32>
    %289 = vector.extract_strided_slice %269 {offsets = [32, 0], sizes = [8, 32], strides = [1, 1]} : vector<72x32xf32> to vector<8x32xf32>
    %c4_147 = arith.constant 4 : index
    %c0_148 = arith.constant 0 : index
    %c0_149 = arith.constant 0 : index
    %290 = vector.load %arg15[%c4_147, %c0_148, %c0_149] : memref<9x32x32xf32, #tpu.memory_space<vmem>>, vector<1x32x32xf32>
    %291 = vector.shape_cast %290 : vector<1x32x32xf32> to vector<32x32xf32>
    %cst_150 = arith.constant dense<0.000000e+00> : vector<8x32xf32>
    %292 = tpu.matmul %289, %291, %cst_150 {dimension_numbers = #tpu.dot_dimension_numbers<[1], [0], [0], [1], [0, 0, 1, 1], [], []>} : vector<8x32xf32>, vector<32x32xf32>, vector<8x32xf32> -> vector<8x32xf32>
    %293 = arith.addf %288, %292 : vector<8x32xf32>
    %294 = vector.extract_strided_slice %269 {offsets = [40, 0], sizes = [8, 32], strides = [1, 1]} : vector<72x32xf32> to vector<8x32xf32>
    %c5_151 = arith.constant 5 : index
    %c0_152 = arith.constant 0 : index
    %c0_153 = arith.constant 0 : index
    %295 = vector.load %arg15[%c5_151, %c0_152, %c0_153] : memref<9x32x32xf32, #tpu.memory_space<vmem>>, vector<1x32x32xf32>
    %296 = vector.shape_cast %295 : vector<1x32x32xf32> to vector<32x32xf32>
    %cst_154 = arith.constant dense<0.000000e+00> : vector<8x32xf32>
    %297 = tpu.matmul %294, %296, %cst_154 {dimension_numbers = #tpu.dot_dimension_numbers<[1], [0], [0], [1], [0, 0, 1, 1], [], []>} : vector<8x32xf32>, vector<32x32xf32>, vector<8x32xf32> -> vector<8x32xf32>
    %298 = arith.addf %293, %297 : vector<8x32xf32>
    %299 = vector.extract_strided_slice %269 {offsets = [48, 0], sizes = [8, 32], strides = [1, 1]} : vector<72x32xf32> to vector<8x32xf32>
    %c6_155 = arith.constant 6 : index
    %c0_156 = arith.constant 0 : index
    %c0_157 = arith.constant 0 : index
    %300 = vector.load %arg15[%c6_155, %c0_156, %c0_157] : memref<9x32x32xf32, #tpu.memory_space<vmem>>, vector<1x32x32xf32>
    %301 = vector.shape_cast %300 : vector<1x32x32xf32> to vector<32x32xf32>
    %cst_158 = arith.constant dense<0.000000e+00> : vector<8x32xf32>
    %302 = tpu.matmul %299, %301, %cst_158 {dimension_numbers = #tpu.dot_dimension_numbers<[1], [0], [0], [1], [0, 0, 1, 1], [], []>} : vector<8x32xf32>, vector<32x32xf32>, vector<8x32xf32> -> vector<8x32xf32>
    %303 = arith.addf %298, %302 : vector<8x32xf32>
    %304 = vector.extract_strided_slice %269 {offsets = [56, 0], sizes = [8, 32], strides = [1, 1]} : vector<72x32xf32> to vector<8x32xf32>
    %c7_159 = arith.constant 7 : index
    %c0_160 = arith.constant 0 : index
    %c0_161 = arith.constant 0 : index
    %305 = vector.load %arg15[%c7_159, %c0_160, %c0_161] : memref<9x32x32xf32, #tpu.memory_space<vmem>>, vector<1x32x32xf32>
    %306 = vector.shape_cast %305 : vector<1x32x32xf32> to vector<32x32xf32>
    %cst_162 = arith.constant dense<0.000000e+00> : vector<8x32xf32>
    %307 = tpu.matmul %304, %306, %cst_162 {dimension_numbers = #tpu.dot_dimension_numbers<[1], [0], [0], [1], [0, 0, 1, 1], [], []>} : vector<8x32xf32>, vector<32x32xf32>, vector<8x32xf32> -> vector<8x32xf32>
    %308 = arith.addf %303, %307 : vector<8x32xf32>
    %309 = vector.extract_strided_slice %269 {offsets = [64, 0], sizes = [8, 32], strides = [1, 1]} : vector<72x32xf32> to vector<8x32xf32>
    %c8_163 = arith.constant 8 : index
    %c0_164 = arith.constant 0 : index
    %c0_165 = arith.constant 0 : index
    %310 = vector.load %arg15[%c8_163, %c0_164, %c0_165] : memref<9x32x32xf32, #tpu.memory_space<vmem>>, vector<1x32x32xf32>
    %311 = vector.shape_cast %310 : vector<1x32x32xf32> to vector<32x32xf32>
    %cst_166 = arith.constant dense<0.000000e+00> : vector<8x32xf32>
    %312 = tpu.matmul %309, %311, %cst_166 {dimension_numbers = #tpu.dot_dimension_numbers<[1], [0], [0], [1], [0, 0, 1, 1], [], []>} : vector<8x32xf32>, vector<32x32xf32>, vector<8x32xf32> -> vector<8x32xf32>
    %313 = arith.addf %308, %312 : vector<8x32xf32>
    %c0_167 = arith.constant 0 : index
    %c0_168 = arith.constant 0 : index
    %314 = vector.load %arg16[%c0_167, %c0_168] : memref<1x32xf32, #tpu.memory_space<vmem>>, vector<1x32xf32>
    %c0_169 = arith.constant 0 : index
    %c0_170 = arith.constant 0 : index
    %315 = vector.load %arg17[%c0_169, %c0_170] : memref<1x32xf32, #tpu.memory_space<vmem>>, vector<1x32xf32>
    %cst_171 = arith.constant dense<0.000000e+00> : vector<32xf32>
    %316 = vector.multi_reduction <add>, %313, %cst_171 [0] : vector<8x32xf32> to vector<32xf32>
    %317 = vector.shape_cast %316 : vector<32xf32> to vector<1x32xf32>
    %318 = arith.mulf %313, %313 : vector<8x32xf32>
    %cst_172 = arith.constant dense<0.000000e+00> : vector<32xf32>
    %319 = vector.multi_reduction <add>, %318, %cst_172 [0] : vector<8x32xf32> to vector<32xf32>
    %320 = vector.shape_cast %319 : vector<32xf32> to vector<1x32xf32>
    %321 = tpu.iota {dimensions = array<i32: 0>} : vector<4x32xi32>
    %322 = tpu.iota {dimensions = array<i32: 1>} : vector<4x32xi32>
    %c8_i32_173 = arith.constant 8 : i32
    %323 = vector.broadcast %c8_i32_173 : i32 to vector<4x32xi32>
    %324 = arith.muli %321, %323 : vector<4x32xi32>
    %325 = arith.cmpi sge, %322, %324 : vector<4x32xi32>
    %c1_i32_174 = arith.constant 1 : i32
    %326 = vector.broadcast %c1_i32_174 : i32 to vector<4x32xi32>
    %327 = arith.addi %321, %326 : vector<4x32xi32>
    %c8_i32_175 = arith.constant 8 : i32
    %328 = vector.broadcast %c8_i32_175 : i32 to vector<4x32xi32>
    %329 = arith.muli %327, %328 : vector<4x32xi32>
    %330 = arith.cmpi slt, %322, %329 : vector<4x32xi32>
    %331 = arith.andi %325, %330 : vector<4x32xi1>
    %332 = arith.extui %331 : vector<4x32xi1> to vector<4x32xi32>
    %333 = arith.sitofp %332 : vector<4x32xi32> to vector<4x32xf32>
    %334 = vector.broadcast %317 : vector<1x32xf32> to vector<4x32xf32>
    %335 = arith.mulf %333, %334 : vector<4x32xf32>
    %cst_176 = arith.constant dense<0.000000e+00> : vector<4xf32>
    %336 = vector.multi_reduction <add>, %335, %cst_176 [1] : vector<4x32xf32> to vector<4xf32>
    %337 = vector.shape_cast %336 : vector<4xf32> to vector<4x1xf32>
    %cst_177 = arith.constant 6.400000e+01 : f32
    %338 = vector.broadcast %cst_177 : f32 to vector<4x1xf32>
    %339 = arith.divf %337, %338 : vector<4x1xf32>
    %340 = vector.broadcast %320 : vector<1x32xf32> to vector<4x32xf32>
    %341 = arith.mulf %333, %340 : vector<4x32xf32>
    %cst_178 = arith.constant dense<0.000000e+00> : vector<4xf32>
    %342 = vector.multi_reduction <add>, %341, %cst_178 [1] : vector<4x32xf32> to vector<4xf32>
    %343 = vector.shape_cast %342 : vector<4xf32> to vector<4x1xf32>
    %cst_179 = arith.constant 6.400000e+01 : f32
    %344 = vector.broadcast %cst_179 : f32 to vector<4x1xf32>
    %345 = arith.divf %343, %344 : vector<4x1xf32>
    %346 = arith.mulf %339, %339 : vector<4x1xf32>
    %347 = arith.subf %345, %346 : vector<4x1xf32>
    %cst_180 = arith.constant 0.000000e+00 : f32
    %348 = vector.broadcast %cst_180 : f32 to vector<4x1xf32>
    %349 = arith.maximumf %347, %348 : vector<4x1xf32>
    %cst_181 = arith.constant 9.99999974E-6 : f32
    %350 = vector.broadcast %cst_181 : f32 to vector<4x1xf32>
    %351 = arith.addf %349, %350 : vector<4x1xf32>
    %352 = math.rsqrt %351 : vector<4x1xf32>
    %353 = vector.broadcast %339 : vector<4x1xf32> to vector<4x32xf32>
    %354 = arith.mulf %333, %353 : vector<4x32xf32>
    %cst_182 = arith.constant dense<0.000000e+00> : vector<32xf32>
    %355 = vector.multi_reduction <add>, %354, %cst_182 [0] : vector<4x32xf32> to vector<32xf32>
    %356 = vector.shape_cast %355 : vector<32xf32> to vector<1x32xf32>
    %357 = vector.broadcast %352 : vector<4x1xf32> to vector<4x32xf32>
    %358 = arith.mulf %333, %357 : vector<4x32xf32>
    %cst_183 = arith.constant dense<0.000000e+00> : vector<32xf32>
    %359 = vector.multi_reduction <add>, %358, %cst_183 [0] : vector<4x32xf32> to vector<32xf32>
    %360 = vector.shape_cast %359 : vector<32xf32> to vector<1x32xf32>
    %361 = vector.broadcast %356 : vector<1x32xf32> to vector<8x32xf32>
    %362 = arith.subf %313, %361 : vector<8x32xf32>
    %363 = vector.broadcast %360 : vector<1x32xf32> to vector<8x32xf32>
    %364 = arith.mulf %362, %363 : vector<8x32xf32>
    %365 = vector.broadcast %314 : vector<1x32xf32> to vector<8x32xf32>
    %366 = arith.mulf %364, %365 : vector<8x32xf32>
    %367 = vector.broadcast %315 : vector<1x32xf32> to vector<8x32xf32>
    %368 = arith.addf %366, %367 : vector<8x32xf32>
    %369 = arith.addf %368, %164 : vector<8x32xf32>
    %cst_184 = arith.constant 0.000000e+00 : f32
    %370 = vector.broadcast %cst_184 : f32 to vector<8x32xf32>
    %371 = arith.maximumf %369, %370 : vector<8x32xf32>
    %c0_185 = arith.constant 0 : index
    %c0_186 = arith.constant 0 : index
    %372 = vector.load %arg18[%c0_185, %c0_186] : memref<72x8xf32, #tpu.memory_space<vmem>>, vector<72x8xf32>
    %cst_187 = arith.constant dense<0.000000e+00> : vector<72x32xf32>
    %373 = tpu.matmul %372, %371, %cst_187 {dimension_numbers = #tpu.dot_dimension_numbers<[1], [0], [0], [1], [0, 0, 1, 1], [], []>} : vector<72x8xf32>, vector<8x32xf32>, vector<72x32xf32> -> vector<72x32xf32>
    %374 = vector.extract_strided_slice %373 {offsets = [0, 0], sizes = [8, 32], strides = [1, 1]} : vector<72x32xf32> to vector<8x32xf32>
    %c0_188 = arith.constant 0 : index
    %c0_189 = arith.constant 0 : index
    %c0_190 = arith.constant 0 : index
    %375 = vector.load %arg19[%c0_188, %c0_189, %c0_190] : memref<9x32x256xf32, #tpu.memory_space<vmem>>, vector<1x32x256xf32>
    %376 = vector.shape_cast %375 : vector<1x32x256xf32> to vector<32x256xf32>
    %cst_191 = arith.constant dense<0.000000e+00> : vector<8x256xf32>
    %377 = tpu.matmul %374, %376, %cst_191 {dimension_numbers = #tpu.dot_dimension_numbers<[1], [0], [0], [1], [0, 0, 1, 1], [], []>} : vector<8x32xf32>, vector<32x256xf32>, vector<8x256xf32> -> vector<8x256xf32>
    %378 = vector.extract_strided_slice %373 {offsets = [8, 0], sizes = [8, 32], strides = [1, 1]} : vector<72x32xf32> to vector<8x32xf32>
    %c1_192 = arith.constant 1 : index
    %c0_193 = arith.constant 0 : index
    %c0_194 = arith.constant 0 : index
    %379 = vector.load %arg19[%c1_192, %c0_193, %c0_194] : memref<9x32x256xf32, #tpu.memory_space<vmem>>, vector<1x32x256xf32>
    %380 = vector.shape_cast %379 : vector<1x32x256xf32> to vector<32x256xf32>
    %cst_195 = arith.constant dense<0.000000e+00> : vector<8x256xf32>
    %381 = tpu.matmul %378, %380, %cst_195 {dimension_numbers = #tpu.dot_dimension_numbers<[1], [0], [0], [1], [0, 0, 1, 1], [], []>} : vector<8x32xf32>, vector<32x256xf32>, vector<8x256xf32> -> vector<8x256xf32>
    %382 = arith.addf %377, %381 : vector<8x256xf32>
    %383 = vector.extract_strided_slice %373 {offsets = [16, 0], sizes = [8, 32], strides = [1, 1]} : vector<72x32xf32> to vector<8x32xf32>
    %c2_196 = arith.constant 2 : index
    %c0_197 = arith.constant 0 : index
    %c0_198 = arith.constant 0 : index
    %384 = vector.load %arg19[%c2_196, %c0_197, %c0_198] : memref<9x32x256xf32, #tpu.memory_space<vmem>>, vector<1x32x256xf32>
    %385 = vector.shape_cast %384 : vector<1x32x256xf32> to vector<32x256xf32>
    %cst_199 = arith.constant dense<0.000000e+00> : vector<8x256xf32>
    %386 = tpu.matmul %383, %385, %cst_199 {dimension_numbers = #tpu.dot_dimension_numbers<[1], [0], [0], [1], [0, 0, 1, 1], [], []>} : vector<8x32xf32>, vector<32x256xf32>, vector<8x256xf32> -> vector<8x256xf32>
    %387 = arith.addf %382, %386 : vector<8x256xf32>
    %388 = vector.extract_strided_slice %373 {offsets = [24, 0], sizes = [8, 32], strides = [1, 1]} : vector<72x32xf32> to vector<8x32xf32>
    %c3_200 = arith.constant 3 : index
    %c0_201 = arith.constant 0 : index
    %c0_202 = arith.constant 0 : index
    %389 = vector.load %arg19[%c3_200, %c0_201, %c0_202] : memref<9x32x256xf32, #tpu.memory_space<vmem>>, vector<1x32x256xf32>
    %390 = vector.shape_cast %389 : vector<1x32x256xf32> to vector<32x256xf32>
    %cst_203 = arith.constant dense<0.000000e+00> : vector<8x256xf32>
    %391 = tpu.matmul %388, %390, %cst_203 {dimension_numbers = #tpu.dot_dimension_numbers<[1], [0], [0], [1], [0, 0, 1, 1], [], []>} : vector<8x32xf32>, vector<32x256xf32>, vector<8x256xf32> -> vector<8x256xf32>
    %392 = arith.addf %387, %391 : vector<8x256xf32>
    %393 = vector.extract_strided_slice %373 {offsets = [32, 0], sizes = [8, 32], strides = [1, 1]} : vector<72x32xf32> to vector<8x32xf32>
    %c4_204 = arith.constant 4 : index
    %c0_205 = arith.constant 0 : index
    %c0_206 = arith.constant 0 : index
    %394 = vector.load %arg19[%c4_204, %c0_205, %c0_206] : memref<9x32x256xf32, #tpu.memory_space<vmem>>, vector<1x32x256xf32>
    %395 = vector.shape_cast %394 : vector<1x32x256xf32> to vector<32x256xf32>
    %cst_207 = arith.constant dense<0.000000e+00> : vector<8x256xf32>
    %396 = tpu.matmul %393, %395, %cst_207 {dimension_numbers = #tpu.dot_dimension_numbers<[1], [0], [0], [1], [0, 0, 1, 1], [], []>} : vector<8x32xf32>, vector<32x256xf32>, vector<8x256xf32> -> vector<8x256xf32>
    %397 = arith.addf %392, %396 : vector<8x256xf32>
    %398 = vector.extract_strided_slice %373 {offsets = [40, 0], sizes = [8, 32], strides = [1, 1]} : vector<72x32xf32> to vector<8x32xf32>
    %c5_208 = arith.constant 5 : index
    %c0_209 = arith.constant 0 : index
    %c0_210 = arith.constant 0 : index
    %399 = vector.load %arg19[%c5_208, %c0_209, %c0_210] : memref<9x32x256xf32, #tpu.memory_space<vmem>>, vector<1x32x256xf32>
    %400 = vector.shape_cast %399 : vector<1x32x256xf32> to vector<32x256xf32>
    %cst_211 = arith.constant dense<0.000000e+00> : vector<8x256xf32>
    %401 = tpu.matmul %398, %400, %cst_211 {dimension_numbers = #tpu.dot_dimension_numbers<[1], [0], [0], [1], [0, 0, 1, 1], [], []>} : vector<8x32xf32>, vector<32x256xf32>, vector<8x256xf32> -> vector<8x256xf32>
    %402 = arith.addf %397, %401 : vector<8x256xf32>
    %403 = vector.extract_strided_slice %373 {offsets = [48, 0], sizes = [8, 32], strides = [1, 1]} : vector<72x32xf32> to vector<8x32xf32>
    %c6_212 = arith.constant 6 : index
    %c0_213 = arith.constant 0 : index
    %c0_214 = arith.constant 0 : index
    %404 = vector.load %arg19[%c6_212, %c0_213, %c0_214] : memref<9x32x256xf32, #tpu.memory_space<vmem>>, vector<1x32x256xf32>
    %405 = vector.shape_cast %404 : vector<1x32x256xf32> to vector<32x256xf32>
    %cst_215 = arith.constant dense<0.000000e+00> : vector<8x256xf32>
    %406 = tpu.matmul %403, %405, %cst_215 {dimension_numbers = #tpu.dot_dimension_numbers<[1], [0], [0], [1], [0, 0, 1, 1], [], []>} : vector<8x32xf32>, vector<32x256xf32>, vector<8x256xf32> -> vector<8x256xf32>
    %407 = arith.addf %402, %406 : vector<8x256xf32>
    %408 = vector.extract_strided_slice %373 {offsets = [56, 0], sizes = [8, 32], strides = [1, 1]} : vector<72x32xf32> to vector<8x32xf32>
    %c7_216 = arith.constant 7 : index
    %c0_217 = arith.constant 0 : index
    %c0_218 = arith.constant 0 : index
    %409 = vector.load %arg19[%c7_216, %c0_217, %c0_218] : memref<9x32x256xf32, #tpu.memory_space<vmem>>, vector<1x32x256xf32>
    %410 = vector.shape_cast %409 : vector<1x32x256xf32> to vector<32x256xf32>
    %cst_219 = arith.constant dense<0.000000e+00> : vector<8x256xf32>
    %411 = tpu.matmul %408, %410, %cst_219 {dimension_numbers = #tpu.dot_dimension_numbers<[1], [0], [0], [1], [0, 0, 1, 1], [], []>} : vector<8x32xf32>, vector<32x256xf32>, vector<8x256xf32> -> vector<8x256xf32>
    %412 = arith.addf %407, %411 : vector<8x256xf32>
    %413 = vector.extract_strided_slice %373 {offsets = [64, 0], sizes = [8, 32], strides = [1, 1]} : vector<72x32xf32> to vector<8x32xf32>
    %c8_220 = arith.constant 8 : index
    %c0_221 = arith.constant 0 : index
    %c0_222 = arith.constant 0 : index
    %414 = vector.load %arg19[%c8_220, %c0_221, %c0_222] : memref<9x32x256xf32, #tpu.memory_space<vmem>>, vector<1x32x256xf32>
    %415 = vector.shape_cast %414 : vector<1x32x256xf32> to vector<32x256xf32>
    %cst_223 = arith.constant dense<0.000000e+00> : vector<8x256xf32>
    %416 = tpu.matmul %413, %415, %cst_223 {dimension_numbers = #tpu.dot_dimension_numbers<[1], [0], [0], [1], [0, 0, 1, 1], [], []>} : vector<8x32xf32>, vector<32x256xf32>, vector<8x256xf32> -> vector<8x256xf32>
    %417 = arith.addf %412, %416 : vector<8x256xf32>
    %c0_224 = arith.constant 0 : index
    %c0_225 = arith.constant 0 : index
    %418 = vector.load %arg20[%c0_224, %c0_225] : memref<1x256xf32, #tpu.memory_space<vmem>>, vector<1x256xf32>
    %c0_226 = arith.constant 0 : index
    %c0_227 = arith.constant 0 : index
    %419 = vector.load %arg21[%c0_226, %c0_227] : memref<1x256xf32, #tpu.memory_space<vmem>>, vector<1x256xf32>
    %cst_228 = arith.constant dense<0.000000e+00> : vector<256xf32>
    %420 = vector.multi_reduction <add>, %417, %cst_228 [0] : vector<8x256xf32> to vector<256xf32>
    %421 = vector.shape_cast %420 : vector<256xf32> to vector<1x256xf32>
    %422 = arith.mulf %417, %417 : vector<8x256xf32>
    %cst_229 = arith.constant dense<0.000000e+00> : vector<256xf32>
    %423 = vector.multi_reduction <add>, %422, %cst_229 [0] : vector<8x256xf32> to vector<256xf32>
    %424 = vector.shape_cast %423 : vector<256xf32> to vector<1x256xf32>
    %425 = tpu.iota {dimensions = array<i32: 0>} : vector<1x256xi32>
    %426 = tpu.iota {dimensions = array<i32: 1>} : vector<1x256xi32>
    %c256_i32 = arith.constant 256 : i32
    %427 = vector.broadcast %c256_i32 : i32 to vector<1x256xi32>
    %428 = arith.muli %425, %427 : vector<1x256xi32>
    %429 = arith.cmpi sge, %426, %428 : vector<1x256xi32>
    %c1_i32_230 = arith.constant 1 : i32
    %430 = vector.broadcast %c1_i32_230 : i32 to vector<1x256xi32>
    %431 = arith.addi %425, %430 : vector<1x256xi32>
    %c256_i32_231 = arith.constant 256 : i32
    %432 = vector.broadcast %c256_i32_231 : i32 to vector<1x256xi32>
    %433 = arith.muli %431, %432 : vector<1x256xi32>
    %434 = arith.cmpi slt, %426, %433 : vector<1x256xi32>
    %435 = arith.andi %429, %434 : vector<1x256xi1>
    %436 = arith.extui %435 : vector<1x256xi1> to vector<1x256xi32>
    %437 = arith.sitofp %436 : vector<1x256xi32> to vector<1x256xf32>
    %438 = arith.mulf %437, %421 : vector<1x256xf32>
    %cst_232 = arith.constant dense<0.000000e+00> : vector<1xf32>
    %439 = vector.multi_reduction <add>, %438, %cst_232 [1] : vector<1x256xf32> to vector<1xf32>
    %440 = vector.shape_cast %439 : vector<1xf32> to vector<1x1xf32>
    %cst_233 = arith.constant 2.048000e+03 : f32
    %441 = vector.broadcast %cst_233 : f32 to vector<1x1xf32>
    %442 = arith.divf %440, %441 : vector<1x1xf32>
    %443 = arith.mulf %437, %424 : vector<1x256xf32>
    %cst_234 = arith.constant dense<0.000000e+00> : vector<1xf32>
    %444 = vector.multi_reduction <add>, %443, %cst_234 [1] : vector<1x256xf32> to vector<1xf32>
    %445 = vector.shape_cast %444 : vector<1xf32> to vector<1x1xf32>
    %cst_235 = arith.constant 2.048000e+03 : f32
    %446 = vector.broadcast %cst_235 : f32 to vector<1x1xf32>
    %447 = arith.divf %445, %446 : vector<1x1xf32>
    %448 = arith.mulf %442, %442 : vector<1x1xf32>
    %449 = arith.subf %447, %448 : vector<1x1xf32>
    %cst_236 = arith.constant 0.000000e+00 : f32
    %450 = vector.broadcast %cst_236 : f32 to vector<1x1xf32>
    %451 = arith.maximumf %449, %450 : vector<1x1xf32>
    %cst_237 = arith.constant 9.99999974E-6 : f32
    %452 = vector.broadcast %cst_237 : f32 to vector<1x1xf32>
    %453 = arith.addf %451, %452 : vector<1x1xf32>
    %454 = math.rsqrt %453 : vector<1x1xf32>
    %455 = vector.broadcast %442 : vector<1x1xf32> to vector<1x256xf32>
    %456 = arith.mulf %437, %455 : vector<1x256xf32>
    %cst_238 = arith.constant dense<0.000000e+00> : vector<256xf32>
    %457 = vector.multi_reduction <add>, %456, %cst_238 [0] : vector<1x256xf32> to vector<256xf32>
    %458 = vector.shape_cast %457 : vector<256xf32> to vector<1x256xf32>
    %459 = vector.broadcast %454 : vector<1x1xf32> to vector<1x256xf32>
    %460 = arith.mulf %437, %459 : vector<1x256xf32>
    %cst_239 = arith.constant dense<0.000000e+00> : vector<256xf32>
    %461 = vector.multi_reduction <add>, %460, %cst_239 [0] : vector<1x256xf32> to vector<256xf32>
    %462 = vector.shape_cast %461 : vector<256xf32> to vector<1x256xf32>
    %463 = vector.broadcast %458 : vector<1x256xf32> to vector<8x256xf32>
    %464 = arith.subf %417, %463 : vector<8x256xf32>
    %465 = vector.broadcast %462 : vector<1x256xf32> to vector<8x256xf32>
    %466 = arith.mulf %464, %465 : vector<8x256xf32>
    %467 = vector.broadcast %418 : vector<1x256xf32> to vector<8x256xf32>
    %468 = arith.mulf %466, %467 : vector<8x256xf32>
    %469 = vector.broadcast %419 : vector<1x256xf32> to vector<8x256xf32>
    %470 = arith.addf %468, %469 : vector<8x256xf32>
    %cst_240 = arith.constant 0.000000e+00 : f32
    %471 = vector.broadcast %cst_240 : f32 to vector<8x256xf32>
    %472 = arith.maximumf %470, %471 : vector<8x256xf32>
    %c0_241 = arith.constant 0 : index
    %c0_242 = arith.constant 0 : index
    %c0_243 = arith.constant 0 : index
    %473 = vector.load %arg22[%c0_241, %c0_242, %c0_243] : memref<1x8x256xf32, #tpu.memory_space<vmem>>, vector<1x8x256xf32>
    %474 = vector.shape_cast %473 : vector<1x8x256xf32> to vector<8x256xf32>
    %475 = vector.shape_cast %472 : vector<8x256xf32> to vector<1x8x256xf32>
    tpu.vector_store %arg22[%c0_241, %c0_242, %c0_243], %475 {strides = array<i32>} : memref<1x8x256xf32, #tpu.memory_space<vmem>>, vector<1x8x256xf32>,
    return
  }
  func.func @transform_0(%arg0: i32) -> (i32, i32, i32) {
    %c0_i32 = arith.constant 0 : i32
    %c0_i32_0 = arith.constant 0 : i32
    %c0_i32_1 = arith.constant 0 : i32
    return %arg0, %c0_i32, %c0_i32_0 : i32, i32, i32
  }
  func.func @transform_1(%arg0: i32) -> (i32, i32) {
    %c0_i32 = arith.constant 0 : i32
    %c0_i32_0 = arith.constant 0 : i32
    %c0_i32_1 = arith.constant 0 : i32
    return %c0_i32, %c0_i32_0 : i32, i32
  }
  func.func @transform_2(%arg0: i32) -> (i32, i32, i32) {
    %c0_i32 = arith.constant 0 : i32
    %c0_i32_0 = arith.constant 0 : i32
    %c0_i32_1 = arith.constant 0 : i32
    %c0_i32_2 = arith.constant 0 : i32
    return %c0_i32, %c0_i32_0, %c0_i32_1 : i32, i32, i32
  }
  func.func @transform_3(%arg0: i32) -> (i32, i32) {
    %c0_i32 = arith.constant 0 : i32
    %c0_i32_0 = arith.constant 0 : i32
    %c0_i32_1 = arith.constant 0 : i32
    return %c0_i32, %c0_i32_0 : i32, i32
  }
  func.func @transform_4(%arg0: i32) -> (i32, i32) {
    %c0_i32 = arith.constant 0 : i32
    %c0_i32_0 = arith.constant 0 : i32
    %c0_i32_1 = arith.constant 0 : i32
    return %c0_i32, %c0_i32_0 : i32, i32
  }
  func.func @transform_5(%arg0: i32) -> (i32, i32) {
    %c0_i32 = arith.constant 0 : i32
    %c0_i32_0 = arith.constant 0 : i32
    %c0_i32_1 = arith.constant 0 : i32
    return %c0_i32, %c0_i32_0 : i32, i32
  }
  func.func @transform_6(%arg0: i32) -> (i32, i32, i32) {
    %c0_i32 = arith.constant 0 : i32
    %c0_i32_0 = arith.constant 0 : i32
    %c0_i32_1 = arith.constant 0 : i32
    %c0_i32_2 = arith.constant 0 : i32
    return %c0_i32, %c0_i32_0, %c0_i32_1 : i32, i32, i32
  }
  func.func @transform_7(%arg0: i32) -> (i32, i32) {
    %c0_i32 = arith.constant 0 : i32
    %c0_i32_0 = arith.constant 0 : i32
    %c0_i32_1 = arith.constant 0 : i32
    return %c0_i32, %c0_i32_0 : i32, i32
  }
  func.func @transform_8(%arg0: i32) -> (i32, i32) {
    %c0_i32 = arith.constant 0 : i32
    %c0_i32_0 = arith.constant 0 : i32
    %c0_i32_1 = arith.constant 0 : i32
    return %c0_i32, %c0_i32_0 : i32, i32
  }
  func.func @transform_9(%arg0: i32) -> (i32, i32) {
    %c0_i32 = arith.constant 0 : i32
    %c0_i32_0 = arith.constant 0 : i32
    %c0_i32_1 = arith.constant 0 : i32
    return %c0_i32, %c0_i32_0 : i32, i32
  }
  func.func @transform_10(%arg0: i32) -> (i32, i32, i32) {
    %c0_i32 = arith.constant 0 : i32
    %c0_i32_0 = arith.constant 0 : i32
    %c0_i32_1 = arith.constant 0 : i32
    %c0_i32_2 = arith.constant 0 : i32
    return %c0_i32, %c0_i32_0, %c0_i32_1 : i32, i32, i32
  }
  func.func @transform_11(%arg0: i32) -> (i32, i32) {
    %c0_i32 = arith.constant 0 : i32
    %c0_i32_0 = arith.constant 0 : i32
    %c0_i32_1 = arith.constant 0 : i32
    return %c0_i32, %c0_i32_0 : i32, i32
  }
  func.func @transform_12(%arg0: i32) -> (i32, i32) {
    %c0_i32 = arith.constant 0 : i32
    %c0_i32_0 = arith.constant 0 : i32
    %c0_i32_1 = arith.constant 0 : i32
    return %c0_i32, %c0_i32_0 : i32, i32
  }
  func.func @transform_13(%arg0: i32) -> (i32, i32) {
    %c0_i32 = arith.constant 0 : i32
    %c0_i32_0 = arith.constant 0 : i32
    %c0_i32_1 = arith.constant 0 : i32
    return %c0_i32, %c0_i32_0 : i32, i32
  }
  func.func @transform_14(%arg0: i32) -> (i32, i32, i32) {
    %c0_i32 = arith.constant 0 : i32
    %c0_i32_0 = arith.constant 0 : i32
    %c0_i32_1 = arith.constant 0 : i32
    %c0_i32_2 = arith.constant 0 : i32
    return %c0_i32, %c0_i32_0, %c0_i32_1 : i32, i32, i32
  }
  func.func @transform_15(%arg0: i32) -> (i32, i32) {
    %c0_i32 = arith.constant 0 : i32
    %c0_i32_0 = arith.constant 0 : i32
    %c0_i32_1 = arith.constant 0 : i32
    return %c0_i32, %c0_i32_0 : i32, i32
  }
  func.func @transform_16(%arg0: i32) -> (i32, i32) {
    %c0_i32 = arith.constant 0 : i32
    %c0_i32_0 = arith.constant 0 : i32
    %c0_i32_1 = arith.constant 0 : i32
    return %c0_i32, %c0_i32_0 : i32, i32
  }
  func.func @transform_17(%arg0: i32) -> (i32, i32) {
    %c0_i32 = arith.constant 0 : i32
    %c0_i32_0 = arith.constant 0 : i32
    %c0_i32_1 = arith.constant 0 : i32
    return %c0_i32, %c0_i32_0 : i32, i32
  }
  func.func @transform_18(%arg0: i32) -> (i32, i32, i32) {
    %c0_i32 = arith.constant 0 : i32
    %c0_i32_0 = arith.constant 0 : i32
    %c0_i32_1 = arith.constant 0 : i32
    %c0_i32_2 = arith.constant 0 : i32
    return %c0_i32, %c0_i32_0, %c0_i32_1 : i32, i32, i32
  }
  func.func @transform_19(%arg0: i32) -> (i32, i32) {
    %c0_i32 = arith.constant 0 : i32
    %c0_i32_0 = arith.constant 0 : i32
    %c0_i32_1 = arith.constant 0 : i32
    return %c0_i32, %c0_i32_0 : i32, i32
  }
  func.func @transform_20(%arg0: i32) -> (i32, i32) {
    %c0_i32 = arith.constant 0 : i32
    %c0_i32_0 = arith.constant 0 : i32
    %c0_i32_1 = arith.constant 0 : i32
    return %c0_i32, %c0_i32_0 : i32, i32
  }
  func.func @transform_21(%arg0: i32) -> (i32, i32, i32) {
    %c0_i32 = arith.constant 0 : i32
    %c0_i32_0 = arith.constant 0 : i32
    %c0_i32_1 = arith.constant 0 : i32
    return %arg0, %c0_i32, %c0_i32_0 : i32, i32, i32
  }
}

</mosaic_0001>

<llo_original>
// kernel: tpu_custom_call.1
$region0: #{tpu_custom_call.1}
  #allocation0 [shape = 'u32[]', space=smem, size = 0x4, offset = 0x4, fixed_abs, tag = 'smem constant byte address 0x4 - core index']
  #allocation1 [shape = 'u32[144,128]{1,0:T(1,128)}', space=vmem, size = 0x12000, scoped, tag = 'internal scratch']
  %s0 = inlined_call_operand.vmem [shape: f32[2,512,4], index: 0, kind: input, shape index: {}]
  %s1 = inlined_call_operand.vmem [shape: f32[288,512], index: 1, kind: input, shape index: {}]
  %s2 = inlined_call_operand.hbm [shape: f32[9,4,16], index: 2, kind: input, shape index: {}]
  %s3 = inlined_call_operand.vmem [shape: f32[1,16], index: 3, kind: input, shape index: {}]
  %s4 = inlined_call_operand.hbm [shape: f32[1,16], index: 4, kind: input, shape index: {}]
  %s5 = inlined_call_operand.vmem [shape: f32[8,32], index: 5, kind: input, shape index: {}]
  %s6 = inlined_call_operand.vmem [shape: f32[1,16,32], index: 6, kind: input, shape index: {}]
  %s7 = inlined_call_operand.hbm [shape: f32[1,32], index: 7, kind: input, shape index: {}]
  %s8 = inlined_call_operand.hbm [shape: f32[1,32], index: 8, kind: input, shape index: {}]
  %s9 = inlined_call_operand.vmem [shape: f32[72,32], index: 9, kind: input, shape index: {}]
  %s10 = inlined_call_operand.vmem [shape: f32[9,16,32], index: 10, kind: input, shape index: {}]
  %s11 = inlined_call_operand.hbm [shape: f32[1,32], index: 11, kind: input, shape index: {}]
  %s12 = inlined_call_operand.hbm [shape: f32[1,32], index: 12, kind: input, shape index: {}]
  %s13 = inlined_call_operand.vmem [shape: f32[72,8], index: 13, kind: input, shape index: {}]
  %s14 = inlined_call_operand.hbm [shape: f32[9,32,32], index: 14, kind: input, shape index: {}]
  %s15 = inlined_call_operand.hbm [shape: f32[1,32], index: 15, kind: input, shape index: {}]
  %s16 = inlined_call_operand.vmem [shape: f32[1,32], index: 16, kind: input, shape index: {}]
  %s17 = inlined_call_operand.vmem [shape: f32[72,8], index: 17, kind: input, shape index: {}]
  %s18 = inlined_call_operand.hbm [shape: f32[9,32,256], index: 18, kind: input, shape index: {}]
  %s19 = inlined_call_operand.vmem [shape: f32[1,256], index: 19, kind: input, shape index: {}]
  %s20 = inlined_call_operand.vmem [shape: f32[1,256], index: 20, kind: input, shape index: {}]
  %s21 = inlined_call_operand.hbm [shape: f32[2,8,256], index: 21, kind: output, shape index: {}]
  %s22 = sld [smem:[#allocation0]]
  $region153: #{tpu_custom_call.1} parent=0
    _
  %s24 = ssub.s32 1, %s22
  %s25 = scalar_select 0, %s24, %s22
  $region1: #{tpu_custom_call.1} parent=0
    #allocation2 [shape = 'u8[18432]{0}', space=vmem, size = 0x4800, scoped, tag = 'input window, operand 2, single buffered']
    #allocation3 [shape = 's32[2]{0}', space=sflag, size = 0x8, scoped, tag = 'scoped memory for tpu_custom_call.1']
    #allocation4 [shape = 's32[2]{0}', space=sflag, size = 0x8, scoped, tag = 'scoped memory for tpu_custom_call.1']
    #allocation5 [shape = 'u8[512]{0}', space=vmem, size = 0x400, scoped, tag = 'input window, operand 4, single buffered']
    #allocation6 [shape = 's32[1]{0}', space=sflag, size = 0x4, scoped, tag = 'scoped memory for tpu_custom_call.1']
    #allocation7 [shape = 'u8[512]{0}', space=vmem, size = 0x400, scoped, tag = 'input window, operand 7, single buffered']
    #allocation8 [shape = 'u8[512]{0}', space=vmem, size = 0x400, scoped, tag = 'input window, operand 8, single buffered']
    #allocation9 [shape = 's32[1]{0}', space=sflag, size = 0x4, scoped, tag = 'scoped memory for tpu_custom_call.1']
    #allocation10 [shape = 'u8[512]{0}', space=vmem, size = 0x400, scoped, tag = 'input window, operand 11, single buffered']
    #allocation11 [shape = 'u8[512]{0}', space=vmem, size = 0x400, scoped, tag = 'input window, operand 12, single buffered']
    #allocation12 [shape = 's32[1]{0}', space=sflag, size = 0x4, scoped, tag = 'scoped memory for tpu_custom_call.1']
    #allocation13 [shape = 'u8[147456]{0}', space=vmem, size = 0x24000, scoped, tag = 'input window, operand 14, single buffered']
    #allocation14 [shape = 'u8[512]{0}', space=vmem, size = 0x400, scoped, tag = 'input window, operand 15, single buffered']
    #allocation15 [shape = 's32[1]{0}', space=sflag, size = 0x4, scoped, tag = 'scoped memory for tpu_custom_call.1']
    #allocation16 [shape = 'u8[294912]{0}', space=vmem, size = 0x48000, scoped, tag = 'input window, operand 18, single buffered']
    #allocation17 [shape = 'u8[16384]{0}', space=vmem, size = 0x4000, scoped, tag = 'output window, operand 0']
    %26 = vsyncpa [#allocation3], 0
    %27 = vsyncpa [#allocation6], 0
    %28 = vsyncpa [#allocation9], 0
    %29 = vsyncpa [#allocation12], 0
    %30 = vsyncpa [#allocation15], 0
    %31 = vsyncpa [#allocation4], 0
    %s32 = scalar_lea.sflag [#allocation4], 1
    %33 = vsyncpa %s32, 0
    loop: start=0, step=1, limit=4
    $region2: #{tpu_custom_call.1} parent=1 // loop_pre_header
      _
    $region3: #{tpu_custom_call.1} parent=1 // loop_header
      %s35 = sphi 0, %s39
      %p36 = scmp.ge.s32.totalorder %s35, 4
      %s45 = sphi 0, %s47
      %s48 = sphi 0, %s45
      %s49 = sphi 0, %s48
      %s65 = sphi 0, %s49
      %s69 = sphi 0, %s69
      %s71 = sphi 0, %s69
      %s72 = sphi 0, %s71
      %s86 = sphi 0, %s72
      %s90 = sphi 0, %s90
      %s92 = sphi 0, %s90
      %s93 = sphi 0, %s92
      %s107 = sphi 0, %s93
      %s111 = sphi 0, %s111
      %s113 = sphi 0, %s111
      %s114 = sphi 0, %s113
      %s128 = sphi 0, %s114
      %s132 = sphi 0, %s132
      %s134 = sphi 0, %s132
      %s135 = sphi 0, %s134
      %s149 = sphi 0, %s135
      %s153 = sphi 0, %s153
      %s155 = sphi 0, %s153
      %s156 = sphi 0, %s155
      %s170 = sphi 0, %s156
      %s174 = sphi 0, %s174
      %s176 = sphi 0, %s174
      %s177 = sphi 0, %s176
      %s191 = sphi 0, %s177
      %s195 = sphi 0, %s195
      %s197 = sphi 0, %s195
      %s198 = sphi 0, %s197
      %s212 = sphi 0, %s198
      %s216 = sphi 0, %s216
      %s218 = sphi 0, %s216
      %s219 = sphi 0, %s218
      %s233 = sphi 0, %s219
      %s237 = sphi 0, %s237
      %s239 = sphi 0, %s237
      %s240 = sphi 0, %s239
      %s254 = sphi 0, %s240
      %s258 = sphi 0, %s258
      %s260 = sphi 0, %s258
      %s261 = sphi 0, %s260
      %s275 = sphi 0, %s261
      %s279 = sphi 0, %s279
      %s281 = sphi 0, %s279
      %s282 = sphi 0, %s281
      %s296 = sphi 0, %s282
      %s300 = sphi 0, %s300
      %s302 = sphi 0, %s300
      %s303 = sphi 0, %s302
      %s317 = sphi 0, %s303
      %s321 = sphi 0, %s321
      %s323 = sphi 0, %s321
      %s324 = sphi 0, %s323
      %s338 = sphi 0, %s324
      %s342 = sphi 0, %s342
      %s344 = sphi 0, %s342
      %s345 = sphi 0, %s344
      %s359 = sphi 0, %s345
      %s363 = sphi 0, %s363
      %s365 = sphi 0, %s363
      %s366 = sphi 0, %s365
      %s380 = sphi 0, %s366
      %s384 = sphi 0, %s384
      %s386 = sphi 0, %s384
      %s387 = sphi 0, %s386
      %s401 = sphi 0, %s387
      %s405 = sphi 0, %s405
      %s407 = sphi 0, %s405
      %s408 = sphi 0, %s407
      %s422 = sphi 0, %s408
      %s426 = sphi 0, %s426
      %s428 = sphi 0, %s426
      %s429 = sphi 0, %s428
      %s443 = sphi 0, %s429
      %s447 = sphi 0, %s447
      %s449 = sphi 0, %s447
      %s450 = sphi 0, %s449
      %s464 = sphi 0, %s450
      %s468 = sphi 0, %s468
      %s470 = sphi 0, %s468
      %s471 = sphi 0, %s470
      %s485 = sphi 0, %s471
      %s491 = sphi 0, %s493
      %s494 = sphi 0, %s491
      %s495 = sphi 0, %s494
      %s511 = sphi 0, %s495
    $region4: #{tpu_custom_call.1} parent=1 // loop_header_branch
      %38 = sbr.rel (%p36) target = $region8
    $region5: #{tpu_custom_call.1} parent=1 // loop_body
      %s40 = ssub.s32 %s35, 1
      %s41 = ssub.s32 %s35, 2
      %s42 = sadd.s32 %s35, 1
      %s43 = ssub.s32 %s35, %s42
      %p44 = scmp.eq.s32.totalorder %s43, 0
      %s46 = sadd.s32 %s45, 1
      %s47 = scalar_select %p44, %s45, %s46
      %p50 = pneg %p44
      %p51 = scmp.eq.s32.totalorder %s35, 1
      %p52 = por %p50, %p51
      %p53 = scmp.ne.s32.totalorder %s45, %s48
      %p54 = scmp.eq.s32.totalorder %s35, 0
      %p55 = por %p53, %p54
      %p56 = scmp.ne.s32.totalorder %s45, %s48
      %p57 = scmp.eq.s32.totalorder %s40, 1
      %p58 = por %p56, %p57
      %p59 = scmp.ne.s32.totalorder %s48, %s49
      %p60 = scmp.eq.s32.totalorder %s40, 0
      %p61 = por %p59, %p60
      %p62 = scmp.ne.s32.totalorder %s48, %s49
      %p63 = scmp.eq.s32.totalorder %s41, 1
      %p64 = por %p62, %p63
      %p66 = scmp.ne.s32.totalorder %s49, %s65
      %p67 = scmp.eq.s32.totalorder %s41, 0
      %p68 = por %p66, %p67
      %s70 = sadd.s32 %s69, 1
      %p73 = scmp.eq.s32.totalorder %s35, 1
      %p74 = scmp.ne.s32.totalorder %s69, %s71
      %p75 = scmp.eq.s32.totalorder %s35, 0
      %p76 = por %p74, %p75
      %p77 = scmp.ne.s32.totalorder %s69, %s71
      %p78 = scmp.eq.s32.totalorder %s40, 1
      %p79 = por %p77, %p78
      %p80 = scmp.ne.s32.totalorder %s71, %s72
      %p81 = scmp.eq.s32.totalorder %s40, 0
      %p82 = por %p80, %p81
      %p83 = scmp.ne.s32.totalorder %s71, %s72
      %p84 = scmp.eq.s32.totalorder %s41, 1
      %p85 = por %p83, %p84
      %p87 = scmp.ne.s32.totalorder %s72, %s86
      %p88 = scmp.eq.s32.totalorder %s41, 0
      %p89 = por %p87, %p88
      %s91 = sadd.s32 %s90, 1
      %p94 = scmp.eq.s32.totalorder %s35, 1
      %p95 = scmp.ne.s32.totalorder %s90, %s92
      %p96 = scmp.eq.s32.totalorder %s35, 0
      %p97 = por %p95, %p96
      %p98 = scmp.ne.s32.totalorder %s90, %s92
      %p99 = scmp.eq.s32.totalorder %s40, 1
      %p100 = por %p98, %p99
      %p101 = scmp.ne.s32.totalorder %s92, %s93
      %p102 = scmp.eq.s32.totalorder %s40, 0
      %p103 = por %p101, %p102
      %p104 = scmp.ne.s32.totalorder %s92, %s93
      %p105 = scmp.eq.s32.totalorder %s41, 1
      %p106 = por %p104, %p105
      %p108 = scmp.ne.s32.totalorder %s93, %s107
      %p109 = scmp.eq.s32.totalorder %s41, 0
      %p110 = por %p108, %p109
      %s112 = sadd.s32 %s111, 1
      %p115 = scmp.eq.s32.totalorder %s35, 1
      %p116 = scmp.ne.s32.totalorder %s111, %s113
      %p117 = scmp.eq.s32.totalorder %s35, 0
      %p118 = por %p116, %p117
      %p119 = scmp.ne.s32.totalorder %s111, %s113
      %p120 = scmp.eq.s32.totalorder %s40, 1
      %p121 = por %p119, %p120
      %p122 = scmp.ne.s32.totalorder %s113, %s114
      %p123 = scmp.eq.s32.totalorder %s40, 0
      %p124 = por %p122, %p123
      %p125 = scmp.ne.s32.totalorder %s113, %s114
      %p126 = scmp.eq.s32.totalorder %s41, 1
      %p127 = por %p125, %p126
      %p129 = scmp.ne.s32.totalorder %s114, %s128
      %p130 = scmp.eq.s32.totalorder %s41, 0
      %p131 = por %p129, %p130
      %s133 = sadd.s32 %s132, 1
      %p136 = scmp.eq.s32.totalorder %s35, 1
      %p137 = scmp.ne.s32.totalorder %s132, %s134
      %p138 = scmp.eq.s32.totalorder %s35, 0
      %p139 = por %p137, %p138
      %p140 = scmp.ne.s32.totalorder %s132, %s134
      %p141 = scmp.eq.s32.totalorder %s40, 1
      %p142 = por %p140, %p141
      %p143 = scmp.ne.s32.totalorder %s134, %s135
      %p144 = scmp.eq.s32.totalorder %s40, 0
      %p145 = por %p143, %p144
      %p146 = scmp.ne.s32.totalorder %s134, %s135
      %p147 = scmp.eq.s32.totalorder %s41, 1
      %p148 = por %p146, %p147
      %p150 = scmp.ne.s32.totalorder %s135, %s149
      %p151 = scmp.eq.s32.totalorder %s41, 0
      %p152 = por %p150, %p151
      %s154 = sadd.s32 %s153, 1
      %p157 = scmp.eq.s32.totalorder %s35, 1
      %p158 = scmp.ne.s32.totalorder %s153, %s155
      %p159 = scmp.eq.s32.totalorder %s35, 0
      %p160 = por %p158, %p159
      %p161 = scmp.ne.s32.totalorder %s153, %s155
      %p162 = scmp.eq.s32.totalorder %s40, 1
      %p163 = por %p161, %p162
      %p164 = scmp.ne.s32.totalorder %s155, %s156
      %p165 = scmp.eq.s32.totalorder %s40, 0
      %p166 = por %p164, %p165
      %p167 = scmp.ne.s32.totalorder %s155, %s156
      %p168 = scmp.eq.s32.totalorder %s41, 1
      %p169 = por %p167, %p168
      %p171 = scmp.ne.s32.totalorder %s156, %s170
      %p172 = scmp.eq.s32.totalorder %s41, 0
      %p173 = por %p171, %p172
      %s175 = sadd.s32 %s174, 1
      %p178 = scmp.eq.s32.totalorder %s35, 1
      %p179 = scmp.ne.s32.totalorder %s174, %s176
      %p180 = scmp.eq.s32.totalorder %s35, 0
      %p181 = por %p179, %p180
      %p182 = scmp.ne.s32.totalorder %s174, %s176
      %p183 = scmp.eq.s32.totalorder %s40, 1
      %p184 = por %p182, %p183
      %p185 = scmp.ne.s32.totalorder %s176, %s177
      %p186 = scmp.eq.s32.totalorder %s40, 0
      %p187 = por %p185, %p186
      %p188 = scmp.ne.s32.totalorder %s176, %s177
      %p189 = scmp.eq.s32.totalorder %s41, 1
      %p190 = por %p188, %p189
      %p192 = scmp.ne.s32.totalorder %s177, %s191
      %p193 = scmp.eq.s32.totalorder %s41, 0
      %p194 = por %p192, %p193
      %s196 = sadd.s32 %s195, 1
      %p199 = scmp.eq.s32.totalorder %s35, 1
      %p200 = scmp.ne.s32.totalorder %s195, %s197
      %p201 = scmp.eq.s32.totalorder %s35, 0
      %p202 = por %p200, %p201
      %p203 = scmp.ne.s32.totalorder %s195, %s197
      %p204 = scmp.eq.s32.totalorder %s40, 1
      %p205 = por %p203, %p204
      %p206 = scmp.ne.s32.totalorder %s197, %s198
      %p207 = scmp.eq.s32.totalorder %s40, 0
      %p208 = por %p206, %p207
      %p209 = scmp.ne.s32.totalorder %s197, %s198
      %p210 = scmp.eq.s32.totalorder %s41, 1
      %p211 = por %p209, %p210
      %p213 = scmp.ne.s32.totalorder %s198, %s212
      %p214 = scmp.eq.s32.totalorder %s41, 0
      %p215 = por %p213, %p214
      %s217 = sadd.s32 %s216, 1
      %p220 = scmp.eq.s32.totalorder %s35, 1
      %p221 = scmp.ne.s32.totalorder %s216, %s218
      %p222 = scmp.eq.s32.totalorder %s35, 0
      %p223 = por %p221, %p222
      %p224 = scmp.ne.s32.totalorder %s216, %s218
      %p225 = scmp.eq.s32.totalorder %s40, 1
      %p226 = por %p224, %p225
      %p227 = scmp.ne.s32.totalorder %s218, %s219
      %p228 = scmp.eq.s32.totalorder %s40, 0
      %p229 = por %p227, %p228
      %p230 = scmp.ne.s32.totalorder %s218, %s219
      %p231 = scmp.eq.s32.totalorder %s41, 1
      %p232 = por %p230, %p231
      %p234 = scmp.ne.s32.totalorder %s219, %s233
      %p235 = scmp.eq.s32.totalorder %s41, 0
      %p236 = por %p234, %p235
      %s238 = sadd.s32 %s237, 1
      %p241 = scmp.eq.s32.totalorder %s35, 1
      %p242 = scmp.ne.s32.totalorder %s237, %s239
      %p243 = scmp.eq.s32.totalorder %s35, 0
      %p244 = por %p242, %p243
      %p245 = scmp.ne.s32.totalorder %s237, %s239
      %p246 = scmp.eq.s32.totalorder %s40, 1
      %p247 = por %p245, %p246
      %p248 = scmp.ne.s32.totalorder %s239, %s240
      %p249 = scmp.eq.s32.totalorder %s40, 0
      %p250 = por %p248, %p249
      %p251 = scmp.ne.s32.totalorder %s239, %s240
      %p252 = scmp.eq.s32.totalorder %s41, 1
      %p253 = por %p251, %p252
      %p255 = scmp.ne.s32.totalorder %s240, %s254
      %p256 = scmp.eq.s32.totalorder %s41, 0
      %p257 = por %p255, %p256
      %s259 = sadd.s32 %s258, 1
      %p262 = scmp.eq.s32.totalorder %s35, 1
      %p263 = scmp.ne.s32.totalorder %s258, %s260
      %p264 = scmp.eq.s32.totalorder %s35, 0
      %p265 = por %p263, %p264
      %p266 = scmp.ne.s32.totalorder %s258, %s260
      %p267 = scmp.eq.s32.totalorder %s40, 1
      %p268 = por %p266, %p267
      %p269 = scmp.ne.s32.totalorder %s260, %s261
      %p270 = scmp.eq.s32.totalorder %s40, 0
      %p271 = por %p269, %p270
      %p272 = scmp.ne.s32.totalorder %s260, %s261
      %p273 = scmp.eq.s32.totalorder %s41, 1
      %p274 = por %p272, %p273
      %p276 = scmp.ne.s32.totalorder %s261, %s275
      %p277 = scmp.eq.s32.totalorder %s41, 0
      %p278 = por %p276, %p277
      %s280 = sadd.s32 %s279, 1
      %p283 = scmp.eq.s32.totalorder %s35, 1
      %p284 = scmp.ne.s32.totalorder %s279, %s281
      %p285 = scmp.eq.s32.totalorder %s35, 0
      %p286 = por %p284, %p285
      %p287 = scmp.ne.s32.totalorder %s279, %s281
      %p288 = scmp.eq.s32.totalorder %s40, 1
      %p289 = por %p287, %p288
      %p290 = scmp.ne.s32.totalorder %s281, %s282
      %p291 = scmp.eq.s32.totalorder %s40, 0
      %p292 = por %p290, %p291
      %p293 = scmp.ne.s32.totalorder %s281, %s282
      %p294 = scmp.eq.s32.totalorder %s41, 1
      %p295 = por %p293, %p294
      %p297 = scmp.ne.s32.totalorder %s282, %s296
      %p298 = scmp.eq.s32.totalorder %s41, 0
      %p299 = por %p297, %p298
      %s301 = sadd.s32 %s300, 1
      %p304 = scmp.eq.s32.totalorder %s35, 1
      %p305 = scmp.ne.s32.totalorder %s300, %s302
      %p306 = scmp.eq.s32.totalorder %s35, 0
      %p307 = por %p305, %p306
      %p308 = scmp.ne.s32.totalorder %s300, %s302
      %p309 = scmp.eq.s32.totalorder %s40, 1
      %p310 = por %p308, %p309
      %p311 = scmp.ne.s32.totalorder %s302, %s303
      %p312 = scmp.eq.s32.totalorder %s40, 0
      %p313 = por %p311, %p312
      %p314 = scmp.ne.s32.totalorder %s302, %s303
      %p315 = scmp.eq.s32.totalorder %s41, 1
      %p316 = por %p314, %p315
      %p318 = scmp.ne.s32.totalorder %s303, %s317
      %p319 = scmp.eq.s32.totalorder %s41, 0
      %p320 = por %p318, %p319
      %s322 = sadd.s32 %s321, 1
      %p325 = scmp.eq.s32.totalorder %s35, 1
      %p326 = scmp.ne.s32.totalorder %s321, %s323
      %p327 = scmp.eq.s32.totalorder %s35, 0
      %p328 = por %p326, %p327
      %p329 = scmp.ne.s32.totalorder %s321, %s323
      %p330 = scmp.eq.s32.totalorder %s40, 1
      %p331 = por %p329, %p330
      %p332 = scmp.ne.s32.totalorder %s323, %s324
      %p333 = scmp.eq.s32.totalorder %s40, 0
      %p334 = por %p332, %p333
      %p335 = scmp.ne.s32.totalorder %s323, %s324
      %p336 = scmp.eq.s32.totalorder %s41, 1
      %p337 = por %p335, %p336
      %p339 = scmp.ne.s32.totalorder %s324, %s338
      %p340 = scmp.eq.s32.totalorder %s41, 0
      %p341 = por %p339, %p340
      %s343 = sadd.s32 %s342, 1
      %p346 = scmp.eq.s32.totalorder %s35, 1
      %p347 = scmp.ne.s32.totalorder %s342, %s344
      %p348 = scmp.eq.s32.totalorder %s35, 0
      %p349 = por %p347, %p348
      %p350 = scmp.ne.s32.totalorder %s342, %s344
      %p351 = scmp.eq.s32.totalorder %s40, 1
      %p352 = por %p350, %p351
      %p353 = scmp.ne.s32.totalorder %s344, %s345
      %p354 = scmp.eq.s32.totalorder %s40, 0
      %p355 = por %p353, %p354
      %p356 = scmp.ne.s32.totalorder %s344, %s345
      %p357 = scmp.eq.s32.totalorder %s41, 1
      %p358 = por %p356, %p357
      %p360 = scmp.ne.s32.totalorder %s345, %s359
      %p361 = scmp.eq.s32.totalorder %s41, 0
      %p362 = por %p360, %p361
      %s364 = sadd.s32 %s363, 1
      %p367 = scmp.eq.s32.totalorder %s35, 1
      %p368 = scmp.ne.s32.totalorder %s363, %s365
      %p369 = scmp.eq.s32.totalorder %s35, 0
      %p370 = por %p368, %p369
      %p371 = scmp.ne.s32.totalorder %s363, %s365
      %p372 = scmp.eq.s32.totalorder %s40, 1
      %p373 = por %p371, %p372
      %p374 = scmp.ne.s32.totalorder %s365, %s366
      %p375 = scmp.eq.s32.totalorder %s40, 0
      %p376 = por %p374, %p375
      %p377 = scmp.ne.s32.totalorder %s365, %s366
      %p378 = scmp.eq.s32.totalorder %s41, 1
      %p379 = por %p377, %p378
      %p381 = scmp.ne.s32.totalorder %s366, %s380
      %p382 = scmp.eq.s32.totalorder %s41, 0
      %p383 = por %p381, %p382
      %s385 = sadd.s32 %s384, 1
      %p388 = scmp.eq.s32.totalorder %s35, 1
      %p389 = scmp.ne.s32.totalorder %s384, %s386
      %p390 = scmp.eq.s32.totalorder %s35, 0
      %p391 = por %p389, %p390
      %p392 = scmp.ne.s32.totalorder %s384, %s386
      %p393 = scmp.eq.s32.totalorder %s40, 1
      %p394 = por %p392, %p393
      %p395 = scmp.ne.s32.totalorder %s386, %s387
      %p396 = scmp.eq.s32.totalorder %s40, 0
      %p397 = por %p395, %p396
      %p398 = scmp.ne.s32.totalorder %s386, %s387
      %p399 = scmp.eq.s32.totalorder %s41, 1
      %p400 = por %p398, %p399
      %p402 = scmp.ne.s32.totalorder %s387, %s401
      %p403 = scmp.eq.s32.totalorder %s41, 0
      %p404 = por %p402, %p403
      %s406 = sadd.s32 %s405, 1
      %p409 = scmp.eq.s32.totalorder %s35, 1
      %p410 = scmp.ne.s32.totalorder %s405, %s407
      %p411 = scmp.eq.s32.totalorder %s35, 0
      %p412 = por %p410, %p411
      %p413 = scmp.ne.s32.totalorder %s405, %s407
      %p414 = scmp.eq.s32.totalorder %s40, 1
      %p415 = por %p413, %p414
      %p416 = scmp.ne.s32.totalorder %s407, %s408
      %p417 = scmp.eq.s32.totalorder %s40, 0
      %p418 = por %p416, %p417
      %p419 = scmp.ne.s32.totalorder %s407, %s408
      %p420 = scmp.eq.s32.totalorder %s41, 1
      %p421 = por %p419, %p420
      %p423 = scmp.ne.s32.totalorder %s408, %s422
      %p424 = scmp.eq.s32.totalorder %s41, 0
      %p425 = por %p423, %p424
      %s427 = sadd.s32 %s426, 1
      %p430 = scmp.eq.s32.totalorder %s35, 1
      %p431 = scmp.ne.s32.totalorder %s426, %s428
      %p432 = scmp.eq.s32.totalorder %s35, 0
      %p433 = por %p431, %p432
      %p434 = scmp.ne.s32.totalorder %s426, %s428
      %p435 = scmp.eq.s32.totalorder %s40, 1
      %p436 = por %p434, %p435
      %p437 = scmp.ne.s32.totalorder %s428, %s429
      %p438 = scmp.eq.s32.totalorder %s40, 0
      %p439 = por %p437, %p438
      %p440 = scmp.ne.s32.totalorder %s428, %s429
      %p441 = scmp.eq.s32.totalorder %s41, 1
      %p442 = por %p440, %p441
      %p444 = scmp.ne.s32.totalorder %s429, %s443
      %p445 = scmp.eq.s32.totalorder %s41, 0
      %p446 = por %p444, %p445
      %s448 = sadd.s32 %s447, 1
      %p451 = scmp.eq.s32.totalorder %s35, 1
      %p452 = scmp.ne.s32.totalorder %s447, %s449
      %p453 = scmp.eq.s32.totalorder %s35, 0
      %p454 = por %p452, %p453
      %p455 = scmp.ne.s32.totalorder %s447, %s449
      %p456 = scmp.eq.s32.totalorder %s40, 1
      %p457 = por %p455, %p456
      %p458 = scmp.ne.s32.totalorder %s449, %s450
      %p459 = scmp.eq.s32.totalorder %s40, 0
      %p460 = por %p458, %p459
      %p461 = scmp.ne.s32.totalorder %s449, %s450
      %p462 = scmp.eq.s32.totalorder %s41, 1
      %p463 = por %p461, %p462
      %p465 = scmp.ne.s32.totalorder %s450, %s464
      %p466 = scmp.eq.s32.totalorder %s41, 0
      %p467 = por %p465, %p466
      %s469 = sadd.s32 %s468, 1
      %p472 = scmp.eq.s32.totalorder %s35, 1
      %p473 = scmp.ne.s32.totalorder %s468, %s470
      %p474 = scmp.eq.s32.totalorder %s35, 0
      %p475 = por %p473, %p474
      %p476 = scmp.ne.s32.totalorder %s468, %s470
      %p477 = scmp.eq.s32.totalorder %s40, 1
      %p478 = por %p476, %p477
      %p479 = scmp.ne.s32.totalorder %s470, %s471
      %p480 = scmp.eq.s32.totalorder %s40, 0
      %p481 = por %p479, %p480
      %p482 = scmp.ne.s32.totalorder %s470, %s471
      %p483 = scmp.eq.s32.totalorder %s41, 1
      %p484 = por %p482, %p483
      %p486 = scmp.ne.s32.totalorder %s471, %s485
      %p487 = scmp.eq.s32.totalorder %s41, 0
      %p488 = por %p486, %p487
      %s489 = ssub.s32 %s35, %s42
      %p490 = scmp.eq.s32.totalorder %s489, 0
      %s492 = sadd.s32 %s491, 1
      %s493 = scalar_select %p490, %s491, %s492
      %p496 = pneg %p490
      %p497 = scmp.eq.s32.totalorder %s35, 1
      %p498 = por %p496, %p497
      %p499 = scmp.ne.s32.totalorder %s491, %s494
      %p500 = scmp.eq.s32.totalorder %s35, 0
      %p501 = por %p499, %p500
      %p502 = scmp.ne.s32.totalorder %s491, %s494
      %p503 = scmp.eq.s32.totalorder %s40, 1
      %p504 = por %p502, %p503
      %p505 = scmp.ne.s32.totalorder %s494, %s495
      %p506 = scmp.eq.s32.totalorder %s40, 0
      %p507 = por %p505, %p506
      %p508 = scmp.ne.s32.totalorder %s494, %s495
      %p509 = scmp.eq.s32.totalorder %s41, 1
      %p510 = por %p508, %p509
      %p512 = scmp.ne.s32.totalorder %s495, %s511
      %p513 = scmp.eq.s32.totalorder %s41, 0
      %p514 = por %p512, %p513
      %p515 = scmp.le.s32.totalorder 1, %s35
      %p516 = scmp.lt.s32.totalorder %s35, 3
      %p517 = pnand %p515, %p516
      %p518 = pneg %p517
      // Predicated region
      $region9: #{tpu_custom_call.1} parent=5 // pred_check
        _
      $region10: #{tpu_custom_call.1} parent=5 // pred_check_branch
        %520 = sbr.rel (%p517) target = $region12
      $region11: #{tpu_custom_call.1} parent=5 // pred_region
        %s521 = ssub.s32 %s35, 1
        // Predicated region
        $region13: #{tpu_custom_call.1} parent=11 // pred_check
          %p522 = pneg %p82
        $region14: #{tpu_custom_call.1} parent=11 // pred_check_branch
          %524 = sbr.rel (%p522) target = $region16
        $region15: #{tpu_custom_call.1} parent=11 // pred_region
          _
        $region16: #{tpu_custom_call.1} parent=11 // pred_fallthru
          _
        // Predicated region
        $region17: #{tpu_custom_call.1} parent=11 // pred_check
          %p525 = pneg %p103
        $region18: #{tpu_custom_call.1} parent=11 // pred_check_branch
          %527 = sbr.rel (%p525) target = $region20
        $region19: #{tpu_custom_call.1} parent=11 // pred_region
          %s529 = ssub.s32 576, 576
          %530 = vsyncadd [#allocation3], %s529
          %s531 = sshll.u32 [#allocation2], 4
          %s532 = int_to_ptr.vmem [resolvable:$true] %s531
          %537 = dma.hbm_to_vmem [thread:$0]  %s2, 576, %s532, [#allocation3], 64, 64, 4
        $region20: #{tpu_custom_call.1} parent=11 // pred_fallthru
          _
        // Predicated region
        $region21: #{tpu_custom_call.1} parent=11 // pred_check
          %p538 = pneg %p124
        $region22: #{tpu_custom_call.1} parent=11 // pred_check_branch
          %540 = sbr.rel (%p538) target = $region24
        $region23: #{tpu_custom_call.1} parent=11 // pred_region
          _
        $region24: #{tpu_custom_call.1} parent=11 // pred_fallthru
          _
        // Predicated region
        $region25: #{tpu_custom_call.1} parent=11 // pred_check
          %p541 = pneg %p145
        $region26: #{tpu_custom_call.1} parent=11 // pred_check_branch
          %543 = sbr.rel (%p541) target = $region28
        $region27: #{tpu_custom_call.1} parent=11 // pred_region
          %s545 = ssub.s32 16, 16
          %546 = vsyncadd [#allocation6], %s545
          %s548 = sshll.u32 [#allocation5], 4
          %s549 = int_to_ptr.vmem [resolvable:$true] %s548
          %551 = dma.hbm_to_vmem [thread:$0]  %s4, 16, %s549, [#allocation6]
        $region28: #{tpu_custom_call.1} parent=11 // pred_fallthru
          _
        // Predicated region
        $region29: #{tpu_custom_call.1} parent=11 // pred_check
          %p552 = pneg %p166
        $region30: #{tpu_custom_call.1} parent=11 // pred_check_branch
          %554 = sbr.rel (%p552) target = $region32
        $region31: #{tpu_custom_call.1} parent=11 // pred_region
          _
        $region32: #{tpu_custom_call.1} parent=11 // pred_fallthru
          _
        // Predicated region
        $region33: #{tpu_custom_call.1} parent=11 // pred_check
          %p555 = pneg %p187
        $region34: #{tpu_custom_call.1} parent=11 // pred_check_branch
          %557 = sbr.rel (%p555) target = $region36
        $region35: #{tpu_custom_call.1} parent=11 // pred_region
          _
        $region36: #{tpu_custom_call.1} parent=11 // pred_fallthru
          _
        // Predicated region
        $region37: #{tpu_custom_call.1} parent=11 // pred_check
          %p558 = pneg %p208
        $region38: #{tpu_custom_call.1} parent=11 // pred_check_branch
          %560 = sbr.rel (%p558) target = $region40
        $region39: #{tpu_custom_call.1} parent=11 // pred_region
          %s562 = ssub.s32 16, 16
          %563 = vsyncadd [#allocation6], %s562
          %s565 = sshll.u32 [#allocation7], 4
          %s566 = int_to_ptr.vmem [resolvable:$true] %s565
          %568 = dma.hbm_to_vmem [thread:$0]  %s7, 16, %s566, [#allocation6]
        $region40: #{tpu_custom_call.1} parent=11 // pred_fallthru
          _
        // Predicated region
        $region41: #{tpu_custom_call.1} parent=11 // pred_check
          %p569 = pneg %p229
        $region42: #{tpu_custom_call.1} parent=11 // pred_check_branch
          %571 = sbr.rel (%p569) target = $region44
        $region43: #{tpu_custom_call.1} parent=11 // pred_region
          %s573 = ssub.s32 16, 16
          %574 = vsyncadd [#allocation9], %s573
          %s576 = sshll.u32 [#allocation8], 4
          %s577 = int_to_ptr.vmem [resolvable:$true] %s576
          %579 = dma.hbm_to_vmem [thread:$0]  %s8, 16, %s577, [#allocation9]
        $region44: #{tpu_custom_call.1} parent=11 // pred_fallthru
          _
        // Predicated region
        $region45: #{tpu_custom_call.1} parent=11 // pred_check
          %p580 = pneg %p250
        $region46: #{tpu_custom_call.1} parent=11 // pred_check_branch
          %582 = sbr.rel (%p580) target = $region48
        $region47: #{tpu_custom_call.1} parent=11 // pred_region
          _
        $region48: #{tpu_custom_call.1} parent=11 // pred_fallthru
          _
        // Predicated region
        $region49: #{tpu_custom_call.1} parent=11 // pred_check
          %p583 = pneg %p271
        $region50: #{tpu_custom_call.1} parent=11 // pred_check_branch
          %585 = sbr.rel (%p583) target = $region52
        $region51: #{tpu_custom_call.1} parent=11 // pred_region
          _
        $region52: #{tpu_custom_call.1} parent=11 // pred_fallthru
          _
        // Predicated region
        $region53: #{tpu_custom_call.1} parent=11 // pred_check
          %p586 = pneg %p292
        $region54: #{tpu_custom_call.1} parent=11 // pred_check_branch
          %588 = sbr.rel (%p586) target = $region56
        $region55: #{tpu_custom_call.1} parent=11 // pred_region
          %s590 = ssub.s32 16, 16
          %591 = vsyncadd [#allocation9], %s590
          %s593 = sshll.u32 [#allocation10], 4
          %s594 = int_to_ptr.vmem [resolvable:$true] %s593
          %596 = dma.hbm_to_vmem [thread:$0]  %s11, 16, %s594, [#allocation9]
        $region56: #{tpu_custom_call.1} parent=11 // pred_fallthru
          _
        // Predicated region
        $region57: #{tpu_custom_call.1} parent=11 // pred_check
          %p597 = pneg %p313
        $region58: #{tpu_custom_call.1} parent=11 // pred_check_branch
          %599 = sbr.rel (%p597) target = $region60
        $region59: #{tpu_custom_call.1} parent=11 // pred_region
          %s601 = ssub.s32 16, 16
          %602 = vsyncadd [#allocation12], %s601
          %s604 = sshll.u32 [#allocation11], 4
          %s605 = int_to_ptr.vmem [resolvable:$true] %s604
          %607 = dma.hbm_to_vmem [thread:$0]  %s12, 16, %s605, [#allocation12]
        $region60: #{tpu_custom_call.1} parent=11 // pred_fallthru
          _
        // Predicated region
        $region61: #{tpu_custom_call.1} parent=11 // pred_check
          %p608 = pneg %p334
        $region62: #{tpu_custom_call.1} parent=11 // pred_check_branch
          %610 = sbr.rel (%p608) target = $region64
        $region63: #{tpu_custom_call.1} parent=11 // pred_region
          _
        $region64: #{tpu_custom_call.1} parent=11 // pred_fallthru
          _
        // Predicated region
        $region65: #{tpu_custom_call.1} parent=11 // pred_check
          %p611 = pneg %p355
        $region66: #{tpu_custom_call.1} parent=11 // pred_check_branch
          %613 = sbr.rel (%p611) target = $region68
        $region67: #{tpu_custom_call.1} parent=11 // pred_region
          %s615 = ssub.s32 4608, 4608
          %616 = vsyncadd [#allocation12], %s615
          %s617 = sshll.u32 [#allocation13], 4
          %s618 = int_to_ptr.vmem [resolvable:$true] %s617
          %623 = dma.hbm_to_vmem [thread:$0]  %s14, 4608, %s618, [#allocation12], 128, 128, 8
        $region68: #{tpu_custom_call.1} parent=11 // pred_fallthru
          _
        // Predicated region
        $region69: #{tpu_custom_call.1} parent=11 // pred_check
          %p624 = pneg %p376
        $region70: #{tpu_custom_call.1} parent=11 // pred_check_branch
          %626 = sbr.rel (%p624) target = $region72
        $region71: #{tpu_custom_call.1} parent=11 // pred_region
          %s628 = ssub.s32 16, 16
          %629 = vsyncadd [#allocation15], %s628
          %s631 = sshll.u32 [#allocation14], 4
          %s632 = int_to_ptr.vmem [resolvable:$true] %s631
          %634 = dma.hbm_to_vmem [thread:$0]  %s15, 16, %s632, [#allocation15]
        $region72: #{tpu_custom_call.1} parent=11 // pred_fallthru
          _
        // Predicated region
        $region73: #{tpu_custom_call.1} parent=11 // pred_check
          %p635 = pneg %p397
        $region74: #{tpu_custom_call.1} parent=11 // pred_check_branch
          %637 = sbr.rel (%p635) target = $region76
        $region75: #{tpu_custom_call.1} parent=11 // pred_region
          _
        $region76: #{tpu_custom_call.1} parent=11 // pred_fallthru
          _
        // Predicated region
        $region77: #{tpu_custom_call.1} parent=11 // pred_check
          %p638 = pneg %p418
        $region78: #{tpu_custom_call.1} parent=11 // pred_check_branch
          %640 = sbr.rel (%p638) target = $region80
        $region79: #{tpu_custom_call.1} parent=11 // pred_region
          _
        $region80: #{tpu_custom_call.1} parent=11 // pred_fallthru
          _
        // Predicated region
        $region81: #{tpu_custom_call.1} parent=11 // pred_check
          %p641 = pneg %p439
        $region82: #{tpu_custom_call.1} parent=11 // pred_check_branch
          %643 = sbr.rel (%p641) target = $region84
        $region83: #{tpu_custom_call.1} parent=11 // pred_region
          %s645 = ssub.s32 9216, 9216
          %646 = vsyncadd [#allocation15], %s645
          %s647 = sshll.u32 [#allocation16], 4
          %s648 = int_to_ptr.vmem [resolvable:$true] %s647
          %653 = dma.hbm_to_vmem [thread:$0]  %s18, 9216, %s648, [#allocation15], 256, 256, 16
        $region84: #{tpu_custom_call.1} parent=11 // pred_fallthru
          _
        // Predicated region
        $region85: #{tpu_custom_call.1} parent=11 // pred_check
          %p654 = pneg %p460
        $region86: #{tpu_custom_call.1} parent=11 // pred_check_branch
          %656 = sbr.rel (%p654) target = $region88
        $region87: #{tpu_custom_call.1} parent=11 // pred_region
          _
        $region88: #{tpu_custom_call.1} parent=11 // pred_fallthru
          _
        // Predicated region
        $region89: #{tpu_custom_call.1} parent=11 // pred_check
          %p657 = pneg %p481
        $region90: #{tpu_custom_call.1} parent=11 // pred_check_branch
          %659 = sbr.rel (%p657) target = $region92
        $region91: #{tpu_custom_call.1} parent=11 // pred_region
          _
        $region92: #{tpu_custom_call.1} parent=11 // pred_fallthru
          _
      $region12: #{tpu_custom_call.1} parent=5 // pred_fallthru
        _
      %p660 = scmp.lt.s32.totalorder %s35, 2
      // Predicated region
      $region93: #{tpu_custom_call.1} parent=5 // pred_check
        %p661 = pneg %p660
      $region94: #{tpu_custom_call.1} parent=5 // pred_check_branch
        %663 = sbr.rel (%p661) target = $region96
      $region95: #{tpu_custom_call.1} parent=5 // pred_region
        // Predicated region
        $region97: #{tpu_custom_call.1} parent=95 // pred_check
          %p664 = pneg %p55
        $region98: #{tpu_custom_call.1} parent=95 // pred_check_branch
          %666 = sbr.rel (%p664) target = $region100
        $region99: #{tpu_custom_call.1} parent=95 // pred_region
          %p667 = scmp.lt.s32.totalorder %s35, 1
          %s668 = scalar_select %p667, %s35, 1
          %s669 = smul.addr %s668, 64
          %s670 = smul.addr %s669, 8
          %s671 = scalar_lea.vmem %s0, %s670
        $region100: #{tpu_custom_call.1} parent=95 // pred_fallthru
          _
      $region96: #{tpu_custom_call.1} parent=5 // pred_fallthru
        _
      %p672 = scmp.le.s32.totalorder 1, %s35
      %p673 = scmp.lt.s32.totalorder %s35, 3
      %p674 = pnand %p672, %p673
      %p675 = pneg %p674
      // Predicated region
      $region101: #{tpu_custom_call.1} parent=5 // pred_check
        _
      $region102: #{tpu_custom_call.1} parent=5 // pred_check_branch
        %677 = sbr.rel (%p674) target = $region104
      $region103: #{tpu_custom_call.1} parent=5 // pred_region
        %s678 = ssub.s32 %s35, 1
        // Predicated region
        $region105: #{tpu_custom_call.1} parent=103 // pred_check
          %p679 = pneg %p103
        $region106: #{tpu_custom_call.1} parent=103 // pred_check_branch
          %681 = sbr.rel (%p679) target = $region108
        $region107: #{tpu_custom_call.1} parent=103 // pred_region
          %682 = dma.done [#allocation3], 576
        $region108: #{tpu_custom_call.1} parent=103 // pred_fallthru
          _
        // Predicated region
        $region109: #{tpu_custom_call.1} parent=103 // pred_check
          %p683 = pneg %p145
        $region110: #{tpu_custom_call.1} parent=103 // pred_check_branch
          %685 = sbr.rel (%p683) target = $region112
        $region111: #{tpu_custom_call.1} parent=103 // pred_region
          %686 = dma.done [#allocation6], 16
        $region112: #{tpu_custom_call.1} parent=103 // pred_fallthru
          _
        // Predicated region
        $region113: #{tpu_custom_call.1} parent=103 // pred_check
          %p687 = pneg %p208
        $region114: #{tpu_custom_call.1} parent=103 // pred_check_branch
          %689 = sbr.rel (%p687) target = $region116
        $region115: #{tpu_custom_call.1} parent=103 // pred_region
          %690 = dma.done [#allocation6], 16
        $region116: #{tpu_custom_call.1} parent=103 // pred_fallthru
          _
        // Predicated region
        $region117: #{tpu_custom_call.1} parent=103 // pred_check
          %p691 = pneg %p229
        $region118: #{tpu_custom_call.1} parent=103 // pred_check_branch
          %693 = sbr.rel (%p691) target = $region120
        $region119: #{tpu_custom_call.1} parent=103 // pred_region
          %694 = dma.done [#allocation9], 16
        $region120: #{tpu_custom_call.1} parent=103 // pred_fallthru
          _
        // Predicated region
        $region121: #{tpu_custom_call.1} parent=103 // pred_check
          %p695 = pneg %p292
        $region122: #{tpu_custom_call.1} parent=103 // pred_check_branch
          %697 = sbr.rel (%p695) target = $region124
        $region123: #{tpu_custom_call.1} parent=103 // pred_region
          %698 = dma.done [#allocation9], 16
        $region124: #{tpu_custom_call.1} parent=103 // pred_fallthru
          _
        // Predicated region
        $region125: #{tpu_custom_call.1} parent=103 // pred_check
          %p699 = pneg %p313
        $region126: #{tpu_custom_call.1} parent=103 // pred_check_branch
          %701 = sbr.rel (%p699) target = $region128
        $region127: #{tpu_custom_call.1} parent=103 // pred_region
          %702 = dma.done [#allocation12], 16
        $region128: #{tpu_custom_call.1} parent=103 // pred_fallthru
          _
        // Predicated region
        $region129: #{tpu_custom_call.1} parent=103 // pred_check
          %p703 = pneg %p355
        $region130: #{tpu_custom_call.1} parent=103 // pred_check_branch
          %705 = sbr.rel (%p703) target = $region132
        $region131: #{tpu_custom_call.1} parent=103 // pred_region
          %706 = dma.done [#allocation12], 4608
        $region132: #{tpu_custom_call.1} parent=103 // pred_fallthru
          _
        // Predicated region
        $region133: #{tpu_custom_call.1} parent=103 // pred_check
          %p707 = pneg %p376
        $region134: #{tpu_custom_call.1} parent=103 // pred_check_branch
          %709 = sbr.rel (%p707) target = $region136
        $region135: #{tpu_custom_call.1} parent=103 // pred_region
          %710 = dma.done [#allocation15], 16
        $region136: #{tpu_custom_call.1} parent=103 // pred_fallthru
          _
        // Predicated region
        $region137: #{tpu_custom_call.1} parent=103 // pred_check
          %p711 = pneg %p439
        $region138: #{tpu_custom_call.1} parent=103 // pred_check_branch
          %713 = sbr.rel (%p711) target = $region140
        $region139: #{tpu_custom_call.1} parent=103 // pred_region
          %714 = dma.done [#allocation15], 9216
        $region140: #{tpu_custom_call.1} parent=103 // pred_fallthru
          _
        %p715 = scmp.lt.s32.totalorder %s40, 1
        %s716 = scalar_select %p715, %s40, 1
        %s717 = smul.addr %s716, 64
        %s718 = smul.addr %s717, 8
        %s719 = scalar_lea.vmem %s0, %s718
        %p720 = pneg %p61
        %p721 = pneg %p58
        %p722 = pneg %p82
        %p723 = pneg %p79
        %p724 = pneg %p103
        %p725 = pneg %p100
        %p726 = pneg %p124
        %p727 = pneg %p121
        %p728 = pneg %p145
        %p729 = pneg %p142
        %p730 = pneg %p166
        %p731 = pneg %p163
        %p732 = pneg %p187
        %p733 = pneg %p184
        %p734 = pneg %p208
        %p735 = pneg %p205
        %p736 = pneg %p229
        %p737 = pneg %p226
        %p738 = pneg %p250
        %p739 = pneg %p247
        %p740 = pneg %p271
        %p741 = pneg %p268
        %p742 = pneg %p292
        %p743 = pneg %p289
        %p744 = pneg %p313
        %p745 = pneg %p310
        %p746 = pneg %p334
        %p747 = pneg %p331
        %p748 = pneg %p355
        %p749 = pneg %p352
        %p750 = pneg %p376
        %p751 = pneg %p373
        %p752 = pneg %p397
        %p753 = pneg %p394
        %p754 = pneg %p418
        %p755 = pneg %p415
        %p756 = pneg %p439
        %p757 = pneg %p436
        %p758 = pneg %p460
        %p759 = pneg %p457
        %p760 = pneg %p481
        %p761 = pneg %p478
        %p762 = pneg %p507
        %p763 = pneg %p504
        %s764 = sand.u32 %s494, 1
        %s765 = scalar_lea.sflag [#allocation4], %s764
        %s766 = sand.u32 %s494, 1
        %s767 = smul.addr %s766, 16
        %s768 = scalar_lea.vmem [#allocation17], %s767
        %p769 = scmp.lt.s32.totalorder %s40, 1
        %s770 = scalar_select %p769, %s40, 1
        %s771 = smul.addr %s770, 64
        %s772 = smul.addr %s771, 8
        %s773 = scalar_lea.vmem %s0, %s772
        %v774 = vld [vmem:[%s773] sm:$0xff]
        %v775 = vld [vmem:[%s773 + $0x8] sm:$0xff]
        %v776 = vld [vmem:[%s773 + $0x10] sm:$0xff]
        %v777 = vld [vmem:[%s773 + $0x18] sm:$0xff]
        %v778 = vld [vmem:[%s773 + $0x20] sm:$0xff]
        %v779 = vld [vmem:[%s773 + $0x28] sm:$0xff]
        %v780 = vld [vmem:[%s773 + $0x30] sm:$0xff]
        %v781 = vld [vmem:[%s773 + $0x38] sm:$0xff]
        %v782 = vld [vmem:[%s773 + $0x40] sm:$0xff]
        %v783 = vld [vmem:[%s773 + $0x48] sm:$0xff]
        %v784 = vld [vmem:[%s773 + $0x50] sm:$0xff]
        %v785 = vld [vmem:[%s773 + $0x58] sm:$0xff]
        %v786 = vld [vmem:[%s773 + $0x60] sm:$0xff]
        %v787 = vld [vmem:[%s773 + $0x68] sm:$0xff]
        %v788 = vld [vmem:[%s773 + $0x70] sm:$0xff]
        %v789 = vld [vmem:[%s773 + $0x78] sm:$0xff]
        %v790 = vld [vmem:[%s773 + $0x80] sm:$0xff]
        %v791 = vld [vmem:[%s773 + $0x88] sm:$0xff]
        %v792 = vld [vmem:[%s773 + $0x90] sm:$0xff]
        %v793 = vld [vmem:[%s773 + $0x98] sm:$0xff]
        %v794 = vld [vmem:[%s773 + $0xa0] sm:$0xff]
        %v795 = vld [vmem:[%s773 + $0xa8] sm:$0xff]
        %v796 = vld [vmem:[%s773 + $0xb0] sm:$0xff]
        %v797 = vld [vmem:[%s773 + $0xb8] sm:$0xff]
        %v798 = vld [vmem:[%s773 + $0xc0] sm:$0xff]
        %v799 = vld [vmem:[%s773 + $0xc8] sm:$0xff]
        %v800 = vld [vmem:[%s773 + $0xd0] sm:$0xff]
        %v801 = vld [vmem:[%s773 + $0xd8] sm:$0xff]
        %v802 = vld [vmem:[%s773 + $0xe0] sm:$0xff]
        %v803 = vld [vmem:[%s773 + $0xe8] sm:$0xff]
        %v804 = vld [vmem:[%s773 + $0xf0] sm:$0xff]
        %v805 = vld [vmem:[%s773 + $0xf8] sm:$0xff]
        %v806 = vld [vmem:[%s773 + $0x100] sm:$0xff]
        %v807 = vld [vmem:[%s773 + $0x108] sm:$0xff]
        %v808 = vld [vmem:[%s773 + $0x110] sm:$0xff]
        %v809 = vld [vmem:[%s773 + $0x118] sm:$0xff]
        %v810 = vld [vmem:[%s773 + $0x120] sm:$0xff]
        %v811 = vld [vmem:[%s773 + $0x128] sm:$0xff]
        %v812 = vld [vmem:[%s773 + $0x130] sm:$0xff]
        %v813 = vld [vmem:[%s773 + $0x138] sm:$0xff]
        %v814 = vld [vmem:[%s773 + $0x140] sm:$0xff]
        %v815 = vld [vmem:[%s773 + $0x148] sm:$0xff]
        %v816 = vld [vmem:[%s773 + $0x150] sm:$0xff]
        %v817 = vld [vmem:[%s773 + $0x158] sm:$0xff]
        %v818 = vld [vmem:[%s773 + $0x160] sm:$0xff]
        %v819 = vld [vmem:[%s773 + $0x168] sm:$0xff]
        %v820 = vld [vmem:[%s773 + $0x170] sm:$0xff]
        %v821 = vld [vmem:[%s773 + $0x178] sm:$0xff]
        %v822 = vld [vmem:[%s773 + $0x180] sm:$0xff]
        %v823 = vld [vmem:[%s773 + $0x188] sm:$0xff]
        %v824 = vld [vmem:[%s773 + $0x190] sm:$0xff]
        %v825 = vld [vmem:[%s773 + $0x198] sm:$0xff]
        %v826 = vld [vmem:[%s773 + $0x1a0] sm:$0xff]
        %v827 = vld [vmem:[%s773 + $0x1a8] sm:$0xff]
        %v828 = vld [vmem:[%s773 + $0x1b0] sm:$0xff]
        %v829 = vld [vmem:[%s773 + $0x1b8] sm:$0xff]
        %v830 = vld [vmem:[%s773 + $0x1c0] sm:$0xff]
        %v831 = vld [vmem:[%s773 + $0x1c8] sm:$0xff]
        %v832 = vld [vmem:[%s773 + $0x1d0] sm:$0xff]
        %v833 = vld [vmem:[%s773 + $0x1d8] sm:$0xff]
        %v834 = vld [vmem:[%s773 + $0x1e0] sm:$0xff]
        %v835 = vld [vmem:[%s773 + $0x1e8] sm:$0xff]
        %v836 = vld [vmem:[%s773 + $0x1f0] sm:$0xff]
        %v837 = vld [vmem:[%s773 + $0x1f8] sm:$0xff]
        %v838 = vld [vmem:[%s1] sm:$0xff]
        %v839 = vld [vmem:[%s1 + $0x8] sm:$0xff]
        %v840 = vld [vmem:[%s1 + $0x10] sm:$0xff]
        %v841 = vld [vmem:[%s1 + $0x18] sm:$0xff]
        %v842 = vld [vmem:[%s1 + $0x20] sm:$0xff]
        %v843 = vld [vmem:[%s1 + $0x28] sm:$0xff]
        %v844 = vld [vmem:[%s1 + $0x30] sm:$0xff]
        %v845 = vld [vmem:[%s1 + $0x38] sm:$0xff]
        %v846 = vld [vmem:[%s1 + $0x40] sm:$0xff]
        %v847 = vld [vmem:[%s1 + $0x48] sm:$0xff]
        %v848 = vld [vmem:[%s1 + $0x50] sm:$0xff]
        %v849 = vld [vmem:[%s1 + $0x58] sm:$0xff]
        %v850 = vld [vmem:[%s1 + $0x60] sm:$0xff]
        %v851 = vld [vmem:[%s1 + $0x68] sm:$0xff]
        %v852 = vld [vmem:[%s1 + $0x70] sm:$0xff]
        %v853 = vld [vmem:[%s1 + $0x78] sm:$0xff]
        %v854 = vld [vmem:[%s1 + $0x80] sm:$0xff]
        %v855 = vld [vmem:[%s1 + $0x88] sm:$0xff]
        %v856 = vld [vmem:[%s1 + $0x90] sm:$0xff]
        %v857 = vld [vmem:[%s1 + $0x98] sm:$0xff]
        %v858 = vld [vmem:[%s1 + $0xa0] sm:$0xff]
        %v859 = vld [vmem:[%s1 + $0xa8] sm:$0xff]
        %v860 = vld [vmem:[%s1 + $0xb0] sm:$0xff]
        %v861 = vld [vmem:[%s1 + $0xb8] sm:$0xff]
        %v862 = vld [vmem:[%s1 + $0xc0] sm:$0xff]
        %v863 = vld [vmem:[%s1 + $0xc8] sm:$0xff]
        %v864 = vld [vmem:[%s1 + $0xd0] sm:$0xff]
        %v865 = vld [vmem:[%s1 + $0xd8] sm:$0xff]
        %v866 = vld [vmem:[%s1 + $0xe0] sm:$0xff]
        %v867 = vld [vmem:[%s1 + $0xe8] sm:$0xff]
        %v868 = vld [vmem:[%s1 + $0xf0] sm:$0xff]
        %v869 = vld [vmem:[%s1 + $0xf8] sm:$0xff]
        %v870 = vld [vmem:[%s1 + $0x100] sm:$0xff]
        %v871 = vld [vmem:[%s1 + $0x108] sm:$0xff]
        %v872 = vld [vmem:[%s1 + $0x110] sm:$0xff]
        %v873 = vld [vmem:[%s1 + $0x118] sm:$0xff]
        %v874 = vld [vmem:[%s1 + $0x120] sm:$0xff]
        %v875 = vld [vmem:[%s1 + $0x128] sm:$0xff]
        %v876 = vld [vmem:[%s1 + $0x130] sm:$0xff]
        %v877 = vld [vmem:[%s1 + $0x138] sm:$0xff]
        %v878 = vld [vmem:[%s1 + $0x140] sm:$0xff]
        %v879 = vld [vmem:[%s1 + $0x148] sm:$0xff]
        %v880 = vld [vmem:[%s1 + $0x150] sm:$0xff]
        %v881 = vld [vmem:[%s1 + $0x158] sm:$0xff]
        %v882 = vld [vmem:[%s1 + $0x160] sm:$0xff]
        %v883 = vld [vmem:[%s1 + $0x168] sm:$0xff]
        %v884 = vld [vmem:[%s1 + $0x170] sm:$0xff]
        %v885 = vld [vmem:[%s1 + $0x178] sm:$0xff]
        %v886 = vld [vmem:[%s1 + $0x180] sm:$0xff]
        %v887 = vld [vmem:[%s1 + $0x188] sm:$0xff]
        %v888 = vld [vmem:[%s1 + $0x190] sm:$0xff]
        %v889 = vld [vmem:[%s1 + $0x198] sm:$0xff]
        %v890 = vld [vmem:[%s1 + $0x1a0] sm:$0xff]
        %v891 = vld [vmem:[%s1 + $0x1a8] sm:$0xff]
        %v892 = vld [vmem:[%s1 + $0x1b0] sm:$0xff]
        %v893 = vld [vmem:[%s1 + $0x1b8] sm:$0xff]
        %v894 = vld [vmem:[%s1 + $0x1c0] sm:$0xff]
        %v895 = vld [vmem:[%s1 + $0x1c8] sm:$0xff]
        %v896 = vld [vmem:[%s1 + $0x1d0] sm:$0xff]
        %v897 = vld [vmem:[%s1 + $0x1d8] sm:$0xff]
        %v898 = vld [vmem:[%s1 + $0x1e0] sm:$0xff]
        %v899 = vld [vmem:[%s1 + $0x1e8] sm:$0xff]
        %v900 = vld [vmem:[%s1 + $0x1f0] sm:$0xff]
        %v901 = vld [vmem:[%s1 + $0x1f8] sm:$0xff]
        %v902 = vld [vmem:[%s1 + $0x200] sm:$0xff]
        %v903 = vld [vmem:[%s1 + $0x208] sm:$0xff]
        %v904 = vld [vmem:[%s1 + $0x210] sm:$0xff]
        %v905 = vld [vmem:[%s1 + $0x218] sm:$0xff]
        %v906 = vld [vmem:[%s1 + $0x220] sm:$0xff]
        %v907 = vld [vmem:[%s1 + $0x228] sm:$0xff]
        %v908 = vld [vmem:[%s1 + $0x230] sm:$0xff]
        %v909 = vld [vmem:[%s1 + $0x238] sm:$0xff]
        %v910 = vld [vmem:[%s1 + $0x240] sm:$0xff]
        %v911 = vld [vmem:[%s1 + $0x248] sm:$0xff]
        %v912 = vld [vmem:[%s1 + $0x250] sm:$0xff]
        %v913 = vld [vmem:[%s1 + $0x258] sm:$0xff]
        %v914 = vld [vmem:[%s1 + $0x260] sm:$0xff]
        %v915 = vld [vmem:[%s1 + $0x268] sm:$0xff]
        %v916 = vld [vmem:[%s1 + $0x270] sm:$0xff]
        %v917 = vld [vmem:[%s1 + $0x278] sm:$0xff]
        %v918 = vld [vmem:[%s1 + $0x280] sm:$0xff]
        %v919 = vld [vmem:[%s1 + $0x288] sm:$0xff]
        %v920 = vld [vmem:[%s1 + $0x290] sm:$0xff]
        %v921 = vld [vmem:[%s1 + $0x298] sm:$0xff]
        %v922 = vld [vmem:[%s1 + $0x2a0] sm:$0xff]
        %v923 = vld [vmem:[%s1 + $0x2a8] sm:$0xff]
        %v924 = vld [vmem:[%s1 + $0x2b0] sm:$0xff]
        %v925 = vld [vmem:[%s1 + $0x2b8] sm:$0xff]
        %v926 = vld [vmem:[%s1 + $0x2c0] sm:$0xff]
        %v927 = vld [vmem:[%s1 + $0x2c8] sm:$0xff]
        %v928 = vld [vmem:[%s1 + $0x2d0] sm:$0xff]
        %v929 = vld [vmem:[%s1 + $0x2d8] sm:$0xff]
        %v930 = vld [vmem:[%s1 + $0x2e0] sm:$0xff]
        %v931 = vld [vmem:[%s1 + $0x2e8] sm:$0xff]
        %v932 = vld [vmem:[%s1 + $0x2f0] sm:$0xff]
        %v933 = vld [vmem:[%s1 + $0x2f8] sm:$0xff]
        %v934 = vld [vmem:[%s1 + $0x300] sm:$0xff]
        %v935 = vld [vmem:[%s1 + $0x308] sm:$0xff]
        %v936 = vld [vmem:[%s1 + $0x310] sm:$0xff]
        %v937 = vld [vmem:[%s1 + $0x318] sm:$0xff]
        %v938 = vld [vmem:[%s1 + $0x320] sm:$0xff]
        %v939 = vld [vmem:[%s1 + $0x328] sm:$0xff]
        %v940 = vld [vmem:[%s1 + $0x330] sm:$0xff]
        %v941 = vld [vmem:[%s1 + $0x338] sm:$0xff]
        %v942 = vld [vmem:[%s1 + $0x340] sm:$0xff]
        %v943 = vld [vmem:[%s1 + $0x348] sm:$0xff]
        %v944 = vld [vmem:[%s1 + $0x350] sm:$0xff]
        %v945 = vld [vmem:[%s1 + $0x358] sm:$0xff]
        %v946 = vld [vmem:[%s1 + $0x360] sm:$0xff]
        %v947 = vld [vmem:[%s1 + $0x368] sm:$0xff]
        %v948 = vld [vmem:[%s1 + $0x370] sm:$0xff]
        %v949 = vld [vmem:[%s1 + $0x378] sm:$0xff]
        %v950 = vld [vmem:[%s1 + $0x380] sm:$0xff]
        %v951 = vld [vmem:[%s1 + $0x388] sm:$0xff]
        %v952 = vld [vmem:[%s1 + $0x390] sm:$0xff]
        %v953 = vld [vmem:[%s1 + $0x398] sm:$0xff]
        %v954 = vld [vmem:[%s1 + $0x3a0] sm:$0xff]
        %v955 = vld [vmem:[%s1 + $0x3a8] sm:$0xff]
        %v956 = vld [vmem:[%s1 + $0x3b0] sm:$0xff]
        %v957 = vld [vmem:[%s1 + $0x3b8] sm:$0xff]
        %v958 = vld [vmem:[%s1 + $0x3c0] sm:$0xff]
        %v959 = vld [vmem:[%s1 + $0x3c8] sm:$0xff]
        %v960 = vld [vmem:[%s1 + $0x3d0] sm:$0xff]
        %v961 = vld [vmem:[%s1 + $0x3d8] sm:$0xff]
        %v962 = vld [vmem:[%s1 + $0x3e0] sm:$0xff]
        %v963 = vld [vmem:[%s1 + $0x3e8] sm:$0xff]
        %v964 = vld [vmem:[%s1 + $0x3f0] sm:$0xff]
        %v965 = vld [vmem:[%s1 + $0x3f8] sm:$0xff]
        %v966 = vld [vmem:[%s1 + $0x400] sm:$0xff]
        %v967 = vld [vmem:[%s1 + $0x408] sm:$0xff]
        %v968 = vld [vmem:[%s1 + $0x410] sm:$0xff]
        %v969 = vld [vmem:[%s1 + $0x418] sm:$0xff]
        %v970 = vld [vmem:[%s1 + $0x420] sm:$0xff]
        %v971 = vld [vmem:[%s1 + $0x428] sm:$0xff]
        %v972 = vld [vmem:[%s1 + $0x430] sm:$0xff]
        %v973 = vld [vmem:[%s1 + $0x438] sm:$0xff]
        %v974 = vld [vmem:[%s1 + $0x440] sm:$0xff]
        %v975 = vld [vmem:[%s1 + $0x448] sm:$0xff]
        %v976 = vld [vmem:[%s1 + $0x450] sm:$0xff]
        %v977 = vld [vmem:[%s1 + $0x458] sm:$0xff]
        %v978 = vld [vmem:[%s1 + $0x460] sm:$0xff]
        %v979 = vld [vmem:[%s1 + $0x468] sm:$0xff]
        %v980 = vld [vmem:[%s1 + $0x470] sm:$0xff]
        %v981 = vld [vmem:[%s1 + $0x478] sm:$0xff]
        %982 = vmatprep.subr.mxu0 0.0
        %983 = vmatpush1.msra.mxu0 %v774
        %984 = vmatprep.subr.mxu0 0.0
        %985 = vmatpush1.msra.mxu0 %v775
        %986 = vmatprep.subr.mxu0 0.0
        %987 = vmatpush1.msra.mxu0 %v776
        %988 = vmatprep.subr.mxu0 0.0
        %989 = vmatpush1.msra.mxu0 %v777
        %990 = vmatprep.subr.mxu0 0.0
        %991 = vmatpush1.msra.mxu0 %v778
        %992 = vmatprep.subr.mxu0 0.0
        %993 = vmatpush1.msra.mxu0 %v779
        %994 = vmatprep.subr.mxu0 0.0
        %995 = vmatpush1.msra.mxu0 %v780
        %996 = vmatprep.subr.mxu0 0.0
        %997 = vmatpush1.msra.mxu0 %v781
        %998 = vmatprep.subr.mxu0 0.0
        %999 = vmatpush1.msra.mxu0 %v782
        %1000 = vmatprep.subr.mxu0 0.0
        %1001 = vmatpush1.msra.mxu0 %v783
        %1002 = vmatprep.subr.mxu0 0.0
        %1003 = vmatpush1.msra.mxu0 %v784
        %1004 = vmatprep.subr.mxu0 0.0
        %1005 = vmatpush1.msra.mxu0 %v785
        %1006 = vmatprep.subr.mxu0 0.0
        %1007 = vmatpush1.msra.mxu0 %v786
        %1008 = vmatprep.subr.mxu0 0.0
        %1009 = vmatpush1.msra.mxu0 %v787
        %1010 = vmatprep.subr.mxu0 0.0
        %1011 = vmatpush1.msra.mxu0 %v788
        %1012 = vmatprep.subr.mxu0 0.0
        %1013 = vmatpush1.msra.mxu0 %v789
        %1014 = vmatprep.subr.mxu0 0.0
        %1015 = vmatpush1.msra.mxu0 %v790
        %1016 = vmatprep.subr.mxu0 0.0
        %1017 = vmatpush1.msra.mxu0 %v791
        %1018 = vmatprep.subr.mxu0 0.0
        %1019 = vmatpush1.msra.mxu0 %v792
        %1020 = vmatprep.subr.mxu0 0.0
        %1021 = vmatpush1.msra.mxu0 %v793
        %1022 = vmatprep.subr.mxu0 0.0
        %1023 = vmatpush1.msra.mxu0 %v794
        %1024 = vmatprep.subr.mxu0 0.0
        %1025 = vmatpush1.msra.mxu0 %v795
        %1026 = vmatprep.subr.mxu0 0.0
        %1027 = vmatpush1.msra.mxu0 %v796
        %1028 = vmatprep.subr.mxu0 0.0
        %1029 = vmatpush1.msra.mxu0 %v797
        %1030 = vmatprep.subr.mxu0 0.0
        %1031 = vmatpush1.msra.mxu0 %v798
        %1032 = vmatprep.subr.mxu0 0.0
        %1033 = vmatpush1.msra.mxu0 %v799
        %1034 = vmatprep.subr.mxu0 0.0
        %1035 = vmatpush1.msra.mxu0 %v800
        %1036 = vmatprep.subr.mxu0 0.0
        %1037 = vmatpush1.msra.mxu0 %v801
        %1038 = vmatprep.subr.mxu0 0.0
        %1039 = vmatpush1.msra.mxu0 %v802
        %1040 = vmatprep.subr.mxu0 0.0
        %1041 = vmatpush1.msra.mxu0 %v803
        %1042 = vmatprep.subr.mxu0 0.0
        %1043 = vmatpush1.msra.mxu0 %v804
        %1044 = vmatprep.subr.mxu0 0.0
        %1045 = vmatpush1.msra.mxu0 %v805
        %1046 = vmatprep.mubr.f32.mxu0 %v839
        %1047 = vmatmul.mubr.f32.gmra.mrb[0].mxu0 %v838
        %v1048 = vpop.f32.mrb[0].mxu0
        %v1049 = vadd.f32 0.0, %v1048
        %v1050 = vpop.f32.mrb[0].mxu0
        %1051 = vmatprep.mubr.f32.mxu0 %v843
        %1052 = vmatmul.mubr.f32.gmra.mrb[0].mxu0 %v842
        %v1053 = vpop.f32.mrb[0].mxu0
        %v1054 = vadd.f32 0.0, %v1053
        %v1055 = vpop.f32.mrb[0].mxu0
        %1056 = vmatprep.mubr.f32.mxu0 %v847
        %1057 = vmatmul.mubr.f32.gmra.mrb[0].mxu0 %v846
        %v1058 = vpop.f32.mrb[0].mxu0
        %v1059 = vadd.f32 0.0, %v1058
        %v1060 = vpop.f32.mrb[0].mxu0
        %1061 = vmatprep.mubr.f32.mxu0 %v851
        %1062 = vmatmul.mubr.f32.gmra.mrb[0].mxu0 %v850
        %v1063 = vpop.f32.mrb[0].mxu0
        %v1064 = vadd.f32 0.0, %v1063
        %v1065 = vpop.f32.mrb[0].mxu0
        %1066 = vmatprep.mubr.f32.mxu0 %v855
        %1067 = vmatmul.mubr.f32.gmra.mrb[0].mxu0 %v854
        %v1068 = vpop.f32.mrb[0].mxu0
        %v1069 = vadd.f32 0.0, %v1068
        %v1070 = vpop.f32.mrb[0].mxu0
        %1071 = vmatprep.mubr.f32.mxu0 %v859
        %1072 = vmatmul.mubr.f32.gmra.mrb[0].mxu0 %v858
        %v1073 = vpop.f32.mrb[0].mxu0
        %v1074 = vadd.f32 0.0, %v1073
        %v1075 = vpop.f32.mrb[0].mxu0
        %1076 = vmatprep.mubr.f32.mxu0 %v863
        %1077 = vmatmul.mubr.f32.gmra.mrb[0].mxu0 %v862
        %v1078 = vpop.f32.mrb[0].mxu0
        %v1079 = vadd.f32 0.0, %v1078
        %v1080 = vpop.f32.mrb[0].mxu0
        %1081 = vmatprep.mubr.f32.mxu0 %v867
        %1082 = vmatmul.mubr.f32.gmra.mrb[0].mxu0 %v866
        %v1083 = vpop.f32.mrb[0].mxu0
        %v1084 = vadd.f32 0.0, %v1083
        %v1085 = vpop.f32.mrb[0].mxu0
        %1086 = vmatprep.mubr.f32.mxu0 %v871
        %1087 = vmatmul.mubr.f32.gmra.mrb[0].mxu0 %v870
        %v1088 = vpop.f32.mrb[0].mxu0
        %v1089 = vadd.f32 0.0, %v1088
        %v1090 = vpop.f32.mrb[0].mxu0
        %1091 = vmatprep.mubr.f32.mxu0 %v875
        %1092 = vmatmul.mubr.f32.gmra.mrb[0].mxu0 %v874
        %v1093 = vpop.f32.mrb[0].mxu0
        %v1094 = vadd.f32 0.0, %v1093
        %v1095 = vpop.f32.mrb[0].mxu0
        %1096 = vmatprep.mubr.f32.mxu0 %v879
        %1097 = vmatmul.mubr.f32.gmra.mrb[0].mxu0 %v878
        %v1098 = vpop.f32.mrb[0].mxu0
        %v1099 = vadd.f32 0.0, %v1098
        %v1100 = vpop.f32.mrb[0].mxu0
        %1101 = vmatprep.mubr.f32.mxu0 %v883
        %1102 = vmatmul.mubr.f32.gmra.mrb[0].mxu0 %v882
        %v1103 = vpop.f32.mrb[0].mxu0
        %v1104 = vadd.f32 0.0, %v1103
        %v1105 = vpop.f32.mrb[0].mxu0
        %1106 = vmatprep.mubr.f32.mxu0 %v887
        %1107 = vmatmul.mubr.f32.gmra.mrb[0].mxu0 %v886
        %v1108 = vpop.f32.mrb[0].mxu0
        %v1109 = vadd.f32 0.0, %v1108
        %v1110 = vpop.f32.mrb[0].mxu0
        %1111 = vmatprep.mubr.f32.mxu0 %v891
        %1112 = vmatmul.mubr.f32.gmra.mrb[0].mxu0 %v890
        %v1113 = vpop.f32.mrb[0].mxu0
        %v1114 = vadd.f32 0.0, %v1113
        %v1115 = vpop.f32.mrb[0].mxu0
        %1116 = vmatprep.mubr.f32.mxu0 %v895
        %1117 = vmatmul.mubr.f32.gmra.mrb[0].mxu0 %v894
        %v1118 = vpop.f32.mrb[0].mxu0
        %v1119 = vadd.f32 0.0, %v1118
        %v1120 = vpop.f32.mrb[0].mxu0
        %1121 = vmatprep.mubr.f32.mxu0 %v899
        %1122 = vmatmul.mubr.f32.gmra.mrb[0].mxu0 %v898
        %v1123 = vpop.f32.mrb[0].mxu0
        %v1124 = vadd.f32 0.0, %v1123
        %v1125 = vpop.f32.mrb[0].mxu0
        %1126 = vmatprep.mubr.f32.mxu0 %v903
        %1127 = vmatmul.mubr.f32.gmra.mrb[0].mxu0 %v902
        %v1128 = vpop.f32.mrb[0].mxu0
        %v1129 = vadd.f32 0.0, %v1128
        %v1130 = vpop.f32.mrb[0].mxu0
        %1131 = vmatprep.mubr.f32.mxu0 %v907
        %1132 = vmatmul.mubr.f32.gmra.mrb[0].mxu0 %v906
        %v1133 = vpop.f32.mrb[0].mxu0
        %v1134 = vadd.f32 0.0, %v1133
        %v1135 = vpop.f32.mrb[0].mxu0
        %1136 = vmatprep.mubr.f32.mxu0 %v911
        %1137 = vmatmul.mubr.f32.gmra.mrb[0].mxu0 %v910
        %v1138 = vpop.f32.mrb[0].mxu0
        %v1139 = vadd.f32 0.0, %v1138
        %v1140 = vpop.f32.mrb[0].mxu0
        %1141 = vmatprep.mubr.f32.mxu0 %v915
        %1142 = vmatmul.mubr.f32.gmra.mrb[0].mxu0 %v914
        %v1143 = vpop.f32.mrb[0].mxu0
        %v1144 = vadd.f32 0.0, %v1143
        %v1145 = vpop.f32.mrb[0].mxu0
        %1146 = vmatprep.mubr.f32.mxu0 %v919
        %1147 = vmatmul.mubr.f32.gmra.mrb[0].mxu0 %v918
        %v1148 = vpop.f32.mrb[0].mxu0
        %v1149 = vadd.f32 0.0, %v1148
        %v1150 = vpop.f32.mrb[0].mxu0
        %1151 = vmatprep.mubr.f32.mxu0 %v923
        %1152 = vmatmul.mubr.f32.gmra.mrb[0].mxu0 %v922
        %v1153 = vpop.f32.mrb[0].mxu0
        %v1154 = vadd.f32 0.0, %v1153
        %v1155 = vpop.f32.mrb[0].mxu0
        %1156 = vmatprep.mubr.f32.mxu0 %v927
        %1157 = vmatmul.mubr.f32.gmra.mrb[0].mxu0 %v926
        %v1158 = vpop.f32.mrb[0].mxu0
        %v1159 = vadd.f32 0.0, %v1158
        %v1160 = vpop.f32.mrb[0].mxu0
        %1161 = vmatprep.mubr.f32.mxu0 %v931
        %1162 = vmatmul.mubr.f32.gmra.mrb[0].mxu0 %v930
        %v1163 = vpop.f32.mrb[0].mxu0
        %v1164 = vadd.f32 0.0, %v1163
        %v1165 = vpop.f32.mrb[0].mxu0
        %1166 = vmatprep.mubr.f32.mxu0 %v935
        %1167 = vmatmul.mubr.f32.gmra.mrb[0].mxu0 %v934
        %v1168 = vpop.f32.mrb[0].mxu0
        %v1169 = vadd.f32 0.0, %v1168
        %v1170 = vpop.f32.mrb[0].mxu0
        %1171 = vmatprep.mubr.f32.mxu0 %v939
        %1172 = vmatmul.mubr.f32.gmra.mrb[0].mxu0 %v938
        %v1173 = vpop.f32.mrb[0].mxu0
        %v1174 = vadd.f32 0.0, %v1173
        %v1175 = vpop.f32.mrb[0].mxu0
        %1176 = vmatprep.mubr.f32.mxu0 %v943
        %1177 = vmatmul.mubr.f32.gmra.mrb[0].mxu0 %v942
        %v1178 = vpop.f32.mrb[0].mxu0
        %v1179 = vadd.f32 0.0, %v1178
        %v1180 = vpop.f32.mrb[0].mxu0
        %1181 = vmatprep.mubr.f32.mxu0 %v947
        %1182 = vmatmul.mubr.f32.gmra.mrb[0].mxu0 %v946
        %v1183 = vpop.f32.mrb[0].mxu0
        %v1184 = vadd.f32 0.0, %v1183
        %v1185 = vpop.f32.mrb[0].mxu0
        %1186 = vmatprep.mubr.f32.mxu0 %v951
        %1187 = vmatmul.mubr.f32.gmra.mrb[0].mxu0 %v950
        %v1188 = vpop.f32.mrb[0].mxu0
        %v1189 = vadd.f32 0.0, %v1188
        %v1190 = vpop.f32.mrb[0].mxu0
        %1191 = vmatprep.mubr.f32.mxu0 %v955
        %1192 = vmatmul.mubr.f32.gmra.mrb[0].mxu0 %v954
        %v1193 = vpop.f32.mrb[0].mxu0
        %v1194 = vadd.f32 0.0, %v1193
        %v1195 = vpop.f32.mrb[0].mxu0
        %1196 = vmatprep.mubr.f32.mxu0 %v959
        %1197 = vmatmul.mubr.f32.gmra.mrb[0].mxu0 %v958
        %v1198 = vpop.f32.mrb[0].mxu0
        %v1199 = vadd.f32 0.0, %v1198
        %v1200 = vpop.f32.mrb[0].mxu0
        %1201 = vmatprep.mubr.f32.mxu0 %v963
        %1202 = vmatmul.mubr.f32.gmra.mrb[0].mxu0 %v962
        %v1203 = vpop.f32.mrb[0].mxu0
        %v1204 = vadd.f32 0.0, %v1203
        %v1205 = vpop.f32.mrb[0].mxu0
        %1206 = vmatprep.mubr.f32.mxu0 %v967
        %1207 = vmatmul.mubr.f32.gmra.mrb[0].mxu0 %v966
        %v1208 = vpop.f32.mrb[0].mxu0
        %v1209 = vadd.f32 0.0, %v1208
        %v1210 = vpop.f32.mrb[0].mxu0
        %1211 = vmatprep.mubr.f32.mxu0 %v971
        %1212 = vmatmul.mubr.f32.gmra.mrb[0].mxu0 %v970
        %v1213 = vpop.f32.mrb[0].mxu0
        %v1214 = vadd.f32 0.0, %v1213
        %v1215 = vpop.f32.mrb[0].mxu0
        %1216 = vmatprep.mubr.f32.mxu0 %v975
        %1217 = vmatmul.mubr.f32.gmra.mrb[0].mxu0 %v974
        %v1218 = vpop.f32.mrb[0].mxu0
        %v1219 = vadd.f32 0.0, %v1218
        %v1220 = vpop.f32.mrb[0].mxu0
        %1221 = vmatprep.mubr.f32.mxu0 %v979
        %1222 = vmatmul.mubr.f32.gmra.mrb[0].mxu0 %v978
        %v1223 = vpop.f32.mrb[0].mxu0
        %v1224 = vadd.f32 0.0, %v1223
        %v1225 = vpop.f32.mrb[0].mxu0
        %1226 = vdwg.mxu0
        %1227 = vmatprep.subr.mxu0 0.0
        %1228 = vmatpush1.msra.mxu0 %v806
        %1229 = vmatprep.subr.mxu0 0.0
        %1230 = vmatpush1.msra.mxu0 %v807
        %1231 = vmatprep.subr.mxu0 0.0
        %1232 = vmatpush1.msra.mxu0 %v808
        %1233 = vmatprep.subr.mxu0 0.0
        %1234 = vmatpush1.msra.mxu0 %v809
        %1235 = vmatprep.subr.mxu0 0.0
        %1236 = vmatpush1.msra.mxu0 %v810
        %1237 = vmatprep.subr.mxu0 0.0
        %1238 = vmatpush1.msra.mxu0 %v811
        %1239 = vmatprep.subr.mxu0 0.0
        %1240 = vmatpush1.msra.mxu0 %v812
        %1241 = vmatprep.subr.mxu0 0.0
        %1242 = vmatpush1.msra.mxu0 %v813
        %1243 = vmatprep.subr.mxu0 0.0
        %1244 = vmatpush1.msra.mxu0 %v814
        %1245 = vmatprep.subr.mxu0 0.0
        %1246 = vmatpush1.msra.mxu0 %v815
        %1247 = vmatprep.subr.mxu0 0.0
        %1248 = vmatpush1.msra.mxu0 %v816
        %1249 = vmatprep.subr.mxu0 0.0
        %1250 = vmatpush1.msra.mxu0 %v817
        %1251 = vmatprep.subr.mxu0 0.0
        %1252 = vmatpush1.msra.mxu0 %v818
        %1253 = vmatprep.subr.mxu0 0.0
        %1254 = vmatpush1.msra.mxu0 %v819
        %1255 = vmatprep.subr.mxu0 0.0
        %1256 = vmatpush1.msra.mxu0 %v820
        %1257 = vmatprep.subr.mxu0 0.0
        %1258 = vmatpush1.msra.mxu0 %v821
        %1259 = vmatprep.subr.mxu0 0.0
        %1260 = vmatpush1.msra.mxu0 %v822
        %1261 = vmatprep.subr.mxu0 0.0
        %1262 = vmatpush1.msra.mxu0 %v823
        %1263 = vmatprep.subr.mxu0 0.0
        %1264 = vmatpush1.msra.mxu0 %v824
        %1265 = vmatprep.subr.mxu0 0.0
        %1266 = vmatpush1.msra.mxu0 %v825
        %1267 = vmatprep.subr.mxu0 0.0
        %1268 = vmatpush1.msra.mxu0 %v826
        %1269 = vmatprep.subr.mxu0 0.0
        %1270 = vmatpush1.msra.mxu0 %v827
        %1271 = vmatprep.subr.mxu0 0.0
        %1272 = vmatpush1.msra.mxu0 %v828
        %1273 = vmatprep.subr.mxu0 0.0
        %1274 = vmatpush1.msra.mxu0 %v829
        %1275 = vmatprep.subr.mxu0 0.0
        %1276 = vmatpush1.msra.mxu0 %v830
        %1277 = vmatprep.subr.mxu0 0.0
        %1278 = vmatpush1.msra.mxu0 %v831
        %1279 = vmatprep.subr.mxu0 0.0
        %1280 = vmatpush1.msra.mxu0 %v832
        %1281 = vmatprep.subr.mxu0 0.0
        %1282 = vmatpush1.msra.mxu0 %v833
        %1283 = vmatprep.subr.mxu0 0.0
        %1284 = vmatpush1.msra.mxu0 %v834
        %1285 = vmatprep.subr.mxu0 0.0
        %1286 = vmatpush1.msra.mxu0 %v835
        %1287 = vmatprep.subr.mxu0 0.0
        %1288 = vmatpush1.msra.mxu0 %v836
        %1289 = vmatprep.subr.mxu0 0.0
        %1290 = vmatpush1.msra.mxu0 %v837
        %1291 = vmatprep.mubr.f32.mxu0 %v841
        %1292 = vmatmul.mubr.f32.gmra.mrb[0].mxu0 %v840
        %v1293 = vpop.f32.mrb[0].mxu0
        %v1294 = vadd.f32 %v1049, %v1293
        %v1295 = vpop.f32.mrb[0].mxu0
        %1296 = vmatprep.mubr.f32.mxu0 %v845
        %1297 = vmatmul.mubr.f32.gmra.mrb[0].mxu0 %v844
        %v1298 = vpop.f32.mrb[0].mxu0
        %v1299 = vadd.f32 %v1054, %v1298
        %v1300 = vpop.f32.mrb[0].mxu0
        %1301 = vmatprep.mubr.f32.mxu0 %v849
        %1302 = vmatmul.mubr.f32.gmra.mrb[0].mxu0 %v848
        %v1303 = vpop.f32.mrb[0].mxu0
        %v1304 = vadd.f32 %v1059, %v1303
        %v1305 = vpop.f32.mrb[0].mxu0
        %1306 = vmatprep.mubr.f32.mxu0 %v853
        %1307 = vmatmul.mubr.f32.gmra.mrb[0].mxu0 %v852
        %v1308 = vpop.f32.mrb[0].mxu0
        %v1309 = vadd.f32 %v1064, %v1308
        %v1310 = vpop.f32.mrb[0].mxu0
        %1311 = vmatprep.mubr.f32.mxu0 %v857
        %1312 = vmatmul.mubr.f32.gmra.mrb[0].mxu0 %v856
        %v1313 = vpop.f32.mrb[0].mxu0
        %v1314 = vadd.f32 %v1069, %v1313
        %v1315 = vpop.f32.mrb[0].mxu0
        %1316 = vmatprep.mubr.f32.mxu0 %v861
        %1317 = vmatmul.mubr.f32.gmra.mrb[0].mxu0 %v860
        %v1318 = vpop.f32.mrb[0].mxu0
        %v1319 = vadd.f32 %v1074, %v1318
        %v1320 = vpop.f32.mrb[0].mxu0
        %1321 = vmatprep.mubr.f32.mxu0 %v865
        %1322 = vmatmul.mubr.f32.gmra.mrb[0].mxu0 %v864
        %v1323 = vpop.f32.mrb[0].mxu0
        %v1324 = vadd.f32 %v1079, %v1323
        %v1325 = vpop.f32.mrb[0].mxu0
        %1326 = vmatprep.mubr.f32.mxu0 %v869
        %1327 = vmatmul.mubr.f32.gmra.mrb[0].mxu0 %v868
        %v1328 = vpop.f32.mrb[0].mxu0
        %v1329 = vadd.f32 %v1084, %v1328
        %v1330 = vpop.f32.mrb[0].mxu0
        %1331 = vmatprep.mubr.f32.mxu0 %v873
        %1332 = vmatmul.mubr.f32.gmra.mrb[0].mxu0 %v872
        %v1333 = vpop.f32.mrb[0].mxu0
        %v1334 = vadd.f32 %v1089, %v1333
        %v1335 = vpop.f32.mrb[0].mxu0
        %1336 = vmatprep.mubr.f32.mxu0 %v877
        %1337 = vmatmul.mubr.f32.gmra.mrb[0].mxu0 %v876
        %v1338 = vpop.f32.mrb[0].mxu0
        %v1339 = vadd.f32 %v1094, %v1338
        %v1340 = vpop.f32.mrb[0].mxu0
        %1341 = vmatprep.mubr.f32.mxu0 %v881
        %1342 = vmatmul.mubr.f32.gmra.mrb[0].mxu0 %v880
        %v1343 = vpop.f32.mrb[0].mxu0
        %v1344 = vadd.f32 %v1099, %v1343
        %v1345 = vpop.f32.mrb[0].mxu0
        %1346 = vmatprep.mubr.f32.mxu0 %v885
        %1347 = vmatmul.mubr.f32.gmra.mrb[0].mxu0 %v884
        %v1348 = vpop.f32.mrb[0].mxu0
        %v1349 = vadd.f32 %v1104, %v1348
        %v1350 = vpop.f32.mrb[0].mxu0
        %1351 = vmatprep.mubr.f32.mxu0 %v889
        %1352 = vmatmul.mubr.f32.gmra.mrb[0].mxu0 %v888
        %v1353 = vpop.f32.mrb[0].mxu0
        %v1354 = vadd.f32 %v1109, %v1353
        %v1355 = vpop.f32.mrb[0].mxu0
        %1356 = vmatprep.mubr.f32.mxu0 %v893
        %1357 = vmatmul.mubr.f32.gmra.mrb[0].mxu0 %v892
        %v1358 = vpop.f32.mrb[0].mxu0
        %v1359 = vadd.f32 %v1114, %v1358
        %v1360 = vpop.f32.mrb[0].mxu0
        %1361 = vmatprep.mubr.f32.mxu0 %v897
        %1362 = vmatmul.mubr.f32.gmra.mrb[0].mxu0 %v896
        %v1363 = vpop.f32.mrb[0].mxu0
        %v1364 = vadd.f32 %v1119, %v1363
        %v1365 = vpop.f32.mrb[0].mxu0
        %1366 = vmatprep.mubr.f32.mxu0 %v901
        %1367 = vmatmul.mubr.f32.gmra.mrb[0].mxu0 %v900
        %v1368 = vpop.f32.mrb[0].mxu0
        %v1369 = vadd.f32 %v1124, %v1368
        %v1370 = vpop.f32.mrb[0].mxu0
        %1371 = vmatprep.mubr.f32.mxu0 %v905
        %1372 = vmatmul.mubr.f32.gmra.mrb[0].mxu0 %v904
        %v1373 = vpop.f32.mrb[0].mxu0
        %v1374 = vadd.f32 %v1129, %v1373
        %v1375 = vpop.f32.mrb[0].mxu0
        %1376 = vmatprep.mubr.f32.mxu0 %v909
        %1377 = vmatmul.mubr.f32.gmra.mrb[0].mxu0 %v908
        %v1378 = vpop.f32.mrb[0].mxu0
        %v1379 = vadd.f32 %v1134, %v1378
        %v1380 = vpop.f32.mrb[0].mxu0
        %1381 = vmatprep.mubr.f32.mxu0 %v913
        %1382 = vmatmul.mubr.f32.gmra.mrb[0].mxu0 %v912
        %v1383 = vpop.f32.mrb[0].mxu0
        %v1384 = vadd.f32 %v1139, %v1383
        %v1385 = vpop.f32.mrb[0].mxu0
        %1386 = vmatprep.mubr.f32.mxu0 %v917
        %1387 = vmatmul.mubr.f32.gmra.mrb[0].mxu0 %v916
        %v1388 = vpop.f32.mrb[0].mxu0
        %v1389 = vadd.f32 %v1144, %v1388
        %v1390 = vpop.f32.mrb[0].mxu0
        %1391 = vmatprep.mubr.f32.mxu0 %v921
        %1392 = vmatmul.mubr.f32.gmra.mrb[0].mxu0 %v920
        %v1393 = vpop.f32.mrb[0].mxu0
        %v1394 = vadd.f32 %v1149, %v1393
        %v1395 = vpop.f32.mrb[0].mxu0
        %1396 = vmatprep.mubr.f32.mxu0 %v925
        %1397 = vmatmul.mubr.f32.gmra.mrb[0].mxu0 %v924
        %v1398 = vpop.f32.mrb[0].mxu0
        %v1399 = vadd.f32 %v1154, %v1398
        %v1400 = vpop.f32.mrb[0].mxu0
        %1401 = vmatprep.mubr.f32.mxu0 %v929
        %1402 = vmatmul.mubr.f32.gmra.mrb[0].mxu0 %v928
        %v1403 = vpop.f32.mrb[0].mxu0
        %v1404 = vadd.f32 %v1159, %v1403
        %v1405 = vpop.f32.mrb[0].mxu0
        %1406 = vmatprep.mubr.f32.mxu0 %v933
        %1407 = vmatmul.mubr.f32.gmra.mrb[0].mxu0 %v932
        %v1408 = vpop.f32.mrb[0].mxu0
        %v1409 = vadd.f32 %v1164, %v1408
        %v1410 = vpop.f32.mrb[0].mxu0
        %1411 = vmatprep.mubr.f32.mxu0 %v937
        %1412 = vmatmul.mubr.f32.gmra.mrb[0].mxu0 %v936
        %v1413 = vpop.f32.mrb[0].mxu0
        %v1414 = vadd.f32 %v1169, %v1413
        %v1415 = vpop.f32.mrb[0].mxu0
        %1416 = vmatprep.mubr.f32.mxu0 %v941
        %1417 = vmatmul.mubr.f32.gmra.mrb[0].mxu0 %v940
        %v1418 = vpop.f32.mrb[0].mxu0
        %v1419 = vadd.f32 %v1174, %v1418
        %v1420 = vpop.f32.mrb[0].mxu0
        %1421 = vmatprep.mubr.f32.mxu0 %v945
        %1422 = vmatmul.mubr.f32.gmra.mrb[0].mxu0 %v944
        %v1423 = vpop.f32.mrb[0].mxu0
        %v1424 = vadd.f32 %v1179, %v1423
        %v1425 = vpop.f32.mrb[0].mxu0
        %1426 = vmatprep.mubr.f32.mxu0 %v949
        %1427 = vmatmul.mubr.f32.gmra.mrb[0].mxu0 %v948
        %v1428 = vpop.f32.mrb[0].mxu0
        %v1429 = vadd.f32 %v1184, %v1428
        %v1430 = vpop.f32.mrb[0].mxu0
        %1431 = vmatprep.mubr.f32.mxu0 %v953
        %1432 = vmatmul.mubr.f32.gmra.mrb[0].mxu0 %v952
        %v1433 = vpop.f32.mrb[0].mxu0
        %v1434 = vadd.f32 %v1189, %v1433
        %v1435 = vpop.f32.mrb[0].mxu0
        %1436 = vmatprep.mubr.f32.mxu0 %v957
        %1437 = vmatmul.mubr.f32.gmra.mrb[0].mxu0 %v956
        %v1438 = vpop.f32.mrb[0].mxu0
        %v1439 = vadd.f32 %v1194, %v1438
        %v1440 = vpop.f32.mrb[0].mxu0
        %1441 = vmatprep.mubr.f32.mxu0 %v961
        %1442 = vmatmul.mubr.f32.gmra.mrb[0].mxu0 %v960
        %v1443 = vpop.f32.mrb[0].mxu0
        %v1444 = vadd.f32 %v1199, %v1443
        %v1445 = vpop.f32.mrb[0].mxu0
        %1446 = vmatprep.mubr.f32.mxu0 %v965
        %1447 = vmatmul.mubr.f32.gmra.mrb[0].mxu0 %v964
        %v1448 = vpop.f32.mrb[0].mxu0
        %v1449 = vadd.f32 %v1204, %v1448
        %v1450 = vpop.f32.mrb[0].mxu0
        %1451 = vmatprep.mubr.f32.mxu0 %v969
        %1452 = vmatmul.mubr.f32.gmra.mrb[0].mxu0 %v968
        %v1453 = vpop.f32.mrb[0].mxu0
        %v1454 = vadd.f32 %v1209, %v1453
        %v1455 = vpop.f32.mrb[0].mxu0
        %1456 = vmatprep.mubr.f32.mxu0 %v973
        %1457 = vmatmul.mubr.f32.gmra.mrb[0].mxu0 %v972
        %v1458 = vpop.f32.mrb[0].mxu0
        %v1459 = vadd.f32 %v1214, %v1458
        %v1460 = vpop.f32.mrb[0].mxu0
        %1461 = vmatprep.mubr.f32.mxu0 %v977
        %1462 = vmatmul.mubr.f32.gmra.mrb[0].mxu0 %v976
        %v1463 = vpop.f32.mrb[0].mxu0
        %v1464 = vadd.f32 %v1219, %v1463
        %v1465 = vpop.f32.mrb[0].mxu0
        %1466 = vmatprep.mubr.f32.mxu0 %v981
        %1467 = vmatmul.mubr.f32.gmra.mrb[0].mxu0 %v980
        %v1468 = vpop.f32.mrb[0].mxu0
        %v1469 = vadd.f32 %v1224, %v1468
        %v1470 = vpop.f32.mrb[0].mxu0
        %1471 = vdwg.mxu0
        %v1472 = vld [vmem:[#allocation2] sm:$0xf]
        %s1473 = scalar_lea.vmem [#allocation2], 4
        %v1474 = vld [vmem:[%s1473] sm:$0xf]
        %vm1475 = vcmask 31744
        %v1477 = vsel %vm1475, %v1314, 0
        %v1480 = vsel %vm1475, %v1319, 0
        %v1483 = vsel %vm1475, %v1324, 0
        %v1486 = vsel %vm1475, %v1329, 0
        %vm1488 = vcmask 1043456
        %v1490 = vsel %vm1488, %v1474, 0
        %1492 = vmatprep.subr.mxu0 0.0
        %1493 = vmatpush1.msra.mxu0 %v1490
        %1494 = vmatprep.subr.mxu0 0.0
        %1495 = vmatpush1.msra.mxu0 0.0
        %1496 = vmatprep.subr.mxu0 0.0
        %1497 = vmatpush1.msra.mxu0 0.0
        %1498 = vmatprep.subr.mxu0 0.0
        %1499 = vmatpush1.msra.mxu0 0.0
        %1500 = vmatprep.subr.mxu0 0.0
        %1501 = vmatpush1.msra.mxu0 0.0
        %1502 = vmatprep.subr.mxu0 0.0
        %1503 = vmatpush1.msra.mxu0 0.0
        %1504 = vmatprep.subr.mxu0 0.0
        %1505 = vmatpush1.msra.mxu0 0.0
        %1506 = vmatprep.subr.mxu0 0.0
        %1507 = vmatpush1.msra.mxu0 0.0
        %1508 = vmatprep.subr.mxu0 0.0
        %1509 = vmatpush1.msra.mxu0 0.0
        %1510 = vmatprep.subr.mxu0 0.0
        %1511 = vmatpush1.msra.mxu0 0.0
        %1512 = vmatprep.subr.mxu0 0.0
        %1513 = vmatpush1.msra.mxu0 0.0
        %1514 = vmatprep.subr.mxu0 0.0
        %1515 = vmatpush1.msra.mxu0 0.0
        %1516 = vmatprep.subr.mxu0 0.0
        %1517 = vmatpush1.msra.mxu0 0.0
        %1518 = vmatprep.subr.mxu0 0.0
        %1519 = vmatpush1.msra.mxu0 0.0
        %1520 = vmatprep.subr.mxu0 0.0
        %1521 = vmatpush1.msra.mxu0 0.0
        %1522 = vmatprep.subr.mxu0 0.0
        %1523 = vmatpush1.msra.mxu0 0.0
        %1524 = vmatprep.subr.mxu0 0.0
        %1525 = vmatpush1.msra.mxu0 0.0
        %1526 = vmatprep.subr.mxu0 0.0
        %1527 = vmatpush1.msra.mxu0 0.0
        %1528 = vmatprep.subr.mxu0 0.0
        %1529 = vmatpush1.msra.mxu0 0.0
        %1530 = vmatprep.subr.mxu0 0.0
        %1531 = vmatpush1.msra.mxu0 0.0
        %1532 = vmatprep.subr.mxu0 0.0
        %1533 = vmatpush1.msra.mxu0 0.0
        %1534 = vmatprep.subr.mxu0 0.0
        %1535 = vmatpush1.msra.mxu0 0.0
        %1536 = vmatprep.subr.mxu0 0.0
        %1537 = vmatpush1.msra.mxu0 0.0
        %1538 = vmatprep.subr.mxu0 0.0
        %1539 = vmatpush1.msra.mxu0 0.0
        %1540 = vmatprep.subr.mxu0 0.0
        %1541 = vmatpush1.msra.mxu0 0.0
        %1542 = vmatprep.subr.mxu0 0.0
        %1543 = vmatpush1.msra.mxu0 0.0
        %1544 = vmatprep.subr.mxu0 0.0
        %1545 = vmatpush1.msra.mxu0 0.0
        %1546 = vmatprep.subr.mxu0 0.0
        %1547 = vmatpush1.msra.mxu0 0.0
        %1548 = vmatprep.subr.mxu0 0.0
        %1549 = vmatpush1.msra.mxu0 0.0
        %1550 = vmatprep.subr.mxu0 0.0
        %1551 = vmatpush1.msra.mxu0 0.0
        %1552 = vmatprep.subr.mxu0 0.0
        %1553 = vmatpush1.msra.mxu0 0.0
        %1554 = vmatprep.subr.mxu0 0.0
        %1555 = vmatpush1.msra.mxu0 0.0
        %1556 = vmatprep.mubr.f32.mxu0 0.0
        %1557 = vmatmul.mubr.f32.gmra.mrb[0].mxu0 %v1477
        %v1558 = vpop.f32.mrb[0].mxu0
        %v1559 = vadd.f32 0.0, %v1558
        %v1560 = vpop.f32.mrb[0].mxu0
        %1561 = vmatprep.mubr.f32.mxu0 0.0
        %1562 = vmatmul.mubr.f32.gmra.mrb[0].mxu0 %v1480
        %v1563 = vpop.f32.mrb[0].mxu0
        %v1564 = vadd.f32 0.0, %v1563
        %v1565 = vpop.f32.mrb[0].mxu0
        %1566 = vmatprep.mubr.f32.mxu0 0.0
        %1567 = vmatmul.mubr.f32.gmra.mrb[0].mxu0 %v1483
        %v1568 = vpop.f32.mrb[0].mxu0
        %v1569 = vadd.f32 0.0, %v1568
        %v1570 = vpop.f32.mrb[0].mxu0
        %1571 = vmatprep.mubr.f32.mxu0 0.0
        %1572 = vmatmul.mubr.f32.gmra.mrb[0].mxu0 %v1486
        %v1573 = vpop.f32.mrb[0].mxu0
        %v1574 = vadd.f32 0.0, %v1573
        %v1575 = vpop.f32.mrb[0].mxu0
        %1576 = vdwg.mxu0
        %v1578 = vsel %vm1475, %v1294, 0
        %v1581 = vsel %vm1475, %v1299, 0
        %v1584 = vsel %vm1475, %v1304, 0
        %v1587 = vsel %vm1475, %v1309, 0
        %v1590 = vsel %vm1488, %v1472, 0
        %1592 = vmatprep.subr.mxu0 0.0
        %1593 = vmatpush1.msra.mxu0 %v1590
        %1594 = vmatprep.subr.mxu0 0.0
        %1595 = vmatpush1.msra.mxu0 0.0
        %1596 = vmatprep.subr.mxu0 0.0
        %1597 = vmatpush1.msra.mxu0 0.0
        %1598 = vmatprep.subr.mxu0 0.0
        %1599 = vmatpush1.msra.mxu0 0.0
        %1600 = vmatprep.subr.mxu0 0.0
        %1601 = vmatpush1.msra.mxu0 0.0
        %1602 = vmatprep.subr.mxu0 0.0
        %1603 = vmatpush1.msra.mxu0 0.0
        %1604 = vmatprep.subr.mxu0 0.0
        %1605 = vmatpush1.msra.mxu0 0.0
        %1606 = vmatprep.subr.mxu0 0.0
        %1607 = vmatpush1.msra.mxu0 0.0
        %1608 = vmatprep.subr.mxu0 0.0
        %1609 = vmatpush1.msra.mxu0 0.0
        %1610 = vmatprep.subr.mxu0 0.0
        %1611 = vmatpush1.msra.mxu0 0.0
        %1612 = vmatprep.subr.mxu0 0.0
        %1613 = vmatpush1.msra.mxu0 0.0
        %1614 = vmatprep.subr.mxu0 0.0
        %1615 = vmatpush1.msra.mxu0 0.0
        %1616 = vmatprep.subr.mxu0 0.0
        %1617 = vmatpush1.msra.mxu0 0.0
        %1618 = vmatprep.subr.mxu0 0.0
        %1619 = vmatpush1.msra.mxu0 0.0
        %1620 = vmatprep.subr.mxu0 0.0
        %1621 = vmatpush1.msra.mxu0 0.0
        %1622 = vmatprep.subr.mxu0 0.0
        %1623 = vmatpush1.msra.mxu0 0.0
        %1624 = vmatprep.subr.mxu0 0.0
        %1625 = vmatpush1.msra.mxu0 0.0
        %1626 = vmatprep.subr.mxu0 0.0
        %1627 = vmatpush1.msra.mxu0 0.0
        %1628 = vmatprep.subr.mxu0 0.0
        %1629 = vmatpush1.msra.mxu0 0.0
        %1630 = vmatprep.subr.mxu0 0.0
        %1631 = vmatpush1.msra.mxu0 0.0
        %1632 = vmatprep.subr.mxu0 0.0
        %1633 = vmatpush1.msra.mxu0 0.0
        %1634 = vmatprep.subr.mxu0 0.0
        %1635 = vmatpush1.msra.mxu0 0.0
        %1636 = vmatprep.subr.mxu0 0.0
        %1637 = vmatpush1.msra.mxu0 0.0
        %1638 = vmatprep.subr.mxu0 0.0
        %1639 = vmatpush1.msra.mxu0 0.0
        %1640 = vmatprep.subr.mxu0 0.0
        %1641 = vmatpush1.msra.mxu0 0.0
        %1642 = vmatprep.subr.mxu0 0.0
        %1643 = vmatpush1.msra.mxu0 0.0
        %1644 = vmatprep.subr.mxu0 0.0
        %1645 = vmatpush1.msra.mxu0 0.0
        %1646 = vmatprep.subr.mxu0 0.0
        %1647 = vmatpush1.msra.mxu0 0.0
        %1648 = vmatprep.subr.mxu0 0.0
        %1649 = vmatpush1.msra.mxu0 0.0
        %1650 = vmatprep.subr.mxu0 0.0
        %1651 = vmatpush1.msra.mxu0 0.0
        %1652 = vmatprep.subr.mxu0 0.0
        %1653 = vmatpush1.msra.mxu0 0.0
        %1654 = vmatprep.subr.mxu0 0.0
        %1655 = vmatpush1.msra.mxu0 0.0
        %1656 = vmatprep.mubr.f32.mxu0 0.0
        %1657 = vmatmul.mubr.f32.gmra.mrb[0].mxu0 %v1578
        %v1658 = vpop.f32.mrb[0].mxu0
        %v1659 = vadd.f32 %v1559, %v1658
        %v1660 = vpop.f32.mrb[0].mxu0
        %1661 = vmatprep.mubr.f32.mxu0 0.0
        %1662 = vmatmul.mubr.f32.gmra.mrb[0].mxu0 %v1581
        %v1663 = vpop.f32.mrb[0].mxu0
        %v1664 = vadd.f32 %v1564, %v1663
        %v1665 = vpop.f32.mrb[0].mxu0
        %1666 = vmatprep.mubr.f32.mxu0 0.0
        %1667 = vmatmul.mubr.f32.gmra.mrb[0].mxu0 %v1584
        %v1668 = vpop.f32.mrb[0].mxu0
        %v1669 = vadd.f32 %v1569, %v1668
        %v1670 = vpop.f32.mrb[0].mxu0
        %1671 = vmatprep.mubr.f32.mxu0 0.0
        %1672 = vmatmul.mubr.f32.gmra.mrb[0].mxu0 %v1587
        %v1673 = vpop.f32.mrb[0].mxu0
        %v1674 = vadd.f32 %v1574, %v1673
        %v1675 = vpop.f32.mrb[0].mxu0
        %1676 = vdwg.mxu0
        %s1677 = scalar_lea.vmem [#allocation2], 8
        %v1678 = vld [vmem:[%s1677] sm:$0xf]
        %v1680 = vsel %vm1475, %v1334, 0
        %v1683 = vsel %vm1475, %v1339, 0
        %v1686 = vsel %vm1475, %v1344, 0
        %v1689 = vsel %vm1475, %v1349, 0
        %v1692 = vsel %vm1488, %v1678, 0
        %1694 = vmatprep.subr.mxu0 0.0
        %1695 = vmatpush1.msra.mxu0 %v1692
        %1696 = vmatprep.subr.mxu0 0.0
        %1697 = vmatpush1.msra.mxu0 0.0
        %1698 = vmatprep.subr.mxu0 0.0
        %1699 = vmatpush1.msra.mxu0 0.0
        %1700 = vmatprep.subr.mxu0 0.0
        %1701 = vmatpush1.msra.mxu0 0.0
        %1702 = vmatprep.subr.mxu0 0.0
        %1703 = vmatpush1.msra.mxu0 0.0
        %1704 = vmatprep.subr.mxu0 0.0
        %1705 = vmatpush1.msra.mxu0 0.0
        %1706 = vmatprep.subr.mxu0 0.0
        %1707 = vmatpush1.msra.mxu0 0.0
        %1708 = vmatprep.subr.mxu0 0.0
        %1709 = vmatpush1.msra.mxu0 0.0
        %1710 = vmatprep.subr.mxu0 0.0
        %1711 = vmatpush1.msra.mxu0 0.0
        %1712 = vmatprep.subr.mxu0 0.0
        %1713 = vmatpush1.msra.mxu0 0.0
        %1714 = vmatprep.subr.mxu0 0.0
        %1715 = vmatpush1.msra.mxu0 0.0
        %1716 = vmatprep.subr.mxu0 0.0
        %1717 = vmatpush1.msra.mxu0 0.0
        %1718 = vmatprep.subr.mxu0 0.0
        %1719 = vmatpush1.msra.mxu0 0.0
        %1720 = vmatprep.subr.mxu0 0.0
        %1721 = vmatpush1.msra.mxu0 0.0
        %1722 = vmatprep.subr.mxu0 0.0
        %1723 = vmatpush1.msra.mxu0 0.0
        %1724 = vmatprep.subr.mxu0 0.0
        %1725 = vmatpush1.msra.mxu0 0.0
        %1726 = vmatprep.subr.mxu0 0.0
        %1727 = vmatpush1.msra.mxu0 0.0
        %1728 = vmatprep.subr.mxu0 0.0
        %1729 = vmatpush1.msra.mxu0 0.0
        %1730 = vmatprep.subr.mxu0 0.0
        %1731 = vmatpush1.msra.mxu0 0.0
        %1732 = vmatprep.subr.mxu0 0.0
        %1733 = vmatpush1.msra.mxu0 0.0
        %1734 = vmatprep.subr.mxu0 0.0
        %1735 = vmatpush1.msra.mxu0 0.0
        %1736 = vmatprep.subr.mxu0 0.0
        %1737 = vmatpush1.msra.mxu0 0.0
        %1738 = vmatprep.subr.mxu0 0.0
        %1739 = vmatpush1.msra.mxu0 0.0
        %1740 = vmatprep.subr.mxu0 0.0
        %1741 = vmatpush1.msra.mxu0 0.0
        %1742 = vmatprep.subr.mxu0 0.0
        %1743 = vmatpush1.msra.mxu0 0.0
        %1744 = vmatprep.subr.mxu0 0.0
        %1745 = vmatpush1.msra.mxu0 0.0
        %1746 = vmatprep.subr.mxu0 0.0
        %1747 = vmatpush1.msra.mxu0 0.0
        %1748 = vmatprep.subr.mxu0 0.0
        %1749 = vmatpush1.msra.mxu0 0.0
        %1750 = vmatprep.subr.mxu0 0.0
        %1751 = vmatpush1.msra.mxu0 0.0
        %1752 = vmatprep.subr.mxu0 0.0
        %1753 = vmatpush1.msra.mxu0 0.0
        %1754 = vmatprep.subr.mxu0 0.0
        %1755 = vmatpush1.msra.mxu0 0.0
        %1756 = vmatprep.subr.mxu0 0.0
        %1757 = vmatpush1.msra.mxu0 0.0
        %1758 = vmatprep.mubr.f32.mxu0 0.0
        %1759 = vmatmul.mubr.f32.gmra.mrb[0].mxu0 %v1680
        %v1760 = vpop.f32.mrb[0].mxu0
        %v1761 = vadd.f32 0.0, %v1760
        %v1762 = vpop.f32.mrb[0].mxu0
        %1763 = vmatprep.mubr.f32.mxu0 0.0
        %1764 = vmatmul.mubr.f32.gmra.mrb[0].mxu0 %v1683
        %v1765 = vpop.f32.mrb[0].mxu0
        %v1766 = vadd.f32 0.0, %v1765
        %v1767 = vpop.f32.mrb[0].mxu0
        %1768 = vmatprep.mubr.f32.mxu0 0.0
        %1769 = vmatmul.mubr.f32.gmra.mrb[0].mxu0 %v1686
        %v1770 = vpop.f32.mrb[0].mxu0
        %v1771 = vadd.f32 0.0, %v1770
        %v1772 = vpop.f32.mrb[0].mxu0
        %1773 = vmatprep.mubr.f32.mxu0 0.0
        %1774 = vmatmul.mubr.f32.gmra.mrb[0].mxu0 %v1689
        %v1775 = vpop.f32.mrb[0].mxu0
        %v1776 = vadd.f32 0.0, %v1775
        %v1777 = vpop.f32.mrb[0].mxu0
        %1778 = vdwg.mxu0
        %v1779 = vadd.f32 %v1659, %v1761
        %v1780 = vadd.f32 %v1664, %v1766
        %v1781 = vadd.f32 %v1669, %v1771
        %v1782 = vadd.f32 %v1674, %v1776
        %s1783 = scalar_lea.vmem [#allocation2], 12
        %v1784 = vld [vmem:[%s1783] sm:$0xf]
        %v1786 = vsel %vm1475, %v1354, 0
        %v1789 = vsel %vm1475, %v1359, 0
        %v1792 = vsel %vm1475, %v1364, 0
        %v1795 = vsel %vm1475, %v1369, 0
        %v1798 = vsel %vm1488, %v1784, 0
        %1800 = vmatprep.subr.mxu0 0.0
        %1801 = vmatpush1.msra.mxu0 %v1798
        %1802 = vmatprep.subr.mxu0 0.0
        %1803 = vmatpush1.msra.mxu0 0.0
        %1804 = vmatprep.subr.mxu0 0.0
        %1805 = vmatpush1.msra.mxu0 0.0
        %1806 = vmatprep.subr.mxu0 0.0
        %1807 = vmatpush1.msra.mxu0 0.0
        %1808 = vmatprep.subr.mxu0 0.0
        %1809 = vmatpush1.msra.mxu0 0.0
        %1810 = vmatprep.subr.mxu0 0.0
        %1811 = vmatpush1.msra.mxu0 0.0
        %1812 = vmatprep.subr.mxu0 0.0
        %1813 = vmatpush1.msra.mxu0 0.0
        %1814 = vmatprep.subr.mxu0 0.0
        %1815 = vmatpush1.msra.mxu0 0.0
        %1816 = vmatprep.subr.mxu0 0.0
        %1817 = vmatpush1.msra.mxu0 0.0
        %1818 = vmatprep.subr.mxu0 0.0
        %1819 = vmatpush1.msra.mxu0 0.0
        %1820 = vmatprep.subr.mxu0 0.0
        %1821 = vmatpush1.msra.mxu0 0.0
        %1822 = vmatprep.subr.mxu0 0.0
        %1823 = vmatpush1.msra.mxu0 0.0
        %1824 = vmatprep.subr.mxu0 0.0
        %1825 = vmatpush1.msra.mxu0 0.0
        %1826 = vmatprep.subr.mxu0 0.0
        %1827 = vmatpush1.msra.mxu0 0.0
        %1828 = vmatprep.subr.mxu0 0.0
        %1829 = vmatpush1.msra.mxu0 0.0
        %1830 = vmatprep.subr.mxu0 0.0
        %1831 = vmatpush1.msra.mxu0 0.0
        %1832 = vmatprep.subr.mxu0 0.0
        %1833 = vmatpush1.msra.mxu0 0.0
        %1834 = vmatprep.subr.mxu0 0.0
        %1835 = vmatpush1.msra.mxu0 0.0
        %1836 = vmatprep.subr.mxu0 0.0
        %1837 = vmatpush1.msra.mxu0 0.0
        %1838 = vmatprep.subr.mxu0 0.0
        %1839 = vmatpush1.msra.mxu0 0.0
        %1840 = vmatprep.subr.mxu0 0.0
        %1841 = vmatpush1.msra.mxu0 0.0
        %1842 = vmatprep.subr.mxu0 0.0
        %1843 = vmatpush1.msra.mxu0 0.0
        %1844 = vmatprep.subr.mxu0 0.0
        %1845 = vmatpush1.msra.mxu0 0.0
        %1846 = vmatprep.subr.mxu0 0.0
        %1847 = vmatpush1.msra.mxu0 0.0
        %1848 = vmatprep.subr.mxu0 0.0
        %1849 = vmatpush1.msra.mxu0 0.0
        %1850 = vmatprep.subr.mxu0 0.0
        %1851 = vmatpush1.msra.mxu0 0.0
        %1852 = vmatprep.subr.mxu0 0.0
        %1853 = vmatpush1.msra.mxu0 0.0
        %1854 = vmatprep.subr.mxu0 0.0
        %1855 = vmatpush1.msra.mxu0 0.0
        %1856 = vmatprep.subr.mxu0 0.0
        %1857 = vmatpush1.msra.mxu0 0.0
        %1858 = vmatprep.subr.mxu0 0.0
        %1859 = vmatpush1.msra.mxu0 0.0
        %1860 = vmatprep.subr.mxu0 0.0
        %1861 = vmatpush1.msra.mxu0 0.0
        %1862 = vmatprep.subr.mxu0 0.0
        %1863 = vmatpush1.msra.mxu0 0.0
        %1864 = vmatprep.mubr.f32.mxu0 0.0
        %1865 = vmatmul.mubr.f32.gmra.mrb[0].mxu0 %v1786
        %v1866 = vpop.f32.mrb[0].mxu0
        %v1867 = vadd.f32 0.0, %v1866
        %v1868 = vpop.f32.mrb[0].mxu0
        %1869 = vmatprep.mubr.f32.mxu0 0.0
        %1870 = vmatmul.mubr.f32.gmra.mrb[0].mxu0 %v1789
        %v1871 = vpop.f32.mrb[0].mxu0
        %v1872 = vadd.f32 0.0, %v1871
        %v1873 = vpop.f32.mrb[0].mxu0
        %1874 = vmatprep.mubr.f32.mxu0 0.0
        %1875 = vmatmul.mubr.f32.gmra.mrb[0].mxu0 %v1792
        %v1876 = vpop.f32.mrb[0].mxu0
        %v1877 = vadd.f32 0.0, %v1876
        %v1878 = vpop.f32.mrb[0].mxu0
        %1879 = vmatprep.mubr.f32.mxu0 0.0
        %1880 = vmatmul.mubr.f32.gmra.mrb[0].mxu0 %v1795
        %v1881 = vpop.f32.mrb[0].mxu0
        %v1882 = vadd.f32 0.0, %v1881
        %v1883 = vpop.f32.mrb[0].mxu0
        %1884 = vdwg.mxu0
        %v1885 = vadd.f32 %v1779, %v1867
        %v1886 = vadd.f32 %v1780, %v1872
        %v1887 = vadd.f32 %v1781, %v1877
        %v1888 = vadd.f32 %v1782, %v1882
        %s1889 = scalar_lea.vmem [#allocation2], 16
        %v1890 = vld [vmem:[%s1889] sm:$0xf]
        %v1892 = vsel %vm1475, %v1374, 0
        %v1895 = vsel %vm1475, %v1379, 0
        %v1898 = vsel %vm1475, %v1384, 0
        %v1901 = vsel %vm1475, %v1389, 0
        %v1904 = vsel %vm1488, %v1890, 0
        %1906 = vmatprep.subr.mxu0 0.0
        %1907 = vmatpush1.msra.mxu0 %v1904
        %1908 = vmatprep.subr.mxu0 0.0
        %1909 = vmatpush1.msra.mxu0 0.0
        %1910 = vmatprep.subr.mxu0 0.0
        %1911 = vmatpush1.msra.mxu0 0.0
        %1912 = vmatprep.subr.mxu0 0.0
        %1913 = vmatpush1.msra.mxu0 0.0
        %1914 = vmatprep.subr.mxu0 0.0
        %1915 = vmatpush1.msra.mxu0 0.0
        %1916 = vmatprep.subr.mxu0 0.0
        %1917 = vmatpush1.msra.mxu0 0.0
        %1918 = vmatprep.subr.mxu0 0.0
        %1919 = vmatpush1.msra.mxu0 0.0
        %1920 = vmatprep.subr.mxu0 0.0
        %1921 = vmatpush1.msra.mxu0 0.0
        %1922 = vmatprep.subr.mxu0 0.0
        %1923 = vmatpush1.msra.mxu0 0.0
        %1924 = vmatprep.subr.mxu0 0.0
        %1925 = vmatpush1.msra.mxu0 0.0
        %1926 = vmatprep.subr.mxu0 0.0
        %1927 = vmatpush1.msra.mxu0 0.0
        %1928 = vmatprep.subr.mxu0 0.0
        %1929 = vmatpush1.msra.mxu0 0.0
        %1930 = vmatprep.subr.mxu0 0.0
        %1931 = vmatpush1.msra.mxu0 0.0
        %1932 = vmatprep.subr.mxu0 0.0
        %1933 = vmatpush1.msra.mxu0 0.0
        %1934 = vmatprep.subr.mxu0 0.0
        %1935 = vmatpush1.msra.mxu0 0.0
        %1936 = vmatprep.subr.mxu0 0.0
        %1937 = vmatpush1.msra.mxu0 0.0
        %1938 = vmatprep.subr.mxu0 0.0
        %1939 = vmatpush1.msra.mxu0 0.0
        %1940 = vmatprep.subr.mxu0 0.0
        %1941 = vmatpush1.msra.mxu0 0.0
        %1942 = vmatprep.subr.mxu0 0.0
        %1943 = vmatpush1.msra.mxu0 0.0
        %1944 = vmatprep.subr.mxu0 0.0
        %1945 = vmatpush1.msra.mxu0 0.0
        %1946 = vmatprep.subr.mxu0 0.0
        %1947 = vmatpush1.msra.mxu0 0.0
        %1948 = vmatprep.subr.mxu0 0.0
        %1949 = vmatpush1.msra.mxu0 0.0
        %1950 = vmatprep.subr.mxu0 0.0
        %1951 = vmatpush1.msra.mxu0 0.0
        %1952 = vmatprep.subr.mxu0 0.0
        %1953 = vmatpush1.msra.mxu0 0.0
        %1954 = vmatprep.subr.mxu0 0.0
        %1955 = vmatpush1.msra.mxu0 0.0
        %1956 = vmatprep.subr.mxu0 0.0
        %1957 = vmatpush1.msra.mxu0 0.0
        %1958 = vmatprep.subr.mxu0 0.0
        %1959 = vmatpush1.msra.mxu0 0.0
        %1960 = vmatprep.subr.mxu0 0.0
        %1961 = vmatpush1.msra.mxu0 0.0
        %1962 = vmatprep.subr.mxu0 0.0
        %1963 = vmatpush1.msra.mxu0 0.0
        %1964 = vmatprep.subr.mxu0 0.0
        %1965 = vmatpush1.msra.mxu0 0.0
        %1966 = vmatprep.subr.mxu0 0.0
        %1967 = vmatpush1.msra.mxu0 0.0
        %1968 = vmatprep.subr.mxu0 0.0
        %1969 = vmatpush1.msra.mxu0 0.0
        %1970 = vmatprep.mubr.f32.mxu0 0.0
        %1971 = vmatmul.mubr.f32.gmra.mrb[0].mxu0 %v1892
        %v1972 = vpop.f32.mrb[0].mxu0
        %v1973 = vadd.f32 0.0, %v1972
        %v1974 = vpop.f32.mrb[0].mxu0
        %1975 = vmatprep.mubr.f32.mxu0 0.0
        %1976 = vmatmul.mubr.f32.gmra.mrb[0].mxu0 %v1895
        %v1977 = vpop.f32.mrb[0].mxu0
        %v1978 = vadd.f32 0.0, %v1977
        %v1979 = vpop.f32.mrb[0].mxu0
        %1980 = vmatprep.mubr.f32.mxu0 0.0
        %1981 = vmatmul.mubr.f32.gmra.mrb[0].mxu0 %v1898
        %v1982 = vpop.f32.mrb[0].mxu0
        %v1983 = vadd.f32 0.0, %v1982
        %v1984 = vpop.f32.mrb[0].mxu0
        %1985 = vmatprep.mubr.f32.mxu0 0.0
        %1986 = vmatmul.mubr.f32.gmra.mrb[0].mxu0 %v1901
        %v1987 = vpop.f32.mrb[0].mxu0
        %v1988 = vadd.f32 0.0, %v1987
        %v1989 = vpop.f32.mrb[0].mxu0
        %1990 = vdwg.mxu0
        %v1991 = vadd.f32 %v1885, %v1973
        %v1992 = vadd.f32 %v1886, %v1978
        %v1993 = vadd.f32 %v1887, %v1983
        %v1994 = vadd.f32 %v1888, %v1988
        %s1995 = scalar_lea.vmem [#allocation2], 20
        %v1996 = vld [vmem:[%s1995] sm:$0xf]
        %v1998 = vsel %vm1475, %v1394, 0
        %v2001 = vsel %vm1475, %v1399, 0
        %v2004 = vsel %vm1475, %v1404, 0
        %v2007 = vsel %vm1475, %v1409, 0
        %v2010 = vsel %vm1488, %v1996, 0
        %2012 = vmatprep.subr.mxu0 0.0
        %2013 = vmatpush1.msra.mxu0 %v2010
        %2014 = vmatprep.subr.mxu0 0.0
        %2015 = vmatpush1.msra.mxu0 0.0
        %2016 = vmatprep.subr.mxu0 0.0
        %2017 = vmatpush1.msra.mxu0 0.0
        %2018 = vmatprep.subr.mxu0 0.0
        %2019 = vmatpush1.msra.mxu0 0.0
        %2020 = vmatprep.subr.mxu0 0.0
        %2021 = vmatpush1.msra.mxu0 0.0
        %2022 = vmatprep.subr.mxu0 0.0
        %2023 = vmatpush1.msra.mxu0 0.0
        %2024 = vmatprep.subr.mxu0 0.0
        %2025 = vmatpush1.msra.mxu0 0.0
        %2026 = vmatprep.subr.mxu0 0.0
        %2027 = vmatpush1.msra.mxu0 0.0
        %2028 = vmatprep.subr.mxu0 0.0
        %2029 = vmatpush1.msra.mxu0 0.0
        %2030 = vmatprep.subr.mxu0 0.0
        %2031 = vmatpush1.msra.mxu0 0.0
        %2032 = vmatprep.subr.mxu0 0.0
        %2033 = vmatpush1.msra.mxu0 0.0
        %2034 = vmatprep.subr.mxu0 0.0
        %2035 = vmatpush1.msra.mxu0 0.0
        %2036 = vmatprep.subr.mxu0 0.0
        %2037 = vmatpush1.msra.mxu0 0.0
        %2038 = vmatprep.subr.mxu0 0.0
        %2039 = vmatpush1.msra.mxu0 0.0
        %2040 = vmatprep.subr.mxu0 0.0
        %2041 = vmatpush1.msra.mxu0 0.0
        %2042 = vmatprep.subr.mxu0 0.0
        %2043 = vmatpush1.msra.mxu0 0.0
        %2044 = vmatprep.subr.mxu0 0.0
        %2045 = vmatpush1.msra.mxu0 0.0
        %2046 = vmatprep.subr.mxu0 0.0
        %2047 = vmatpush1.msra.mxu0 0.0
        %2048 = vmatprep.subr.mxu0 0.0
        %2049 = vmatpush1.msra.mxu0 0.0
        %2050 = vmatprep.subr.mxu0 0.0
        %2051 = vmatpush1.msra.mxu0 0.0
        %2052 = vmatprep.subr.mxu0 0.0
        %2053 = vmatpush1.msra.mxu0 0.0
        %2054 = vmatprep.subr.mxu0 0.0
        %2055 = vmatpush1.msra.mxu0 0.0
        %2056 = vmatprep.subr.mxu0 0.0
        %2057 = vmatpush1.msra.mxu0 0.0
        %2058 = vmatprep.subr.mxu0 0.0
        %2059 = vmatpush1.msra.mxu0 0.0
        %2060 = vmatprep.subr.mxu0 0.0
        %2061 = vmatpush1.msra.mxu0 0.0
        %2062 = vmatprep.subr.mxu0 0.0
        %2063 = vmatpush1.msra.mxu0 0.0
        %2064 = vmatprep.subr.mxu0 0.0
        %2065 = vmatpush1.msra.mxu0 0.0
        %2066 = vmatprep.subr.mxu0 0.0
        %2067 = vmatpush1.msra.mxu0 0.0
        %2068 = vmatprep.subr.mxu0 0.0
        %2069 = vmatpush1.msra.mxu0 0.0
        %2070 = vmatprep.subr.mxu0 0.0
        %2071 = vmatpush1.msra.mxu0 0.0
        %2072 = vmatprep.subr.mxu0 0.0
        %2073 = vmatpush1.msra.mxu0 0.0
        %2074 = vmatprep.subr.mxu0 0.0
        %2075 = vmatpush1.msra.mxu0 0.0
        %2076 = vmatprep.mubr.f32.mxu0 0.0
        %2077 = vmatmul.mubr.f32.gmra.mrb[0].mxu0 %v1998
        %v2078 = vpop.f32.mrb[0].mxu0
        %v2079 = vadd.f32 0.0, %v2078
        %v2080 = vpop.f32.mrb[0].mxu0
        %2081 = vmatprep.mubr.f32.mxu0 0.0
        %2082 = vmatmul.mubr.f32.gmra.mrb[0].mxu0 %v2001
        %v2083 = vpop.f32.mrb[0].mxu0
        %v2084 = vadd.f32 0.0, %v2083
        %v2085 = vpop.f32.mrb[0].mxu0
        %2086 = vmatprep.mubr.f32.mxu0 0.0
        %2087 = vmatmul.mubr.f32.gmra.mrb[0].mxu0 %v2004
        %v2088 = vpop.f32.mrb[0].mxu0
        %v2089 = vadd.f32 0.0, %v2088
        %v2090 = vpop.f32.mrb[0].mxu0
        %2091 = vmatprep.mubr.f32.mxu0 0.0
        %2092 = vmatmul.mubr.f32.gmra.mrb[0].mxu0 %v2007
        %v2093 = vpop.f32.mrb[0].mxu0
        %v2094 = vadd.f32 0.0, %v2093
        %v2095 = vpop.f32.mrb[0].mxu0
        %2096 = vdwg.mxu0
        %v2097 = vadd.f32 %v1991, %v2079
        %v2098 = vadd.f32 %v1992, %v2084
        %v2099 = vadd.f32 %v1993, %v2089
        %v2100 = vadd.f32 %v1994, %v2094
        %s2101 = scalar_lea.vmem [#allocation2], 24
        %v2102 = vld [vmem:[%s2101] sm:$0xf]
        %v2104 = vsel %vm1475, %v1414, 0
        %v2107 = vsel %vm1475, %v1419, 0
        %v2110 = vsel %vm1475, %v1424, 0
        %v2113 = vsel %vm1475, %v1429, 0
        %v2116 = vsel %vm1488, %v2102, 0
        %2118 = vmatprep.subr.mxu0 0.0
        %2119 = vmatpush1.msra.mxu0 %v2116
        %2120 = vmatprep.subr.mxu0 0.0
        %2121 = vmatpush1.msra.mxu0 0.0
        %2122 = vmatprep.subr.mxu0 0.0
        %2123 = vmatpush1.msra.mxu0 0.0
        %2124 = vmatprep.subr.mxu0 0.0
        %2125 = vmatpush1.msra.mxu0 0.0
        %2126 = vmatprep.subr.mxu0 0.0
        %2127 = vmatpush1.msra.mxu0 0.0
        %2128 = vmatprep.subr.mxu0 0.0
        %2129 = vmatpush1.msra.mxu0 0.0
        %2130 = vmatprep.subr.mxu0 0.0
        %2131 = vmatpush1.msra.mxu0 0.0
        %2132 = vmatprep.subr.mxu0 0.0
        %2133 = vmatpush1.msra.mxu0 0.0
        %2134 = vmatprep.subr.mxu0 0.0
        %2135 = vmatpush1.msra.mxu0 0.0
        %2136 = vmatprep.subr.mxu0 0.0
        %2137 = vmatpush1.msra.mxu0 0.0
        %2138 = vmatprep.subr.mxu0 0.0
        %2139 = vmatpush1.msra.mxu0 0.0
        %2140 = vmatprep.subr.mxu0 0.0
        %2141 = vmatpush1.msra.mxu0 0.0
        %2142 = vmatprep.subr.mxu0 0.0
        %2143 = vmatpush1.msra.mxu0 0.0
        %2144 = vmatprep.subr.mxu0 0.0
        %2145 = vmatpush1.msra.mxu0 0.0
        %2146 = vmatprep.subr.mxu0 0.0
        %2147 = vmatpush1.msra.mxu0 0.0
        %2148 = vmatprep.subr.mxu0 0.0
        %2149 = vmatpush1.msra.mxu0 0.0
        %2150 = vmatprep.subr.mxu0 0.0
        %2151 = vmatpush1.msra.mxu0 0.0
        %2152 = vmatprep.subr.mxu0 0.0
        %2153 = vmatpush1.msra.mxu0 0.0
        %2154 = vmatprep.subr.mxu0 0.0
        %2155 = vmatpush1.msra.mxu0 0.0
        %2156 = vmatprep.subr.mxu0 0.0
        %2157 = vmatpush1.msra.mxu0 0.0
        %2158 = vmatprep.subr.mxu0 0.0
        %2159 = vmatpush1.msra.mxu0 0.0
        %2160 = vmatprep.subr.mxu0 0.0
        %2161 = vmatpush1.msra.mxu0 0.0
        %2162 = vmatprep.subr.mxu0 0.0
        %2163 = vmatpush1.msra.mxu0 0.0
        %2164 = vmatprep.subr.mxu0 0.0
        %2165 = vmatpush1.msra.mxu0 0.0
        %2166 = vmatprep.subr.mxu0 0.0
        %2167 = vmatpush1.msra.mxu0 0.0
        %2168 = vmatprep.subr.mxu0 0.0
        %2169 = vmatpush1.msra.mxu0 0.0
        %2170 = vmatprep.subr.mxu0 0.0
        %2171 = vmatpush1.msra.mxu0 0.0
        %2172 = vmatprep.subr.mxu0 0.0
        %2173 = vmatpush1.msra.mxu0 0.0
        %2174 = vmatprep.subr.mxu0 0.0
        %2175 = vmatpush1.msra.mxu0 0.0
        %2176 = vmatprep.subr.mxu0 0.0
        %2177 = vmatpush1.msra.mxu0 0.0
        %2178 = vmatprep.subr.mxu0 0.0
        %2179 = vmatpush1.msra.mxu0 0.0
        %2180 = vmatprep.subr.mxu0 0.0
        %2181 = vmatpush1.msra.mxu0 0.0
        %2182 = vmatprep.mubr.f32.mxu0 0.0
        %2183 = vmatmul.mubr.f32.gmra.mrb[0].mxu0 %v2104
        %v2184 = vpop.f32.mrb[0].mxu0
        %v2185 = vadd.f32 0.0, %v2184
        %v2186 = vpop.f32.mrb[0].mxu0
        %2187 = vmatprep.mubr.f32.mxu0 0.0
        %2188 = vmatmul.mubr.f32.gmra.mrb[0].mxu0 %v2107
        %v2189 = vpop.f32.mrb[0].mxu0
        %v2190 = vadd.f32 0.0, %v2189
        %v2191 = vpop.f32.mrb[0].mxu0
        %2192 = vmatprep.mubr.f32.mxu0 0.0
        %2193 = vmatmul.mubr.f32.gmra.mrb[0].mxu0 %v2110
        %v2194 = vpop.f32.mrb[0].mxu0
        %v2195 = vadd.f32 0.0, %v2194
        %v2196 = vpop.f32.mrb[0].mxu0
        %2197 = vmatprep.mubr.f32.mxu0 0.0
        %2198 = vmatmul.mubr.f32.gmra.mrb[0].mxu0 %v2113
        %v2199 = vpop.f32.mrb[0].mxu0
        %v2200 = vadd.f32 0.0, %v2199
        %v2201 = vpop.f32.mrb[0].mxu0
        %2202 = vdwg.mxu0
        %v2203 = vadd.f32 %v2097, %v2185
        %v2204 = vadd.f32 %v2098, %v2190
        %v2205 = vadd.f32 %v2099, %v2195
        %v2206 = vadd.f32 %v2100, %v2200
        %s2207 = scalar_lea.vmem [#allocation2], 28
        %v2208 = vld [vmem:[%s2207] sm:$0xf]
        %v2210 = vsel %vm1475, %v1434, 0
        %v2213 = vsel %vm1475, %v1439, 0
        %v2216 = vsel %vm1475, %v1444, 0
        %v2219 = vsel %vm1475, %v1449, 0
        %v2222 = vsel %vm1488, %v2208, 0
        %2224 = vmatprep.subr.mxu0 0.0
        %2225 = vmatpush1.msra.mxu0 %v2222
        %2226 = vmatprep.subr.mxu0 0.0
        %2227 = vmatpush1.msra.mxu0 0.0
        %2228 = vmatprep.subr.mxu0 0.0
        %2229 = vmatpush1.msra.mxu0 0.0
        %2230 = vmatprep.subr.mxu0 0.0
        %2231 = vmatpush1.msra.mxu0 0.0
        %2232 = vmatprep.subr.mxu0 0.0
        %2233 = vmatpush1.msra.mxu0 0.0
        %2234 = vmatprep.subr.mxu0 0.0
        %2235 = vmatpush1.msra.mxu0 0.0
        %2236 = vmatprep.subr.mxu0 0.0
        %2237 = vmatpush1.msra.mxu0 0.0
        %2238 = vmatprep.subr.mxu0 0.0
        %2239 = vmatpush1.msra.mxu0 0.0
        %2240 = vmatprep.subr.mxu0 0.0
        %2241 = vmatpush1.msra.mxu0 0.0
        %2242 = vmatprep.subr.mxu0 0.0
        %2243 = vmatpush1.msra.mxu0 0.0
        %2244 = vmatprep.subr.mxu0 0.0
        %2245 = vmatpush1.msra.mxu0 0.0
        %2246 = vmatprep.subr.mxu0 0.0
        %2247 = vmatpush1.msra.mxu0 0.0
        %2248 = vmatprep.subr.mxu0 0.0
        %2249 = vmatpush1.msra.mxu0 0.0
        %2250 = vmatprep.subr.mxu0 0.0
        %2251 = vmatpush1.msra.mxu0 0.0
        %2252 = vmatprep.subr.mxu0 0.0
        %2253 = vmatpush1.msra.mxu0 0.0
        %2254 = vmatprep.subr.mxu0 0.0
        %2255 = vmatpush1.msra.mxu0 0.0
        %2256 = vmatprep.subr.mxu0 0.0
        %2257 = vmatpush1.msra.mxu0 0.0
        %2258 = vmatprep.subr.mxu0 0.0
        %2259 = vmatpush1.msra.mxu0 0.0
        %2260 = vmatprep.subr.mxu0 0.0
        %2261 = vmatpush1.msra.mxu0 0.0
        %2262 = vmatprep.subr.mxu0 0.0
        %2263 = vmatpush1.msra.mxu0 0.0
        %2264 = vmatprep.subr.mxu0 0.0
        %2265 = vmatpush1.msra.mxu0 0.0
        %2266 = vmatprep.subr.mxu0 0.0
        %2267 = vmatpush1.msra.mxu0 0.0
        %2268 = vmatprep.subr.mxu0 0.0
        %2269 = vmatpush1.msra.mxu0 0.0
        %2270 = vmatprep.subr.mxu0 0.0
        %2271 = vmatpush1.msra.mxu0 0.0
        %2272 = vmatprep.subr.mxu0 0.0
        %2273 = vmatpush1.msra.mxu0 0.0
        %2274 = vmatprep.subr.mxu0 0.0
        %2275 = vmatpush1.msra.mxu0 0.0
        %2276 = vmatprep.subr.mxu0 0.0
        %2277 = vmatpush1.msra.mxu0 0.0
        %2278 = vmatprep.subr.mxu0 0.0
        %2279 = vmatpush1.msra.mxu0 0.0
        %2280 = vmatprep.subr.mxu0 0.0
        %2281 = vmatpush1.msra.mxu0 0.0
        %2282 = vmatprep.subr.mxu0 0.0
        %2283 = vmatpush1.msra.mxu0 0.0
        %2284 = vmatprep.subr.mxu0 0.0
        %2285 = vmatpush1.msra.mxu0 0.0
        %2286 = vmatprep.subr.mxu0 0.0
        %2287 = vmatpush1.msra.mxu0 0.0
        %2288 = vmatprep.mubr.f32.mxu0 0.0
        %2289 = vmatmul.mubr.f32.gmra.mrb[0].mxu0 %v2210
        %v2290 = vpop.f32.mrb[0].mxu0
        %v2291 = vadd.f32 0.0, %v2290
        %v2292 = vpop.f32.mrb[0].mxu0
        %2293 = vmatprep.mubr.f32.mxu0 0.0
        %2294 = vmatmul.mubr.f32.gmra.mrb[0].mxu0 %v2213
        %v2295 = vpop.f32.mrb[0].mxu0
        %v2296 = vadd.f32 0.0, %v2295
        %v2297 = vpop.f32.mrb[0].mxu0
        %2298 = vmatprep.mubr.f32.mxu0 0.0
        %2299 = vmatmul.mubr.f32.gmra.mrb[0].mxu0 %v2216
        %v2300 = vpop.f32.mrb[0].mxu0
        %v2301 = vadd.f32 0.0, %v2300
        %v2302 = vpop.f32.mrb[0].mxu0
        %2303 = vmatprep.mubr.f32.mxu0 0.0
        %2304 = vmatmul.mubr.f32.gmra.mrb[0].mxu0 %v2219
        %v2305 = vpop.f32.mrb[0].mxu0
        %v2306 = vadd.f32 0.0, %v2305
        %v2307 = vpop.f32.mrb[0].mxu0
        %2308 = vdwg.mxu0
        %v2309 = vadd.f32 %v2203, %v2291
        %v2310 = vadd.f32 %v2204, %v2296
        %v2311 = vadd.f32 %v2205, %v2301
        %v2312 = vadd.f32 %v2206, %v2306
        %s2313 = scalar_lea.vmem [#allocation2], 32
        %v2314 = vld [vmem:[%s2313] sm:$0xf]
        %v2316 = vsel %vm1475, %v1454, 0
        %v2319 = vsel %vm1475, %v1459, 0
        %v2322 = vsel %vm1475, %v1464, 0
        %v2325 = vsel %vm1475, %v1469, 0
        %v2328 = vsel %vm1488, %v2314, 0
        %2330 = vmatprep.subr.mxu0 0.0
        %2331 = vmatpush1.msra.mxu0 %v2328
        %2332 = vmatprep.subr.mxu0 0.0
        %2333 = vmatpush1.msra.mxu0 0.0
        %2334 = vmatprep.subr.mxu0 0.0
        %2335 = vmatpush1.msra.mxu0 0.0
        %2336 = vmatprep.subr.mxu0 0.0
        %2337 = vmatpush1.msra.mxu0 0.0
        %2338 = vmatprep.subr.mxu0 0.0
        %2339 = vmatpush1.msra.mxu0 0.0
        %2340 = vmatprep.subr.mxu0 0.0
        %2341 = vmatpush1.msra.mxu0 0.0
        %2342 = vmatprep.subr.mxu0 0.0
        %2343 = vmatpush1.msra.mxu0 0.0
        %2344 = vmatprep.subr.mxu0 0.0
        %2345 = vmatpush1.msra.mxu0 0.0
        %2346 = vmatprep.subr.mxu0 0.0
        %2347 = vmatpush1.msra.mxu0 0.0
        %2348 = vmatprep.subr.mxu0 0.0
        %2349 = vmatpush1.msra.mxu0 0.0
        %2350 = vmatprep.subr.mxu0 0.0
        %2351 = vmatpush1.msra.mxu0 0.0
        %2352 = vmatprep.subr.mxu0 0.0
        %2353 = vmatpush1.msra.mxu0 0.0
        %2354 = vmatprep.subr.mxu0 0.0
        %2355 = vmatpush1.msra.mxu0 0.0
        %2356 = vmatprep.subr.mxu0 0.0
        %2357 = vmatpush1.msra.mxu0 0.0
        %2358 = vmatprep.subr.mxu0 0.0
        %2359 = vmatpush1.msra.mxu0 0.0
        %2360 = vmatprep.subr.mxu0 0.0
        %2361 = vmatpush1.msra.mxu0 0.0
        %2362 = vmatprep.subr.mxu0 0.0
        %2363 = vmatpush1.msra.mxu0 0.0
        %2364 = vmatprep.subr.mxu0 0.0
        %2365 = vmatpush1.msra.mxu0 0.0
        %2366 = vmatprep.subr.mxu0 0.0
        %2367 = vmatpush1.msra.mxu0 0.0
        %2368 = vmatprep.subr.mxu0 0.0
        %2369 = vmatpush1.msra.mxu0 0.0
        %2370 = vmatprep.subr.mxu0 0.0
        %2371 = vmatpush1.msra.mxu0 0.0
        %2372 = vmatprep.subr.mxu0 0.0
        %2373 = vmatpush1.msra.mxu0 0.0
        %2374 = vmatprep.subr.mxu0 0.0
        %2375 = vmatpush1.msra.mxu0 0.0
        %2376 = vmatprep.subr.mxu0 0.0
        %2377 = vmatpush1.msra.mxu0 0.0
        %2378 = vmatprep.subr.mxu0 0.0
        %2379 = vmatpush1.msra.mxu0 0.0
        %2380 = vmatprep.subr.mxu0 0.0
        %2381 = vmatpush1.msra.mxu0 0.0
        %2382 = vmatprep.subr.mxu0 0.0
        %2383 = vmatpush1.msra.mxu0 0.0
        %2384 = vmatprep.subr.mxu0 0.0
        %2385 = vmatpush1.msra.mxu0 0.0
        %2386 = vmatprep.subr.mxu0 0.0
        %2387 = vmatpush1.msra.mxu0 0.0
        %2388 = vmatprep.subr.mxu0 0.0
        %2389 = vmatpush1.msra.mxu0 0.0
        %2390 = vmatprep.subr.mxu0 0.0
        %2391 = vmatpush1.msra.mxu0 0.0
        %2392 = vmatprep.subr.mxu0 0.0
        %2393 = vmatpush1.msra.mxu0 0.0
        %2394 = vmatprep.mubr.f32.mxu0 0.0
        %2395 = vmatmul.mubr.f32.gmra.mrb[0].mxu0 %v2316
        %v2396 = vpop.f32.mrb[0].mxu0
        %v2397 = vadd.f32 0.0, %v2396
        %v2398 = vpop.f32.mrb[0].mxu0
        %2399 = vmatprep.mubr.f32.mxu0 0.0
        %2400 = vmatmul.mubr.f32.gmra.mrb[0].mxu0 %v2319
        %v2401 = vpop.f32.mrb[0].mxu0
        %v2402 = vadd.f32 0.0, %v2401
        %v2403 = vpop.f32.mrb[0].mxu0
        %2404 = vmatprep.mubr.f32.mxu0 0.0
        %2405 = vmatmul.mubr.f32.gmra.mrb[0].mxu0 %v2322
        %v2406 = vpop.f32.mrb[0].mxu0
        %v2407 = vadd.f32 0.0, %v2406
        %v2408 = vpop.f32.mrb[0].mxu0
        %2409 = vmatprep.mubr.f32.mxu0 0.0
        %2410 = vmatmul.mubr.f32.gmra.mrb[0].mxu0 %v2325
        %v2411 = vpop.f32.mrb[0].mxu0
        %v2412 = vadd.f32 0.0, %v2411
        %v2413 = vpop.f32.mrb[0].mxu0
        %2414 = vdwg.mxu0
        %v2415 = vadd.f32 %v2309, %v2397
        %v2416 = vadd.f32 %v2310, %v2402
        %v2417 = vadd.f32 %v2311, %v2407
        %v2418 = vadd.f32 %v2312, %v2412
        %v2419 = vld [vmem:[%s3] sm:$0x1]
        %v2420 = vld [vmem:[#allocation5] sm:$0x1]
        %vm2421 = vcmask 130048
        %v2422 = vsel %vm2421, %v2415, 0.0
        %v2423 = vsel %vm2421, %v2416, 0.0
        %v2424 = vadd.f32 %v2422, %v2423
        %v2425 = vsel %vm2421, %v2417, 0.0
        %v2426 = vadd.f32 %v2424, %v2425
        %v2427 = vsel %vm2421, %v2418, 0.0
        %v2428 = vadd.f32 %v2426, %v2427
        %v2429 = vrot.slane %v2428, 4
        %v2430 = vadd.f32 %v2428, %v2429
        %v2431 = vrot.slane %v2430, 2
        %v2432 = vadd.f32 %v2430, %v2431
        %v2433 = vrot.slane %v2432, 1
        %v2434 = vadd.f32 %v2432, %v2433
        %v2435 = vmul.f32 %v2415, %v2415
        %v2436 = vmul.f32 %v2416, %v2416
        %v2437 = vmul.f32 %v2417, %v2417
        %v2438 = vmul.f32 %v2418, %v2418
        %v2439 = vsel %vm2421, %v2435, 0.0
        %v2440 = vsel %vm2421, %v2436, 0.0
        %v2441 = vadd.f32 %v2439, %v2440
        %v2442 = vsel %vm2421, %v2437, 0.0
        %v2443 = vadd.f32 %v2441, %v2442
        %v2444 = vsel %vm2421, %v2438, 0.0
        %v2445 = vadd.f32 %v2443, %v2444
        %v2446 = vrot.slane %v2445, 4
        %v2447 = vadd.f32 %v2445, %v2446
        %v2448 = vrot.slane %v2447, 2
        %v2449 = vadd.f32 %v2447, %v2448
        %v2450 = vrot.slane %v2449, 1
        %v2451 = vadd.f32 %v2449, %v2450
        %v2452 = vlaneseq
        %v2453 = vshrl.u32 %v2452, 7
        %v2454 = vlaneseq
        %v2455 = vand.u32 %v2454, 127
        %v2456 = vmul.u32 %v2453, 4
        %vm2457 = vcmp.ge.s32.totalorder %v2455, %v2456
        %v2458 = vadd.s32 %v2453, 1
        %v2459 = vmul.u32 %v2458, 4
        %vm2460 = vcmp.lt.s32.totalorder %v2455, %v2459
        %vm2461 = vmand %vm2457, %vm2460
        %v2462 = vsel %vm2461, 1, 0
        %v2463 = vcvt.s32.f32 %v2462
        %v2464 = vmul.f32 %v2463, %v2434
        %vm2465 = vcmask 125952
        %v2466 = vsel %vm2465, %v2464, 0.0
        %2467 = vadd.xlane.f32.xlu0 %v2466
        %v2468 = vpop.xlane.xlu0 %2467
        %v2469 = vrcp.pop 128.0
        %v2470 = vmul.f32 %v2468, %v2469
        %v2471 = vmul.f32 %v2463, %v2451
        %v2472 = vsel %vm2465, %v2471, 0.0
        %2473 = vadd.xlane.f32.xlu0 %v2472
        %v2474 = vpop.xlane.xlu0 %2473
        %v2475 = vmul.f32 %v2474, %v2469
        %v2476 = vmul.f32 %v2470, %v2470
        %v2477 = vsub.f32 %v2475, %v2476
        %v2478 = vmax.f32 %v2477, 0.0
        %v2479 = vadd.f32 %v2478, 1e-05
        %v2480 = vrsqrt.pop %v2479
        %v2481 = vmul.f32 %v2463, %v2470
        %v2482 = vsel %vm2465, %v2481, 0.0
        %v2483 = vrot.slane %v2482, 4
        %v2484 = vadd.f32 %v2482, %v2483
        %v2485 = vrot.slane %v2484, 2
        %v2486 = vadd.f32 %v2484, %v2485
        %v2487 = vrot.slane %v2486, 1
        %v2488 = vadd.f32 %v2486, %v2487
        %v2489 = vmul.f32 %v2463, %v2480
        %v2490 = vsel %vm2465, %v2489, 0.0
        %v2491 = vrot.slane %v2490, 4
        %v2492 = vadd.f32 %v2490, %v2491
        %v2493 = vrot.slane %v2492, 2
        %v2494 = vadd.f32 %v2492, %v2493
        %v2495 = vrot.slane %v2494, 1
        %v2496 = vadd.f32 %v2494, %v2495
        %v2497 = vsub.f32 %v2415, %v2488
        %v2498 = vsub.f32 %v2416, %v2488
        %v2499 = vsub.f32 %v2417, %v2488
        %v2500 = vsub.f32 %v2418, %v2488
        %v2501 = vmul.f32 %v2497, %v2496
        %v2502 = vmul.f32 %v2498, %v2496
        %v2503 = vmul.f32 %v2499, %v2496
        %v2504 = vmul.f32 %v2500, %v2496
        %v2506 = vlaneseq
        %v2507 = vshrl.u32 %v2506, 7
        %v2508 = vsub.s32 0, %v2507
        %v2509 = vrot.slane %v2419, %v2508
        %v2511 = vmul.f32 %v2501, %v2509
        %v2512 = vmul.f32 %v2502, %v2509
        %v2513 = vmul.f32 %v2503, %v2509
        %v2514 = vmul.f32 %v2504, %v2509
        %v2516 = vlaneseq
        %v2517 = vshrl.u32 %v2516, 7
        %v2518 = vsub.s32 0, %v2517
        %v2519 = vrot.slane %v2420, %v2518
        %v2521 = vadd.f32 %v2511, %v2519
        %v2522 = vadd.f32 %v2512, %v2519
        %v2523 = vadd.f32 %v2513, %v2519
        %v2524 = vadd.f32 %v2514, %v2519
        %v2525 = vmax.f32 %v2521, 0.0
        %v2526 = vmax.f32 %v2522, 0.0
        %v2527 = vmax.f32 %v2523, 0.0
        %v2528 = vmax.f32 %v2524, 0.0
        %v2529 = vld [vmem:[%s5] sm:$0xff]
        %vm2530 = vcmask 261120
        %v2532 = vsel %vm2530, %v2529, 0
        %2534 = vmatprep.subr.mxu0 0.0
        %2535 = vmatpush1.msra.mxu0 %v2525
        %2536 = vmatprep.subr.mxu0 0.0
        %2537 = vmatpush1.msra.mxu0 %v2526
        %2538 = vmatprep.subr.mxu0 0.0
        %2539 = vmatpush1.msra.mxu0 %v2527
        %2540 = vmatprep.subr.mxu0 0.0
        %2541 = vmatpush1.msra.mxu0 %v2528
        %2542 = vmatprep.subr.mxu0 0.0
        %2543 = vmatpush1.msra.mxu0 0.0
        %2544 = vmatprep.subr.mxu0 0.0
        %2545 = vmatpush1.msra.mxu0 0.0
        %2546 = vmatprep.subr.mxu0 0.0
        %2547 = vmatpush1.msra.mxu0 0.0
        %2548 = vmatprep.subr.mxu0 0.0
        %2549 = vmatpush1.msra.mxu0 0.0
        %2550 = vmatprep.subr.mxu0 0.0
        %2551 = vmatpush1.msra.mxu0 0.0
        %2552 = vmatprep.subr.mxu0 0.0
        %2553 = vmatpush1.msra.mxu0 0.0
        %2554 = vmatprep.subr.mxu0 0.0
        %2555 = vmatpush1.msra.mxu0 0.0
        %2556 = vmatprep.subr.mxu0 0.0
        %2557 = vmatpush1.msra.mxu0 0.0
        %2558 = vmatprep.subr.mxu0 0.0
        %2559 = vmatpush1.msra.mxu0 0.0
        %2560 = vmatprep.subr.mxu0 0.0
        %2561 = vmatpush1.msra.mxu0 0.0
        %2562 = vmatprep.subr.mxu0 0.0
        %2563 = vmatpush1.msra.mxu0 0.0
        %2564 = vmatprep.subr.mxu0 0.0
        %2565 = vmatpush1.msra.mxu0 0.0
        %2566 = vmatprep.subr.mxu0 0.0
        %2567 = vmatpush1.msra.mxu0 0.0
        %2568 = vmatprep.subr.mxu0 0.0
        %2569 = vmatpush1.msra.mxu0 0.0
        %2570 = vmatprep.subr.mxu0 0.0
        %2571 = vmatpush1.msra.mxu0 0.0
        %2572 = vmatprep.subr.mxu0 0.0
        %2573 = vmatpush1.msra.mxu0 0.0
        %2574 = vmatprep.subr.mxu0 0.0
        %2575 = vmatpush1.msra.mxu0 0.0
        %2576 = vmatprep.subr.mxu0 0.0
        %2577 = vmatpush1.msra.mxu0 0.0
        %2578 = vmatprep.subr.mxu0 0.0
        %2579 = vmatpush1.msra.mxu0 0.0
        %2580 = vmatprep.subr.mxu0 0.0
        %2581 = vmatpush1.msra.mxu0 0.0
        %2582 = vmatprep.subr.mxu0 0.0
        %2583 = vmatpush1.msra.mxu0 0.0
        %2584 = vmatprep.subr.mxu0 0.0
        %2585 = vmatpush1.msra.mxu0 0.0
        %2586 = vmatprep.subr.mxu0 0.0
        %2587 = vmatpush1.msra.mxu0 0.0
        %2588 = vmatprep.subr.mxu0 0.0
        %2589 = vmatpush1.msra.mxu0 0.0
        %2590 = vmatprep.subr.mxu0 0.0
        %2591 = vmatpush1.msra.mxu0 0.0
        %2592 = vmatprep.subr.mxu0 0.0
        %2593 = vmatpush1.msra.mxu0 0.0
        %2594 = vmatprep.subr.mxu0 0.0
        %2595 = vmatpush1.msra.mxu0 0.0
        %2596 = vmatprep.subr.mxu0 0.0
        %2597 = vmatpush1.msra.mxu0 0.0
        %2598 = vmatprep.mubr.f32.mxu0 0.0
        %2599 = vmatmul.mubr.f32.gmra.mrb[0].mxu0 %v2532
        %v2600 = vpop.f32.mrb[0].mxu0
        %v2601 = vadd.f32 0.0, %v2600
        %v2602 = vpop.f32.mrb[0].mxu0
        %2603 = vdwg.mxu0
        %v2604 = vld [vmem:[%s6] sm:$0xff]
        %v2605 = vld [vmem:[%s6 + $0x8] sm:$0xff]
        %v2607 = vsel %vm2421, %v2601, 0
        %2609 = vmatprep.subr.mxu0 0.0
        %2610 = vmatpush1.msra.mxu0 %v2604
        %2611 = vmatprep.subr.mxu0 0.0
        %2612 = vmatpush1.msra.mxu0 %v2605
        %2613 = vmatprep.subr.mxu0 0.0
        %2614 = vmatpush1.msra.mxu0 0.0
        %2615 = vmatprep.subr.mxu0 0.0
        %2616 = vmatpush1.msra.mxu0 0.0
        %2617 = vmatprep.subr.mxu0 0.0
        %2618 = vmatpush1.msra.mxu0 0.0
        %2619 = vmatprep.subr.mxu0 0.0
        %2620 = vmatpush1.msra.mxu0 0.0
        %2621 = vmatprep.subr.mxu0 0.0
        %2622 = vmatpush1.msra.mxu0 0.0
        %2623 = vmatprep.subr.mxu0 0.0
        %2624 = vmatpush1.msra.mxu0 0.0
        %2625 = vmatprep.subr.mxu0 0.0
        %2626 = vmatpush1.msra.mxu0 0.0
        %2627 = vmatprep.subr.mxu0 0.0
        %2628 = vmatpush1.msra.mxu0 0.0
        %2629 = vmatprep.subr.mxu0 0.0
        %2630 = vmatpush1.msra.mxu0 0.0
        %2631 = vmatprep.subr.mxu0 0.0
        %2632 = vmatpush1.msra.mxu0 0.0
        %2633 = vmatprep.subr.mxu0 0.0
        %2634 = vmatpush1.msra.mxu0 0.0
        %2635 = vmatprep.subr.mxu0 0.0
        %2636 = vmatpush1.msra.mxu0 0.0
        %2637 = vmatprep.subr.mxu0 0.0
        %2638 = vmatpush1.msra.mxu0 0.0
        %2639 = vmatprep.subr.mxu0 0.0
        %2640 = vmatpush1.msra.mxu0 0.0
        %2641 = vmatprep.subr.mxu0 0.0
        %2642 = vmatpush1.msra.mxu0 0.0
        %2643 = vmatprep.subr.mxu0 0.0
        %2644 = vmatpush1.msra.mxu0 0.0
        %2645 = vmatprep.subr.mxu0 0.0
        %2646 = vmatpush1.msra.mxu0 0.0
        %2647 = vmatprep.subr.mxu0 0.0
        %2648 = vmatpush1.msra.mxu0 0.0
        %2649 = vmatprep.subr.mxu0 0.0
        %2650 = vmatpush1.msra.mxu0 0.0
        %2651 = vmatprep.subr.mxu0 0.0
        %2652 = vmatpush1.msra.mxu0 0.0
        %2653 = vmatprep.subr.mxu0 0.0
        %2654 = vmatpush1.msra.mxu0 0.0
        %2655 = vmatprep.subr.mxu0 0.0
        %2656 = vmatpush1.msra.mxu0 0.0
        %2657 = vmatprep.subr.mxu0 0.0
        %2658 = vmatpush1.msra.mxu0 0.0
        %2659 = vmatprep.subr.mxu0 0.0
        %2660 = vmatpush1.msra.mxu0 0.0
        %2661 = vmatprep.subr.mxu0 0.0
        %2662 = vmatpush1.msra.mxu0 0.0
        %2663 = vmatprep.subr.mxu0 0.0
        %2664 = vmatpush1.msra.mxu0 0.0
        %2665 = vmatprep.subr.mxu0 0.0
        %2666 = vmatpush1.msra.mxu0 0.0
        %2667 = vmatprep.subr.mxu0 0.0
        %2668 = vmatpush1.msra.mxu0 0.0
        %2669 = vmatprep.subr.mxu0 0.0
        %2670 = vmatpush1.msra.mxu0 0.0
        %2671 = vmatprep.subr.mxu0 0.0
        %2672 = vmatpush1.msra.mxu0 0.0
        %2673 = vmatprep.mubr.f32.mxu0 0.0
        %2674 = vmatmul.mubr.f32.gmra.mrb[0].mxu0 %v2607
        %v2675 = vpop.f32.mrb[0].mxu0
        %v2676 = vadd.f32 0.0, %v2675
        %v2677 = vpop.f32.mrb[0].mxu0
        %2678 = vdwg.mxu0
        %v2679 = vld [vmem:[#allocation7] sm:$0x1]
        %v2680 = vld [vmem:[#allocation8] sm:$0x1]
        %v2681 = vsel %vm2530, %v2676, 0.0
        %v2682 = vrot.slane %v2681, 4
        %v2683 = vadd.f32 %v2681, %v2682
        %v2684 = vrot.slane %v2683, 2
        %v2685 = vadd.f32 %v2683, %v2684
        %v2686 = vrot.slane %v2685, 1
        %v2687 = vadd.f32 %v2685, %v2686
        %v2688 = vmul.f32 %v2676, %v2676
        %v2689 = vsel %vm2530, %v2688, 0.0
        %v2690 = vrot.slane %v2689, 4
        %v2691 = vadd.f32 %v2689, %v2690
        %v2692 = vrot.slane %v2691, 2
        %v2693 = vadd.f32 %v2691, %v2692
        %v2694 = vrot.slane %v2693, 1
        %v2695 = vadd.f32 %v2693, %v2694
        %v2696 = vmul.u32 %v2453, 8
        %vm2697 = vcmp.ge.s32.totalorder %v2455, %v2696
        %v2698 = vmul.u32 %v2458, 8
        %vm2699 = vcmp.lt.s32.totalorder %v2455, %v2698
        %vm2700 = vmand %vm2697, %vm2699
        %v2701 = vsel %vm2700, 1, 0
        %v2702 = vcvt.s32.f32 %v2701
        %v2703 = vmul.f32 %v2702, %v2687
        %vm2704 = vcmask 257024
        %v2705 = vsel %vm2704, %v2703, 0.0
        %2706 = vadd.xlane.f32.xlu0 %v2705
        %v2707 = vpop.xlane.xlu0 %2706
        %v2708 = vrcp.pop 64.0
        %v2709 = vmul.f32 %v2707, %v2708
        %v2710 = vmul.f32 %v2702, %v2695
        %v2711 = vsel %vm2704, %v2710, 0.0
        %2712 = vadd.xlane.f32.xlu0 %v2711
        %v2713 = vpop.xlane.xlu0 %2712
        %v2714 = vmul.f32 %v2713, %v2708
        %v2715 = vmul.f32 %v2709, %v2709
        %v2716 = vsub.f32 %v2714, %v2715
        %v2717 = vmax.f32 %v2716, 0.0
        %v2718 = vadd.f32 %v2717, 1e-05
        %v2719 = vrsqrt.pop %v2718
        %v2720 = vmul.f32 %v2702, %v2709
        %v2721 = vsel %vm2704, %v2720, 0.0
        %v2722 = vrot.slane %v2721, 4
        %v2723 = vadd.f32 %v2721, %v2722
        %v2724 = vrot.slane %v2723, 2
        %v2725 = vadd.f32 %v2723, %v2724
        %v2726 = vrot.slane %v2725, 1
        %v2727 = vadd.f32 %v2725, %v2726
        %v2728 = vmul.f32 %v2702, %v2719
        %v2729 = vsel %vm2704, %v2728, 0.0
        %v2730 = vrot.slane %v2729, 4
        %v2731 = vadd.f32 %v2729, %v2730
        %v2732 = vrot.slane %v2731, 2
        %v2733 = vadd.f32 %v2731, %v2732
        %v2734 = vrot.slane %v2733, 1
        %v2735 = vadd.f32 %v2733, %v2734
        %v2736 = vsub.f32 %v2676, %v2727
        %v2737 = vmul.f32 %v2736, %v2735
        %v2739 = vlaneseq
        %v2740 = vshrl.u32 %v2739, 7
        %v2741 = vsub.s32 0, %v2740
        %v2742 = vrot.slane %v2679, %v2741
        %v2744 = vmul.f32 %v2737, %v2742
        %v2746 = vlaneseq
        %v2747 = vshrl.u32 %v2746, 7
        %v2748 = vsub.s32 0, %v2747
        %v2749 = vrot.slane %v2680, %v2748
        %v2751 = vadd.f32 %v2744, %v2749
        %v2752 = vld [vmem:[%s9] sm:$0xff]
        %v2753 = vld [vmem:[%s9 + $0x8] sm:$0xff]
        %v2754 = vld [vmem:[%s9 + $0x10] sm:$0xff]
        %v2755 = vld [vmem:[%s9 + $0x18] sm:$0xff]
        %v2756 = vld [vmem:[%s9 + $0x20] sm:$0xff]
        %v2757 = vld [vmem:[%s9 + $0x28] sm:$0xff]
        %v2758 = vld [vmem:[%s9 + $0x30] sm:$0xff]
        %v2759 = vld [vmem:[%s9 + $0x38] sm:$0xff]
        %v2760 = vld [vmem:[%s9 + $0x40] sm:$0xff]
        %v2762 = vsel %vm2530, %v2752, 0
        %v2765 = vsel %vm2530, %v2753, 0
        %v2768 = vsel %vm2530, %v2754, 0
        %v2771 = vsel %vm2530, %v2755, 0
        %v2774 = vsel %vm2530, %v2756, 0
        %v2777 = vsel %vm2530, %v2757, 0
        %v2780 = vsel %vm2530, %v2758, 0
        %v2783 = vsel %vm2530, %v2759, 0
        %v2786 = vsel %vm2530, %v2760, 0
        %2788 = vmatprep.subr.mxu0 0.0
        %2789 = vmatpush1.msra.mxu0 %v2525
        %2790 = vmatprep.subr.mxu0 0.0
        %2791 = vmatpush1.msra.mxu0 %v2526
        %2792 = vmatprep.subr.mxu0 0.0
        %2793 = vmatpush1.msra.mxu0 %v2527
        %2794 = vmatprep.subr.mxu0 0.0
        %2795 = vmatpush1.msra.mxu0 %v2528
        %2796 = vmatprep.subr.mxu0 0.0
        %2797 = vmatpush1.msra.mxu0 0.0
        %2798 = vmatprep.subr.mxu0 0.0
        %2799 = vmatpush1.msra.mxu0 0.0
        %2800 = vmatprep.subr.mxu0 0.0
        %2801 = vmatpush1.msra.mxu0 0.0
        %2802 = vmatprep.subr.mxu0 0.0
        %2803 = vmatpush1.msra.mxu0 0.0
        %2804 = vmatprep.subr.mxu0 0.0
        %2805 = vmatpush1.msra.mxu0 0.0
        %2806 = vmatprep.subr.mxu0 0.0
        %2807 = vmatpush1.msra.mxu0 0.0
        %2808 = vmatprep.subr.mxu0 0.0
        %2809 = vmatpush1.msra.mxu0 0.0
        %2810 = vmatprep.subr.mxu0 0.0
        %2811 = vmatpush1.msra.mxu0 0.0
        %2812 = vmatprep.subr.mxu0 0.0
        %2813 = vmatpush1.msra.mxu0 0.0
        %2814 = vmatprep.subr.mxu0 0.0
        %2815 = vmatpush1.msra.mxu0 0.0
        %2816 = vmatprep.subr.mxu0 0.0
        %2817 = vmatpush1.msra.mxu0 0.0
        %2818 = vmatprep.subr.mxu0 0.0
        %2819 = vmatpush1.msra.mxu0 0.0
        %2820 = vmatprep.subr.mxu0 0.0
        %2821 = vmatpush1.msra.mxu0 0.0
        %2822 = vmatprep.subr.mxu0 0.0
        %2823 = vmatpush1.msra.mxu0 0.0
        %2824 = vmatprep.subr.mxu0 0.0
        %2825 = vmatpush1.msra.mxu0 0.0
        %2826 = vmatprep.subr.mxu0 0.0
        %2827 = vmatpush1.msra.mxu0 0.0
        %2828 = vmatprep.subr.mxu0 0.0
        %2829 = vmatpush1.msra.mxu0 0.0
        %2830 = vmatprep.subr.mxu0 0.0
        %2831 = vmatpush1.msra.mxu0 0.0
        %2832 = vmatprep.subr.mxu0 0.0
        %2833 = vmatpush1.msra.mxu0 0.0
        %2834 = vmatprep.subr.mxu0 0.0
        %2835 = vmatpush1.msra.mxu0 0.0
        %2836 = vmatprep.subr.mxu0 0.0
        %2837 = vmatpush1.msra.mxu0 0.0
        %2838 = vmatprep.subr.mxu0 0.0
        %2839 = vmatpush1.msra.mxu0 0.0
        %2840 = vmatprep.subr.mxu0 0.0
        %2841 = vmatpush1.msra.mxu0 0.0
        %2842 = vmatprep.subr.mxu0 0.0
        %2843 = vmatpush1.msra.mxu0 0.0
        %2844 = vmatprep.subr.mxu0 0.0
        %2845 = vmatpush1.msra.mxu0 0.0
        %2846 = vmatprep.subr.mxu0 0.0
        %2847 = vmatpush1.msra.mxu0 0.0
        %2848 = vmatprep.subr.mxu0 0.0
        %2849 = vmatpush1.msra.mxu0 0.0
        %2850 = vmatprep.subr.mxu0 0.0
        %2851 = vmatpush1.msra.mxu0 0.0
        %2852 = vmatprep.mubr.f32.mxu0 0.0
        %2853 = vmatmul.mubr.f32.gmra.mrb[0].mxu0 %v2762
        %v2854 = vpop.f32.mrb[0].mxu0
        %v2855 = vadd.f32 0.0, %v2854
        %v2856 = vpop.f32.mrb[0].mxu0
        %2857 = vmatprep.mubr.f32.mxu0 0.0
        %2858 = vmatmul.mubr.f32.gmra.mrb[0].mxu0 %v2765
        %v2859 = vpop.f32.mrb[0].mxu0
        %v2860 = vadd.f32 0.0, %v2859
        %v2861 = vpop.f32.mrb[0].mxu0
        %2862 = vmatprep.mubr.f32.mxu0 0.0
        %2863 = vmatmul.mubr.f32.gmra.mrb[0].mxu0 %v2768
        %v2864 = vpop.f32.mrb[0].mxu0
        %v2865 = vadd.f32 0.0, %v2864
        %v2866 = vpop.f32.mrb[0].mxu0
        %2867 = vmatprep.mubr.f32.mxu0 0.0
        %2868 = vmatmul.mubr.f32.gmra.mrb[0].mxu0 %v2771
        %v2869 = vpop.f32.mrb[0].mxu0
        %v2870 = vadd.f32 0.0, %v2869
        %v2871 = vpop.f32.mrb[0].mxu0
        %2872 = vmatprep.mubr.f32.mxu0 0.0
        %2873 = vmatmul.mubr.f32.gmra.mrb[0].mxu0 %v2774
        %v2874 = vpop.f32.mrb[0].mxu0
        %v2875 = vadd.f32 0.0, %v2874
        %v2876 = vpop.f32.mrb[0].mxu0
        %2877 = vmatprep.mubr.f32.mxu0 0.0
        %2878 = vmatmul.mubr.f32.gmra.mrb[0].mxu0 %v2777
        %v2879 = vpop.f32.mrb[0].mxu0
        %v2880 = vadd.f32 0.0, %v2879
        %v2881 = vpop.f32.mrb[0].mxu0
        %2882 = vmatprep.mubr.f32.mxu0 0.0
        %2883 = vmatmul.mubr.f32.gmra.mrb[0].mxu0 %v2780
        %v2884 = vpop.f32.mrb[0].mxu0
        %v2885 = vadd.f32 0.0, %v2884
        %v2886 = vpop.f32.mrb[0].mxu0
        %2887 = vmatprep.mubr.f32.mxu0 0.0
        %2888 = vmatmul.mubr.f32.gmra.mrb[0].mxu0 %v2783
        %v2889 = vpop.f32.mrb[0].mxu0
        %v2890 = vadd.f32 0.0, %v2889
        %v2891 = vpop.f32.mrb[0].mxu0
        %2892 = vmatprep.mubr.f32.mxu0 0.0
        %2893 = vmatmul.mubr.f32.gmra.mrb[0].mxu0 %v2786
        %v2894 = vpop.f32.mrb[0].mxu0
        %v2895 = vadd.f32 0.0, %v2894
        %v2896 = vpop.f32.mrb[0].mxu0
        %2897 = vdwg.mxu0
        %v2898 = vld [vmem:[%s10] sm:$0xff]
        %v2899 = vld [vmem:[%s10 + $0x8] sm:$0xff]
        %s2900 = scalar_lea.vmem %s10, 16
        %v2901 = vld [vmem:[%s2900] sm:$0xff]
        %v2902 = vld [vmem:[%s2900 + $0x8] sm:$0xff]
        %v2904 = vsel %vm2421, %v2860, 0
        %2906 = vmatprep.subr.mxu0 0.0
        %2907 = vmatpush1.msra.mxu0 %v2901
        %2908 = vmatprep.subr.mxu0 0.0
        %2909 = vmatpush1.msra.mxu0 %v2902
        %2910 = vmatprep.subr.mxu0 0.0
        %2911 = vmatpush1.msra.mxu0 0.0
        %2912 = vmatprep.subr.mxu0 0.0
        %2913 = vmatpush1.msra.mxu0 0.0
        %2914 = vmatprep.subr.mxu0 0.0
        %2915 = vmatpush1.msra.mxu0 0.0
        %2916 = vmatprep.subr.mxu0 0.0
        %2917 = vmatpush1.msra.mxu0 0.0
        %2918 = vmatprep.subr.mxu0 0.0
        %2919 = vmatpush1.msra.mxu0 0.0
        %2920 = vmatprep.subr.mxu0 0.0
        %2921 = vmatpush1.msra.mxu0 0.0
        %2922 = vmatprep.subr.mxu0 0.0
        %2923 = vmatpush1.msra.mxu0 0.0
        %2924 = vmatprep.subr.mxu0 0.0
        %2925 = vmatpush1.msra.mxu0 0.0
        %2926 = vmatprep.subr.mxu0 0.0
        %2927 = vmatpush1.msra.mxu0 0.0
        %2928 = vmatprep.subr.mxu0 0.0
        %2929 = vmatpush1.msra.mxu0 0.0
        %2930 = vmatprep.subr.mxu0 0.0
        %2931 = vmatpush1.msra.mxu0 0.0
        %2932 = vmatprep.subr.mxu0 0.0
        %2933 = vmatpush1.msra.mxu0 0.0
        %2934 = vmatprep.subr.mxu0 0.0
        %2935 = vmatpush1.msra.mxu0 0.0
        %2936 = vmatprep.subr.mxu0 0.0
        %2937 = vmatpush1.msra.mxu0 0.0
        %2938 = vmatprep.subr.mxu0 0.0
        %2939 = vmatpush1.msra.mxu0 0.0
        %2940 = vmatprep.subr.mxu0 0.0
        %2941 = vmatpush1.msra.mxu0 0.0
        %2942 = vmatprep.subr.mxu0 0.0
        %2943 = vmatpush1.msra.mxu0 0.0
        %2944 = vmatprep.subr.mxu0 0.0
        %2945 = vmatpush1.msra.mxu0 0.0
        %2946 = vmatprep.subr.mxu0 0.0
        %2947 = vmatpush1.msra.mxu0 0.0
        %2948 = vmatprep.subr.mxu0 0.0
        %2949 = vmatpush1.msra.mxu0 0.0
        %2950 = vmatprep.subr.mxu0 0.0
        %2951 = vmatpush1.msra.mxu0 0.0
        %2952 = vmatprep.subr.mxu0 0.0
        %2953 = vmatpush1.msra.mxu0 0.0
        %2954 = vmatprep.subr.mxu0 0.0
        %2955 = vmatpush1.msra.mxu0 0.0
        %2956 = vmatprep.subr.mxu0 0.0
        %2957 = vmatpush1.msra.mxu0 0.0
        %2958 = vmatprep.subr.mxu0 0.0
        %2959 = vmatpush1.msra.mxu0 0.0
        %2960 = vmatprep.subr.mxu0 0.0
        %2961 = vmatpush1.msra.mxu0 0.0
        %2962 = vmatprep.subr.mxu0 0.0
        %2963 = vmatpush1.msra.mxu0 0.0
        %2964 = vmatprep.subr.mxu0 0.0
        %2965 = vmatpush1.msra.mxu0 0.0
        %2966 = vmatprep.subr.mxu0 0.0
        %2967 = vmatpush1.msra.mxu0 0.0
        %2968 = vmatprep.subr.mxu0 0.0
        %2969 = vmatpush1.msra.mxu0 0.0
        %2970 = vmatprep.mubr.f32.mxu0 0.0
        %2971 = vmatmul.mubr.f32.gmra.mrb[0].mxu0 %v2904
        %v2972 = vpop.f32.mrb[0].mxu0
        %v2973 = vadd.f32 0.0, %v2972
        %v2974 = vpop.f32.mrb[0].mxu0
        %2975 = vdwg.mxu0
        %v2977 = vsel %vm2421, %v2855, 0
        %2979 = vmatprep.subr.mxu0 0.0
        %2980 = vmatpush1.msra.mxu0 %v2898
        %2981 = vmatprep.subr.mxu0 0.0
        %2982 = vmatpush1.msra.mxu0 %v2899
        %2983 = vmatprep.subr.mxu0 0.0
        %2984 = vmatpush1.msra.mxu0 0.0
        %2985 = vmatprep.subr.mxu0 0.0
        %2986 = vmatpush1.msra.mxu0 0.0
        %2987 = vmatprep.subr.mxu0 0.0
        %2988 = vmatpush1.msra.mxu0 0.0
        %2989 = vmatprep.subr.mxu0 0.0
        %2990 = vmatpush1.msra.mxu0 0.0
        %2991 = vmatprep.subr.mxu0 0.0
        %2992 = vmatpush1.msra.mxu0 0.0
        %2993 = vmatprep.subr.mxu0 0.0
        %2994 = vmatpush1.msra.mxu0 0.0
        %2995 = vmatprep.subr.mxu0 0.0
        %2996 = vmatpush1.msra.mxu0 0.0
        %2997 = vmatprep.subr.mxu0 0.0
        %2998 = vmatpush1.msra.mxu0 0.0
        %2999 = vmatprep.subr.mxu0 0.0
        %3000 = vmatpush1.msra.mxu0 0.0
        %3001 = vmatprep.subr.mxu0 0.0
        %3002 = vmatpush1.msra.mxu0 0.0
        %3003 = vmatprep.subr.mxu0 0.0
        %3004 = vmatpush1.msra.mxu0 0.0
        %3005 = vmatprep.subr.mxu0 0.0
        %3006 = vmatpush1.msra.mxu0 0.0
        %3007 = vmatprep.subr.mxu0 0.0
        %3008 = vmatpush1.msra.mxu0 0.0
        %3009 = vmatprep.subr.mxu0 0.0
        %3010 = vmatpush1.msra.mxu0 0.0
        %3011 = vmatprep.subr.mxu0 0.0
        %3012 = vmatpush1.msra.mxu0 0.0
        %3013 = vmatprep.subr.mxu0 0.0
        %3014 = vmatpush1.msra.mxu0 0.0
        %3015 = vmatprep.subr.mxu0 0.0
        %3016 = vmatpush1.msra.mxu0 0.0
        %3017 = vmatprep.subr.mxu0 0.0
        %3018 = vmatpush1.msra.mxu0 0.0
        %3019 = vmatprep.subr.mxu0 0.0
        %3020 = vmatpush1.msra.mxu0 0.0
        %3021 = vmatprep.subr.mxu0 0.0
        %3022 = vmatpush1.msra.mxu0 0.0
        %3023 = vmatprep.subr.mxu0 0.0
        %3024 = vmatpush1.msra.mxu0 0.0
        %3025 = vmatprep.subr.mxu0 0.0
        %3026 = vmatpush1.msra.mxu0 0.0
        %3027 = vmatprep.subr.mxu0 0.0
        %3028 = vmatpush1.msra.mxu0 0.0
        %3029 = vmatprep.subr.mxu0 0.0
        %3030 = vmatpush1.msra.mxu0 0.0
        %3031 = vmatprep.subr.mxu0 0.0
        %3032 = vmatpush1.msra.mxu0 0.0
        %3033 = vmatprep.subr.mxu0 0.0
        %3034 = vmatpush1.msra.mxu0 0.0
        %3035 = vmatprep.subr.mxu0 0.0
        %3036 = vmatpush1.msra.mxu0 0.0
        %3037 = vmatprep.subr.mxu0 0.0
        %3038 = vmatpush1.msra.mxu0 0.0
        %3039 = vmatprep.subr.mxu0 0.0
        %3040 = vmatpush1.msra.mxu0 0.0
        %3041 = vmatprep.subr.mxu0 0.0
        %3042 = vmatpush1.msra.mxu0 0.0
        %3043 = vmatprep.mubr.f32.mxu0 0.0
        %3044 = vmatmul.mubr.f32.gmra.mrb[0].mxu0 %v2977
        %v3045 = vpop.f32.mrb[0].mxu0
        %v3046 = vadd.f32 %v2973, %v3045
        %v3047 = vpop.f32.mrb[0].mxu0
        %3048 = vdwg.mxu0
        %s3049 = scalar_lea.vmem %s10, 32
        %v3050 = vld [vmem:[%s3049] sm:$0xff]
        %v3051 = vld [vmem:[%s3049 + $0x8] sm:$0xff]
        %v3053 = vsel %vm2421, %v2865, 0
        %3055 = vmatprep.subr.mxu0 0.0
        %3056 = vmatpush1.msra.mxu0 %v3050
        %3057 = vmatprep.subr.mxu0 0.0
        %3058 = vmatpush1.msra.mxu0 %v3051
        %3059 = vmatprep.subr.mxu0 0.0
        %3060 = vmatpush1.msra.mxu0 0.0
        %3061 = vmatprep.subr.mxu0 0.0
        %3062 = vmatpush1.msra.mxu0 0.0
        %3063 = vmatprep.subr.mxu0 0.0
        %3064 = vmatpush1.msra.mxu0 0.0
        %3065 = vmatprep.subr.mxu0 0.0
        %3066 = vmatpush1.msra.mxu0 0.0
        %3067 = vmatprep.subr.mxu0 0.0
        %3068 = vmatpush1.msra.mxu0 0.0
        %3069 = vmatprep.subr.mxu0 0.0
        %3070 = vmatpush1.msra.mxu0 0.0
        %3071 = vmatprep.subr.mxu0 0.0
        %3072 = vmatpush1.msra.mxu0 0.0
        %3073 = vmatprep.subr.mxu0 0.0
        %3074 = vmatpush1.msra.mxu0 0.0
        %3075 = vmatprep.subr.mxu0 0.0
        %3076 = vmatpush1.msra.mxu0 0.0
        %3077 = vmatprep.subr.mxu0 0.0
        %3078 = vmatpush1.msra.mxu0 0.0
        %3079 = vmatprep.subr.mxu0 0.0
        %3080 = vmatpush1.msra.mxu0 0.0
        %3081 = vmatprep.subr.mxu0 0.0
        %3082 = vmatpush1.msra.mxu0 0.0
        %3083 = vmatprep.subr.mxu0 0.0
        %3084 = vmatpush1.msra.mxu0 0.0
        %3085 = vmatprep.subr.mxu0 0.0
        %3086 = vmatpush1.msra.mxu0 0.0
        %3087 = vmatprep.subr.mxu0 0.0
        %3088 = vmatpush1.msra.mxu0 0.0
        %3089 = vmatprep.subr.mxu0 0.0
        %3090 = vmatpush1.msra.mxu0 0.0
        %3091 = vmatprep.subr.mxu0 0.0
        %3092 = vmatpush1.msra.mxu0 0.0
        %3093 = vmatprep.subr.mxu0 0.0
        %3094 = vmatpush1.msra.mxu0 0.0
        %3095 = vmatprep.subr.mxu0 0.0
        %3096 = vmatpush1.msra.mxu0 0.0
        %3097 = vmatprep.subr.mxu0 0.0
        %3098 = vmatpush1.msra.mxu0 0.0
        %3099 = vmatprep.subr.mxu0 0.0
        %3100 = vmatpush1.msra.mxu0 0.0
        %3101 = vmatprep.subr.mxu0 0.0
        %3102 = vmatpush1.msra.mxu0 0.0
        %3103 = vmatprep.subr.mxu0 0.0
        %3104 = vmatpush1.msra.mxu0 0.0
        %3105 = vmatprep.subr.mxu0 0.0
        %3106 = vmatpush1.msra.mxu0 0.0
        %3107 = vmatprep.subr.mxu0 0.0
        %3108 = vmatpush1.msra.mxu0 0.0
        %3109 = vmatprep.subr.mxu0 0.0
        %3110 = vmatpush1.msra.mxu0 0.0
        %3111 = vmatprep.subr.mxu0 0.0
        %3112 = vmatpush1.msra.mxu0 0.0
        %3113 = vmatprep.subr.mxu0 0.0
        %3114 = vmatpush1.msra.mxu0 0.0
        %3115 = vmatprep.subr.mxu0 0.0
        %3116 = vmatpush1.msra.mxu0 0.0
        %3117 = vmatprep.subr.mxu0 0.0
        %3118 = vmatpush1.msra.mxu0 0.0
        %3119 = vmatprep.mubr.f32.mxu0 0.0
        %3120 = vmatmul.mubr.f32.gmra.mrb[0].mxu0 %v3053
        %v3121 = vpop.f32.mrb[0].mxu0
        %v3122 = vadd.f32 0.0, %v3121
        %v3123 = vpop.f32.mrb[0].mxu0
        %3124 = vdwg.mxu0
        %v3125 = vadd.f32 %v3046, %v3122
        %s3126 = scalar_lea.vmem %s10, 48
        %v3127 = vld [vmem:[%s3126] sm:$0xff]
        %v3128 = vld [vmem:[%s3126 + $0x8] sm:$0xff]
        %v3130 = vsel %vm2421, %v2870, 0
        %3132 = vmatprep.subr.mxu0 0.0
        %3133 = vmatpush1.msra.mxu0 %v3127
        %3134 = vmatprep.subr.mxu0 0.0
        %3135 = vmatpush1.msra.mxu0 %v3128
        %3136 = vmatprep.subr.mxu0 0.0
        %3137 = vmatpush1.msra.mxu0 0.0
        %3138 = vmatprep.subr.mxu0 0.0
        %3139 = vmatpush1.msra.mxu0 0.0
        %3140 = vmatprep.subr.mxu0 0.0
        %3141 = vmatpush1.msra.mxu0 0.0
        %3142 = vmatprep.subr.mxu0 0.0
        %3143 = vmatpush1.msra.mxu0 0.0
        %3144 = vmatprep.subr.mxu0 0.0
        %3145 = vmatpush1.msra.mxu0 0.0
        %3146 = vmatprep.subr.mxu0 0.0
        %3147 = vmatpush1.msra.mxu0 0.0
        %3148 = vmatprep.subr.mxu0 0.0
        %3149 = vmatpush1.msra.mxu0 0.0
        %3150 = vmatprep.subr.mxu0 0.0
        %3151 = vmatpush1.msra.mxu0 0.0
        %3152 = vmatprep.subr.mxu0 0.0
        %3153 = vmatpush1.msra.mxu0 0.0
        %3154 = vmatprep.subr.mxu0 0.0
        %3155 = vmatpush1.msra.mxu0 0.0
        %3156 = vmatprep.subr.mxu0 0.0
        %3157 = vmatpush1.msra.mxu0 0.0
        %3158 = vmatprep.subr.mxu0 0.0
        %3159 = vmatpush1.msra.mxu0 0.0
        %3160 = vmatprep.subr.mxu0 0.0
        %3161 = vmatpush1.msra.mxu0 0.0
        %3162 = vmatprep.subr.mxu0 0.0
        %3163 = vmatpush1.msra.mxu0 0.0
        %3164 = vmatprep.subr.mxu0 0.0
        %3165 = vmatpush1.msra.mxu0 0.0
        %3166 = vmatprep.subr.mxu0 0.0
        %3167 = vmatpush1.msra.mxu0 0.0
        %3168 = vmatprep.subr.mxu0 0.0
        %3169 = vmatpush1.msra.mxu0 0.0
        %3170 = vmatprep.subr.mxu0 0.0
        %3171 = vmatpush1.msra.mxu0 0.0
        %3172 = vmatprep.subr.mxu0 0.0
        %3173 = vmatpush1.msra.mxu0 0.0
        %3174 = vmatprep.subr.mxu0 0.0
        %3175 = vmatpush1.msra.mxu0 0.0
        %3176 = vmatprep.subr.mxu0 0.0
        %3177 = vmatpush1.msra.mxu0 0.0
        %3178 = vmatprep.subr.mxu0 0.0
        %3179 = vmatpush1.msra.mxu0 0.0
        %3180 = vmatprep.subr.mxu0 0.0
        %3181 = vmatpush1.msra.mxu0 0.0
        %3182 = vmatprep.subr.mxu0 0.0
        %3183 = vmatpush1.msra.mxu0 0.0
        %3184 = vmatprep.subr.mxu0 0.0
        %3185 = vmatpush1.msra.mxu0 0.0
        %3186 = vmatprep.subr.mxu0 0.0
        %3187 = vmatpush1.msra.mxu0 0.0
        %3188 = vmatprep.subr.mxu0 0.0
        %3189 = vmatpush1.msra.mxu0 0.0
        %3190 = vmatprep.subr.mxu0 0.0
        %3191 = vmatpush1.msra.mxu0 0.0
        %3192 = vmatprep.subr.mxu0 0.0
        %3193 = vmatpush1.msra.mxu0 0.0
        %3194 = vmatprep.subr.mxu0 0.0
        %3195 = vmatpush1.msra.mxu0 0.0
        %3196 = vmatprep.mubr.f32.mxu0 0.0
        %3197 = vmatmul.mubr.f32.gmra.mrb[0].mxu0 %v3130
        %v3198 = vpop.f32.mrb[0].mxu0
        %v3199 = vadd.f32 0.0, %v3198
        %v3200 = vpop.f32.mrb[0].mxu0
        %3201 = vdwg.mxu0
        %v3202 = vadd.f32 %v3125, %v3199
        %s3203 = scalar_lea.vmem %s10, 64
        %v3204 = vld [vmem:[%s3203] sm:$0xff]
        %v3205 = vld [vmem:[%s3203 + $0x8] sm:$0xff]
        %v3207 = vsel %vm2421, %v2875, 0
        %3209 = vmatprep.subr.mxu0 0.0
        %3210 = vmatpush1.msra.mxu0 %v3204
        %3211 = vmatprep.subr.mxu0 0.0
        %3212 = vmatpush1.msra.mxu0 %v3205
        %3213 = vmatprep.subr.mxu0 0.0
        %3214 = vmatpush1.msra.mxu0 0.0
        %3215 = vmatprep.subr.mxu0 0.0
        %3216 = vmatpush1.msra.mxu0 0.0
        %3217 = vmatprep.subr.mxu0 0.0
        %3218 = vmatpush1.msra.mxu0 0.0
        %3219 = vmatprep.subr.mxu0 0.0
        %3220 = vmatpush1.msra.mxu0 0.0
        %3221 = vmatprep.subr.mxu0 0.0
        %3222 = vmatpush1.msra.mxu0 0.0
        %3223 = vmatprep.subr.mxu0 0.0
        %3224 = vmatpush1.msra.mxu0 0.0
        %3225 = vmatprep.subr.mxu0 0.0
        %3226 = vmatpush1.msra.mxu0 0.0
        %3227 = vmatprep.subr.mxu0 0.0
        %3228 = vmatpush1.msra.mxu0 0.0
        %3229 = vmatprep.subr.mxu0 0.0
        %3230 = vmatpush1.msra.mxu0 0.0
        %3231 = vmatprep.subr.mxu0 0.0
        %3232 = vmatpush1.msra.mxu0 0.0
        %3233 = vmatprep.subr.mxu0 0.0
        %3234 = vmatpush1.msra.mxu0 0.0
        %3235 = vmatprep.subr.mxu0 0.0
        %3236 = vmatpush1.msra.mxu0 0.0
        %3237 = vmatprep.subr.mxu0 0.0
        %3238 = vmatpush1.msra.mxu0 0.0
        %3239 = vmatprep.subr.mxu0 0.0
        %3240 = vmatpush1.msra.mxu0 0.0
        %3241 = vmatprep.subr.mxu0 0.0
        %3242 = vmatpush1.msra.mxu0 0.0
        %3243 = vmatprep.subr.mxu0 0.0
        %3244 = vmatpush1.msra.mxu0 0.0
        %3245 = vmatprep.subr.mxu0 0.0
        %3246 = vmatpush1.msra.mxu0 0.0
        %3247 = vmatprep.subr.mxu0 0.0
        %3248 = vmatpush1.msra.mxu0 0.0
        %3249 = vmatprep.subr.mxu0 0.0
        %3250 = vmatpush1.msra.mxu0 0.0
        %3251 = vmatprep.subr.mxu0 0.0
        %3252 = vmatpush1.msra.mxu0 0.0
        %3253 = vmatprep.subr.mxu0 0.0
        %3254 = vmatpush1.msra.mxu0 0.0
        %3255 = vmatprep.subr.mxu0 0.0
        %3256 = vmatpush1.msra.mxu0 0.0
        %3257 = vmatprep.subr.mxu0 0.0
        %3258 = vmatpush1.msra.mxu0 0.0
        %3259 = vmatprep.subr.mxu0 0.0
        %3260 = vmatpush1.msra.mxu0 0.0
        %3261 = vmatprep.subr.mxu0 0.0
        %3262 = vmatpush1.msra.mxu0 0.0
        %3263 = vmatprep.subr.mxu0 0.0
        %3264 = vmatpush1.msra.mxu0 0.0
        %3265 = vmatprep.subr.mxu0 0.0
        %3266 = vmatpush1.msra.mxu0 0.0
        %3267 = vmatprep.subr.mxu0 0.0
        %3268 = vmatpush1.msra.mxu0 0.0
        %3269 = vmatprep.subr.mxu0 0.0
        %3270 = vmatpush1.msra.mxu0 0.0
        %3271 = vmatprep.subr.mxu0 0.0
        %3272 = vmatpush1.msra.mxu0 0.0
        %3273 = vmatprep.mubr.f32.mxu0 0.0
        %3274 = vmatmul.mubr.f32.gmra.mrb[0].mxu0 %v3207
        %v3275 = vpop.f32.mrb[0].mxu0
        %v3276 = vadd.f32 0.0, %v3275
        %v3277 = vpop.f32.mrb[0].mxu0
        %3278 = vdwg.mxu0
        %v3279 = vadd.f32 %v3202, %v3276
        %s3280 = scalar_lea.vmem %s10, 80
        %v3281 = vld [vmem:[%s3280] sm:$0xff]
        %v3282 = vld [vmem:[%s3280 + $0x8] sm:$0xff]
        %v3284 = vsel %vm2421, %v2880, 0
        %3286 = vmatprep.subr.mxu0 0.0
        %3287 = vmatpush1.msra.mxu0 %v3281
        %3288 = vmatprep.subr.mxu0 0.0
        %3289 = vmatpush1.msra.mxu0 %v3282
        %3290 = vmatprep.subr.mxu0 0.0
        %3291 = vmatpush1.msra.mxu0 0.0
        %3292 = vmatprep.subr.mxu0 0.0
        %3293 = vmatpush1.msra.mxu0 0.0
        %3294 = vmatprep.subr.mxu0 0.0
        %3295 = vmatpush1.msra.mxu0 0.0
        %3296 = vmatprep.subr.mxu0 0.0
        %3297 = vmatpush1.msra.mxu0 0.0
        %3298 = vmatprep.subr.mxu0 0.0
        %3299 = vmatpush1.msra.mxu0 0.0
        %3300 = vmatprep.subr.mxu0 0.0
        %3301 = vmatpush1.msra.mxu0 0.0
        %3302 = vmatprep.subr.mxu0 0.0
        %3303 = vmatpush1.msra.mxu0 0.0
        %3304 = vmatprep.subr.mxu0 0.0
        %3305 = vmatpush1.msra.mxu0 0.0
        %3306 = vmatprep.subr.mxu0 0.0
        %3307 = vmatpush1.msra.mxu0 0.0
        %3308 = vmatprep.subr.mxu0 0.0
        %3309 = vmatpush1.msra.mxu0 0.0
        %3310 = vmatprep.subr.mxu0 0.0
        %3311 = vmatpush1.msra.mxu0 0.0
        %3312 = vmatprep.subr.mxu0 0.0
        %3313 = vmatpush1.msra.mxu0 0.0
        %3314 = vmatprep.subr.mxu0 0.0
        %3315 = vmatpush1.msra.mxu0 0.0
        %3316 = vmatprep.subr.mxu0 0.0
        %3317 = vmatpush1.msra.mxu0 0.0
        %3318 = vmatprep.subr.mxu0 0.0
        %3319 = vmatpush1.msra.mxu0 0.0
        %3320 = vmatprep.subr.mxu0 0.0
        %3321 = vmatpush1.msra.mxu0 0.0
        %3322 = vmatprep.subr.mxu0 0.0
        %3323 = vmatpush1.msra.mxu0 0.0
        %3324 = vmatprep.subr.mxu0 0.0
        %3325 = vmatpush1.msra.mxu0 0.0
        %3326 = vmatprep.subr.mxu0 0.0
        %3327 = vmatpush1.msra.mxu0 0.0
        %3328 = vmatprep.subr.mxu0 0.0
        %3329 = vmatpush1.msra.mxu0 0.0
        %3330 = vmatprep.subr.mxu0 0.0
        %3331 = vmatpush1.msra.mxu0 0.0
        %3332 = vmatprep.subr.mxu0 0.0
        %3333 = vmatpush1.msra.mxu0 0.0
        %3334 = vmatprep.subr.mxu0 0.0
        %3335 = vmatpush1.msra.mxu0 0.0
        %3336 = vmatprep.subr.mxu0 0.0
        %3337 = vmatpush1.msra.mxu0 0.0
        %3338 = vmatprep.subr.mxu0 0.0
        %3339 = vmatpush1.msra.mxu0 0.0
        %3340 = vmatprep.subr.mxu0 0.0
        %3341 = vmatpush1.msra.mxu0 0.0
        %3342 = vmatprep.subr.mxu0 0.0
        %3343 = vmatpush1.msra.mxu0 0.0
        %3344 = vmatprep.subr.mxu0 0.0
        %3345 = vmatpush1.msra.mxu0 0.0
        %3346 = vmatprep.subr.mxu0 0.0
        %3347 = vmatpush1.msra.mxu0 0.0
        %3348 = vmatprep.subr.mxu0 0.0
        %3349 = vmatpush1.msra.mxu0 0.0
        %3350 = vmatprep.mubr.f32.mxu0 0.0
        %3351 = vmatmul.mubr.f32.gmra.mrb[0].mxu0 %v3284
        %v3352 = vpop.f32.mrb[0].mxu0
        %v3353 = vadd.f32 0.0, %v3352
        %v3354 = vpop.f32.mrb[0].mxu0
        %3355 = vdwg.mxu0
        %v3356 = vadd.f32 %v3279, %v3353
        %s3357 = scalar_lea.vmem %s10, 96
        %v3358 = vld [vmem:[%s3357] sm:$0xff]
        %v3359 = vld [vmem:[%s3357 + $0x8] sm:$0xff]
        %v3361 = vsel %vm2421, %v2885, 0
        %3363 = vmatprep.subr.mxu0 0.0
        %3364 = vmatpush1.msra.mxu0 %v3358
        %3365 = vmatprep.subr.mxu0 0.0
        %3366 = vmatpush1.msra.mxu0 %v3359
        %3367 = vmatprep.subr.mxu0 0.0
        %3368 = vmatpush1.msra.mxu0 0.0
        %3369 = vmatprep.subr.mxu0 0.0
        %3370 = vmatpush1.msra.mxu0 0.0
        %3371 = vmatprep.subr.mxu0 0.0
        %3372 = vmatpush1.msra.mxu0 0.0
        %3373 = vmatprep.subr.mxu0 0.0
        %3374 = vmatpush1.msra.mxu0 0.0
        %3375 = vmatprep.subr.mxu0 0.0
        %3376 = vmatpush1.msra.mxu0 0.0
        %3377 = vmatprep.subr.mxu0 0.0
        %3378 = vmatpush1.msra.mxu0 0.0
        %3379 = vmatprep.subr.mxu0 0.0
        %3380 = vmatpush1.msra.mxu0 0.0
        %3381 = vmatprep.subr.mxu0 0.0
        %3382 = vmatpush1.msra.mxu0 0.0
        %3383 = vmatprep.subr.mxu0 0.0
        %3384 = vmatpush1.msra.mxu0 0.0
        %3385 = vmatprep.subr.mxu0 0.0
        %3386 = vmatpush1.msra.mxu0 0.0
        %3387 = vmatprep.subr.mxu0 0.0
        %3388 = vmatpush1.msra.mxu0 0.0
        %3389 = vmatprep.subr.mxu0 0.0
        %3390 = vmatpush1.msra.mxu0 0.0
        %3391 = vmatprep.subr.mxu0 0.0
        %3392 = vmatpush1.msra.mxu0 0.0
        %3393 = vmatprep.subr.mxu0 0.0
        %3394 = vmatpush1.msra.mxu0 0.0
        %3395 = vmatprep.subr.mxu0 0.0
        %3396 = vmatpush1.msra.mxu0 0.0
        %3397 = vmatprep.subr.mxu0 0.0
        %3398 = vmatpush1.msra.mxu0 0.0
        %3399 = vmatprep.subr.mxu0 0.0
        %3400 = vmatpush1.msra.mxu0 0.0
        %3401 = vmatprep.subr.mxu0 0.0
        %3402 = vmatpush1.msra.mxu0 0.0
        %3403 = vmatprep.subr.mxu0 0.0
        %3404 = vmatpush1.msra.mxu0 0.0
        %3405 = vmatprep.subr.mxu0 0.0
        %3406 = vmatpush1.msra.mxu0 0.0
        %3407 = vmatprep.subr.mxu0 0.0
        %3408 = vmatpush1.msra.mxu0 0.0
        %3409 = vmatprep.subr.mxu0 0.0
        %3410 = vmatpush1.msra.mxu0 0.0
        %3411 = vmatprep.subr.mxu0 0.0
        %3412 = vmatpush1.msra.mxu0 0.0
        %3413 = vmatprep.subr.mxu0 0.0
        %3414 = vmatpush1.msra.mxu0 0.0
        %3415 = vmatprep.subr.mxu0 0.0
        %3416 = vmatpush1.msra.mxu0 0.0
        %3417 = vmatprep.subr.mxu0 0.0
        %3418 = vmatpush1.msra.mxu0 0.0
        %3419 = vmatprep.subr.mxu0 0.0
        %3420 = vmatpush1.msra.mxu0 0.0
        %3421 = vmatprep.subr.mxu0 0.0
        %3422 = vmatpush1.msra.mxu0 0.0
        %3423 = vmatprep.subr.mxu0 0.0
        %3424 = vmatpush1.msra.mxu0 0.0
        %3425 = vmatprep.subr.mxu0 0.0
        %3426 = vmatpush1.msra.mxu0 0.0
        %3427 = vmatprep.mubr.f32.mxu0 0.0
        %3428 = vmatmul.mubr.f32.gmra.mrb[0].mxu0 %v3361
        %v3429 = vpop.f32.mrb[0].mxu0
        %v3430 = vadd.f32 0.0, %v3429
        %v3431 = vpop.f32.mrb[0].mxu0
        %3432 = vdwg.mxu0
        %v3433 = vadd.f32 %v3356, %v3430
        %s3434 = scalar_lea.vmem %s10, 112
        %v3435 = vld [vmem:[%s3434] sm:$0xff]
        %v3436 = vld [vmem:[%s3434 + $0x8] sm:$0xff]
        %v3438 = vsel %vm2421, %v2890, 0
        %3440 = vmatprep.subr.mxu0 0.0
        %3441 = vmatpush1.msra.mxu0 %v3435
        %3442 = vmatprep.subr.mxu0 0.0
        %3443 = vmatpush1.msra.mxu0 %v3436
        %3444 = vmatprep.subr.mxu0 0.0
        %3445 = vmatpush1.msra.mxu0 0.0
        %3446 = vmatprep.subr.mxu0 0.0
        %3447 = vmatpush1.msra.mxu0 0.0
        %3448 = vmatprep.subr.mxu0 0.0
        %3449 = vmatpush1.msra.mxu0 0.0
        %3450 = vmatprep.subr.mxu0 0.0
        %3451 = vmatpush1.msra.mxu0 0.0
        %3452 = vmatprep.subr.mxu0 0.0
        %3453 = vmatpush1.msra.mxu0 0.0
        %3454 = vmatprep.subr.mxu0 0.0
        %3455 = vmatpush1.msra.mxu0 0.0
        %3456 = vmatprep.subr.mxu0 0.0
        %3457 = vmatpush1.msra.mxu0 0.0
        %3458 = vmatprep.subr.mxu0 0.0
        %3459 = vmatpush1.msra.mxu0 0.0
        %3460 = vmatprep.subr.mxu0 0.0
        %3461 = vmatpush1.msra.mxu0 0.0
        %3462 = vmatprep.subr.mxu0 0.0
        %3463 = vmatpush1.msra.mxu0 0.0
        %3464 = vmatprep.subr.mxu0 0.0
        %3465 = vmatpush1.msra.mxu0 0.0
        %3466 = vmatprep.subr.mxu0 0.0
        %3467 = vmatpush1.msra.mxu0 0.0
        %3468 = vmatprep.subr.mxu0 0.0
        %3469 = vmatpush1.msra.mxu0 0.0
        %3470 = vmatprep.subr.mxu0 0.0
        %3471 = vmatpush1.msra.mxu0 0.0
        %3472 = vmatprep.subr.mxu0 0.0
        %3473 = vmatpush1.msra.mxu0 0.0
        %3474 = vmatprep.subr.mxu0 0.0
        %3475 = vmatpush1.msra.mxu0 0.0
        %3476 = vmatprep.subr.mxu0 0.0
        %3477 = vmatpush1.msra.mxu0 0.0
        %3478 = vmatprep.subr.mxu0 0.0
        %3479 = vmatpush1.msra.mxu0 0.0
        %3480 = vmatprep.subr.mxu0 0.0
        %3481 = vmatpush1.msra.mxu0 0.0
        %3482 = vmatprep.subr.mxu0 0.0
        %3483 = vmatpush1.msra.mxu0 0.0
        %3484 = vmatprep.subr.mxu0 0.0
        %3485 = vmatpush1.msra.mxu0 0.0
        %3486 = vmatprep.subr.mxu0 0.0
        %3487 = vmatpush1.msra.mxu0 0.0
        %3488 = vmatprep.subr.mxu0 0.0
        %3489 = vmatpush1.msra.mxu0 0.0
        %3490 = vmatprep.subr.mxu0 0.0
        %3491 = vmatpush1.msra.mxu0 0.0
        %3492 = vmatprep.subr.mxu0 0.0
        %3493 = vmatpush1.msra.mxu0 0.0
        %3494 = vmatprep.subr.mxu0 0.0
        %3495 = vmatpush1.msra.mxu0 0.0
        %3496 = vmatprep.subr.mxu0 0.0
        %3497 = vmatpush1.msra.mxu0 0.0
        %3498 = vmatprep.subr.mxu0 0.0
        %3499 = vmatpush1.msra.mxu0 0.0
        %3500 = vmatprep.subr.mxu0 0.0
        %3501 = vmatpush1.msra.mxu0 0.0
        %3502 = vmatprep.subr.mxu0 0.0
        %3503 = vmatpush1.msra.mxu0 0.0
        %3504 = vmatprep.mubr.f32.mxu0 0.0
        %3505 = vmatmul.mubr.f32.gmra.mrb[0].mxu0 %v3438
        %v3506 = vpop.f32.mrb[0].mxu0
        %v3507 = vadd.f32 0.0, %v3506
        %v3508 = vpop.f32.mrb[0].mxu0
        %3509 = vdwg.mxu0
        %v3510 = vadd.f32 %v3433, %v3507
        %s3511 = scalar_lea.vmem %s10, 128
        %v3512 = vld [vmem:[%s3511] sm:$0xff]
        %v3513 = vld [vmem:[%s3511 + $0x8] sm:$0xff]
        %v3515 = vsel %vm2421, %v2895, 0
        %3517 = vmatprep.subr.mxu0 0.0
        %3518 = vmatpush1.msra.mxu0 %v3512
        %3519 = vmatprep.subr.mxu0 0.0
        %3520 = vmatpush1.msra.mxu0 %v3513
        %3521 = vmatprep.subr.mxu0 0.0
        %3522 = vmatpush1.msra.mxu0 0.0
        %3523 = vmatprep.subr.mxu0 0.0
        %3524 = vmatpush1.msra.mxu0 0.0
        %3525 = vmatprep.subr.mxu0 0.0
        %3526 = vmatpush1.msra.mxu0 0.0
        %3527 = vmatprep.subr.mxu0 0.0
        %3528 = vmatpush1.msra.mxu0 0.0
        %3529 = vmatprep.subr.mxu0 0.0
        %3530 = vmatpush1.msra.mxu0 0.0
        %3531 = vmatprep.subr.mxu0 0.0
        %3532 = vmatpush1.msra.mxu0 0.0
        %3533 = vmatprep.subr.mxu0 0.0
        %3534 = vmatpush1.msra.mxu0 0.0
        %3535 = vmatprep.subr.mxu0 0.0
        %3536 = vmatpush1.msra.mxu0 0.0
        %3537 = vmatprep.subr.mxu0 0.0
        %3538 = vmatpush1.msra.mxu0 0.0
        %3539 = vmatprep.subr.mxu0 0.0
        %3540 = vmatpush1.msra.mxu0 0.0
        %3541 = vmatprep.subr.mxu0 0.0
        %3542 = vmatpush1.msra.mxu0 0.0
        %3543 = vmatprep.subr.mxu0 0.0
        %3544 = vmatpush1.msra.mxu0 0.0
        %3545 = vmatprep.subr.mxu0 0.0
        %3546 = vmatpush1.msra.mxu0 0.0
        %3547 = vmatprep.subr.mxu0 0.0
        %3548 = vmatpush1.msra.mxu0 0.0
        %3549 = vmatprep.subr.mxu0 0.0
        %3550 = vmatpush1.msra.mxu0 0.0
        %3551 = vmatprep.subr.mxu0 0.0
        %3552 = vmatpush1.msra.mxu0 0.0
        %3553 = vmatprep.subr.mxu0 0.0
        %3554 = vmatpush1.msra.mxu0 0.0
        %3555 = vmatprep.subr.mxu0 0.0
        %3556 = vmatpush1.msra.mxu0 0.0
        %3557 = vmatprep.subr.mxu0 0.0
        %3558 = vmatpush1.msra.mxu0 0.0
        %3559 = vmatprep.subr.mxu0 0.0
        %3560 = vmatpush1.msra.mxu0 0.0
        %3561 = vmatprep.subr.mxu0 0.0
        %3562 = vmatpush1.msra.mxu0 0.0
        %3563 = vmatprep.subr.mxu0 0.0
        %3564 = vmatpush1.msra.mxu0 0.0
        %3565 = vmatprep.subr.mxu0 0.0
        %3566 = vmatpush1.msra.mxu0 0.0
        %3567 = vmatprep.subr.mxu0 0.0
        %3568 = vmatpush1.msra.mxu0 0.0
        %3569 = vmatprep.subr.mxu0 0.0
        %3570 = vmatpush1.msra.mxu0 0.0
        %3571 = vmatprep.subr.mxu0 0.0
        %3572 = vmatpush1.msra.mxu0 0.0
        %3573 = vmatprep.subr.mxu0 0.0
        %3574 = vmatpush1.msra.mxu0 0.0
        %3575 = vmatprep.subr.mxu0 0.0
        %3576 = vmatpush1.msra.mxu0 0.0
        %3577 = vmatprep.subr.mxu0 0.0
        %3578 = vmatpush1.msra.mxu0 0.0
        %3579 = vmatprep.subr.mxu0 0.0
        %3580 = vmatpush1.msra.mxu0 0.0
        %3581 = vmatprep.mubr.f32.mxu0 0.0
        %3582 = vmatmul.mubr.f32.gmra.mrb[0].mxu0 %v3515
        %v3583 = vpop.f32.mrb[0].mxu0
        %v3584 = vadd.f32 0.0, %v3583
        %v3585 = vpop.f32.mrb[0].mxu0
        %3586 = vdwg.mxu0
        %v3587 = vadd.f32 %v3510, %v3584
        %v3588 = vld [vmem:[#allocation10] sm:$0x1]
        %v3589 = vld [vmem:[#allocation11] sm:$0x1]
        %v3590 = vsel %vm2530, %v3587, 0.0
        %v3591 = vrot.slane %v3590, 4
        %v3592 = vadd.f32 %v3590, %v3591
        %v3593 = vrot.slane %v3592, 2
        %v3594 = vadd.f32 %v3592, %v3593
        %v3595 = vrot.slane %v3594, 1
        %v3596 = vadd.f32 %v3594, %v3595
        %v3597 = vmul.f32 %v3587, %v3587
        %v3598 = vsel %vm2530, %v3597, 0.0
        %v3599 = vrot.slane %v3598, 4
        %v3600 = vadd.f32 %v3598, %v3599
        %v3601 = vrot.slane %v3600, 2
        %v3602 = vadd.f32 %v3600, %v3601
        %v3603 = vrot.slane %v3602, 1
        %v3604 = vadd.f32 %v3602, %v3603
        %v3605 = vmul.f32 %v2702, %v3596
        %v3606 = vsel %vm2704, %v3605, 0.0
        %3607 = vadd.xlane.f32.xlu0 %v3606
        %v3608 = vpop.xlane.xlu0 %3607
        %v3609 = vmul.f32 %v3608, %v2708
        %v3610 = vmul.f32 %v2702, %v3604
        %v3611 = vsel %vm2704, %v3610, 0.0
        %3612 = vadd.xlane.f32.xlu0 %v3611
        %v3613 = vpop.xlane.xlu0 %3612
        %v3614 = vmul.f32 %v3613, %v2708
        %v3615 = vmul.f32 %v3609, %v3609
        %v3616 = vsub.f32 %v3614, %v3615
        %v3617 = vmax.f32 %v3616, 0.0
        %v3618 = vadd.f32 %v3617, 1e-05
        %v3619 = vrsqrt.pop %v3618
        %v3620 = vmul.f32 %v2702, %v3609
        %v3621 = vsel %vm2704, %v3620, 0.0
        %v3622 = vrot.slane %v3621, 4
        %v3623 = vadd.f32 %v3621, %v3622
        %v3624 = vrot.slane %v3623, 2
        %v3625 = vadd.f32 %v3623, %v3624
        %v3626 = vrot.slane %v3625, 1
        %v3627 = vadd.f32 %v3625, %v3626
        %v3628 = vmul.f32 %v2702, %v3619
        %v3629 = vsel %vm2704, %v3628, 0.0
        %v3630 = vrot.slane %v3629, 4
        %v3631 = vadd.f32 %v3629, %v3630
        %v3632 = vrot.slane %v3631, 2
        %v3633 = vadd.f32 %v3631, %v3632
        %v3634 = vrot.slane %v3633, 1
        %v3635 = vadd.f32 %v3633, %v3634
        %v3636 = vsub.f32 %v3587, %v3627
        %v3637 = vmul.f32 %v3636, %v3635
        %v3639 = vlaneseq
        %v3640 = vshrl.u32 %v3639, 7
        %v3641 = vsub.s32 0, %v3640
        %v3642 = vrot.slane %v3588, %v3641
        %v3644 = vmul.f32 %v3637, %v3642
        %v3646 = vlaneseq
        %v3647 = vshrl.u32 %v3646, 7
        %v3648 = vsub.s32 0, %v3647
        %v3649 = vrot.slane %v3589, %v3648
        %v3651 = vadd.f32 %v3644, %v3649
        %v3652 = vmax.f32 %v3651, 0.0
        %v3653 = vld [vmem:[%s13] sm:$0xff]
        %v3654 = vld [vmem:[%s13 + $0x8] sm:$0xff]
        %v3655 = vld [vmem:[%s13 + $0x10] sm:$0xff]
        %v3656 = vld [vmem:[%s13 + $0x18] sm:$0xff]
        %v3657 = vld [vmem:[%s13 + $0x20] sm:$0xff]
        %v3658 = vld [vmem:[%s13 + $0x28] sm:$0xff]
        %v3659 = vld [vmem:[%s13 + $0x30] sm:$0xff]
        %v3660 = vld [vmem:[%s13 + $0x38] sm:$0xff]
        %v3661 = vld [vmem:[%s13 + $0x40] sm:$0xff]
        %vm3662 = vcmask 64512
        %v3664 = vsel %vm3662, %v3653, 0
        %v3667 = vsel %vm3662, %v3654, 0
        %v3670 = vsel %vm3662, %v3655, 0
        %v3673 = vsel %vm3662, %v3656, 0
        %v3676 = vsel %vm3662, %v3657, 0
        %v3679 = vsel %vm3662, %v3658, 0
        %v3682 = vsel %vm3662, %v3659, 0
        %v3685 = vsel %vm3662, %v3660, 0
        %v3688 = vsel %vm3662, %v3661, 0
        %3690 = vmatprep.subr.mxu0 0.0
        %3691 = vmatpush1.msra.mxu0 %v3652
        %3692 = vmatprep.subr.mxu0 0.0
        %3693 = vmatpush1.msra.mxu0 0.0
        %3694 = vmatprep.subr.mxu0 0.0
        %3695 = vmatpush1.msra.mxu0 0.0
        %3696 = vmatprep.subr.mxu0 0.0
        %3697 = vmatpush1.msra.mxu0 0.0
        %3698 = vmatprep.subr.mxu0 0.0
        %3699 = vmatpush1.msra.mxu0 0.0
        %3700 = vmatprep.subr.mxu0 0.0
        %3701 = vmatpush1.msra.mxu0 0.0
        %3702 = vmatprep.subr.mxu0 0.0
        %3703 = vmatpush1.msra.mxu0 0.0
        %3704 = vmatprep.subr.mxu0 0.0
        %3705 = vmatpush1.msra.mxu0 0.0
        %3706 = vmatprep.subr.mxu0 0.0
        %3707 = vmatpush1.msra.mxu0 0.0
        %3708 = vmatprep.subr.mxu0 0.0
        %3709 = vmatpush1.msra.mxu0 0.0
        %3710 = vmatprep.subr.mxu0 0.0
        %3711 = vmatpush1.msra.mxu0 0.0
        %3712 = vmatprep.subr.mxu0 0.0
        %3713 = vmatpush1.msra.mxu0 0.0
        %3714 = vmatprep.subr.mxu0 0.0
        %3715 = vmatpush1.msra.mxu0 0.0
        %3716 = vmatprep.subr.mxu0 0.0
        %3717 = vmatpush1.msra.mxu0 0.0
        %3718 = vmatprep.subr.mxu0 0.0
        %3719 = vmatpush1.msra.mxu0 0.0
        %3720 = vmatprep.subr.mxu0 0.0
        %3721 = vmatpush1.msra.mxu0 0.0
        %3722 = vmatprep.subr.mxu0 0.0
        %3723 = vmatpush1.msra.mxu0 0.0
        %3724 = vmatprep.subr.mxu0 0.0
        %3725 = vmatpush1.msra.mxu0 0.0
        %3726 = vmatprep.subr.mxu0 0.0
        %3727 = vmatpush1.msra.mxu0 0.0
        %3728 = vmatprep.subr.mxu0 0.0
        %3729 = vmatpush1.msra.mxu0 0.0
        %3730 = vmatprep.subr.mxu0 0.0
        %3731 = vmatpush1.msra.mxu0 0.0
        %3732 = vmatprep.subr.mxu0 0.0
        %3733 = vmatpush1.msra.mxu0 0.0
        %3734 = vmatprep.subr.mxu0 0.0
        %3735 = vmatpush1.msra.mxu0 0.0
        %3736 = vmatprep.subr.mxu0 0.0
        %3737 = vmatpush1.msra.mxu0 0.0
        %3738 = vmatprep.subr.mxu0 0.0
        %3739 = vmatpush1.msra.mxu0 0.0
        %3740 = vmatprep.subr.mxu0 0.0
        %3741 = vmatpush1.msra.mxu0 0.0
        %3742 = vmatprep.subr.mxu0 0.0
        %3743 = vmatpush1.msra.mxu0 0.0
        %3744 = vmatprep.subr.mxu0 0.0
        %3745 = vmatpush1.msra.mxu0 0.0
        %3746 = vmatprep.subr.mxu0 0.0
        %3747 = vmatpush1.msra.mxu0 0.0
        %3748 = vmatprep.subr.mxu0 0.0
        %3749 = vmatpush1.msra.mxu0 0.0
        %3750 = vmatprep.subr.mxu0 0.0
        %3751 = vmatpush1.msra.mxu0 0.0
        %3752 = vmatprep.subr.mxu0 0.0
        %3753 = vmatpush1.msra.mxu0 0.0
        %3754 = vmatprep.mubr.f32.mxu0 0.0
        %3755 = vmatmul.mubr.f32.gmra.mrb[0].mxu0 %v3664
        %v3756 = vpop.f32.mrb[0].mxu0
        %v3757 = vadd.f32 0.0, %v3756
        %v3758 = vpop.f32.mrb[0].mxu0
        %3759 = vmatprep.mubr.f32.mxu0 0.0
        %3760 = vmatmul.mubr.f32.gmra.mrb[0].mxu0 %v3667
        %v3761 = vpop.f32.mrb[0].mxu0
        %v3762 = vadd.f32 0.0, %v3761
        %v3763 = vpop.f32.mrb[0].mxu0
        %3764 = vmatprep.mubr.f32.mxu0 0.0
        %3765 = vmatmul.mubr.f32.gmra.mrb[0].mxu0 %v3670
        %v3766 = vpop.f32.mrb[0].mxu0
        %v3767 = vadd.f32 0.0, %v3766
        %v3768 = vpop.f32.mrb[0].mxu0
        %3769 = vmatprep.mubr.f32.mxu0 0.0
        %3770 = vmatmul.mubr.f32.gmra.mrb[0].mxu0 %v3673
        %v3771 = vpop.f32.mrb[0].mxu0
        %v3772 = vadd.f32 0.0, %v3771
        %v3773 = vpop.f32.mrb[0].mxu0
        %3774 = vmatprep.mubr.f32.mxu0 0.0
        %3775 = vmatmul.mubr.f32.gmra.mrb[0].mxu0 %v3676
        %v3776 = vpop.f32.mrb[0].mxu0
        %v3777 = vadd.f32 0.0, %v3776
        %v3778 = vpop.f32.mrb[0].mxu0
        %3779 = vmatprep.mubr.f32.mxu0 0.0
        %3780 = vmatmul.mubr.f32.gmra.mrb[0].mxu0 %v3679
        %v3781 = vpop.f32.mrb[0].mxu0
        %v3782 = vadd.f32 0.0, %v3781
        %v3783 = vpop.f32.mrb[0].mxu0
        %3784 = vmatprep.mubr.f32.mxu0 0.0
        %3785 = vmatmul.mubr.f32.gmra.mrb[0].mxu0 %v3682
        %v3786 = vpop.f32.mrb[0].mxu0
        %v3787 = vadd.f32 0.0, %v3786
        %v3788 = vpop.f32.mrb[0].mxu0
        %3789 = vmatprep.mubr.f32.mxu0 0.0
        %3790 = vmatmul.mubr.f32.gmra.mrb[0].mxu0 %v3685
        %v3791 = vpop.f32.mrb[0].mxu0
        %v3792 = vadd.f32 0.0, %v3791
        %v3793 = vpop.f32.mrb[0].mxu0
        %3794 = vmatprep.mubr.f32.mxu0 0.0
        %3795 = vmatmul.mubr.f32.gmra.mrb[0].mxu0 %v3688
        %v3796 = vpop.f32.mrb[0].mxu0
        %v3797 = vadd.f32 0.0, %v3796
        %v3798 = vpop.f32.mrb[0].mxu0
        %3799 = vdwg.mxu0
        %v3800 = vld [vmem:[#allocation13] sm:$0xff]
        %v3801 = vld [vmem:[#allocation13 + $0x8] sm:$0xff]
        %v3802 = vld [vmem:[#allocation13 + $0x10] sm:$0xff]
        %v3803 = vld [vmem:[#allocation13 + $0x18] sm:$0xff]
        %s3804 = scalar_lea.vmem [#allocation13], 32
        %v3805 = vld [vmem:[%s3804] sm:$0xff]
        %v3806 = vld [vmem:[%s3804 + $0x8] sm:$0xff]
        %v3807 = vld [vmem:[%s3804 + $0x10] sm:$0xff]
        %v3808 = vld [vmem:[%s3804 + $0x18] sm:$0xff]
        %v3810 = vsel %vm2530, %v3762, 0
        %3812 = vmatprep.subr.mxu0 0.0
        %3813 = vmatpush1.msra.mxu0 %v3805
        %3814 = vmatprep.subr.mxu0 0.0
        %3815 = vmatpush1.msra.mxu0 %v3806
        %3816 = vmatprep.subr.mxu0 0.0
        %3817 = vmatpush1.msra.mxu0 %v3807
        %3818 = vmatprep.subr.mxu0 0.0
        %3819 = vmatpush1.msra.mxu0 %v3808
        %3820 = vmatprep.subr.mxu0 0.0
        %3821 = vmatpush1.msra.mxu0 0.0
        %3822 = vmatprep.subr.mxu0 0.0
        %3823 = vmatpush1.msra.mxu0 0.0
        %3824 = vmatprep.subr.mxu0 0.0
        %3825 = vmatpush1.msra.mxu0 0.0
        %3826 = vmatprep.subr.mxu0 0.0
        %3827 = vmatpush1.msra.mxu0 0.0
        %3828 = vmatprep.subr.mxu0 0.0
        %3829 = vmatpush1.msra.mxu0 0.0
        %3830 = vmatprep.subr.mxu0 0.0
        %3831 = vmatpush1.msra.mxu0 0.0
        %3832 = vmatprep.subr.mxu0 0.0
        %3833 = vmatpush1.msra.mxu0 0.0
        %3834 = vmatprep.subr.mxu0 0.0
        %3835 = vmatpush1.msra.mxu0 0.0
        %3836 = vmatprep.subr.mxu0 0.0
        %3837 = vmatpush1.msra.mxu0 0.0
        %3838 = vmatprep.subr.mxu0 0.0
        %3839 = vmatpush1.msra.mxu0 0.0
        %3840 = vmatprep.subr.mxu0 0.0
        %3841 = vmatpush1.msra.mxu0 0.0
        %3842 = vmatprep.subr.mxu0 0.0
        %3843 = vmatpush1.msra.mxu0 0.0
        %3844 = vmatprep.subr.mxu0 0.0
        %3845 = vmatpush1.msra.mxu0 0.0
        %3846 = vmatprep.subr.mxu0 0.0
        %3847 = vmatpush1.msra.mxu0 0.0
        %3848 = vmatprep.subr.mxu0 0.0
        %3849 = vmatpush1.msra.mxu0 0.0
        %3850 = vmatprep.subr.mxu0 0.0
        %3851 = vmatpush1.msra.mxu0 0.0
        %3852 = vmatprep.subr.mxu0 0.0
        %3853 = vmatpush1.msra.mxu0 0.0
        %3854 = vmatprep.subr.mxu0 0.0
        %3855 = vmatpush1.msra.mxu0 0.0
        %3856 = vmatprep.subr.mxu0 0.0
        %3857 = vmatpush1.msra.mxu0 0.0
        %3858 = vmatprep.subr.mxu0 0.0
        %3859 = vmatpush1.msra.mxu0 0.0
        %3860 = vmatprep.subr.mxu0 0.0
        %3861 = vmatpush1.msra.mxu0 0.0
        %3862 = vmatprep.subr.mxu0 0.0
        %3863 = vmatpush1.msra.mxu0 0.0
        %3864 = vmatprep.subr.mxu0 0.0
        %3865 = vmatpush1.msra.mxu0 0.0
        %3866 = vmatprep.subr.mxu0 0.0
        %3867 = vmatpush1.msra.mxu0 0.0
        %3868 = vmatprep.subr.mxu0 0.0
        %3869 = vmatpush1.msra.mxu0 0.0
        %3870 = vmatprep.subr.mxu0 0.0
        %3871 = vmatpush1.msra.mxu0 0.0
        %3872 = vmatprep.subr.mxu0 0.0
        %3873 = vmatpush1.msra.mxu0 0.0
        %3874 = vmatprep.subr.mxu0 0.0
        %3875 = vmatpush1.msra.mxu0 0.0
        %3876 = vmatprep.mubr.f32.mxu0 0.0
        %3877 = vmatmul.mubr.f32.gmra.mrb[0].mxu0 %v3810
        %v3878 = vpop.f32.mrb[0].mxu0
        %v3879 = vadd.f32 0.0, %v3878
        %v3880 = vpop.f32.mrb[0].mxu0
        %3881 = vdwg.mxu0
        %v3883 = vsel %vm2530, %v3757, 0
        %3885 = vmatprep.subr.mxu0 0.0
        %3886 = vmatpush1.msra.mxu0 %v3800
        %3887 = vmatprep.subr.mxu0 0.0
        %3888 = vmatpush1.msra.mxu0 %v3801
        %3889 = vmatprep.subr.mxu0 0.0
        %3890 = vmatpush1.msra.mxu0 %v3802
        %3891 = vmatprep.subr.mxu0 0.0
        %3892 = vmatpush1.msra.mxu0 %v3803
        %3893 = vmatprep.subr.mxu0 0.0
        %3894 = vmatpush1.msra.mxu0 0.0
        %3895 = vmatprep.subr.mxu0 0.0
        %3896 = vmatpush1.msra.mxu0 0.0
        %3897 = vmatprep.subr.mxu0 0.0
        %3898 = vmatpush1.msra.mxu0 0.0
        %3899 = vmatprep.subr.mxu0 0.0
        %3900 = vmatpush1.msra.mxu0 0.0
        %3901 = vmatprep.subr.mxu0 0.0
        %3902 = vmatpush1.msra.mxu0 0.0
        %3903 = vmatprep.subr.mxu0 0.0
        %3904 = vmatpush1.msra.mxu0 0.0
        %3905 = vmatprep.subr.mxu0 0.0
        %3906 = vmatpush1.msra.mxu0 0.0
        %3907 = vmatprep.subr.mxu0 0.0
        %3908 = vmatpush1.msra.mxu0 0.0
        %3909 = vmatprep.subr.mxu0 0.0
        %3910 = vmatpush1.msra.mxu0 0.0
        %3911 = vmatprep.subr.mxu0 0.0
        %3912 = vmatpush1.msra.mxu0 0.0
        %3913 = vmatprep.subr.mxu0 0.0
        %3914 = vmatpush1.msra.mxu0 0.0
        %3915 = vmatprep.subr.mxu0 0.0
        %3916 = vmatpush1.msra.mxu0 0.0
        %3917 = vmatprep.subr.mxu0 0.0
        %3918 = vmatpush1.msra.mxu0 0.0
        %3919 = vmatprep.subr.mxu0 0.0
        %3920 = vmatpush1.msra.mxu0 0.0
        %3921 = vmatprep.subr.mxu0 0.0
        %3922 = vmatpush1.msra.mxu0 0.0
        %3923 = vmatprep.subr.mxu0 0.0
        %3924 = vmatpush1.msra.mxu0 0.0
        %3925 = vmatprep.subr.mxu0 0.0
        %3926 = vmatpush1.msra.mxu0 0.0
        %3927 = vmatprep.subr.mxu0 0.0
        %3928 = vmatpush1.msra.mxu0 0.0
        %3929 = vmatprep.subr.mxu0 0.0
        %3930 = vmatpush1.msra.mxu0 0.0
        %3931 = vmatprep.subr.mxu0 0.0
        %3932 = vmatpush1.msra.mxu0 0.0
        %3933 = vmatprep.subr.mxu0 0.0
        %3934 = vmatpush1.msra.mxu0 0.0
        %3935 = vmatprep.subr.mxu0 0.0
        %3936 = vmatpush1.msra.mxu0 0.0
        %3937 = vmatprep.subr.mxu0 0.0
        %3938 = vmatpush1.msra.mxu0 0.0
        %3939 = vmatprep.subr.mxu0 0.0
        %3940 = vmatpush1.msra.mxu0 0.0
        %3941 = vmatprep.subr.mxu0 0.0
        %3942 = vmatpush1.msra.mxu0 0.0
        %3943 = vmatprep.subr.mxu0 0.0
        %3944 = vmatpush1.msra.mxu0 0.0
        %3945 = vmatprep.subr.mxu0 0.0
        %3946 = vmatpush1.msra.mxu0 0.0
        %3947 = vmatprep.subr.mxu0 0.0
        %3948 = vmatpush1.msra.mxu0 0.0
        %3949 = vmatprep.mubr.f32.mxu0 0.0
        %3950 = vmatmul.mubr.f32.gmra.mrb[0].mxu0 %v3883
        %v3951 = vpop.f32.mrb[0].mxu0
        %v3952 = vadd.f32 %v3879, %v3951
        %v3953 = vpop.f32.mrb[0].mxu0
        %3954 = vdwg.mxu0
        %s3955 = scalar_lea.vmem [#allocation13], 64
        %v3956 = vld [vmem:[%s3955] sm:$0xff]
        %v3957 = vld [vmem:[%s3955 + $0x8] sm:$0xff]
        %v3958 = vld [vmem:[%s3955 + $0x10] sm:$0xff]
        %v3959 = vld [vmem:[%s3955 + $0x18] sm:$0xff]
        %v3961 = vsel %vm2530, %v3767, 0
        %3963 = vmatprep.subr.mxu0 0.0
        %3964 = vmatpush1.msra.mxu0 %v3956
        %3965 = vmatprep.subr.mxu0 0.0
        %3966 = vmatpush1.msra.mxu0 %v3957
        %3967 = vmatprep.subr.mxu0 0.0
        %3968 = vmatpush1.msra.mxu0 %v3958
        %3969 = vmatprep.subr.mxu0 0.0
        %3970 = vmatpush1.msra.mxu0 %v3959
        %3971 = vmatprep.subr.mxu0 0.0
        %3972 = vmatpush1.msra.mxu0 0.0
        %3973 = vmatprep.subr.mxu0 0.0
        %3974 = vmatpush1.msra.mxu0 0.0
        %3975 = vmatprep.subr.mxu0 0.0
        %3976 = vmatpush1.msra.mxu0 0.0
        %3977 = vmatprep.subr.mxu0 0.0
        %3978 = vmatpush1.msra.mxu0 0.0
        %3979 = vmatprep.subr.mxu0 0.0
        %3980 = vmatpush1.msra.mxu0 0.0
        %3981 = vmatprep.subr.mxu0 0.0
        %3982 = vmatpush1.msra.mxu0 0.0
        %3983 = vmatprep.subr.mxu0 0.0
        %3984 = vmatpush1.msra.mxu0 0.0
        %3985 = vmatprep.subr.mxu0 0.0
        %3986 = vmatpush1.msra.mxu0 0.0
        %3987 = vmatprep.subr.mxu0 0.0
        %3988 = vmatpush1.msra.mxu0 0.0
        %3989 = vmatprep.subr.mxu0 0.0
        %3990 = vmatpush1.msra.mxu0 0.0
        %3991 = vmatprep.subr.mxu0 0.0
        %3992 = vmatpush1.msra.mxu0 0.0
        %3993 = vmatprep.subr.mxu0 0.0
        %3994 = vmatpush1.msra.mxu0 0.0
        %3995 = vmatprep.subr.mxu0 0.0
        %3996 = vmatpush1.msra.mxu0 0.0
        %3997 = vmatprep.subr.mxu0 0.0
        %3998 = vmatpush1.msra.mxu0 0.0
        %3999 = vmatprep.subr.mxu0 0.0
        %4000 = vmatpush1.msra.mxu0 0.0
        %4001 = vmatprep.subr.mxu0 0.0
        %4002 = vmatpush1.msra.mxu0 0.0
        %4003 = vmatprep.subr.mxu0 0.0
        %4004 = vmatpush1.msra.mxu0 0.0
        %4005 = vmatprep.subr.mxu0 0.0
        %4006 = vmatpush1.msra.mxu0 0.0
        %4007 = vmatprep.subr.mxu0 0.0
        %4008 = vmatpush1.msra.mxu0 0.0
        %4009 = vmatprep.subr.mxu0 0.0
        %4010 = vmatpush1.msra.mxu0 0.0
        %4011 = vmatprep.subr.mxu0 0.0
        %4012 = vmatpush1.msra.mxu0 0.0
        %4013 = vmatprep.subr.mxu0 0.0
        %4014 = vmatpush1.msra.mxu0 0.0
        %4015 = vmatprep.subr.mxu0 0.0
        %4016 = vmatpush1.msra.mxu0 0.0
        %4017 = vmatprep.subr.mxu0 0.0
        %4018 = vmatpush1.msra.mxu0 0.0
        %4019 = vmatprep.subr.mxu0 0.0
        %4020 = vmatpush1.msra.mxu0 0.0
        %4021 = vmatprep.subr.mxu0 0.0
        %4022 = vmatpush1.msra.mxu0 0.0
        %4023 = vmatprep.subr.mxu0 0.0
        %4024 = vmatpush1.msra.mxu0 0.0
        %4025 = vmatprep.subr.mxu0 0.0
        %4026 = vmatpush1.msra.mxu0 0.0
        %4027 = vmatprep.mubr.f32.mxu0 0.0
        %4028 = vmatmul.mubr.f32.gmra.mrb[0].mxu0 %v3961
        %v4029 = vpop.f32.mrb[0].mxu0
        %v4030 = vadd.f32 0.0, %v4029
        %v4031 = vpop.f32.mrb[0].mxu0
        %4032 = vdwg.mxu0
        %v4033 = vadd.f32 %v3952, %v4030
        %s4034 = scalar_lea.vmem [#allocation13], 96
        %v4035 = vld [vmem:[%s4034] sm:$0xff]
        %v4036 = vld [vmem:[%s4034 + $0x8] sm:$0xff]
        %v4037 = vld [vmem:[%s4034 + $0x10] sm:$0xff]
        %v4038 = vld [vmem:[%s4034 + $0x18] sm:$0xff]
        %v4040 = vsel %vm2530, %v3772, 0
        %4042 = vmatprep.subr.mxu0 0.0
        %4043 = vmatpush1.msra.mxu0 %v4035
        %4044 = vmatprep.subr.mxu0 0.0
        %4045 = vmatpush1.msra.mxu0 %v4036
        %4046 = vmatprep.subr.mxu0 0.0
        %4047 = vmatpush1.msra.mxu0 %v4037
        %4048 = vmatprep.subr.mxu0 0.0
        %4049 = vmatpush1.msra.mxu0 %v4038
        %4050 = vmatprep.subr.mxu0 0.0
        %4051 = vmatpush1.msra.mxu0 0.0
        %4052 = vmatprep.subr.mxu0 0.0
        %4053 = vmatpush1.msra.mxu0 0.0
        %4054 = vmatprep.subr.mxu0 0.0
        %4055 = vmatpush1.msra.mxu0 0.0
        %4056 = vmatprep.subr.mxu0 0.0
        %4057 = vmatpush1.msra.mxu0 0.0
        %4058 = vmatprep.subr.mxu0 0.0
        %4059 = vmatpush1.msra.mxu0 0.0
        %4060 = vmatprep.subr.mxu0 0.0
        %4061 = vmatpush1.msra.mxu0 0.0
        %4062 = vmatprep.subr.mxu0 0.0
        %4063 = vmatpush1.msra.mxu0 0.0
        %4064 = vmatprep.subr.mxu0 0.0
        %4065 = vmatpush1.msra.mxu0 0.0
        %4066 = vmatprep.subr.mxu0 0.0
        %4067 = vmatpush1.msra.mxu0 0.0
        %4068 = vmatprep.subr.mxu0 0.0
        %4069 = vmatpush1.msra.mxu0 0.0
        %4070 = vmatprep.subr.mxu0 0.0
        %4071 = vmatpush1.msra.mxu0 0.0
        %4072 = vmatprep.subr.mxu0 0.0
        %4073 = vmatpush1.msra.mxu0 0.0
        %4074 = vmatprep.subr.mxu0 0.0
        %4075 = vmatpush1.msra.mxu0 0.0
        %4076 = vmatprep.subr.mxu0 0.0
        %4077 = vmatpush1.msra.mxu0 0.0
        %4078 = vmatprep.subr.mxu0 0.0
        %4079 = vmatpush1.msra.mxu0 0.0
        %4080 = vmatprep.subr.mxu0 0.0
        %4081 = vmatpush1.msra.mxu0 0.0
        %4082 = vmatprep.subr.mxu0 0.0
        %4083 = vmatpush1.msra.mxu0 0.0
        %4084 = vmatprep.subr.mxu0 0.0
        %4085 = vmatpush1.msra.mxu0 0.0
        %4086 = vmatprep.subr.mxu0 0.0
        %4087 = vmatpush1.msra.mxu0 0.0
        %4088 = vmatprep.subr.mxu0 0.0
        %4089 = vmatpush1.msra.mxu0 0.0
        %4090 = vmatprep.subr.mxu0 0.0
        %4091 = vmatpush1.msra.mxu0 0.0
        %4092 = vmatprep.subr.mxu0 0.0
        %4093 = vmatpush1.msra.mxu0 0.0
        %4094 = vmatprep.subr.mxu0 0.0
        %4095 = vmatpush1.msra.mxu0 0.0
        %4096 = vmatprep.subr.mxu0 0.0
        %4097 = vmatpush1.msra.mxu0 0.0
        %4098 = vmatprep.subr.mxu0 0.0
        %4099 = vmatpush1.msra.mxu0 0.0
        %4100 = vmatprep.subr.mxu0 0.0
        %4101 = vmatpush1.msra.mxu0 0.0
        %4102 = vmatprep.subr.mxu0 0.0
        %4103 = vmatpush1.msra.mxu0 0.0
        %4104 = vmatprep.subr.mxu0 0.0
        %4105 = vmatpush1.msra.mxu0 0.0
        %4106 = vmatprep.mubr.f32.mxu0 0.0
        %4107 = vmatmul.mubr.f32.gmra.mrb[0].mxu0 %v4040
        %v4108 = vpop.f32.mrb[0].mxu0
        %v4109 = vadd.f32 0.0, %v4108
        %v4110 = vpop.f32.mrb[0].mxu0
        %4111 = vdwg.mxu0
        %v4112 = vadd.f32 %v4033, %v4109
        %s4113 = scalar_lea.vmem [#allocation13], 128
        %v4114 = vld [vmem:[%s4113] sm:$0xff]
        %v4115 = vld [vmem:[%s4113 + $0x8] sm:$0xff]
        %v4116 = vld [vmem:[%s4113 + $0x10] sm:$0xff]
        %v4117 = vld [vmem:[%s4113 + $0x18] sm:$0xff]
        %v4119 = vsel %vm2530, %v3777, 0
        %4121 = vmatprep.subr.mxu0 0.0
        %4122 = vmatpush1.msra.mxu0 %v4114
        %4123 = vmatprep.subr.mxu0 0.0
        %4124 = vmatpush1.msra.mxu0 %v4115
        %4125 = vmatprep.subr.mxu0 0.0
        %4126 = vmatpush1.msra.mxu0 %v4116
        %4127 = vmatprep.subr.mxu0 0.0
        %4128 = vmatpush1.msra.mxu0 %v4117
        %4129 = vmatprep.subr.mxu0 0.0
        %4130 = vmatpush1.msra.mxu0 0.0
        %4131 = vmatprep.subr.mxu0 0.0
        %4132 = vmatpush1.msra.mxu0 0.0
        %4133 = vmatprep.subr.mxu0 0.0
        %4134 = vmatpush1.msra.mxu0 0.0
        %4135 = vmatprep.subr.mxu0 0.0
        %4136 = vmatpush1.msra.mxu0 0.0
        %4137 = vmatprep.subr.mxu0 0.0
        %4138 = vmatpush1.msra.mxu0 0.0
        %4139 = vmatprep.subr.mxu0 0.0
        %4140 = vmatpush1.msra.mxu0 0.0
        %4141 = vmatprep.subr.mxu0 0.0
        %4142 = vmatpush1.msra.mxu0 0.0
        %4143 = vmatprep.subr.mxu0 0.0
        %4144 = vmatpush1.msra.mxu0 0.0
        %4145 = vmatprep.subr.mxu0 0.0
        %4146 = vmatpush1.msra.mxu0 0.0
        %4147 = vmatprep.subr.mxu0 0.0
        %4148 = vmatpush1.msra.mxu0 0.0
        %4149 = vmatprep.subr.mxu0 0.0
        %4150 = vmatpush1.msra.mxu0 0.0
        %4151 = vmatprep.subr.mxu0 0.0
        %4152 = vmatpush1.msra.mxu0 0.0
        %4153 = vmatprep.subr.mxu0 0.0
        %4154 = vmatpush1.msra.mxu0 0.0
        %4155 = vmatprep.subr.mxu0 0.0
        %4156 = vmatpush1.msra.mxu0 0.0
        %4157 = vmatprep.subr.mxu0 0.0
        %4158 = vmatpush1.msra.mxu0 0.0
        %4159 = vmatprep.subr.mxu0 0.0
        %4160 = vmatpush1.msra.mxu0 0.0
        %4161 = vmatprep.subr.mxu0 0.0
        %4162 = vmatpush1.msra.mxu0 0.0
        %4163 = vmatprep.subr.mxu0 0.0
        %4164 = vmatpush1.msra.mxu0 0.0
        %4165 = vmatprep.subr.mxu0 0.0
        %4166 = vmatpush1.msra.mxu0 0.0
        %4167 = vmatprep.subr.mxu0 0.0
        %4168 = vmatpush1.msra.mxu0 0.0
        %4169 = vmatprep.subr.mxu0 0.0
        %4170 = vmatpush1.msra.mxu0 0.0
        %4171 = vmatprep.subr.mxu0 0.0
        %4172 = vmatpush1.msra.mxu0 0.0
        %4173 = vmatprep.subr.mxu0 0.0
        %4174 = vmatpush1.msra.mxu0 0.0
        %4175 = vmatprep.subr.mxu0 0.0
        %4176 = vmatpush1.msra.mxu0 0.0
        %4177 = vmatprep.subr.mxu0 0.0
        %4178 = vmatpush1.msra.mxu0 0.0
        %4179 = vmatprep.subr.mxu0 0.0
        %4180 = vmatpush1.msra.mxu0 0.0
        %4181 = vmatprep.subr.mxu0 0.0
        %4182 = vmatpush1.msra.mxu0 0.0
        %4183 = vmatprep.subr.mxu0 0.0
        %4184 = vmatpush1.msra.mxu0 0.0
        %4185 = vmatprep.mubr.f32.mxu0 0.0
        %4186 = vmatmul.mubr.f32.gmra.mrb[0].mxu0 %v4119
        %v4187 = vpop.f32.mrb[0].mxu0
        %v4188 = vadd.f32 0.0, %v4187
        %v4189 = vpop.f32.mrb[0].mxu0
        %4190 = vdwg.mxu0
        %v4191 = vadd.f32 %v4112, %v4188
        %s4192 = scalar_lea.vmem [#allocation13], 160
        %v4193 = vld [vmem:[%s4192] sm:$0xff]
        %v4194 = vld [vmem:[%s4192 + $0x8] sm:$0xff]
        %v4195 = vld [vmem:[%s4192 + $0x10] sm:$0xff]
        %v4196 = vld [vmem:[%s4192 + $0x18] sm:$0xff]
        %v4198 = vsel %vm2530, %v3782, 0
        %4200 = vmatprep.subr.mxu0 0.0
        %4201 = vmatpush1.msra.mxu0 %v4193
        %4202 = vmatprep.subr.mxu0 0.0
        %4203 = vmatpush1.msra.mxu0 %v4194
        %4204 = vmatprep.subr.mxu0 0.0
        %4205 = vmatpush1.msra.mxu0 %v4195
        %4206 = vmatprep.subr.mxu0 0.0
        %4207 = vmatpush1.msra.mxu0 %v4196
        %4208 = vmatprep.subr.mxu0 0.0
        %4209 = vmatpush1.msra.mxu0 0.0
        %4210 = vmatprep.subr.mxu0 0.0
        %4211 = vmatpush1.msra.mxu0 0.0
        %4212 = vmatprep.subr.mxu0 0.0
        %4213 = vmatpush1.msra.mxu0 0.0
        %4214 = vmatprep.subr.mxu0 0.0
        %4215 = vmatpush1.msra.mxu0 0.0
        %4216 = vmatprep.subr.mxu0 0.0
        %4217 = vmatpush1.msra.mxu0 0.0
        %4218 = vmatprep.subr.mxu0 0.0
        %4219 = vmatpush1.msra.mxu0 0.0
        %4220 = vmatprep.subr.mxu0 0.0
        %4221 = vmatpush1.msra.mxu0 0.0
        %4222 = vmatprep.subr.mxu0 0.0
        %4223 = vmatpush1.msra.mxu0 0.0
        %4224 = vmatprep.subr.mxu0 0.0
        %4225 = vmatpush1.msra.mxu0 0.0
        %4226 = vmatprep.subr.mxu0 0.0
        %4227 = vmatpush1.msra.mxu0 0.0
        %4228 = vmatprep.subr.mxu0 0.0
        %4229 = vmatpush1.msra.mxu0 0.0
        %4230 = vmatprep.subr.mxu0 0.0
        %4231 = vmatpush1.msra.mxu0 0.0
        %4232 = vmatprep.subr.mxu0 0.0
        %4233 = vmatpush1.msra.mxu0 0.0
        %4234 = vmatprep.subr.mxu0 0.0
        %4235 = vmatpush1.msra.mxu0 0.0
        %4236 = vmatprep.subr.mxu0 0.0
        %4237 = vmatpush1.msra.mxu0 0.0
        %4238 = vmatprep.subr.mxu0 0.0
        %4239 = vmatpush1.msra.mxu0 0.0
        %4240 = vmatprep.subr.mxu0 0.0
        %4241 = vmatpush1.msra.mxu0 0.0
        %4242 = vmatprep.subr.mxu0 0.0
        %4243 = vmatpush1.msra.mxu0 0.0
        %4244 = vmatprep.subr.mxu0 0.0
        %4245 = vmatpush1.msra.mxu0 0.0
        %4246 = vmatprep.subr.mxu0 0.0
        %4247 = vmatpush1.msra.mxu0 0.0
        %4248 = vmatprep.subr.mxu0 0.0
        %4249 = vmatpush1.msra.mxu0 0.0
        %4250 = vmatprep.subr.mxu0 0.0
        %4251 = vmatpush1.msra.mxu0 0.0
        %4252 = vmatprep.subr.mxu0 0.0
        %4253 = vmatpush1.msra.mxu0 0.0
        %4254 = vmatprep.subr.mxu0 0.0
        %4255 = vmatpush1.msra.mxu0 0.0
        %4256 = vmatprep.subr.mxu0 0.0
        %4257 = vmatpush1.msra.mxu0 0.0
        %4258 = vmatprep.subr.mxu0 0.0
        %4259 = vmatpush1.msra.mxu0 0.0
        %4260 = vmatprep.subr.mxu0 0.0
        %4261 = vmatpush1.msra.mxu0 0.0
        %4262 = vmatprep.subr.mxu0 0.0
        %4263 = vmatpush1.msra.mxu0 0.0
        %4264 = vmatprep.mubr.f32.mxu0 0.0
        %4265 = vmatmul.mubr.f32.gmra.mrb[0].mxu0 %v4198
        %v4266 = vpop.f32.mrb[0].mxu0
        %v4267 = vadd.f32 0.0, %v4266
        %v4268 = vpop.f32.mrb[0].mxu0
        %4269 = vdwg.mxu0
        %v4270 = vadd.f32 %v4191, %v4267
        %s4271 = scalar_lea.vmem [#allocation13], 192
        %v4272 = vld [vmem:[%s4271] sm:$0xff]
        %v4273 = vld [vmem:[%s4271 + $0x8] sm:$0xff]
        %v4274 = vld [vmem:[%s4271 + $0x10] sm:$0xff]
        %v4275 = vld [vmem:[%s4271 + $0x18] sm:$0xff]
        %v4277 = vsel %vm2530, %v3787, 0
        %4279 = vmatprep.subr.mxu0 0.0
        %4280 = vmatpush1.msra.mxu0 %v4272
        %4281 = vmatprep.subr.mxu0 0.0
        %4282 = vmatpush1.msra.mxu0 %v4273
        %4283 = vmatprep.subr.mxu0 0.0
        %4284 = vmatpush1.msra.mxu0 %v4274
        %4285 = vmatprep.subr.mxu0 0.0
        %4286 = vmatpush1.msra.mxu0 %v4275
        %4287 = vmatprep.subr.mxu0 0.0
        %4288 = vmatpush1.msra.mxu0 0.0
        %4289 = vmatprep.subr.mxu0 0.0
        %4290 = vmatpush1.msra.mxu0 0.0
        %4291 = vmatprep.subr.mxu0 0.0
        %4292 = vmatpush1.msra.mxu0 0.0
        %4293 = vmatprep.subr.mxu0 0.0
        %4294 = vmatpush1.msra.mxu0 0.0
        %4295 = vmatprep.subr.mxu0 0.0
        %4296 = vmatpush1.msra.mxu0 0.0
        %4297 = vmatprep.subr.mxu0 0.0
        %4298 = vmatpush1.msra.mxu0 0.0
        %4299 = vmatprep.subr.mxu0 0.0
        %4300 = vmatpush1.msra.mxu0 0.0
        %4301 = vmatprep.subr.mxu0 0.0
        %4302 = vmatpush1.msra.mxu0 0.0
        %4303 = vmatprep.subr.mxu0 0.0
        %4304 = vmatpush1.msra.mxu0 0.0
        %4305 = vmatprep.subr.mxu0 0.0
        %4306 = vmatpush1.msra.mxu0 0.0
        %4307 = vmatprep.subr.mxu0 0.0
        %4308 = vmatpush1.msra.mxu0 0.0
        %4309 = vmatprep.subr.mxu0 0.0
        %4310 = vmatpush1.msra.mxu0 0.0
        %4311 = vmatprep.subr.mxu0 0.0
        %4312 = vmatpush1.msra.mxu0 0.0
        %4313 = vmatprep.subr.mxu0 0.0
        %4314 = vmatpush1.msra.mxu0 0.0
        %4315 = vmatprep.subr.mxu0 0.0
        %4316 = vmatpush1.msra.mxu0 0.0
        %4317 = vmatprep.subr.mxu0 0.0
        %4318 = vmatpush1.msra.mxu0 0.0
        %4319 = vmatprep.subr.mxu0 0.0
        %4320 = vmatpush1.msra.mxu0 0.0
        %4321 = vmatprep.subr.mxu0 0.0
        %4322 = vmatpush1.msra.mxu0 0.0
        %4323 = vmatprep.subr.mxu0 0.0
        %4324 = vmatpush1.msra.mxu0 0.0
        %4325 = vmatprep.subr.mxu0 0.0
        %4326 = vmatpush1.msra.mxu0 0.0
        %4327 = vmatprep.subr.mxu0 0.0
        %4328 = vmatpush1.msra.mxu0 0.0
        %4329 = vmatprep.subr.mxu0 0.0
        %4330 = vmatpush1.msra.mxu0 0.0
        %4331 = vmatprep.subr.mxu0 0.0
        %4332 = vmatpush1.msra.mxu0 0.0
        %4333 = vmatprep.subr.mxu0 0.0
        %4334 = vmatpush1.msra.mxu0 0.0
        %4335 = vmatprep.subr.mxu0 0.0
        %4336 = vmatpush1.msra.mxu0 0.0
        %4337 = vmatprep.subr.mxu0 0.0
        %4338 = vmatpush1.msra.mxu0 0.0
        %4339 = vmatprep.subr.mxu0 0.0
        %4340 = vmatpush1.msra.mxu0 0.0
        %4341 = vmatprep.subr.mxu0 0.0
        %4342 = vmatpush1.msra.mxu0 0.0
        %4343 = vmatprep.mubr.f32.mxu0 0.0
        %4344 = vmatmul.mubr.f32.gmra.mrb[0].mxu0 %v4277
        %v4345 = vpop.f32.mrb[0].mxu0
        %v4346 = vadd.f32 0.0, %v4345
        %v4347 = vpop.f32.mrb[0].mxu0
        %4348 = vdwg.mxu0
        %v4349 = vadd.f32 %v4270, %v4346
        %s4350 = scalar_lea.vmem [#allocation13], 224
        %v4351 = vld [vmem:[%s4350] sm:$0xff]
        %v4352 = vld [vmem:[%s4350 + $0x8] sm:$0xff]
        %v4353 = vld [vmem:[%s4350 + $0x10] sm:$0xff]
        %v4354 = vld [vmem:[%s4350 + $0x18] sm:$0xff]
        %v4356 = vsel %vm2530, %v3792, 0
        %4358 = vmatprep.subr.mxu0 0.0
        %4359 = vmatpush1.msra.mxu0 %v4351
        %4360 = vmatprep.subr.mxu0 0.0
        %4361 = vmatpush1.msra.mxu0 %v4352
        %4362 = vmatprep.subr.mxu0 0.0
        %4363 = vmatpush1.msra.mxu0 %v4353
        %4364 = vmatprep.subr.mxu0 0.0
        %4365 = vmatpush1.msra.mxu0 %v4354
        %4366 = vmatprep.subr.mxu0 0.0
        %4367 = vmatpush1.msra.mxu0 0.0
        %4368 = vmatprep.subr.mxu0 0.0
        %4369 = vmatpush1.msra.mxu0 0.0
        %4370 = vmatprep.subr.mxu0 0.0
        %4371 = vmatpush1.msra.mxu0 0.0
        %4372 = vmatprep.subr.mxu0 0.0
        %4373 = vmatpush1.msra.mxu0 0.0
        %4374 = vmatprep.subr.mxu0 0.0
        %4375 = vmatpush1.msra.mxu0 0.0
        %4376 = vmatprep.subr.mxu0 0.0
        %4377 = vmatpush1.msra.mxu0 0.0
        %4378 = vmatprep.subr.mxu0 0.0
        %4379 = vmatpush1.msra.mxu0 0.0
        %4380 = vmatprep.subr.mxu0 0.0
        %4381 = vmatpush1.msra.mxu0 0.0
        %4382 = vmatprep.subr.mxu0 0.0
        %4383 = vmatpush1.msra.mxu0 0.0
        %4384 = vmatprep.subr.mxu0 0.0
        %4385 = vmatpush1.msra.mxu0 0.0
        %4386 = vmatprep.subr.mxu0 0.0
        %4387 = vmatpush1.msra.mxu0 0.0
        %4388 = vmatprep.subr.mxu0 0.0
        %4389 = vmatpush1.msra.mxu0 0.0
        %4390 = vmatprep.subr.mxu0 0.0
        %4391 = vmatpush1.msra.mxu0 0.0
        %4392 = vmatprep.subr.mxu0 0.0
        %4393 = vmatpush1.msra.mxu0 0.0
        %4394 = vmatprep.subr.mxu0 0.0
        %4395 = vmatpush1.msra.mxu0 0.0
        %4396 = vmatprep.subr.mxu0 0.0
        %4397 = vmatpush1.msra.mxu0 0.0
        %4398 = vmatprep.subr.mxu0 0.0
        %4399 = vmatpush1.msra.mxu0 0.0
        %4400 = vmatprep.subr.mxu0 0.0
        %4401 = vmatpush1.msra.mxu0 0.0
        %4402 = vmatprep.subr.mxu0 0.0
        %4403 = vmatpush1.msra.mxu0 0.0
        %4404 = vmatprep.subr.mxu0 0.0
        %4405 = vmatpush1.msra.mxu0 0.0
        %4406 = vmatprep.subr.mxu0 0.0
        %4407 = vmatpush1.msra.mxu0 0.0
        %4408 = vmatprep.subr.mxu0 0.0
        %4409 = vmatpush1.msra.mxu0 0.0
        %4410 = vmatprep.subr.mxu0 0.0
        %4411 = vmatpush1.msra.mxu0 0.0
        %4412 = vmatprep.subr.mxu0 0.0
        %4413 = vmatpush1.msra.mxu0 0.0
        %4414 = vmatprep.subr.mxu0 0.0
        %4415 = vmatpush1.msra.mxu0 0.0
        %4416 = vmatprep.subr.mxu0 0.0
        %4417 = vmatpush1.msra.mxu0 0.0
        %4418 = vmatprep.subr.mxu0 0.0
        %4419 = vmatpush1.msra.mxu0 0.0
        %4420 = vmatprep.subr.mxu0 0.0
        %4421 = vmatpush1.msra.mxu0 0.0
        %4422 = vmatprep.mubr.f32.mxu0 0.0
        %4423 = vmatmul.mubr.f32.gmra.mrb[0].mxu0 %v4356
        %v4424 = vpop.f32.mrb[0].mxu0
        %v4425 = vadd.f32 0.0, %v4424
        %v4426 = vpop.f32.mrb[0].mxu0
        %4427 = vdwg.mxu0
        %v4428 = vadd.f32 %v4349, %v4425
        %s4429 = scalar_lea.vmem [#allocation13], 256
        %v4430 = vld [vmem:[%s4429] sm:$0xff]
        %v4431 = vld [vmem:[%s4429 + $0x8] sm:$0xff]
        %v4432 = vld [vmem:[%s4429 + $0x10] sm:$0xff]
        %v4433 = vld [vmem:[%s4429 + $0x18] sm:$0xff]
        %v4435 = vsel %vm2530, %v3797, 0
        %4437 = vmatprep.subr.mxu0 0.0
        %4438 = vmatpush1.msra.mxu0 %v4430
        %4439 = vmatprep.subr.mxu0 0.0
        %4440 = vmatpush1.msra.mxu0 %v4431
        %4441 = vmatprep.subr.mxu0 0.0
        %4442 = vmatpush1.msra.mxu0 %v4432
        %4443 = vmatprep.subr.mxu0 0.0
        %4444 = vmatpush1.msra.mxu0 %v4433
        %4445 = vmatprep.subr.mxu0 0.0
        %4446 = vmatpush1.msra.mxu0 0.0
        %4447 = vmatprep.subr.mxu0 0.0
        %4448 = vmatpush1.msra.mxu0 0.0
        %4449 = vmatprep.subr.mxu0 0.0
        %4450 = vmatpush1.msra.mxu0 0.0
        %4451 = vmatprep.subr.mxu0 0.0
        %4452 = vmatpush1.msra.mxu0 0.0
        %4453 = vmatprep.subr.mxu0 0.0
        %4454 = vmatpush1.msra.mxu0 0.0
        %4455 = vmatprep.subr.mxu0 0.0
        %4456 = vmatpush1.msra.mxu0 0.0
        %4457 = vmatprep.subr.mxu0 0.0
        %4458 = vmatpush1.msra.mxu0 0.0
        %4459 = vmatprep.subr.mxu0 0.0
        %4460 = vmatpush1.msra.mxu0 0.0
        %4461 = vmatprep.subr.mxu0 0.0
        %4462 = vmatpush1.msra.mxu0 0.0
        %4463 = vmatprep.subr.mxu0 0.0
        %4464 = vmatpush1.msra.mxu0 0.0
        %4465 = vmatprep.subr.mxu0 0.0
        %4466 = vmatpush1.msra.mxu0 0.0
        %4467 = vmatprep.subr.mxu0 0.0
        %4468 = vmatpush1.msra.mxu0 0.0
        %4469 = vmatprep.subr.mxu0 0.0
        %4470 = vmatpush1.msra.mxu0 0.0
        %4471 = vmatprep.subr.mxu0 0.0
        %4472 = vmatpush1.msra.mxu0 0.0
        %4473 = vmatprep.subr.mxu0 0.0
        %4474 = vmatpush1.msra.mxu0 0.0
        %4475 = vmatprep.subr.mxu0 0.0
        %4476 = vmatpush1.msra.mxu0 0.0
        %4477 = vmatprep.subr.mxu0 0.0
        %4478 = vmatpush1.msra.mxu0 0.0
        %4479 = vmatprep.subr.mxu0 0.0
        %4480 = vmatpush1.msra.mxu0 0.0
        %4481 = vmatprep.subr.mxu0 0.0
        %4482 = vmatpush1.msra.mxu0 0.0
        %4483 = vmatprep.subr.mxu0 0.0
        %4484 = vmatpush1.msra.mxu0 0.0
        %4485 = vmatprep.subr.mxu0 0.0
        %4486 = vmatpush1.msra.mxu0 0.0
        %4487 = vmatprep.subr.mxu0 0.0
        %4488 = vmatpush1.msra.mxu0 0.0
        %4489 = vmatprep.subr.mxu0 0.0
        %4490 = vmatpush1.msra.mxu0 0.0
        %4491 = vmatprep.subr.mxu0 0.0
        %4492 = vmatpush1.msra.mxu0 0.0
        %4493 = vmatprep.subr.mxu0 0.0
        %4494 = vmatpush1.msra.mxu0 0.0
        %4495 = vmatprep.subr.mxu0 0.0
        %4496 = vmatpush1.msra.mxu0 0.0
        %4497 = vmatprep.subr.mxu0 0.0
        %4498 = vmatpush1.msra.mxu0 0.0
        %4499 = vmatprep.subr.mxu0 0.0
        %4500 = vmatpush1.msra.mxu0 0.0
        %4501 = vmatprep.mubr.f32.mxu0 0.0
        %4502 = vmatmul.mubr.f32.gmra.mrb[0].mxu0 %v4435
        %v4503 = vpop.f32.mrb[0].mxu0
        %v4504 = vadd.f32 0.0, %v4503
        %v4505 = vpop.f32.mrb[0].mxu0
        %4506 = vdwg.mxu0
        %v4507 = vadd.f32 %v4428, %v4504
        %v4508 = vld [vmem:[#allocation14] sm:$0x1]
        %v4509 = vld [vmem:[%s16] sm:$0x1]
        %v4510 = vsel %vm2530, %v4507, 0.0
        %v4511 = vrot.slane %v4510, 4
        %v4512 = vadd.f32 %v4510, %v4511
        %v4513 = vrot.slane %v4512, 2
        %v4514 = vadd.f32 %v4512, %v4513
        %v4515 = vrot.slane %v4514, 1
        %v4516 = vadd.f32 %v4514, %v4515
        %v4517 = vmul.f32 %v4507, %v4507
        %v4518 = vsel %vm2530, %v4517, 0.0
        %v4519 = vrot.slane %v4518, 4
        %v4520 = vadd.f32 %v4518, %v4519
        %v4521 = vrot.slane %v4520, 2
        %v4522 = vadd.f32 %v4520, %v4521
        %v4523 = vrot.slane %v4522, 1
        %v4524 = vadd.f32 %v4522, %v4523
        %v4525 = vmul.f32 %v2702, %v4516
        %v4526 = vsel %vm2704, %v4525, 0.0
        %4527 = vadd.xlane.f32.xlu0 %v4526
        %v4528 = vpop.xlane.xlu0 %4527
        %v4529 = vmul.f32 %v4528, %v2708
        %v4530 = vmul.f32 %v2702, %v4524
        %v4531 = vsel %vm2704, %v4530, 0.0
        %4532 = vadd.xlane.f32.xlu0 %v4531
        %v4533 = vpop.xlane.xlu0 %4532
        %v4534 = vmul.f32 %v4533, %v2708
        %v4535 = vmul.f32 %v4529, %v4529
        %v4536 = vsub.f32 %v4534, %v4535
        %v4537 = vmax.f32 %v4536, 0.0
        %v4538 = vadd.f32 %v4537, 1e-05
        %v4539 = vrsqrt.pop %v4538
        %v4540 = vmul.f32 %v2702, %v4529
        %v4541 = vsel %vm2704, %v4540, 0.0
        %v4542 = vrot.slane %v4541, 4
        %v4543 = vadd.f32 %v4541, %v4542
        %v4544 = vrot.slane %v4543, 2
        %v4545 = vadd.f32 %v4543, %v4544
        %v4546 = vrot.slane %v4545, 1
        %v4547 = vadd.f32 %v4545, %v4546
        %v4548 = vmul.f32 %v2702, %v4539
        %v4549 = vsel %vm2704, %v4548, 0.0
        %v4550 = vrot.slane %v4549, 4
        %v4551 = vadd.f32 %v4549, %v4550
        %v4552 = vrot.slane %v4551, 2
        %v4553 = vadd.f32 %v4551, %v4552
        %v4554 = vrot.slane %v4553, 1
        %v4555 = vadd.f32 %v4553, %v4554
        %v4556 = vsub.f32 %v4507, %v4547
        %v4557 = vmul.f32 %v4556, %v4555
        %v4559 = vlaneseq
        %v4560 = vshrl.u32 %v4559, 7
        %v4561 = vsub.s32 0, %v4560
        %v4562 = vrot.slane %v4508, %v4561
        %v4564 = vmul.f32 %v4557, %v4562
        %v4566 = vlaneseq
        %v4567 = vshrl.u32 %v4566, 7
        %v4568 = vsub.s32 0, %v4567
        %v4569 = vrot.slane %v4509, %v4568
        %v4571 = vadd.f32 %v4564, %v4569
        %v4572 = vadd.f32 %v4571, %v2751
        %v4573 = vmax.f32 %v4572, 0.0
        %v4574 = vld [vmem:[%s17] sm:$0xff]
        %v4575 = vld [vmem:[%s17 + $0x8] sm:$0xff]
        %v4576 = vld [vmem:[%s17 + $0x10] sm:$0xff]
        %v4577 = vld [vmem:[%s17 + $0x18] sm:$0xff]
        %v4578 = vld [vmem:[%s17 + $0x20] sm:$0xff]
        %v4579 = vld [vmem:[%s17 + $0x28] sm:$0xff]
        %v4580 = vld [vmem:[%s17 + $0x30] sm:$0xff]
        %v4581 = vld [vmem:[%s17 + $0x38] sm:$0xff]
        %v4582 = vld [vmem:[%s17 + $0x40] sm:$0xff]
        %v4584 = vsel %vm3662, %v4574, 0
        %v4587 = vsel %vm3662, %v4575, 0
        %v4590 = vsel %vm3662, %v4576, 0
        %v4593 = vsel %vm3662, %v4577, 0
        %v4596 = vsel %vm3662, %v4578, 0
        %v4599 = vsel %vm3662, %v4579, 0
        %v4602 = vsel %vm3662, %v4580, 0
        %v4605 = vsel %vm3662, %v4581, 0
        %v4608 = vsel %vm3662, %v4582, 0
        %4610 = vmatprep.subr.mxu0 0.0
        %4611 = vmatpush1.msra.mxu0 %v4573
        %4612 = vmatprep.subr.mxu0 0.0
        %4613 = vmatpush1.msra.mxu0 0.0
        %4614 = vmatprep.subr.mxu0 0.0
        %4615 = vmatpush1.msra.mxu0 0.0
        %4616 = vmatprep.subr.mxu0 0.0
        %4617 = vmatpush1.msra.mxu0 0.0
        %4618 = vmatprep.subr.mxu0 0.0
        %4619 = vmatpush1.msra.mxu0 0.0
        %4620 = vmatprep.subr.mxu0 0.0
        %4621 = vmatpush1.msra.mxu0 0.0
        %4622 = vmatprep.subr.mxu0 0.0
        %4623 = vmatpush1.msra.mxu0 0.0
        %4624 = vmatprep.subr.mxu0 0.0
        %4625 = vmatpush1.msra.mxu0 0.0
        %4626 = vmatprep.subr.mxu0 0.0
        %4627 = vmatpush1.msra.mxu0 0.0
        %4628 = vmatprep.subr.mxu0 0.0
        %4629 = vmatpush1.msra.mxu0 0.0
        %4630 = vmatprep.subr.mxu0 0.0
        %4631 = vmatpush1.msra.mxu0 0.0
        %4632 = vmatprep.subr.mxu0 0.0
        %4633 = vmatpush1.msra.mxu0 0.0
        %4634 = vmatprep.subr.mxu0 0.0
        %4635 = vmatpush1.msra.mxu0 0.0
        %4636 = vmatprep.subr.mxu0 0.0
        %4637 = vmatpush1.msra.mxu0 0.0
        %4638 = vmatprep.subr.mxu0 0.0
        %4639 = vmatpush1.msra.mxu0 0.0
        %4640 = vmatprep.subr.mxu0 0.0
        %4641 = vmatpush1.msra.mxu0 0.0
        %4642 = vmatprep.subr.mxu0 0.0
        %4643 = vmatpush1.msra.mxu0 0.0
        %4644 = vmatprep.subr.mxu0 0.0
        %4645 = vmatpush1.msra.mxu0 0.0
        %4646 = vmatprep.subr.mxu0 0.0
        %4647 = vmatpush1.msra.mxu0 0.0
        %4648 = vmatprep.subr.mxu0 0.0
        %4649 = vmatpush1.msra.mxu0 0.0
        %4650 = vmatprep.subr.mxu0 0.0
        %4651 = vmatpush1.msra.mxu0 0.0
        %4652 = vmatprep.subr.mxu0 0.0
        %4653 = vmatpush1.msra.mxu0 0.0
        %4654 = vmatprep.subr.mxu0 0.0
        %4655 = vmatpush1.msra.mxu0 0.0
        %4656 = vmatprep.subr.mxu0 0.0
        %4657 = vmatpush1.msra.mxu0 0.0
        %4658 = vmatprep.subr.mxu0 0.0
        %4659 = vmatpush1.msra.mxu0 0.0
        %4660 = vmatprep.subr.mxu0 0.0
        %4661 = vmatpush1.msra.mxu0 0.0
        %4662 = vmatprep.subr.mxu0 0.0
        %4663 = vmatpush1.msra.mxu0 0.0
        %4664 = vmatprep.subr.mxu0 0.0
        %4665 = vmatpush1.msra.mxu0 0.0
        %4666 = vmatprep.subr.mxu0 0.0
        %4667 = vmatpush1.msra.mxu0 0.0
        %4668 = vmatprep.subr.mxu0 0.0
        %4669 = vmatpush1.msra.mxu0 0.0
        %4670 = vmatprep.subr.mxu0 0.0
        %4671 = vmatpush1.msra.mxu0 0.0
        %4672 = vmatprep.subr.mxu0 0.0
        %4673 = vmatpush1.msra.mxu0 0.0
        %4674 = vmatprep.mubr.f32.mxu0 0.0
        %4675 = vmatmul.mubr.f32.gmra.mrb[0].mxu0 %v4584
        %v4676 = vpop.f32.mrb[0].mxu0
        %v4677 = vadd.f32 0.0, %v4676
        %v4678 = vpop.f32.mrb[0].mxu0
        %4679 = vmatprep.mubr.f32.mxu0 0.0
        %4680 = vmatmul.mubr.f32.gmra.mrb[0].mxu0 %v4587
        %v4681 = vpop.f32.mrb[0].mxu0
        %v4682 = vadd.f32 0.0, %v4681
        %v4683 = vpop.f32.mrb[0].mxu0
        %4684 = vmatprep.mubr.f32.mxu0 0.0
        %4685 = vmatmul.mubr.f32.gmra.mrb[0].mxu0 %v4590
        %v4686 = vpop.f32.mrb[0].mxu0
        %v4687 = vadd.f32 0.0, %v4686
        %v4688 = vpop.f32.mrb[0].mxu0
        %4689 = vmatprep.mubr.f32.mxu0 0.0
        %4690 = vmatmul.mubr.f32.gmra.mrb[0].mxu0 %v4593
        %v4691 = vpop.f32.mrb[0].mxu0
        %v4692 = vadd.f32 0.0, %v4691
        %v4693 = vpop.f32.mrb[0].mxu0
        %4694 = vmatprep.mubr.f32.mxu0 0.0
        %4695 = vmatmul.mubr.f32.gmra.mrb[0].mxu0 %v4596
        %v4696 = vpop.f32.mrb[0].mxu0
        %v4697 = vadd.f32 0.0, %v4696
        %v4698 = vpop.f32.mrb[0].mxu0
        %4699 = vmatprep.mubr.f32.mxu0 0.0
        %4700 = vmatmul.mubr.f32.gmra.mrb[0].mxu0 %v4599
        %v4701 = vpop.f32.mrb[0].mxu0
        %v4702 = vadd.f32 0.0, %v4701
        %v4703 = vpop.f32.mrb[0].mxu0
        %4704 = vmatprep.mubr.f32.mxu0 0.0
        %4705 = vmatmul.mubr.f32.gmra.mrb[0].mxu0 %v4602
        %v4706 = vpop.f32.mrb[0].mxu0
        %v4707 = vadd.f32 0.0, %v4706
        %v4708 = vpop.f32.mrb[0].mxu0
        %4709 = vmatprep.mubr.f32.mxu0 0.0
        %4710 = vmatmul.mubr.f32.gmra.mrb[0].mxu0 %v4605
        %v4711 = vpop.f32.mrb[0].mxu0
        %v4712 = vadd.f32 0.0, %v4711
        %v4713 = vpop.f32.mrb[0].mxu0
        %4714 = vmatprep.mubr.f32.mxu0 0.0
        %4715 = vmatmul.mubr.f32.gmra.mrb[0].mxu0 %v4608
        %v4716 = vpop.f32.mrb[0].mxu0
        %v4717 = vadd.f32 0.0, %v4716
        %v4718 = vpop.f32.mrb[0].mxu0
        %4719 = vdwg.mxu0
        %v4720 = vld [vmem:[#allocation16] sm:$0xff]
        %v4721 = vld [vmem:[#allocation16 + $0x8] sm:$0xff]
        %v4722 = vld [vmem:[#allocation16 + $0x10] sm:$0xff]
        %v4723 = vld [vmem:[#allocation16 + $0x18] sm:$0xff]
        %v4724 = vld [vmem:[#allocation16 + $0x20] sm:$0xff]
        %v4725 = vld [vmem:[#allocation16 + $0x28] sm:$0xff]
        %v4726 = vld [vmem:[#allocation16 + $0x30] sm:$0xff]
        %v4727 = vld [vmem:[#allocation16 + $0x38] sm:$0xff]
        %s4728 = scalar_lea.vmem [#allocation16], 64
        %v4729 = vld [vmem:[%s4728] sm:$0xff]
        %v4730 = vld [vmem:[%s4728 + $0x8] sm:$0xff]
        %v4731 = vld [vmem:[%s4728 + $0x10] sm:$0xff]
        %v4732 = vld [vmem:[%s4728 + $0x18] sm:$0xff]
        %v4733 = vld [vmem:[%s4728 + $0x20] sm:$0xff]
        %v4734 = vld [vmem:[%s4728 + $0x28] sm:$0xff]
        %v4735 = vld [vmem:[%s4728 + $0x30] sm:$0xff]
        %v4736 = vld [vmem:[%s4728 + $0x38] sm:$0xff]
        %v4738 = vsel %vm2530, %v4682, 0
        %4740 = vmatprep.subr.mxu0 %v4730
        %4741 = vmatpush1.msra.mxu0 %v4729
        %4742 = vmatprep.subr.mxu0 %v4732
        %4743 = vmatpush1.msra.mxu0 %v4731
        %4744 = vmatprep.subr.mxu0 %v4734
        %4745 = vmatpush1.msra.mxu0 %v4733
        %4746 = vmatprep.subr.mxu0 %v4736
        %4747 = vmatpush1.msra.mxu0 %v4735
        %4748 = vmatprep.subr.mxu0 0.0
        %4749 = vmatpush1.msra.mxu0 0.0
        %4750 = vmatprep.subr.mxu0 0.0
        %4751 = vmatpush1.msra.mxu0 0.0
        %4752 = vmatprep.subr.mxu0 0.0
        %4753 = vmatpush1.msra.mxu0 0.0
        %4754 = vmatprep.subr.mxu0 0.0
        %4755 = vmatpush1.msra.mxu0 0.0
        %4756 = vmatprep.subr.mxu0 0.0
        %4757 = vmatpush1.msra.mxu0 0.0
        %4758 = vmatprep.subr.mxu0 0.0
        %4759 = vmatpush1.msra.mxu0 0.0
        %4760 = vmatprep.subr.mxu0 0.0
        %4761 = vmatpush1.msra.mxu0 0.0
        %4762 = vmatprep.subr.mxu0 0.0
        %4763 = vmatpush1.msra.mxu0 0.0
        %4764 = vmatprep.subr.mxu0 0.0
        %4765 = vmatpush1.msra.mxu0 0.0
        %4766 = vmatprep.subr.mxu0 0.0
        %4767 = vmatpush1.msra.mxu0 0.0
        %4768 = vmatprep.subr.mxu0 0.0
        %4769 = vmatpush1.msra.mxu0 0.0
        %4770 = vmatprep.subr.mxu0 0.0
        %4771 = vmatpush1.msra.mxu0 0.0
        %4772 = vmatprep.subr.mxu0 0.0
        %4773 = vmatpush1.msra.mxu0 0.0
        %4774 = vmatprep.subr.mxu0 0.0
        %4775 = vmatpush1.msra.mxu0 0.0
        %4776 = vmatprep.subr.mxu0 0.0
        %4777 = vmatpush1.msra.mxu0 0.0
        %4778 = vmatprep.subr.mxu0 0.0
        %4779 = vmatpush1.msra.mxu0 0.0
        %4780 = vmatprep.subr.mxu0 0.0
        %4781 = vmatpush1.msra.mxu0 0.0
        %4782 = vmatprep.subr.mxu0 0.0
        %4783 = vmatpush1.msra.mxu0 0.0
        %4784 = vmatprep.subr.mxu0 0.0
        %4785 = vmatpush1.msra.mxu0 0.0
        %4786 = vmatprep.subr.mxu0 0.0
        %4787 = vmatpush1.msra.mxu0 0.0
        %4788 = vmatprep.subr.mxu0 0.0
        %4789 = vmatpush1.msra.mxu0 0.0
        %4790 = vmatprep.subr.mxu0 0.0
        %4791 = vmatpush1.msra.mxu0 0.0
        %4792 = vmatprep.subr.mxu0 0.0
        %4793 = vmatpush1.msra.mxu0 0.0
        %4794 = vmatprep.subr.mxu0 0.0
        %4795 = vmatpush1.msra.mxu0 0.0
        %4796 = vmatprep.subr.mxu0 0.0
        %4797 = vmatpush1.msra.mxu0 0.0
        %4798 = vmatprep.subr.mxu0 0.0
        %4799 = vmatpush1.msra.mxu0 0.0
        %4800 = vmatprep.subr.mxu0 0.0
        %4801 = vmatpush1.msra.mxu0 0.0
        %4802 = vmatprep.subr.mxu0 0.0
        %4803 = vmatpush1.msra.mxu0 0.0
        %4804 = vmatprep.mubr.f32.mxu0 0.0
        %4805 = vmatmul.mubr.f32.gmra.mrb[0].mxu0 %v4738
        %v4806 = vpop.f32.mrb[0].mxu0
        %v4807 = vadd.f32 0.0, %v4806
        %v4808 = vpop.f32.mrb[0].mxu0
        %v4809 = vadd.f32 0.0, %v4808
        %4810 = vdwg.mxu0
        %v4812 = vsel %vm2530, %v4677, 0
        %4814 = vmatprep.subr.mxu0 %v4721
        %4815 = vmatpush1.msra.mxu0 %v4720
        %4816 = vmatprep.subr.mxu0 %v4723
        %4817 = vmatpush1.msra.mxu0 %v4722
        %4818 = vmatprep.subr.mxu0 %v4725
        %4819 = vmatpush1.msra.mxu0 %v4724
        %4820 = vmatprep.subr.mxu0 %v4727
        %4821 = vmatpush1.msra.mxu0 %v4726
        %4822 = vmatprep.subr.mxu0 0.0
        %4823 = vmatpush1.msra.mxu0 0.0
        %4824 = vmatprep.subr.mxu0 0.0
        %4825 = vmatpush1.msra.mxu0 0.0
        %4826 = vmatprep.subr.mxu0 0.0
        %4827 = vmatpush1.msra.mxu0 0.0
        %4828 = vmatprep.subr.mxu0 0.0
        %4829 = vmatpush1.msra.mxu0 0.0
        %4830 = vmatprep.subr.mxu0 0.0
        %4831 = vmatpush1.msra.mxu0 0.0
        %4832 = vmatprep.subr.mxu0 0.0
        %4833 = vmatpush1.msra.mxu0 0.0
        %4834 = vmatprep.subr.mxu0 0.0
        %4835 = vmatpush1.msra.mxu0 0.0
        %4836 = vmatprep.subr.mxu0 0.0
        %4837 = vmatpush1.msra.mxu0 0.0
        %4838 = vmatprep.subr.mxu0 0.0
        %4839 = vmatpush1.msra.mxu0 0.0
        %4840 = vmatprep.subr.mxu0 0.0
        %4841 = vmatpush1.msra.mxu0 0.0
        %4842 = vmatprep.subr.mxu0 0.0
        %4843 = vmatpush1.msra.mxu0 0.0
        %4844 = vmatprep.subr.mxu0 0.0
        %4845 = vmatpush1.msra.mxu0 0.0
        %4846 = vmatprep.subr.mxu0 0.0
        %4847 = vmatpush1.msra.mxu0 0.0
        %4848 = vmatprep.subr.mxu0 0.0
        %4849 = vmatpush1.msra.mxu0 0.0
        %4850 = vmatprep.subr.mxu0 0.0
        %4851 = vmatpush1.msra.mxu0 0.0
        %4852 = vmatprep.subr.mxu0 0.0
        %4853 = vmatpush1.msra.mxu0 0.0
        %4854 = vmatprep.subr.mxu0 0.0
        %4855 = vmatpush1.msra.mxu0 0.0
        %4856 = vmatprep.subr.mxu0 0.0
        %4857 = vmatpush1.msra.mxu0 0.0
        %4858 = vmatprep.subr.mxu0 0.0
        %4859 = vmatpush1.msra.mxu0 0.0
        %4860 = vmatprep.subr.mxu0 0.0
        %4861 = vmatpush1.msra.mxu0 0.0
        %4862 = vmatprep.subr.mxu0 0.0
        %4863 = vmatpush1.msra.mxu0 0.0
        %4864 = vmatprep.subr.mxu0 0.0
        %4865 = vmatpush1.msra.mxu0 0.0
        %4866 = vmatprep.subr.mxu0 0.0
        %4867 = vmatpush1.msra.mxu0 0.0
        %4868 = vmatprep.subr.mxu0 0.0
        %4869 = vmatpush1.msra.mxu0 0.0
        %4870 = vmatprep.subr.mxu0 0.0
        %4871 = vmatpush1.msra.mxu0 0.0
        %4872 = vmatprep.subr.mxu0 0.0
        %4873 = vmatpush1.msra.mxu0 0.0
        %4874 = vmatprep.subr.mxu0 0.0
        %4875 = vmatpush1.msra.mxu0 0.0
        %4876 = vmatprep.subr.mxu0 0.0
        %4877 = vmatpush1.msra.mxu0 0.0
        %4878 = vmatprep.mubr.f32.mxu0 0.0
        %4879 = vmatmul.mubr.f32.gmra.mrb[0].mxu0 %v4812
        %v4880 = vpop.f32.mrb[0].mxu0
        %v4881 = vadd.f32 %v4807, %v4880
        %v4882 = vpop.f32.mrb[0].mxu0
        %v4883 = vadd.f32 %v4809, %v4882
        %4884 = vdwg.mxu0
        %s4885 = scalar_lea.vmem [#allocation16], 128
        %v4886 = vld [vmem:[%s4885] sm:$0xff]
        %v4887 = vld [vmem:[%s4885 + $0x8] sm:$0xff]
        %v4888 = vld [vmem:[%s4885 + $0x10] sm:$0xff]
        %v4889 = vld [vmem:[%s4885 + $0x18] sm:$0xff]
        %v4890 = vld [vmem:[%s4885 + $0x20] sm:$0xff]
        %v4891 = vld [vmem:[%s4885 + $0x28] sm:$0xff]
        %v4892 = vld [vmem:[%s4885 + $0x30] sm:$0xff]
        %v4893 = vld [vmem:[%s4885 + $0x38] sm:$0xff]
        %v4895 = vsel %vm2530, %v4687, 0
        %4897 = vmatprep.subr.mxu0 %v4887
        %4898 = vmatpush1.msra.mxu0 %v4886
        %4899 = vmatprep.subr.mxu0 %v4889
        %4900 = vmatpush1.msra.mxu0 %v4888
        %4901 = vmatprep.subr.mxu0 %v4891
        %4902 = vmatpush1.msra.mxu0 %v4890
        %4903 = vmatprep.subr.mxu0 %v4893
        %4904 = vmatpush1.msra.mxu0 %v4892
        %4905 = vmatprep.subr.mxu0 0.0
        %4906 = vmatpush1.msra.mxu0 0.0
        %4907 = vmatprep.subr.mxu0 0.0
        %4908 = vmatpush1.msra.mxu0 0.0
        %4909 = vmatprep.subr.mxu0 0.0
        %4910 = vmatpush1.msra.mxu0 0.0
        %4911 = vmatprep.subr.mxu0 0.0
        %4912 = vmatpush1.msra.mxu0 0.0
        %4913 = vmatprep.subr.mxu0 0.0
        %4914 = vmatpush1.msra.mxu0 0.0
        %4915 = vmatprep.subr.mxu0 0.0
        %4916 = vmatpush1.msra.mxu0 0.0
        %4917 = vmatprep.subr.mxu0 0.0
        %4918 = vmatpush1.msra.mxu0 0.0
        %4919 = vmatprep.subr.mxu0 0.0
        %4920 = vmatpush1.msra.mxu0 0.0
        %4921 = vmatprep.subr.mxu0 0.0
        %4922 = vmatpush1.msra.mxu0 0.0
        %4923 = vmatprep.subr.mxu0 0.0
        %4924 = vmatpush1.msra.mxu0 0.0
        %4925 = vmatprep.subr.mxu0 0.0
        %4926 = vmatpush1.msra.mxu0 0.0
        %4927 = vmatprep.subr.mxu0 0.0
        %4928 = vmatpush1.msra.mxu0 0.0
        %4929 = vmatprep.subr.mxu0 0.0
        %4930 = vmatpush1.msra.mxu0 0.0
        %4931 = vmatprep.subr.mxu0 0.0
        %4932 = vmatpush1.msra.mxu0 0.0
        %4933 = vmatprep.subr.mxu0 0.0
        %4934 = vmatpush1.msra.mxu0 0.0
        %4935 = vmatprep.subr.mxu0 0.0
        %4936 = vmatpush1.msra.mxu0 0.0
        %4937 = vmatprep.subr.mxu0 0.0
        %4938 = vmatpush1.msra.mxu0 0.0
        %4939 = vmatprep.subr.mxu0 0.0
        %4940 = vmatpush1.msra.mxu0 0.0
        %4941 = vmatprep.subr.mxu0 0.0
        %4942 = vmatpush1.msra.mxu0 0.0
        %4943 = vmatprep.subr.mxu0 0.0
        %4944 = vmatpush1.msra.mxu0 0.0
        %4945 = vmatprep.subr.mxu0 0.0
        %4946 = vmatpush1.msra.mxu0 0.0
        %4947 = vmatprep.subr.mxu0 0.0
        %4948 = vmatpush1.msra.mxu0 0.0
        %4949 = vmatprep.subr.mxu0 0.0
        %4950 = vmatpush1.msra.mxu0 0.0
        %4951 = vmatprep.subr.mxu0 0.0
        %4952 = vmatpush1.msra.mxu0 0.0
        %4953 = vmatprep.subr.mxu0 0.0
        %4954 = vmatpush1.msra.mxu0 0.0
        %4955 = vmatprep.subr.mxu0 0.0
        %4956 = vmatpush1.msra.mxu0 0.0
        %4957 = vmatprep.subr.mxu0 0.0
        %4958 = vmatpush1.msra.mxu0 0.0
        %4959 = vmatprep.subr.mxu0 0.0
        %4960 = vmatpush1.msra.mxu0 0.0
        %4961 = vmatprep.mubr.f32.mxu0 0.0
        %4962 = vmatmul.mubr.f32.gmra.mrb[0].mxu0 %v4895
        %v4963 = vpop.f32.mrb[0].mxu0
        %v4964 = vadd.f32 0.0, %v4963
        %v4965 = vpop.f32.mrb[0].mxu0
        %v4966 = vadd.f32 0.0, %v4965
        %4967 = vdwg.mxu0
        %v4968 = vadd.f32 %v4881, %v4964
        %v4969 = vadd.f32 %v4883, %v4966
        %s4970 = scalar_lea.vmem [#allocation16], 192
        %v4971 = vld [vmem:[%s4970] sm:$0xff]
        %v4972 = vld [vmem:[%s4970 + $0x8] sm:$0xff]
        %v4973 = vld [vmem:[%s4970 + $0x10] sm:$0xff]
        %v4974 = vld [vmem:[%s4970 + $0x18] sm:$0xff]
        %v4975 = vld [vmem:[%s4970 + $0x20] sm:$0xff]
        %v4976 = vld [vmem:[%s4970 + $0x28] sm:$0xff]
        %v4977 = vld [vmem:[%s4970 + $0x30] sm:$0xff]
        %v4978 = vld [vmem:[%s4970 + $0x38] sm:$0xff]
        %v4980 = vsel %vm2530, %v4692, 0
        %4982 = vmatprep.subr.mxu0 %v4972
        %4983 = vmatpush1.msra.mxu0 %v4971
        %4984 = vmatprep.subr.mxu0 %v4974
        %4985 = vmatpush1.msra.mxu0 %v4973
        %4986 = vmatprep.subr.mxu0 %v4976
        %4987 = vmatpush1.msra.mxu0 %v4975
        %4988 = vmatprep.subr.mxu0 %v4978
        %4989 = vmatpush1.msra.mxu0 %v4977
        %4990 = vmatprep.subr.mxu0 0.0
        %4991 = vmatpush1.msra.mxu0 0.0
        %4992 = vmatprep.subr.mxu0 0.0
        %4993 = vmatpush1.msra.mxu0 0.0
        %4994 = vmatprep.subr.mxu0 0.0
        %4995 = vmatpush1.msra.mxu0 0.0
        %4996 = vmatprep.subr.mxu0 0.0
        %4997 = vmatpush1.msra.mxu0 0.0
        %4998 = vmatprep.subr.mxu0 0.0
        %4999 = vmatpush1.msra.mxu0 0.0
        %5000 = vmatprep.subr.mxu0 0.0
        %5001 = vmatpush1.msra.mxu0 0.0
        %5002 = vmatprep.subr.mxu0 0.0
        %5003 = vmatpush1.msra.mxu0 0.0
        %5004 = vmatprep.subr.mxu0 0.0
        %5005 = vmatpush1.msra.mxu0 0.0
        %5006 = vmatprep.subr.mxu0 0.0
        %5007 = vmatpush1.msra.mxu0 0.0
        %5008 = vmatprep.subr.mxu0 0.0
        %5009 = vmatpush1.msra.mxu0 0.0
        %5010 = vmatprep.subr.mxu0 0.0
        %5011 = vmatpush1.msra.mxu0 0.0
        %5012 = vmatprep.subr.mxu0 0.0
        %5013 = vmatpush1.msra.mxu0 0.0
        %5014 = vmatprep.subr.mxu0 0.0
        %5015 = vmatpush1.msra.mxu0 0.0
        %5016 = vmatprep.subr.mxu0 0.0
        %5017 = vmatpush1.msra.mxu0 0.0
        %5018 = vmatprep.subr.mxu0 0.0
        %5019 = vmatpush1.msra.mxu0 0.0
        %5020 = vmatprep.subr.mxu0 0.0
        %5021 = vmatpush1.msra.mxu0 0.0
        %5022 = vmatprep.subr.mxu0 0.0
        %5023 = vmatpush1.msra.mxu0 0.0
        %5024 = vmatprep.subr.mxu0 0.0
        %5025 = vmatpush1.msra.mxu0 0.0
        %5026 = vmatprep.subr.mxu0 0.0
        %5027 = vmatpush1.msra.mxu0 0.0
        %5028 = vmatprep.subr.mxu0 0.0
        %5029 = vmatpush1.msra.mxu0 0.0
        %5030 = vmatprep.subr.mxu0 0.0
        %5031 = vmatpush1.msra.mxu0 0.0
        %5032 = vmatprep.subr.mxu0 0.0
        %5033 = vmatpush1.msra.mxu0 0.0
        %5034 = vmatprep.subr.mxu0 0.0
        %5035 = vmatpush1.msra.mxu0 0.0
        %5036 = vmatprep.subr.mxu0 0.0
        %5037 = vmatpush1.msra.mxu0 0.0
        %5038 = vmatprep.subr.mxu0 0.0
        %5039 = vmatpush1.msra.mxu0 0.0
        %5040 = vmatprep.subr.mxu0 0.0
        %5041 = vmatpush1.msra.mxu0 0.0
        %5042 = vmatprep.subr.mxu0 0.0
        %5043 = vmatpush1.msra.mxu0 0.0
        %5044 = vmatprep.subr.mxu0 0.0
        %5045 = vmatpush1.msra.mxu0 0.0
        %5046 = vmatprep.mubr.f32.mxu0 0.0
        %5047 = vmatmul.mubr.f32.gmra.mrb[0].mxu0 %v4980
        %v5048 = vpop.f32.mrb[0].mxu0
        %v5049 = vadd.f32 0.0, %v5048
        %v5050 = vpop.f32.mrb[0].mxu0
        %v5051 = vadd.f32 0.0, %v5050
        %5052 = vdwg.mxu0
        %v5053 = vadd.f32 %v4968, %v5049
        %v5054 = vadd.f32 %v4969, %v5051
        %s5055 = scalar_lea.vmem [#allocation16], 256
        %v5056 = vld [vmem:[%s5055] sm:$0xff]
        %v5057 = vld [vmem:[%s5055 + $0x8] sm:$0xff]
        %v5058 = vld [vmem:[%s5055 + $0x10] sm:$0xff]
        %v5059 = vld [vmem:[%s5055 + $0x18] sm:$0xff]
        %v5060 = vld [vmem:[%s5055 + $0x20] sm:$0xff]
        %v5061 = vld [vmem:[%s5055 + $0x28] sm:$0xff]
        %v5062 = vld [vmem:[%s5055 + $0x30] sm:$0xff]
        %v5063 = vld [vmem:[%s5055 + $0x38] sm:$0xff]
        %v5065 = vsel %vm2530, %v4697, 0
        %5067 = vmatprep.subr.mxu0 %v5057
        %5068 = vmatpush1.msra.mxu0 %v5056
        %5069 = vmatprep.subr.mxu0 %v5059
        %5070 = vmatpush1.msra.mxu0 %v5058
        %5071 = vmatprep.subr.mxu0 %v5061
        %5072 = vmatpush1.msra.mxu0 %v5060
        %5073 = vmatprep.subr.mxu0 %v5063
        %5074 = vmatpush1.msra.mxu0 %v5062
        %5075 = vmatprep.subr.mxu0 0.0
        %5076 = vmatpush1.msra.mxu0 0.0
        %5077 = vmatprep.subr.mxu0 0.0
        %5078 = vmatpush1.msra.mxu0 0.0
        %5079 = vmatprep.subr.mxu0 0.0
        %5080 = vmatpush1.msra.mxu0 0.0
        %5081 = vmatprep.subr.mxu0 0.0
        %5082 = vmatpush1.msra.mxu0 0.0
        %5083 = vmatprep.subr.mxu0 0.0
        %5084 = vmatpush1.msra.mxu0 0.0
        %5085 = vmatprep.subr.mxu0 0.0
        %5086 = vmatpush1.msra.mxu0 0.0
        %5087 = vmatprep.subr.mxu0 0.0
        %5088 = vmatpush1.msra.mxu0 0.0
        %5089 = vmatprep.subr.mxu0 0.0
        %5090 = vmatpush1.msra.mxu0 0.0
        %5091 = vmatprep.subr.mxu0 0.0
        %5092 = vmatpush1.msra.mxu0 0.0
        %5093 = vmatprep.subr.mxu0 0.0
        %5094 = vmatpush1.msra.mxu0 0.0
        %5095 = vmatprep.subr.mxu0 0.0
        %5096 = vmatpush1.msra.mxu0 0.0
        %5097 = vmatprep.subr.mxu0 0.0
        %5098 = vmatpush1.msra.mxu0 0.0
        %5099 = vmatprep.subr.mxu0 0.0
        %5100 = vmatpush1.msra.mxu0 0.0
        %5101 = vmatprep.subr.mxu0 0.0
        %5102 = vmatpush1.msra.mxu0 0.0
        %5103 = vmatprep.subr.mxu0 0.0
        %5104 = vmatpush1.msra.mxu0 0.0
        %5105 = vmatprep.subr.mxu0 0.0
        %5106 = vmatpush1.msra.mxu0 0.0
        %5107 = vmatprep.subr.mxu0 0.0
        %5108 = vmatpush1.msra.mxu0 0.0
        %5109 = vmatprep.subr.mxu0 0.0
        %5110 = vmatpush1.msra.mxu0 0.0
        %5111 = vmatprep.subr.mxu0 0.0
        %5112 = vmatpush1.msra.mxu0 0.0
        %5113 = vmatprep.subr.mxu0 0.0
        %5114 = vmatpush1.msra.mxu0 0.0
        %5115 = vmatprep.subr.mxu0 0.0
        %5116 = vmatpush1.msra.mxu0 0.0
        %5117 = vmatprep.subr.mxu0 0.0
        %5118 = vmatpush1.msra.mxu0 0.0
        %5119 = vmatprep.subr.mxu0 0.0
        %5120 = vmatpush1.msra.mxu0 0.0
        %5121 = vmatprep.subr.mxu0 0.0
        %5122 = vmatpush1.msra.mxu0 0.0
        %5123 = vmatprep.subr.mxu0 0.0
        %5124 = vmatpush1.msra.mxu0 0.0
        %5125 = vmatprep.subr.mxu0 0.0
        %5126 = vmatpush1.msra.mxu0 0.0
        %5127 = vmatprep.subr.mxu0 0.0
        %5128 = vmatpush1.msra.mxu0 0.0
        %5129 = vmatprep.subr.mxu0 0.0
        %5130 = vmatpush1.msra.mxu0 0.0
        %5131 = vmatprep.mubr.f32.mxu0 0.0
        %5132 = vmatmul.mubr.f32.gmra.mrb[0].mxu0 %v5065
        %v5133 = vpop.f32.mrb[0].mxu0
        %v5134 = vadd.f32 0.0, %v5133
        %v5135 = vpop.f32.mrb[0].mxu0
        %v5136 = vadd.f32 0.0, %v5135
        %5137 = vdwg.mxu0
        %v5138 = vadd.f32 %v5053, %v5134
        %v5139 = vadd.f32 %v5054, %v5136
        %s5140 = scalar_lea.vmem [#allocation16], 320
        %v5141 = vld [vmem:[%s5140] sm:$0xff]
        %v5142 = vld [vmem:[%s5140 + $0x8] sm:$0xff]
        %v5143 = vld [vmem:[%s5140 + $0x10] sm:$0xff]
        %v5144 = vld [vmem:[%s5140 + $0x18] sm:$0xff]
        %v5145 = vld [vmem:[%s5140 + $0x20] sm:$0xff]
        %v5146 = vld [vmem:[%s5140 + $0x28] sm:$0xff]
        %v5147 = vld [vmem:[%s5140 + $0x30] sm:$0xff]
        %v5148 = vld [vmem:[%s5140 + $0x38] sm:$0xff]
        %v5150 = vsel %vm2530, %v4702, 0
        %5152 = vmatprep.subr.mxu0 %v5142
        %5153 = vmatpush1.msra.mxu0 %v5141
        %5154 = vmatprep.subr.mxu0 %v5144
        %5155 = vmatpush1.msra.mxu0 %v5143
        %5156 = vmatprep.subr.mxu0 %v5146
        %5157 = vmatpush1.msra.mxu0 %v5145
        %5158 = vmatprep.subr.mxu0 %v5148
        %5159 = vmatpush1.msra.mxu0 %v5147
        %5160 = vmatprep.subr.mxu0 0.0
        %5161 = vmatpush1.msra.mxu0 0.0
        %5162 = vmatprep.subr.mxu0 0.0
        %5163 = vmatpush1.msra.mxu0 0.0
        %5164 = vmatprep.subr.mxu0 0.0
        %5165 = vmatpush1.msra.mxu0 0.0
        %5166 = vmatprep.subr.mxu0 0.0
        %5167 = vmatpush1.msra.mxu0 0.0
        %5168 = vmatprep.subr.mxu0 0.0
        %5169 = vmatpush1.msra.mxu0 0.0
        %5170 = vmatprep.subr.mxu0 0.0
        %5171 = vmatpush1.msra.mxu0 0.0
        %5172 = vmatprep.subr.mxu0 0.0
        %5173 = vmatpush1.msra.mxu0 0.0
        %5174 = vmatprep.subr.mxu0 0.0
        %5175 = vmatpush1.msra.mxu0 0.0
        %5176 = vmatprep.subr.mxu0 0.0
        %5177 = vmatpush1.msra.mxu0 0.0
        %5178 = vmatprep.subr.mxu0 0.0
        %5179 = vmatpush1.msra.mxu0 0.0
        %5180 = vmatprep.subr.mxu0 0.0
        %5181 = vmatpush1.msra.mxu0 0.0
        %5182 = vmatprep.subr.mxu0 0.0
        %5183 = vmatpush1.msra.mxu0 0.0
        %5184 = vmatprep.subr.mxu0 0.0
        %5185 = vmatpush1.msra.mxu0 0.0
        %5186 = vmatprep.subr.mxu0 0.0
        %5187 = vmatpush1.msra.mxu0 0.0
        %5188 = vmatprep.subr.mxu0 0.0
        %5189 = vmatpush1.msra.mxu0 0.0
        %5190 = vmatprep.subr.mxu0 0.0
        %5191 = vmatpush1.msra.mxu0 0.0
        %5192 = vmatprep.subr.mxu0 0.0
        %5193 = vmatpush1.msra.mxu0 0.0
        %5194 = vmatprep.subr.mxu0 0.0
        %5195 = vmatpush1.msra.mxu0 0.0
        %5196 = vmatprep.subr.mxu0 0.0
        %5197 = vmatpush1.msra.mxu0 0.0
        %5198 = vmatprep.subr.mxu0 0.0
        %5199 = vmatpush1.msra.mxu0 0.0
        %5200 = vmatprep.subr.mxu0 0.0
        %5201 = vmatpush1.msra.mxu0 0.0
        %5202 = vmatprep.subr.mxu0 0.0
        %5203 = vmatpush1.msra.mxu0 0.0
        %5204 = vmatprep.subr.mxu0 0.0
        %5205 = vmatpush1.msra.mxu0 0.0
        %5206 = vmatprep.subr.mxu0 0.0
        %5207 = vmatpush1.msra.mxu0 0.0
        %5208 = vmatprep.subr.mxu0 0.0
        %5209 = vmatpush1.msra.mxu0 0.0
        %5210 = vmatprep.subr.mxu0 0.0
        %5211 = vmatpush1.msra.mxu0 0.0
        %5212 = vmatprep.subr.mxu0 0.0
        %5213 = vmatpush1.msra.mxu0 0.0
        %5214 = vmatprep.subr.mxu0 0.0
        %5215 = vmatpush1.msra.mxu0 0.0
        %5216 = vmatprep.mubr.f32.mxu0 0.0
        %5217 = vmatmul.mubr.f32.gmra.mrb[0].mxu0 %v5150
        %v5218 = vpop.f32.mrb[0].mxu0
        %v5219 = vadd.f32 0.0, %v5218
        %v5220 = vpop.f32.mrb[0].mxu0
        %v5221 = vadd.f32 0.0, %v5220
        %5222 = vdwg.mxu0
        %v5223 = vadd.f32 %v5138, %v5219
        %v5224 = vadd.f32 %v5139, %v5221
        %s5225 = scalar_lea.vmem [#allocation16], 384
        %v5226 = vld [vmem:[%s5225] sm:$0xff]
        %v5227 = vld [vmem:[%s5225 + $0x8] sm:$0xff]
        %v5228 = vld [vmem:[%s5225 + $0x10] sm:$0xff]
        %v5229 = vld [vmem:[%s5225 + $0x18] sm:$0xff]
        %v5230 = vld [vmem:[%s5225 + $0x20] sm:$0xff]
        %v5231 = vld [vmem:[%s5225 + $0x28] sm:$0xff]
        %v5232 = vld [vmem:[%s5225 + $0x30] sm:$0xff]
        %v5233 = vld [vmem:[%s5225 + $0x38] sm:$0xff]
        %v5235 = vsel %vm2530, %v4707, 0
        %5237 = vmatprep.subr.mxu0 %v5227
        %5238 = vmatpush1.msra.mxu0 %v5226
        %5239 = vmatprep.subr.mxu0 %v5229
        %5240 = vmatpush1.msra.mxu0 %v5228
        %5241 = vmatprep.subr.mxu0 %v5231
        %5242 = vmatpush1.msra.mxu0 %v5230
        %5243 = vmatprep.subr.mxu0 %v5233
        %5244 = vmatpush1.msra.mxu0 %v5232
        %5245 = vmatprep.subr.mxu0 0.0
        %5246 = vmatpush1.msra.mxu0 0.0
        %5247 = vmatprep.subr.mxu0 0.0
        %5248 = vmatpush1.msra.mxu0 0.0
        %5249 = vmatprep.subr.mxu0 0.0
        %5250 = vmatpush1.msra.mxu0 0.0
        %5251 = vmatprep.subr.mxu0 0.0
        %5252 = vmatpush1.msra.mxu0 0.0
        %5253 = vmatprep.subr.mxu0 0.0
        %5254 = vmatpush1.msra.mxu0 0.0
        %5255 = vmatprep.subr.mxu0 0.0
        %5256 = vmatpush1.msra.mxu0 0.0
        %5257 = vmatprep.subr.mxu0 0.0
        %5258 = vmatpush1.msra.mxu0 0.0
        %5259 = vmatprep.subr.mxu0 0.0
        %5260 = vmatpush1.msra.mxu0 0.0
        %5261 = vmatprep.subr.mxu0 0.0
        %5262 = vmatpush1.msra.mxu0 0.0
        %5263 = vmatprep.subr.mxu0 0.0
        %5264 = vmatpush1.msra.mxu0 0.0
        %5265 = vmatprep.subr.mxu0 0.0
        %5266 = vmatpush1.msra.mxu0 0.0
        %5267 = vmatprep.subr.mxu0 0.0
        %5268 = vmatpush1.msra.mxu0 0.0
        %5269 = vmatprep.subr.mxu0 0.0
        %5270 = vmatpush1.msra.mxu0 0.0
        %5271 = vmatprep.subr.mxu0 0.0
        %5272 = vmatpush1.msra.mxu0 0.0
        %5273 = vmatprep.subr.mxu0 0.0
        %5274 = vmatpush1.msra.mxu0 0.0
        %5275 = vmatprep.subr.mxu0 0.0
        %5276 = vmatpush1.msra.mxu0 0.0
        %5277 = vmatprep.subr.mxu0 0.0
        %5278 = vmatpush1.msra.mxu0 0.0
        %5279 = vmatprep.subr.mxu0 0.0
        %5280 = vmatpush1.msra.mxu0 0.0
        %5281 = vmatprep.subr.mxu0 0.0
        %5282 = vmatpush1.msra.mxu0 0.0
        %5283 = vmatprep.subr.mxu0 0.0
        %5284 = vmatpush1.msra.mxu0 0.0
        %5285 = vmatprep.subr.mxu0 0.0
        %5286 = vmatpush1.msra.mxu0 0.0
        %5287 = vmatprep.subr.mxu0 0.0
        %5288 = vmatpush1.msra.mxu0 0.0
        %5289 = vmatprep.subr.mxu0 0.0
        %5290 = vmatpush1.msra.mxu0 0.0
        %5291 = vmatprep.subr.mxu0 0.0
        %5292 = vmatpush1.msra.mxu0 0.0
        %5293 = vmatprep.subr.mxu0 0.0
        %5294 = vmatpush1.msra.mxu0 0.0
        %5295 = vmatprep.subr.mxu0 0.0
        %5296 = vmatpush1.msra.mxu0 0.0
        %5297 = vmatprep.subr.mxu0 0.0
        %5298 = vmatpush1.msra.mxu0 0.0
        %5299 = vmatprep.subr.mxu0 0.0
        %5300 = vmatpush1.msra.mxu0 0.0
        %5301 = vmatprep.mubr.f32.mxu0 0.0
        %5302 = vmatmul.mubr.f32.gmra.mrb[0].mxu0 %v5235
        %v5303 = vpop.f32.mrb[0].mxu0
        %v5304 = vadd.f32 0.0, %v5303
        %v5305 = vpop.f32.mrb[0].mxu0
        %v5306 = vadd.f32 0.0, %v5305
        %5307 = vdwg.mxu0
        %v5308 = vadd.f32 %v5223, %v5304
        %v5309 = vadd.f32 %v5224, %v5306
        %s5310 = scalar_lea.vmem [#allocation16], 448
        %v5311 = vld [vmem:[%s5310] sm:$0xff]
        %v5312 = vld [vmem:[%s5310 + $0x8] sm:$0xff]
        %v5313 = vld [vmem:[%s5310 + $0x10] sm:$0xff]
        %v5314 = vld [vmem:[%s5310 + $0x18] sm:$0xff]
        %v5315 = vld [vmem:[%s5310 + $0x20] sm:$0xff]
        %v5316 = vld [vmem:[%s5310 + $0x28] sm:$0xff]
        %v5317 = vld [vmem:[%s5310 + $0x30] sm:$0xff]
        %v5318 = vld [vmem:[%s5310 + $0x38] sm:$0xff]
        %v5320 = vsel %vm2530, %v4712, 0
        %5322 = vmatprep.subr.mxu0 %v5312
        %5323 = vmatpush1.msra.mxu0 %v5311
        %5324 = vmatprep.subr.mxu0 %v5314
        %5325 = vmatpush1.msra.mxu0 %v5313
        %5326 = vmatprep.subr.mxu0 %v5316
        %5327 = vmatpush1.msra.mxu0 %v5315
        %5328 = vmatprep.subr.mxu0 %v5318
        %5329 = vmatpush1.msra.mxu0 %v5317
        %5330 = vmatprep.subr.mxu0 0.0
        %5331 = vmatpush1.msra.mxu0 0.0
        %5332 = vmatprep.subr.mxu0 0.0
        %5333 = vmatpush1.msra.mxu0 0.0
        %5334 = vmatprep.subr.mxu0 0.0
        %5335 = vmatpush1.msra.mxu0 0.0
        %5336 = vmatprep.subr.mxu0 0.0
        %5337 = vmatpush1.msra.mxu0 0.0
        %5338 = vmatprep.subr.mxu0 0.0
        %5339 = vmatpush1.msra.mxu0 0.0
        %5340 = vmatprep.subr.mxu0 0.0
        %5341 = vmatpush1.msra.mxu0 0.0
        %5342 = vmatprep.subr.mxu0 0.0
        %5343 = vmatpush1.msra.mxu0 0.0
        %5344 = vmatprep.subr.mxu0 0.0
        %5345 = vmatpush1.msra.mxu0 0.0
        %5346 = vmatprep.subr.mxu0 0.0
        %5347 = vmatpush1.msra.mxu0 0.0
        %5348 = vmatprep.subr.mxu0 0.0
        %5349 = vmatpush1.msra.mxu0 0.0
        %5350 = vmatprep.subr.mxu0 0.0
        %5351 = vmatpush1.msra.mxu0 0.0
        %5352 = vmatprep.subr.mxu0 0.0
        %5353 = vmatpush1.msra.mxu0 0.0
        %5354 = vmatprep.subr.mxu0 0.0
        %5355 = vmatpush1.msra.mxu0 0.0
        %5356 = vmatprep.subr.mxu0 0.0
        %5357 = vmatpush1.msra.mxu0 0.0
        %5358 = vmatprep.subr.mxu0 0.0
        %5359 = vmatpush1.msra.mxu0 0.0
        %5360 = vmatprep.subr.mxu0 0.0
        %5361 = vmatpush1.msra.mxu0 0.0
        %5362 = vmatprep.subr.mxu0 0.0
        %5363 = vmatpush1.msra.mxu0 0.0
        %5364 = vmatprep.subr.mxu0 0.0
        %5365 = vmatpush1.msra.mxu0 0.0
        %5366 = vmatprep.subr.mxu0 0.0
        %5367 = vmatpush1.msra.mxu0 0.0
        %5368 = vmatprep.subr.mxu0 0.0
        %5369 = vmatpush1.msra.mxu0 0.0
        %5370 = vmatprep.subr.mxu0 0.0
        %5371 = vmatpush1.msra.mxu0 0.0
        %5372 = vmatprep.subr.mxu0 0.0
        %5373 = vmatpush1.msra.mxu0 0.0
        %5374 = vmatprep.subr.mxu0 0.0
        %5375 = vmatpush1.msra.mxu0 0.0
        %5376 = vmatprep.subr.mxu0 0.0
        %5377 = vmatpush1.msra.mxu0 0.0
        %5378 = vmatprep.subr.mxu0 0.0
        %5379 = vmatpush1.msra.mxu0 0.0
        %5380 = vmatprep.subr.mxu0 0.0
        %5381 = vmatpush1.msra.mxu0 0.0
        %5382 = vmatprep.subr.mxu0 0.0
        %5383 = vmatpush1.msra.mxu0 0.0
        %5384 = vmatprep.subr.mxu0 0.0
        %5385 = vmatpush1.msra.mxu0 0.0
        %5386 = vmatprep.mubr.f32.mxu0 0.0
        %5387 = vmatmul.mubr.f32.gmra.mrb[0].mxu0 %v5320
        %v5388 = vpop.f32.mrb[0].mxu0
        %v5389 = vadd.f32 0.0, %v5388
        %v5390 = vpop.f32.mrb[0].mxu0
        %v5391 = vadd.f32 0.0, %v5390
        %5392 = vdwg.mxu0
        %v5393 = vadd.f32 %v5308, %v5389
        %v5394 = vadd.f32 %v5309, %v5391
        %s5395 = scalar_lea.vmem [#allocation16], 512
        %v5396 = vld [vmem:[%s5395] sm:$0xff]
        %v5397 = vld [vmem:[%s5395 + $0x8] sm:$0xff]
        %v5398 = vld [vmem:[%s5395 + $0x10] sm:$0xff]
        %v5399 = vld [vmem:[%s5395 + $0x18] sm:$0xff]
        %v5400 = vld [vmem:[%s5395 + $0x20] sm:$0xff]
        %v5401 = vld [vmem:[%s5395 + $0x28] sm:$0xff]
        %v5402 = vld [vmem:[%s5395 + $0x30] sm:$0xff]
        %v5403 = vld [vmem:[%s5395 + $0x38] sm:$0xff]
        %v5405 = vsel %vm2530, %v4717, 0
        %5407 = vmatprep.subr.mxu0 %v5397
        %5408 = vmatpush1.msra.mxu0 %v5396
        %5409 = vmatprep.subr.mxu0 %v5399
        %5410 = vmatpush1.msra.mxu0 %v5398
        %5411 = vmatprep.subr.mxu0 %v5401
        %5412 = vmatpush1.msra.mxu0 %v5400
        %5413 = vmatprep.subr.mxu0 %v5403
        %5414 = vmatpush1.msra.mxu0 %v5402
        %5415 = vmatprep.subr.mxu0 0.0
        %5416 = vmatpush1.msra.mxu0 0.0
        %5417 = vmatprep.subr.mxu0 0.0
        %5418 = vmatpush1.msra.mxu0 0.0
        %5419 = vmatprep.subr.mxu0 0.0
        %5420 = vmatpush1.msra.mxu0 0.0
        %5421 = vmatprep.subr.mxu0 0.0
        %5422 = vmatpush1.msra.mxu0 0.0
        %5423 = vmatprep.subr.mxu0 0.0
        %5424 = vmatpush1.msra.mxu0 0.0
        %5425 = vmatprep.subr.mxu0 0.0
        %5426 = vmatpush1.msra.mxu0 0.0
        %5427 = vmatprep.subr.mxu0 0.0
        %5428 = vmatpush1.msra.mxu0 0.0
        %5429 = vmatprep.subr.mxu0 0.0
        %5430 = vmatpush1.msra.mxu0 0.0
        %5431 = vmatprep.subr.mxu0 0.0
        %5432 = vmatpush1.msra.mxu0 0.0
        %5433 = vmatprep.subr.mxu0 0.0
        %5434 = vmatpush1.msra.mxu0 0.0
        %5435 = vmatprep.subr.mxu0 0.0
        %5436 = vmatpush1.msra.mxu0 0.0
        %5437 = vmatprep.subr.mxu0 0.0
        %5438 = vmatpush1.msra.mxu0 0.0
        %5439 = vmatprep.subr.mxu0 0.0
        %5440 = vmatpush1.msra.mxu0 0.0
        %5441 = vmatprep.subr.mxu0 0.0
        %5442 = vmatpush1.msra.mxu0 0.0
        %5443 = vmatprep.subr.mxu0 0.0
        %5444 = vmatpush1.msra.mxu0 0.0
        %5445 = vmatprep.subr.mxu0 0.0
        %5446 = vmatpush1.msra.mxu0 0.0
        %5447 = vmatprep.subr.mxu0 0.0
        %5448 = vmatpush1.msra.mxu0 0.0
        %5449 = vmatprep.subr.mxu0 0.0
        %5450 = vmatpush1.msra.mxu0 0.0
        %5451 = vmatprep.subr.mxu0 0.0
        %5452 = vmatpush1.msra.mxu0 0.0
        %5453 = vmatprep.subr.mxu0 0.0
        %5454 = vmatpush1.msra.mxu0 0.0
        %5455 = vmatprep.subr.mxu0 0.0
        %5456 = vmatpush1.msra.mxu0 0.0
        %5457 = vmatprep.subr.mxu0 0.0
        %5458 = vmatpush1.msra.mxu0 0.0
        %5459 = vmatprep.subr.mxu0 0.0
        %5460 = vmatpush1.msra.mxu0 0.0
        %5461 = vmatprep.subr.mxu0 0.0
        %5462 = vmatpush1.msra.mxu0 0.0
        %5463 = vmatprep.subr.mxu0 0.0
        %5464 = vmatpush1.msra.mxu0 0.0
        %5465 = vmatprep.subr.mxu0 0.0
        %5466 = vmatpush1.msra.mxu0 0.0
        %5467 = vmatprep.subr.mxu0 0.0
        %5468 = vmatpush1.msra.mxu0 0.0
        %5469 = vmatprep.subr.mxu0 0.0
        %5470 = vmatpush1.msra.mxu0 0.0
        %5471 = vmatprep.mubr.f32.mxu0 0.0
        %5472 = vmatmul.mubr.f32.gmra.mrb[0].mxu0 %v5405
        %v5473 = vpop.f32.mrb[0].mxu0
        %v5474 = vadd.f32 0.0, %v5473
        %v5475 = vpop.f32.mrb[0].mxu0
        %v5476 = vadd.f32 0.0, %v5475
        %5477 = vdwg.mxu0
        %v5478 = vadd.f32 %v5393, %v5474
        %v5479 = vadd.f32 %v5394, %v5476
        %v5480 = vld [vmem:[%s19] sm:$0x3]
        %v5481 = vld [vmem:[%s20] sm:$0x3]
        %v5482 = vrot.slane %v5478, 4
        %v5483 = vadd.f32 %v5478, %v5482
        %v5484 = vrot.slane %v5483, 2
        %v5485 = vadd.f32 %v5483, %v5484
        %v5486 = vrot.slane %v5485, 1
        %v5487 = vadd.f32 %v5485, %v5486
        %v5488 = vrot.slane %v5479, 4
        %v5489 = vadd.f32 %v5479, %v5488
        %v5490 = vrot.slane %v5489, 2
        %v5491 = vadd.f32 %v5489, %v5490
        %v5492 = vrot.slane %v5491, 1
        %v5493 = vadd.f32 %v5491, %v5492
        %v5494 = vmul.f32 %v5478, %v5478
        %v5495 = vmul.f32 %v5479, %v5479
        %v5496 = vrot.slane %v5494, 4
        %v5497 = vadd.f32 %v5494, %v5496
        %v5498 = vrot.slane %v5497, 2
        %v5499 = vadd.f32 %v5497, %v5498
        %v5500 = vrot.slane %v5499, 1
        %v5501 = vadd.f32 %v5499, %v5500
        %v5502 = vrot.slane %v5495, 4
        %v5503 = vadd.f32 %v5495, %v5502
        %v5504 = vrot.slane %v5503, 2
        %v5505 = vadd.f32 %v5503, %v5504
        %v5506 = vrot.slane %v5505, 1
        %v5507 = vadd.f32 %v5505, %v5506
        %v5508 = vadd.s32 %v2455, 128
        %v5509 = vmul.u32 %v2453, 256
        %vm5510 = vcmp.ge.s32.totalorder %v2455, %v5509
        %vm5511 = vcmp.ge.s32.totalorder %v5508, %v5509
        %v5512 = vmul.u32 %v2458, 256
        %vm5513 = vcmp.lt.s32.totalorder %v2455, %v5512
        %vm5514 = vcmp.lt.s32.totalorder %v5508, %v5512
        %vm5515 = vmand %vm5510, %vm5513
        %vm5516 = vmand %vm5511, %vm5514
        %v5517 = vsel %vm5515, 1, 0
        %v5518 = vsel %vm5516, 1, 0
        %v5519 = vcvt.s32.f32 %v5517
        %v5520 = vcvt.s32.f32 %v5518
        %v5521 = vmul.f32 %v5519, %v5487
        %v5522 = vmul.f32 %v5520, %v5493
        %vm5523 = vcmask 1040384
        %v5524 = vsel %vm5523, %v5521, 0.0
        %v5525 = vsel %vm5523, %v5522, 0.0
        %v5526 = vadd.f32 %v5524, %v5525
        %5527 = vadd.xlane.f32.xlu0 %v5526
        %v5528 = vpop.xlane.xlu0 %5527
        %v5529 = vrcp.pop 2048.0
        %v5530 = vmul.f32 %v5528, %v5529
        %v5531 = vmul.f32 %v5519, %v5501
        %v5532 = vmul.f32 %v5520, %v5507
        %v5533 = vsel %vm5523, %v5531, 0.0
        %v5534 = vsel %vm5523, %v5532, 0.0
        %v5535 = vadd.f32 %v5533, %v5534
        %5536 = vadd.xlane.f32.xlu0 %v5535
        %v5537 = vpop.xlane.xlu0 %5536
        %v5538 = vmul.f32 %v5537, %v5529
        %v5539 = vmul.f32 %v5530, %v5530
        %v5540 = vsub.f32 %v5538, %v5539
        %v5541 = vmax.f32 %v5540, 0.0
        %v5542 = vadd.f32 %v5541, 1e-05
        %v5543 = vrsqrt.pop %v5542
        %v5544 = vmul.f32 %v5519, %v5530
        %v5545 = vmul.f32 %v5520, %v5530
        %v5546 = vadd.f32 %v5544, 0.0
        %v5547 = vadd.f32 %v5545, 0.0
        %v5548 = vmul.f32 %v5519, %v5543
        %v5549 = vmul.f32 %v5520, %v5543
        %v5550 = vadd.f32 %v5548, 0.0
        %v5551 = vadd.f32 %v5549, 0.0
        %v5552 = vlaneseq
        %v5553 = vshrl.u32 %v5552, 7
        %v5554 = vsub.s32 0, %v5553
        %v5555 = vrot.slane %v5546, %v5554
        %v5556 = vlaneseq
        %v5557 = vshrl.u32 %v5556, 7
        %v5558 = vsub.s32 0, %v5557
        %v5559 = vrot.slane %v5547, %v5558
        %v5560 = vsub.f32 %v5478, %v5555
        %v5561 = vsub.f32 %v5479, %v5559
        %v5562 = vlaneseq
        %v5563 = vshrl.u32 %v5562, 7
        %v5564 = vsub.s32 0, %v5563
        %v5565 = vrot.slane %v5550, %v5564
        %v5566 = vlaneseq
        %v5567 = vshrl.u32 %v5566, 7
        %v5568 = vsub.s32 0, %v5567
        %v5569 = vrot.slane %v5551, %v5568
        %v5570 = vmul.f32 %v5560, %v5565
        %v5571 = vmul.f32 %v5561, %v5569
        %v5573 = vlaneseq
        %v5574 = vshrl.u32 %v5573, 7
        %v5575 = vsub.s32 0, %v5574
        %v5576 = vrot.slane %v5480, %v5575
        %v5577 = vlaneseq
        %v5578 = vshrl.u32 %v5577, 7
        %v5579 = vsub.s32 1, %v5578
        %v5580 = vrot.slane %v5480, %v5579
        %v5583 = vmul.f32 %v5570, %v5576
        %v5584 = vmul.f32 %v5571, %v5580
        %v5586 = vlaneseq
        %v5587 = vshrl.u32 %v5586, 7
        %v5588 = vsub.s32 0, %v5587
        %v5589 = vrot.slane %v5481, %v5588
        %v5590 = vlaneseq
        %v5591 = vshrl.u32 %v5590, 7
        %v5592 = vsub.s32 1, %v5591
        %v5593 = vrot.slane %v5481, %v5592
        %v5596 = vadd.f32 %v5583, %v5589
        %v5597 = vadd.f32 %v5584, %v5593
        %v5598 = vmax.f32 %v5596, 0.0
        %v5599 = vmax.f32 %v5597, 0.0
        %5600 = vst [vmem:[%s768] sm:$0xff] %v5598
        %5601 = vst [vmem:[%s768 + $0x8] sm:$0xff] %v5599
        %s5602 = sand.u32 %s494, 1
        %s5603 = scalar_lea.sflag [#allocation4], %s5602
        %s5604 = sand.u32 %s494, 1
        %s5605 = smul.addr %s5604, 16
        %s5606 = scalar_lea.vmem [#allocation17], %s5605
        // Predicated region
        $region141: #{tpu_custom_call.1} parent=103 // pred_check
          %p5607 = pneg %p504
        $region142: #{tpu_custom_call.1} parent=103 // pred_check_branch
          %5609 = sbr.rel (%p5607) target = $region144
        $region143: #{tpu_custom_call.1} parent=103 // pred_region
          %s5611 = ssub.s32 256, 256
          %5612 = vsyncadd %s5603, %s5611
          %s5613 = smul.addr %s40, 2
          %s5614 = smul.addr %s5613, 128
          %s5615 = scalar_lea.hbm %s21, %s5614
          %s5617 = sshll.u32 %s5606, 4
          %s5618 = int_to_ptr.vmem [resolvable:$true] %s5617
          %5620 = dma.vmem_to_hbm [thread:$0]  %s5618, 256, %s5615, %s5603
        $region144: #{tpu_custom_call.1} parent=103 // pred_fallthru
          _
      $region104: #{tpu_custom_call.1} parent=5 // pred_fallthru
        _
      %p5621 = scmp.le.s32.totalorder 2, %s35
      // Predicated region
      $region145: #{tpu_custom_call.1} parent=5 // pred_check
        %p5622 = pneg %p5621
      $region146: #{tpu_custom_call.1} parent=5 // pred_check_branch
        %5624 = sbr.rel (%p5622) target = $region148
      $region147: #{tpu_custom_call.1} parent=5 // pred_region
        %s5625 = ssub.s32 %s35, 2
        // Predicated region
        $region149: #{tpu_custom_call.1} parent=147 // pred_check
          %p5626 = pneg %p510
        $region150: #{tpu_custom_call.1} parent=147 // pred_check_branch
          %5628 = sbr.rel (%p5626) target = $region152
        $region151: #{tpu_custom_call.1} parent=147 // pred_region
          %s5629 = sand.u32 %s495, 1
          %s5630 = scalar_lea.sflag [#allocation4], %s5629
          %s5631 = sand.u32 %s495, 1
          %s5632 = smul.addr %s5631, 16
          %s5633 = scalar_lea.vmem [#allocation17], %s5632
          %5634 = dma.done %s5630, 256
        $region152: #{tpu_custom_call.1} parent=147 // pred_fallthru
          _
      $region148: #{tpu_custom_call.1} parent=5 // pred_fallthru
        _
    $region6: #{tpu_custom_call.1} parent=1 // loop_footer
      %s39 = sadd.s32 1, %s35
    $region7: #{tpu_custom_call.1} parent=1 // loop_footer_branch
      %34 = sbr.rel target = $region3
    $region8: #{tpu_custom_call.1} parent=1 // loop_exit
      _
    %5635 = vsyncpa [#allocation3], 1
    %s5636 = scalar_lea.sflag [#allocation3], 1
    %5637 = vsyncpa %s5636, 1
    %5638 = vsyncpa [#allocation6], 1
    %5639 = vsyncpa [#allocation9], 1
    %5640 = vsyncpa [#allocation12], 1
    %5641 = vsyncpa [#allocation15], 1
    %5642 = vsyncpa [#allocation4], 1
    %s5643 = scalar_lea.sflag [#allocation4], 1
    %5644 = vsyncpa %s5643, 1

</llo_original>
